<compile_context>
chip_gen: v6e
topology: v6e:2x2x1
jax: 0.10.0
libtpu: 0.0.40
codegen_flags: <defaults>
</compile_context>

<pallas_src>
import functools
import numpy as np

import jax
import jax.numpy as jnp
from jax.experimental import pallas as pl
from jax.experimental.pallas import tpu as pltpu

EPS = 1e-5
PRELU_ALPHA = 0.25            # torch nn.PReLU() default init
ENCODER_ACT = "prelu"         # encoder_relu=False -> nn.PReLU
DECODER_ACT = "relu"          # decoder_relu=True  -> nn.ReLU
SS3_DILATIONS = (1, 2, 5, 9, 2, 5, 9, 17)

_LANE = 128
_MSUB = 16                    # M padding base (bf16 native sublane tile)
_VMEM_LIMIT = 32 * 1024 * 1024


def _device_kind():
    try:
        return jax.devices()[0].device_kind.lower()
    except Exception:
        return ""


_KIND = _device_kind()
if "v7" in _KIND:
    # 2 TensorCores/chip: smaller M tile so 'parallel' axes have extent >= 2;
    # spare VMEM spent on a deeper K tile.
    _TM_MAX, _TN_MAX, _TK_MAX = 128, 256, 1024
elif "v5e" in _KIND or ("v5" in _KIND and "lite" in _KIND):
    # 128-wide MXU: a 256-wide N tile only adds padding/writeback.
    _TM_MAX, _TN_MAX, _TK_MAX = 256, 128, 512
else:
    _TM_MAX, _TN_MAX, _TK_MAX = 256, 256, 512


def _round_up(x, m):
    return ((x + m - 1) // m) * m


def _pad_tile(n, base, max_tile):
    """Return (padded_extent, tile) with tile dividing padded_extent."""
    npad = _round_up(max(int(n), 1), base)
    if npad <= max_tile:
        return npad, npad
    return _round_up(npad, max_tile), max_tile


# ---------------------------------------------------------------------------
# Pallas kernels
# ---------------------------------------------------------------------------
def _apply_act(y, act, alpha):
    if act == "relu":
        return jnp.maximum(y, 0.0)
    if act == "prelu":
        return jnp.where(y >= 0.0, y, alpha * y)
    return y


def _matmul_fused_kernel(a_ref, w_ref, shift_ref, *rest, act, alpha,
                         has_res_pre, has_mul, has_add):
    # rest = ([res_pre_ref], [mul_ref], [add_ref], o_ref, acc_ref)
    rest = list(rest)
    acc_ref = rest.pop()
    o_ref = rest.pop()
    res_pre_ref = rest.pop(0) if has_res_pre else None
    mul_ref = rest.pop(0) if has_mul else None
    add_ref = rest.pop(0) if has_add else None

    k = pl.program_id(2)

    @pl.when(k == 0)
    def _():
        acc_ref[...] = jnp.zeros_like(acc_ref)

    acc_ref[...] += jnp.dot(a_ref[...], w_ref[...],
                            preferred_element_type=jnp.float32)

    @pl.when(k == pl.num_programs(2) - 1)
    def _():
        y = acc_ref[...] + shift_ref[...]          # scale folded into weights
        if has_res_pre:
            y = y + res_pre_ref[...].astype(jnp.float32)
        y = _apply_act(y, act, alpha)
        if has_mul:
            y = y * mul_ref[...].astype(jnp.float32)
        if has_add:
            y = y + add_ref[...].astype(jnp.float32)
        o_ref[...] = y.astype(o_ref.dtype)


def _matvec_fused_kernel(a_ref, w_ref, bias_ref, *rest, act, alpha, has_res):
    # Cout=1 conv: VPU multiply + lane reduction (no MXU column padding waste).
    rest = list(rest)
    acc_ref = rest.pop()
    o_ref = rest.pop()
    res_ref = rest.pop(0) if has_res else None

    k = pl.program_id(1)

    @pl.when(k == 0)
    def _():
        acc_ref[...] = jnp.zeros_like(acc_ref)

    a = a_ref[...].astype(jnp.float32)
    w = w_ref[...].astype(jnp.float32)
    acc_ref[...] += jnp.sum(a * w, axis=-1, keepdims=True)

    @pl.when(k == pl.num_programs(1) - 1)
    def _():
        y = acc_ref[...] + bias_ref[...]
        y = _apply_act(y, act, alpha)
        if has_res:                                 # APN: add AFTER activation
            y = y + res_ref[...].astype(jnp.float32)
        o_ref[...] = y.astype(o_ref.dtype)


def _pool_affine_act_kernel(a_ref, b_ref, c_ref, d_ref, s_ref, t_ref, o_ref,
                            *, act, alpha):
    m = jnp.maximum(jnp.maximum(a_ref[...], b_ref[...]),
                    jnp.maximum(c_ref[...], d_ref[...])).astype(jnp.float32)
    o_ref[...] = _apply_act(m * s_ref[...] + t_ref[...], act,
                            alpha).astype(o_ref.dtype)


# ---------------------------------------------------------------------------
# Pallas wrappers
# ---------------------------------------------------------------------------
def _pallas_matmul_fused(A, Wm, shift, act, *, residual_pre=None,
                         residual_mul=None, residual_add=None,
                         alpha=PRELU_ALPHA, out_dtype=jnp.bfloat16):
    """out = act(A @ Wm + shift [+res_pre]) [*mul] [+add], grid-tiled, bf16 MXU."""
    M, K = A.shape
    Cout = Wm.shape[1]
    Mp, tm = _pad_tile(M, _MSUB, _TM_MAX)
    Kp, tk = _pad_tile(K, _LANE, _TK_MAX)
    Np, tn = _pad_tile(Cout, _LANE, _TN_MAX)

    A_p = jnp.pad(A, ((0, Mp - M), (0, Kp - K))).astype(jnp.bfloat16)
    W_p = jnp.pad(Wm.astype(jnp.float32),
                  ((0, Kp - K), (0, Np - Cout))).astype(jnp.bfloat16)
    t_p = jnp.pad(shift.astype(jnp.float32), (0, Np - Cout)).reshape(1, Np)

    in_specs = [
        pl.BlockSpec((tm, tk), lambda i, j, k: (i, k)),
        pl.BlockSpec((tk, tn), lambda i, j, k: (k, j)),
        pl.BlockSpec((1, tn), lambda i, j, k: (0, j)),
    ]
    args = [A_p, W_p, t_p]

    tile_spec = pl.BlockSpec((tm, tn), lambda i, j, k: (i, j))
    has_pre = residual_pre is not None
    has_mul = residual_mul is not None
    has_add = residual_add is not None
    if has_pre:
        args.append(jnp.pad(residual_pre.astype(jnp.bfloat16),
                            ((0, Mp - M), (0, Np - Cout))))
        in_specs.append(tile_spec)
    if has_mul:
        args.append(jnp.pad(residual_mul.astype(jnp.float32),
                            ((0, Mp - M), (0, Np - Cout))))
        in_specs.append(tile_spec)
    if has_add:
        args.append(jnp.pad(residual_add.astype(jnp.float32),
                            ((0, Mp - M), (0, Np - Cout))))
        in_specs.append(tile_spec)

    kernel = functools.partial(_matmul_fused_kernel, act=act, alpha=alpha,
                               has_res_pre=has_pre, has_mul=has_mul,
                               has_add=has_add)
    out = pl.pallas_call(
        kernel,
        grid=(Mp // tm, Np // tn, Kp // tk),
        in_specs=in_specs,
        out_specs=pl.BlockSpec((tm, tn), lambda i, j, k: (i, j)),
        out_shape=jax.ShapeDtypeStruct((Mp, Np), out_dtype),
        scratch_shapes=[pltpu.VMEM((tm, tn), jnp.float32)],
        compiler_params=pltpu.CompilerParams(
            dimension_semantics=("parallel", "parallel", "arbitrary"),
            vmem_limit_bytes=_VMEM_LIMIT),
    )(*args)
    return out[:M, :Cout]


def _pallas_matvec_fused(A, wvec, bias, act, residual_post=None,
                         alpha=PRELU_ALPHA, out_dtype=jnp.float32):
    """Cout=1 conv: out = act(A @ w + b) [+ residual_post]."""
    M, K = A.shape
    Mp, tm = _pad_tile(M, _MSUB, _TM_MAX)
    Kp, tk = _pad_tile(K, _LANE, _TK_MAX)

    A_p = jnp.pad(A, ((0, Mp - M), (0, Kp - K)))
    w_p = jnp.pad(wvec.astype(jnp.float32), (0, Kp - K)).reshape(1, Kp)
    b_p = bias.astype(jnp.float32).reshape(1, 1)

    in_specs = [pl.BlockSpec((tm, tk), lambda i, k: (i, k)),
                pl.BlockSpec((1, tk), lambda i, k: (0, k)),
                pl.BlockSpec((1, 1), lambda i, k: (0, 0))]
    args = [A_p, w_p, b_p]
    has_res = residual_post is not None
    if has_res:
        in_specs.append(pl.BlockSpec((tm, 1), lambda i, k: (i, 0)))
        args.append(jnp.pad(residual_post.astype(jnp.float32),
                            ((0, Mp - M), (0, 0))))

    kernel = functools.partial(_matvec_fused_kernel, act=act, alpha=alpha,
                               has_res=has_res)
    out = pl.pallas_call(
        kernel,
        grid=(Mp // tm, Kp // tk),
        in_specs=in_specs,
        out_specs=pl.BlockSpec((tm, 1), lambda i, k: (i, 0)),
        out_shape=jax.ShapeDtypeStruct((Mp, 1), out_dtype),
        scratch_shapes=[pltpu.VMEM((tm, 1), jnp.float32)],
        compiler_params=pltpu.CompilerParams(
            dimension_semantics=("parallel", "arbitrary"),
            vmem_limit_bytes=_VMEM_LIMIT),
    )(*args)
    return out[:M, 0]


def _max_pool2_affine_act(x, scale, shift, act, alpha=PRELU_ALPHA):
    """2x2 max-pool (floor mode) + per-channel affine + activation, one launch."""
    N, H, W, C = x.shape
    Hh, Wh = H // 2, W // 2
    xs = x[:, :Hh * 2, :Wh * 2, :]
    parts = [xs[:, 0::2, 0::2, :], xs[:, 0::2, 1::2, :],
             xs[:, 1::2, 0::2, :], xs[:, 1::2, 1::2, :]]
    M = N * Hh * Wh
    Cp = _round_up(C, _LANE)
    Mp, tm = _pad_tile(M, _MSUB, 512)
    flats = [jnp.pad(p.reshape(M, C), ((0, Mp - M), (0, Cp - C)))
             for p in parts]
    s2 = jnp.pad(scale.astype(jnp.float32), (0, Cp - C)).reshape(1, Cp)
    t2 = jnp.pad(shift.astype(jnp.float32), (0, Cp - C)).reshape(1, Cp)
    out = pl.pallas_call(
        functools.partial(_pool_affine_act_kernel, act=act, alpha=alpha),
        grid=(Mp // tm,),
        in_specs=[pl.BlockSpec((tm, Cp), lambda i: (i, 0))] * 4
                 + [pl.BlockSpec((1, Cp), lambda i: (0, 0))] * 2,
        out_specs=pl.BlockSpec((tm, Cp), lambda i: (i, 0)),
        out_shape=jax.ShapeDtypeStruct((Mp, Cp), jnp.bfloat16),
        compiler_params=pltpu.CompilerParams(
            dimension_semantics=("parallel",),
            vmem_limit_bytes=_VMEM_LIMIT),
    )(*flats, s2, t2)
    return out[:M, :C].reshape(N, Hh, Wh, C)


# ---------------------------------------------------------------------------
# Convolution (im2col glue + fused Pallas kernels)
# ---------------------------------------------------------------------------
def _extract_patches(x, kh, kw, stride, padding, dilation):
    N, H, W, C = x.shape
    sh, sw = stride
    ph, pw = padding
    dh, dw = dilation
    xp = jnp.pad(x, ((0, 0), (ph, ph), (pw, pw), (0, 0)))
    Hp, Wp = H + 2 * ph, W + 2 * pw
    Ho = (Hp - dh * (kh - 1) - 1) // sh + 1
    Wo = (Wp - dw * (kw - 1) - 1) // sw + 1
    cols = []
    for i in range(kh):
        for j in range(kw):
            h0, w0 = i * dh, j * dw
            sl = xp[:, h0:h0 + sh * (Ho - 1) + 1:sh,
                    w0:w0 + sw * (Wo - 1) + 1:sw, :]
            cols.append(sl)
    patches = jnp.stack(cols, axis=3)                 # (N, Ho, Wo, kh*kw, C)
    return patches.reshape(N, Ho, Wo, kh * kw * C), Ho, Wo


def _bn_affine(bn):
    s = bn["gamma"] / jnp.sqrt(bn["var"] + EPS)
    return s, bn["beta"] - s * bn["mean"]


def _fold_affine(conv, bn):
    """Fold conv bias + optional eval-mode BN into (scale, shift)."""
    b = conv["b"]
    cout = conv["w"].shape[0]
    if bn is None:
        return jnp.ones((cout,), jnp.float32), b
    s, t = _bn_affine(bn)
    return s, s * b + t


def _weight_matrix(w):
    cout, cin, kh, kw = w.shape
    return jnp.transpose(w, (2, 3, 1, 0)).reshape(kh * kw * cin, cout)


def conv2d(x, conv, *, stride=(1, 1), padding=(0, 0), dilation=(1, 1),
           bn=None, act="none", residual=None, residual_mul=None,
           residual_add=None, alpha=PRELU_ALPHA, out_dtype=jnp.bfloat16):
    w = conv["w"]
    Cout, Cin, kh, kw = w.shape
    N = x.shape[0]
    A, Ho, Wo = _extract_patches(x, kh, kw, stride, padding, dilation)
    M = N * Ho * Wo
    scale, shift = _fold_affine(conv, bn)
    Wm = _weight_matrix(w) * scale[None, :]           # fold scale into weights
    rp = None if residual is None else residual.reshape(M, Cout)
    rm = None if residual_mul is None else residual_mul.reshape(M, Cout)
    ra = None if residual_add is None else residual_add.reshape(M, Cout)
    out = _pallas_matmul_fused(A.reshape(M, -1), Wm, shift, act,
                               residual_pre=rp, residual_mul=rm,
                               residual_add=ra, alpha=alpha,
                               out_dtype=out_dtype)
    return out.reshape(N, Ho, Wo, Cout)


def conv2d_single(x, conv, *, stride=(1, 1), padding=(0, 0), dilation=(1, 1),
                  act="none", residual_post=None, alpha=PRELU_ALPHA):
    """Cout=1 conv via the VPU matvec kernel (APN attention pyramid)."""
    w = conv["w"]
    Cout, Cin, kh, kw = w.shape
    N = x.shape[0]
    A, Ho, Wo = _extract_patches(x, kh, kw, stride, padding, dilation)
    M = N * Ho * Wo
    res = None if residual_post is None else residual_post.reshape(M, 1)
    out = _pallas_matvec_fused(A.reshape(M, -1), _weight_matrix(w).reshape(-1),
                               conv["b"], act, residual_post=res, alpha=alpha)
    return out.reshape(N, Ho, Wo, 1)


def conv_pair(x1, conv_a, pad_a, dil_a, bn_a,
              x2, conv_b, pad_b, dil_b, bn_b,
              act, residual=None, alpha=PRELU_ALPHA):
    """Two same-resolution convs (SSnbt left/right branches) batched into one
    block-diagonal matmul; output channels = [branch_a_out, branch_b_out]."""
    wa, wb = conv_a["w"], conv_b["w"]
    ca_out, ca_in, kha, kwa = wa.shape
    cb_out, cb_in, khb, kwb = wb.shape
    N = x1.shape[0]

    Aa, Ho, Wo = _extract_patches(x1, kha, kwa, (1, 1), pad_a, dil_a)
    Ab, _, _ = _extract_patches(x2, khb, kwb, (1, 1), pad_b, dil_b)
    Ka, Kb = kha * kwa * ca_in, khb * kwb * cb_in
    M = N * Ho * Wo
    A = jnp.concatenate([Aa.reshape(M, Ka), Ab.reshape(M, Kb)], axis=1)

    sa, ta = _fold_affine(conv_a, bn_a)
    sb, shb = _fold_affine(conv_b, bn_b)
    Wma = _weight_matrix(wa) * sa[None, :]
    Wmb = _weight_matrix(wb) * sb[None, :]
    Wm = jnp.concatenate([
        jnp.concatenate([Wma, jnp.zeros((Ka, cb_out), Wma.dtype)], axis=1),
        jnp.concatenate([jnp.zeros((Kb, ca_out), Wmb.dtype), Wmb], axis=1),
    ], axis=0)
    shift = jnp.concatenate([ta, shb])

    res2 = None if residual is None else residual.reshape(M, ca_out + cb_out)
    out = _pallas_matmul_fused(A, Wm, shift, act, residual_pre=res2,
                               alpha=alpha)
    return out.reshape(N, Ho, Wo, ca_out + cb_out)


# ---------------------------------------------------------------------------
# Parameter init (deterministic, synthetic)
# ---------------------------------------------------------------------------
class KeyGen:
    def __init__(self, seed):
        self.key = jax.random.PRNGKey(seed)

    def __call__(self):
        self.key, k = jax.random.split(self.key)
        return k


def init_conv(kg, cout, cin, kh, kw):
    fan_in = cin * kh * kw
    w = jax.random.normal(kg(), (cout, cin, kh, kw), jnp.float32) / np.sqrt(fan_in)
    b = jax.random.normal(kg(), (cout,), jnp.float32) * 0.01
    return {"w": w, "b": b}


def init_bn(c):
    return {"gamma": jnp.ones((c,), jnp.float32), "beta": jnp.zeros((c,), jnp.float32),
            "mean": jnp.zeros((c,), jnp.float32), "var": jnp.ones((c,), jnp.float32)}


def init_downsample(kg, cin, cout):
    return {"conv": init_conv(kg, cout - cin, cin, 3, 3), "bn": init_bn(cout)}


def init_ssnbt(kg, ch):
    h = ch // 2
    return {
        "l1": init_conv(kg, h, h, 3, 1), "l2": init_conv(kg, h, h, 1, 3), "bn_l1": init_bn(h),
        "l3": init_conv(kg, h, h, 3, 1), "l4": init_conv(kg, h, h, 1, 3), "bn_l2": init_bn(h),
        "r1": init_conv(kg, h, h, 1, 3), "r2": init_conv(kg, h, h, 3, 1), "bn_r1": init_bn(h),
        "r3": init_conv(kg, h, h, 1, 3), "r4": init_conv(kg, h, h, 3, 1), "bn_r2": init_bn(h),
    }


def init_apn(kg, cin, nclasses):
    return {
        "branch1": init_conv(kg, nclasses, cin, 1, 1),
        "mid": init_conv(kg, nclasses, cin, 1, 1),
        "down1": init_conv(kg, 1, cin, 7, 7),
        "down2": init_conv(kg, 1, 1, 5, 5),
        "down3a": init_conv(kg, 1, 1, 3, 3),
        "down3b": init_conv(kg, 1, 1, 3, 3),
        "conv2": init_conv(kg, 1, 1, 5, 5),
        "conv1": init_conv(kg, 1, 1, 7, 7),
    }


def init_lednet(seed=0, in_channels=3, n_classes=22):
    kg = KeyGen(seed)
    return {
        "ds1": init_downsample(kg, in_channels, 32),
        "ss1": [init_ssnbt(kg, 32) for _ in range(3)],
        "ds2": init_downsample(kg, 32, 64),
        "ss2": [init_ssnbt(kg, 64) for _ in range(2)],
        "ds3": init_downsample(kg, 64, 128),
        "ss3": [init_ssnbt(kg, 128) for _ in range(8)],
        "apn": init_apn(kg, 128, n_classes),
    }


# ---------------------------------------------------------------------------
# Blocks
# ---------------------------------------------------------------------------
def downsample_block(x, p, act):
    c_conv = p["conv"]["w"].shape[0]
    bn = p["bn"]
    # BN over concat([conv, pool]) splits channel-wise: the conv part is folded
    # into the conv matmul epilogue; the pool part is fused into the pool kernel.
    bn_conv = {k: v[:c_conv] for k, v in bn.items()}
    s_pool, t_pool = _bn_affine({k: v[c_conv:] for k, v in bn.items()})

    c = conv2d(x, p["conv"], stride=(2, 2), padding=(1, 1), bn=bn_conv, act=act)
    pooled = _max_pool2_affine_act(x, s_pool, t_pool, act)
    return jnp.concatenate([c, pooled], axis=-1)       # cat([conv, pool], channels)


def channel_shuffle(x, groups):
    N, H, W, C = x.shape
    return x.reshape(N, H, W, groups, C // groups).swapaxes(3, 4).reshape(N, H, W, C)


def ssnbt_block(x, p, act, groups, d):
    C = x.shape[-1]
    h = C // 2
    res = x
    x1, x2 = x[..., :h], x[..., h:]
    # step 1: left (3,1) | right (1,3)
    y = conv_pair(x1, p["l1"], (1, 0), (1, 1), None,
                  x2, p["r1"], (0, 1), (1, 1), None, act)
    x1, x2 = y[..., :h], y[..., h:]
    # step 2: left (1,3)+BN | right (3,1)+BN
    y = conv_pair(x1, p["l2"], (0, 1), (1, 1), p["bn_l1"],
                  x2, p["r2"], (1, 0), (1, 1), p["bn_r1"], act)
    x1, x2 = y[..., :h], y[..., h:]
    # step 3: left dilated (3,1) | right dilated (1,3)
    y = conv_pair(x1, p["l3"], (d, 0), (d, 1), None,
                  x2, p["r3"], (0, d), (1, d), None, act)
    x1, x2 = y[..., :h], y[..., h:]
    # step 4: left dilated (1,3)+BN | right dilated (3,1)+BN,
    # residual add + activation fused into the matmul epilogue.
    y = conv_pair(x1, p["l4"], (0, d), (1, d), p["bn_l2"],
                  x2, p["r4"], (d, 0), (d, 1), p["bn_r2"], act, residual=res)
    # TODO(synk): Dropout2d(drop_prob) is identity in eval mode; not applied.
    return channel_shuffle(y, groups)


def _resize(x, h, w):
    N, _, _, C = x.shape
    return jax.image.resize(x, (N, h, w, C), method="bilinear")


def apn_block(x, p, act):
    N, H, W, _ = x.shape
    nclasses = p["mid"]["w"].shape[0]
    # global-pool branch
    b1 = jnp.mean(x.astype(jnp.float32), axis=(1, 2), keepdims=True)
    b1 = conv2d(b1, p["branch1"], act="none", out_dtype=jnp.float32)
    b1 = _resize(b1, H, W)
    # attention pyramid: Cout=1 convs on the VPU matvec path
    x1 = conv2d_single(x, p["down1"], stride=(2, 2), padding=(3, 3), act=act)
    x2 = conv2d_single(x1, p["down2"], stride=(2, 2), padding=(2, 2), act=act)
    x3 = conv2d_single(x2, p["down3a"], stride=(2, 2), padding=(1, 1), act=act)
    x3 = conv2d_single(x3, p["down3b"], padding=(1, 1), act=act)
    x3 = _resize(x3, max(H // 4, 1), max(W // 4, 1))
    # conv2 with the (post-activation) add of x3 fused into its epilogue
    y = conv2d_single(x2, p["conv2"], padding=(2, 2), act=act, residual_post=x3)
    y = _resize(y, H // 2, W // 2)
    # conv1 with the (post-activation) add of y fused into its epilogue
    y = conv2d_single(x1, p["conv1"], padding=(3, 3), act=act, residual_post=y)
    y = _resize(y, H, W)
    ybroad = jnp.broadcast_to(y, (N, H, W, nclasses))
    # mid 1x1 conv with the attention multiply + global-branch add fused into
    # its epilogue: out = mid(x) * y + b1
    # TODO(synk): exact APN composition (per-conv BN / final 8x upsample) not
    # shown in the provided source; canonical LEDNet APN used, output kept at
    # H/8 resolution.
    return conv2d(x, p["mid"], act="none", residual_mul=ybroad,
                  residual_add=b1, out_dtype=jnp.float32)


def lednet_forward(params, x_nchw):
    x = jnp.transpose(x_nchw, (0, 2, 3, 1))            # NCHW -> NHWC
    x = downsample_block(x, params["ds1"], ENCODER_ACT)
    for p in params["ss1"]:
        x = ssnbt_block(x, p, ENCODER_ACT, groups=4, d=1)
    x = downsample_block(x, params["ds2"], ENCODER_ACT)
    for p in params["ss2"]:
        x = ssnbt_block(x, p, ENCODER_ACT, groups=4, d=1)
    x = downsample_block(x, params["ds3"], ENCODER_ACT)
    for p, d in zip(params["ss3"], SS3_DILATIONS):
        x = ssnbt_block(x, p, ENCODER_ACT, groups=8, d=d)
    out = apn_block(x, params["apn"], DECODER_ACT)
    return jnp.transpose(out, (0, 3, 1, 2))            # NHWC -> NCHW (N, n_classes, H/8, W/8)


if __name__ == "__main__":
    batch, in_ch, image_dim, n_classes = 2, 3, 32, 22
    key = jax.random.PRNGKey(0)
    x = jax.random.normal(key, (batch, in_ch, image_dim, image_dim), jnp.float32)
    params = init_lednet(seed=0, in_channels=in_ch, n_classes=n_classes)
    fwd = jax.jit(lednet_forward)
    out = fwd(params, x)
    jax.block_until_ready(out)
    assert out.shape == (batch, n_classes, image_dim // 8, image_dim // 8), out.shape
    assert bool(jnp.all(jnp.isfinite(out)))
    print("KERNEL_OK")
</pallas_src>

<mosaic_0001>
module attributes {stable_mosaic.version = 11 : i64} {
  func.func @_matmul_fused_kernel(%arg0: i32, %arg1: i32, %arg2: i32, %arg3: memref<256x128xbf16, #tpu.memory_space<vmem>>, %arg4: memref<128x128xbf16, #tpu.memory_space<vmem>>, %arg5: memref<1x128xf32, #tpu.memory_space<vmem>>, %arg6: memref<256x128xbf16, #tpu.memory_space<vmem>>, %arg7: memref<256x128xf32, #tpu.memory_space<vmem>>) attributes {dimension_semantics = [#tpu.dimension_semantics<parallel>, #tpu.dimension_semantics<parallel>, #tpu.dimension_semantics<arbitrary>], iteration_bounds = array<i64: 2, 1, 1>, scalar_prefetch = 0 : i64, scratch_operands = 1 : i64, tpu.core_type = #tpu.core_type<tc>, window_params = [{transform_indices = @transform_0, window_bounds = array<i64: 256, 128>}, {transform_indices = @transform_1, window_bounds = array<i64: 128, 128>}, {transform_indices = @transform_2, window_bounds = array<i64: 1, 128>}, {transform_indices = @transform_3, window_bounds = array<i64: 256, 128>}]} {
    %c0_i32 = arith.constant 0 : i32
    %0 = arith.cmpi eq, %arg2, %c0_i32 : i32
    %1 = arith.extui %0 : i1 to i32
    %c0_i32_0 = arith.constant 0 : i32
    %2 = arith.cmpi ne, %1, %c0_i32_0 : i32
    scf.if %2 {
      %cst_10 = arith.constant 0.000000e+00 : f32
      %12 = vector.broadcast %cst_10 : f32 to vector<256x128xf32>
      %c0_11 = arith.constant 0 : index
      %c0_12 = arith.constant 0 : index
      %13 = vector.load %arg7[%c0_11, %c0_12] : memref<256x128xf32, #tpu.memory_space<vmem>>, vector<256x128xf32>
      tpu.vector_store %arg7[%c0_11, %c0_12], %12 {strides = array<i32>} : memref<256x128xf32, #tpu.memory_space<vmem>>, vector<256x128xf32>,
    } else {
    }
    %c0 = arith.constant 0 : index
    %c0_1 = arith.constant 0 : index
    %3 = vector.load %arg7[%c0, %c0_1] : memref<256x128xf32, #tpu.memory_space<vmem>>, vector<256x128xf32>
    %c0_2 = arith.constant 0 : index
    %c0_3 = arith.constant 0 : index
    %4 = vector.load %arg3[%c0_2, %c0_3] : memref<256x128xbf16, #tpu.memory_space<vmem>>, vector<256x128xbf16>
    %c0_4 = arith.constant 0 : index
    %c0_5 = arith.constant 0 : index
    %5 = vector.load %arg4[%c0_4, %c0_5] : memref<128x128xbf16, #tpu.memory_space<vmem>>, vector<128x128xbf16>
    %cst = arith.constant dense<0.000000e+00> : vector<256x128xf32>
    %6 = tpu.matmul %4, %5, %cst {dimension_numbers = #tpu.dot_dimension_numbers<[1], [0], [0], [1], [0, 0, 1, 1], [], []>} : vector<256x128xbf16>, vector<128x128xbf16>, vector<256x128xf32> -> vector<256x128xf32>
    %7 = arith.addf %3, %6 : vector<256x128xf32>
    %c0_6 = arith.constant 0 : index
    %c0_7 = arith.constant 0 : index
    %8 = vector.load %arg7[%c0_6, %c0_7] : memref<256x128xf32, #tpu.memory_space<vmem>>, vector<256x128xf32>
    tpu.vector_store %arg7[%c0_6, %c0_7], %7 {strides = array<i32>} : memref<256x128xf32, #tpu.memory_space<vmem>>, vector<256x128xf32>,
    %c0_i32_8 = arith.constant 0 : i32
    %9 = arith.cmpi eq, %arg2, %c0_i32_8 : i32
    %10 = arith.extui %9 : i1 to i32
    %c0_i32_9 = arith.constant 0 : i32
    %11 = arith.cmpi ne, %10, %c0_i32_9 : i32
    scf.if %11 {
      %c0_10 = arith.constant 0 : index
      %c0_11 = arith.constant 0 : index
      %12 = vector.load %arg7[%c0_10, %c0_11] : memref<256x128xf32, #tpu.memory_space<vmem>>, vector<256x128xf32>
      %c0_12 = arith.constant 0 : index
      %c0_13 = arith.constant 0 : index
      %13 = vector.load %arg5[%c0_12, %c0_13] : memref<1x128xf32, #tpu.memory_space<vmem>>, vector<1x128xf32>
      %14 = vector.broadcast %13 : vector<1x128xf32> to vector<256x128xf32>
      %15 = arith.addf %12, %14 : vector<256x128xf32>
      %cst_14 = arith.constant 0.000000e+00 : f32
      %16 = vector.broadcast %cst_14 : f32 to vector<256x128xf32>
      %17 = arith.cmpf oge, %15, %16 : vector<256x128xf32>
      %cst_15 = arith.constant 2.500000e-01 : f32
      %18 = vector.broadcast %cst_15 : f32 to vector<256x128xf32>
      %19 = arith.mulf %18, %15 : vector<256x128xf32>
      %20 = arith.select %17, %15, %19 : vector<256x128xi1>, vector<256x128xf32>
      %21 = arith.truncf %20 : vector<256x128xf32> to vector<256x128xbf16>
      %c0_16 = arith.constant 0 : index
      %c0_17 = arith.constant 0 : index
      %22 = vector.load %arg6[%c0_16, %c0_17] : memref<256x128xbf16, #tpu.memory_space<vmem>>, vector<256x128xbf16>
      tpu.vector_store %arg6[%c0_16, %c0_17], %21 {strides = array<i32>} : memref<256x128xbf16, #tpu.memory_space<vmem>>, vector<256x128xbf16>,
    } else {
    }
    return
  }
  func.func @transform_0(%arg0: i32, %arg1: i32, %arg2: i32) -> (i32, i32) {
    %c0_i32 = arith.constant 0 : i32
    return %arg0, %arg2 : i32, i32
  }
  func.func @transform_1(%arg0: i32, %arg1: i32, %arg2: i32) -> (i32, i32) {
    %c0_i32 = arith.constant 0 : i32
    return %arg2, %arg1 : i32, i32
  }
  func.func @transform_2(%arg0: i32, %arg1: i32, %arg2: i32) -> (i32, i32) {
    %c0_i32 = arith.constant 0 : i32
    %c0_i32_0 = arith.constant 0 : i32
    return %c0_i32, %arg1 : i32, i32
  }
  func.func @transform_3(%arg0: i32, %arg1: i32, %arg2: i32) -> (i32, i32) {
    %c0_i32 = arith.constant 0 : i32
    return %arg0, %arg1 : i32, i32
  }
}

module attributes {stable_mosaic.version = 11 : i64} {
  func.func @_pool_affine_act_kernel(%arg0: i32, %arg1: memref<512x128xf32, #tpu.memory_space<vmem>>, %arg2: memref<512x128xf32, #tpu.memory_space<vmem>>, %arg3: memref<512x128xf32, #tpu.memory_space<vmem>>, %arg4: memref<512x128xf32, #tpu.memory_space<vmem>>, %arg5: memref<1x128xf32, #tpu.memory_space<vmem>>, %arg6: memref<1x128xf32, #tpu.memory_space<vmem>>, %arg7: memref<512x128xbf16, #tpu.memory_space<vmem>>) attributes {dimension_semantics = [#tpu.dimension_semantics<parallel>], iteration_bounds = array<i64: 1>, scalar_prefetch = 0 : i64, scratch_operands = 0 : i64, tpu.core_type = #tpu.core_type<tc>, window_params = [{transform_indices = @transform_0, window_bounds = array<i64: 512, 128>}, {transform_indices = @transform_1, window_bounds = array<i64: 512, 128>}, {transform_indices = @transform_2, window_bounds = array<i64: 512, 128>}, {transform_indices = @transform_3, window_bounds = array<i64: 512, 128>}, {pipeline_mode = #tpu.pipeline_mode<synchronous>, transform_indices = @transform_4, window_bounds = array<i64: 1, 128>}, {pipeline_mode = #tpu.pipeline_mode<synchronous>, transform_indices = @transform_5, window_bounds = array<i64: 1, 128>}, {transform_indices = @transform_6, window_bounds = array<i64: 512, 128>}]} {
    %c0 = arith.constant 0 : index
    %c0_0 = arith.constant 0 : index
    %0 = vector.load %arg1[%c0, %c0_0] : memref<512x128xf32, #tpu.memory_space<vmem>>, vector<512x128xf32>
    %c0_1 = arith.constant 0 : index
    %c0_2 = arith.constant 0 : index
    %1 = vector.load %arg2[%c0_1, %c0_2] : memref<512x128xf32, #tpu.memory_space<vmem>>, vector<512x128xf32>
    %2 = arith.maximumf %0, %1 : vector<512x128xf32>
    %c0_3 = arith.constant 0 : index
    %c0_4 = arith.constant 0 : index
    %3 = vector.load %arg3[%c0_3, %c0_4] : memref<512x128xf32, #tpu.memory_space<vmem>>, vector<512x128xf32>
    %c0_5 = arith.constant 0 : index
    %c0_6 = arith.constant 0 : index
    %4 = vector.load %arg4[%c0_5, %c0_6] : memref<512x128xf32, #tpu.memory_space<vmem>>, vector<512x128xf32>
    %5 = arith.maximumf %3, %4 : vector<512x128xf32>
    %6 = arith.maximumf %2, %5 : vector<512x128xf32>
    %c0_7 = arith.constant 0 : index
    %c0_8 = arith.constant 0 : index
    %7 = vector.load %arg5[%c0_7, %c0_8] : memref<1x128xf32, #tpu.memory_space<vmem>>, vector<1x128xf32>
    %8 = vector.broadcast %7 : vector<1x128xf32> to vector<512x128xf32>
    %9 = arith.mulf %6, %8 : vector<512x128xf32>
    %c0_9 = arith.constant 0 : index
    %c0_10 = arith.constant 0 : index
    %10 = vector.load %arg6[%c0_9, %c0_10] : memref<1x128xf32, #tpu.memory_space<vmem>>, vector<1x128xf32>
    %11 = vector.broadcast %10 : vector<1x128xf32> to vector<512x128xf32>
    %12 = arith.addf %9, %11 : vector<512x128xf32>
    %cst = arith.constant 0.000000e+00 : f32
    %13 = vector.broadcast %cst : f32 to vector<512x128xf32>
    %14 = arith.cmpf oge, %12, %13 : vector<512x128xf32>
    %cst_11 = arith.constant 2.500000e-01 : f32
    %15 = vector.broadcast %cst_11 : f32 to vector<512x128xf32>
    %16 = arith.mulf %15, %12 : vector<512x128xf32>
    %17 = arith.select %14, %12, %16 : vector<512x128xi1>, vector<512x128xf32>
    %18 = arith.truncf %17 : vector<512x128xf32> to vector<512x128xbf16>
    %c0_12 = arith.constant 0 : index
    %c0_13 = arith.constant 0 : index
    %19 = vector.load %arg7[%c0_12, %c0_13] : memref<512x128xbf16, #tpu.memory_space<vmem>>, vector<512x128xbf16>
    tpu.vector_store %arg7[%c0_12, %c0_13], %18 {strides = array<i32>} : memref<512x128xbf16, #tpu.memory_space<vmem>>, vector<512x128xbf16>,
    return
  }
  func.func @transform_0(%arg0: i32) -> (i32, i32) {
    %c0_i32 = arith.constant 0 : i32
    %c0_i32_0 = arith.constant 0 : i32
    return %arg0, %c0_i32 : i32, i32
  }
  func.func @transform_1(%arg0: i32) -> (i32, i32) {
    %c0_i32 = arith.constant 0 : i32
    %c0_i32_0 = arith.constant 0 : i32
    return %arg0, %c0_i32 : i32, i32
  }
  func.func @transform_2(%arg0: i32) -> (i32, i32) {
    %c0_i32 = arith.constant 0 : i32
    %c0_i32_0 = arith.constant 0 : i32
    return %arg0, %c0_i32 : i32, i32
  }
  func.func @transform_3(%arg0: i32) -> (i32, i32) {
    %c0_i32 = arith.constant 0 : i32
    %c0_i32_0 = arith.constant 0 : i32
    return %arg0, %c0_i32 : i32, i32
  }
  func.func @transform_4(%arg0: i32) -> (i32, i32) {
    %c0_i32 = arith.constant 0 : i32
    %c0_i32_0 = arith.constant 0 : i32
    %c0_i32_1 = arith.constant 0 : i32
    return %c0_i32, %c0_i32_0 : i32, i32
  }
  func.func @transform_5(%arg0: i32) -> (i32, i32) {
    %c0_i32 = arith.constant 0 : i32
    %c0_i32_0 = arith.constant 0 : i32
    %c0_i32_1 = arith.constant 0 : i32
    return %c0_i32, %c0_i32_0 : i32, i32
  }
  func.func @transform_6(%arg0: i32) -> (i32, i32) {
    %c0_i32 = arith.constant 0 : i32
    %c0_i32_0 = arith.constant 0 : i32
    return %arg0, %c0_i32 : i32, i32
  }
}

module attributes {stable_mosaic.version = 11 : i64} {
  func.func @_matmul_fused_kernel(%arg0: i32, %arg1: i32, %arg2: i32, %arg3: memref<256x128xbf16, #tpu.memory_space<vmem>>, %arg4: memref<128x128xbf16, #tpu.memory_space<vmem>>, %arg5: memref<1x128xf32, #tpu.memory_space<vmem>>, %arg6: memref<256x128xbf16, #tpu.memory_space<vmem>>, %arg7: memref<256x128xbf16, #tpu.memory_space<vmem>>, %arg8: memref<256x128xf32, #tpu.memory_space<vmem>>) attributes {dimension_semantics = [#tpu.dimension_semantics<parallel>, #tpu.dimension_semantics<parallel>, #tpu.dimension_semantics<arbitrary>], iteration_bounds = array<i64: 2, 1, 1>, scalar_prefetch = 0 : i64, scratch_operands = 1 : i64, tpu.core_type = #tpu.core_type<tc>, window_params = [{transform_indices = @transform_0, window_bounds = array<i64: 256, 128>}, {transform_indices = @transform_1, window_bounds = array<i64: 128, 128>}, {transform_indices = @transform_2, window_bounds = array<i64: 1, 128>}, {transform_indices = @transform_3, window_bounds = array<i64: 256, 128>}, {transform_indices = @transform_4, window_bounds = array<i64: 256, 128>}]} {
    %c0_i32 = arith.constant 0 : i32
    %0 = arith.cmpi eq, %arg2, %c0_i32 : i32
    %1 = arith.extui %0 : i1 to i32
    %c0_i32_0 = arith.constant 0 : i32
    %2 = arith.cmpi ne, %1, %c0_i32_0 : i32
    scf.if %2 {
      %cst_10 = arith.constant 0.000000e+00 : f32
      %12 = vector.broadcast %cst_10 : f32 to vector<256x128xf32>
      %c0_11 = arith.constant 0 : index
      %c0_12 = arith.constant 0 : index
      %13 = vector.load %arg8[%c0_11, %c0_12] : memref<256x128xf32, #tpu.memory_space<vmem>>, vector<256x128xf32>
      tpu.vector_store %arg8[%c0_11, %c0_12], %12 {strides = array<i32>} : memref<256x128xf32, #tpu.memory_space<vmem>>, vector<256x128xf32>,
    } else {
    }
    %c0 = arith.constant 0 : index
    %c0_1 = arith.constant 0 : index
    %3 = vector.load %arg8[%c0, %c0_1] : memref<256x128xf32, #tpu.memory_space<vmem>>, vector<256x128xf32>
    %c0_2 = arith.constant 0 : index
    %c0_3 = arith.constant 0 : index
    %4 = vector.load %arg3[%c0_2, %c0_3] : memref<256x128xbf16, #tpu.memory_space<vmem>>, vector<256x128xbf16>
    %c0_4 = arith.constant 0 : index
    %c0_5 = arith.constant 0 : index
    %5 = vector.load %arg4[%c0_4, %c0_5] : memref<128x128xbf16, #tpu.memory_space<vmem>>, vector<128x128xbf16>
    %cst = arith.constant dense<0.000000e+00> : vector<256x128xf32>
    %6 = tpu.matmul %4, %5, %cst {dimension_numbers = #tpu.dot_dimension_numbers<[1], [0], [0], [1], [0, 0, 1, 1], [], []>} : vector<256x128xbf16>, vector<128x128xbf16>, vector<256x128xf32> -> vector<256x128xf32>
    %7 = arith.addf %3, %6 : vector<256x128xf32>
    %c0_6 = arith.constant 0 : index
    %c0_7 = arith.constant 0 : index
    %8 = vector.load %arg8[%c0_6, %c0_7] : memref<256x128xf32, #tpu.memory_space<vmem>>, vector<256x128xf32>
    tpu.vector_store %arg8[%c0_6, %c0_7], %7 {strides = array<i32>} : memref<256x128xf32, #tpu.memory_space<vmem>>, vector<256x128xf32>,
    %c0_i32_8 = arith.constant 0 : i32
    %9 = arith.cmpi eq, %arg2, %c0_i32_8 : i32
    %10 = arith.extui %9 : i1 to i32
    %c0_i32_9 = arith.constant 0 : i32
    %11 = arith.cmpi ne, %10, %c0_i32_9 : i32
    scf.if %11 {
      %c0_10 = arith.constant 0 : index
      %c0_11 = arith.constant 0 : index
      %12 = vector.load %arg8[%c0_10, %c0_11] : memref<256x128xf32, #tpu.memory_space<vmem>>, vector<256x128xf32>
      %c0_12 = arith.constant 0 : index
      %c0_13 = arith.constant 0 : index
      %13 = vector.load %arg5[%c0_12, %c0_13] : memref<1x128xf32, #tpu.memory_space<vmem>>, vector<1x128xf32>
      %14 = vector.broadcast %13 : vector<1x128xf32> to vector<256x128xf32>
      %15 = arith.addf %12, %14 : vector<256x128xf32>
      %c0_14 = arith.constant 0 : index
      %c0_15 = arith.constant 0 : index
      %16 = vector.load %arg6[%c0_14, %c0_15] : memref<256x128xbf16, #tpu.memory_space<vmem>>, vector<256x128xbf16>
      %17 = arith.extf %16 : vector<256x128xbf16> to vector<256x128xf32>
      %18 = arith.addf %15, %17 : vector<256x128xf32>
      %cst_16 = arith.constant 0.000000e+00 : f32
      %19 = vector.broadcast %cst_16 : f32 to vector<256x128xf32>
      %20 = arith.cmpf oge, %18, %19 : vector<256x128xf32>
      %cst_17 = arith.constant 2.500000e-01 : f32
      %21 = vector.broadcast %cst_17 : f32 to vector<256x128xf32>
      %22 = arith.mulf %21, %18 : vector<256x128xf32>
      %23 = arith.select %20, %18, %22 : vector<256x128xi1>, vector<256x128xf32>
      %24 = arith.truncf %23 : vector<256x128xf32> to vector<256x128xbf16>
      %c0_18 = arith.constant 0 : index
      %c0_19 = arith.constant 0 : index
      %25 = vector.load %arg7[%c0_18, %c0_19] : memref<256x128xbf16, #tpu.memory_space<vmem>>, vector<256x128xbf16>
      tpu.vector_store %arg7[%c0_18, %c0_19], %24 {strides = array<i32>} : memref<256x128xbf16, #tpu.memory_space<vmem>>, vector<256x128xbf16>,
    } else {
    }
    return
  }
  func.func @transform_0(%arg0: i32, %arg1: i32, %arg2: i32) -> (i32, i32) {
    %c0_i32 = arith.constant 0 : i32
    return %arg0, %arg2 : i32, i32
  }
  func.func @transform_1(%arg0: i32, %arg1: i32, %arg2: i32) -> (i32, i32) {
    %c0_i32 = arith.constant 0 : i32
    return %arg2, %arg1 : i32, i32
  }
  func.func @transform_2(%arg0: i32, %arg1: i32, %arg2: i32) -> (i32, i32) {
    %c0_i32 = arith.constant 0 : i32
    %c0_i32_0 = arith.constant 0 : i32
    return %c0_i32, %arg1 : i32, i32
  }
  func.func @transform_3(%arg0: i32, %arg1: i32, %arg2: i32) -> (i32, i32) {
    %c0_i32 = arith.constant 0 : i32
    return %arg0, %arg1 : i32, i32
  }
  func.func @transform_4(%arg0: i32, %arg1: i32, %arg2: i32) -> (i32, i32) {
    %c0_i32 = arith.constant 0 : i32
    return %arg0, %arg1 : i32, i32
  }
}

module attributes {stable_mosaic.version = 11 : i64} {
  func.func @_pool_affine_act_kernel(%arg0: i32, %arg1: memref<128x128xbf16, #tpu.memory_space<vmem>>, %arg2: memref<128x128xbf16, #tpu.memory_space<vmem>>, %arg3: memref<128x128xbf16, #tpu.memory_space<vmem>>, %arg4: memref<128x128xbf16, #tpu.memory_space<vmem>>, %arg5: memref<1x128xf32, #tpu.memory_space<vmem>>, %arg6: memref<1x128xf32, #tpu.memory_space<vmem>>, %arg7: memref<128x128xbf16, #tpu.memory_space<vmem>>) attributes {dimension_semantics = [#tpu.dimension_semantics<parallel>], iteration_bounds = array<i64: 1>, scalar_prefetch = 0 : i64, scratch_operands = 0 : i64, tpu.core_type = #tpu.core_type<tc>, window_params = [{transform_indices = @transform_0, window_bounds = array<i64: 128, 128>}, {transform_indices = @transform_1, window_bounds = array<i64: 128, 128>}, {transform_indices = @transform_2, window_bounds = array<i64: 128, 128>}, {transform_indices = @transform_3, window_bounds = array<i64: 128, 128>}, {pipeline_mode = #tpu.pipeline_mode<synchronous>, transform_indices = @transform_4, window_bounds = array<i64: 1, 128>}, {pipeline_mode = #tpu.pipeline_mode<synchronous>, transform_indices = @transform_5, window_bounds = array<i64: 1, 128>}, {transform_indices = @transform_6, window_bounds = array<i64: 128, 128>}]} {
    %c0 = arith.constant 0 : index
    %c0_0 = arith.constant 0 : index
    %0 = vector.load %arg1[%c0, %c0_0] : memref<128x128xbf16, #tpu.memory_space<vmem>>, vector<128x128xbf16>
    %c0_1 = arith.constant 0 : index
    %c0_2 = arith.constant 0 : index
    %1 = vector.load %arg2[%c0_1, %c0_2] : memref<128x128xbf16, #tpu.memory_space<vmem>>, vector<128x128xbf16>
    %2 = arith.maximumf %0, %1 : vector<128x128xbf16>
    %c0_3 = arith.constant 0 : index
    %c0_4 = arith.constant 0 : index
    %3 = vector.load %arg3[%c0_3, %c0_4] : memref<128x128xbf16, #tpu.memory_space<vmem>>, vector<128x128xbf16>
    %c0_5 = arith.constant 0 : index
    %c0_6 = arith.constant 0 : index
    %4 = vector.load %arg4[%c0_5, %c0_6] : memref<128x128xbf16, #tpu.memory_space<vmem>>, vector<128x128xbf16>
    %5 = arith.maximumf %3, %4 : vector<128x128xbf16>
    %6 = arith.maximumf %2, %5 : vector<128x128xbf16>
    %7 = arith.extf %6 : vector<128x128xbf16> to vector<128x128xf32>
    %c0_7 = arith.constant 0 : index
    %c0_8 = arith.constant 0 : index
    %8 = vector.load %arg5[%c0_7, %c0_8] : memref<1x128xf32, #tpu.memory_space<vmem>>, vector<1x128xf32>
    %9 = vector.broadcast %8 : vector<1x128xf32> to vector<128x128xf32>
    %10 = arith.mulf %7, %9 : vector<128x128xf32>
    %c0_9 = arith.constant 0 : index
    %c0_10 = arith.constant 0 : index
    %11 = vector.load %arg6[%c0_9, %c0_10] : memref<1x128xf32, #tpu.memory_space<vmem>>, vector<1x128xf32>
    %12 = vector.broadcast %11 : vector<1x128xf32> to vector<128x128xf32>
    %13 = arith.addf %10, %12 : vector<128x128xf32>
    %cst = arith.constant 0.000000e+00 : f32
    %14 = vector.broadcast %cst : f32 to vector<128x128xf32>
    %15 = arith.cmpf oge, %13, %14 : vector<128x128xf32>
    %cst_11 = arith.constant 2.500000e-01 : f32
    %16 = vector.broadcast %cst_11 : f32 to vector<128x128xf32>
    %17 = arith.mulf %16, %13 : vector<128x128xf32>
    %18 = arith.select %15, %13, %17 : vector<128x128xi1>, vector<128x128xf32>
    %19 = arith.truncf %18 : vector<128x128xf32> to vector<128x128xbf16>
    %c0_12 = arith.constant 0 : index
    %c0_13 = arith.constant 0 : index
    %20 = vector.load %arg7[%c0_12, %c0_13] : memref<128x128xbf16, #tpu.memory_space<vmem>>, vector<128x128xbf16>
    tpu.vector_store %arg7[%c0_12, %c0_13], %19 {strides = array<i32>} : memref<128x128xbf16, #tpu.memory_space<vmem>>, vector<128x128xbf16>,
    return
  }
  func.func @transform_0(%arg0: i32) -> (i32, i32) {
    %c0_i32 = arith.constant 0 : i32
    %c0_i32_0 = arith.constant 0 : i32
    return %arg0, %c0_i32 : i32, i32
  }
  func.func @transform_1(%arg0: i32) -> (i32, i32) {
    %c0_i32 = arith.constant 0 : i32
    %c0_i32_0 = arith.constant 0 : i32
    return %arg0, %c0_i32 : i32, i32
  }
  func.func @transform_2(%arg0: i32) -> (i32, i32) {
    %c0_i32 = arith.constant 0 : i32
    %c0_i32_0 = arith.constant 0 : i32
    return %arg0, %c0_i32 : i32, i32
  }
  func.func @transform_3(%arg0: i32) -> (i32, i32) {
    %c0_i32 = arith.constant 0 : i32
    %c0_i32_0 = arith.constant 0 : i32
    return %arg0, %c0_i32 : i32, i32
  }
  func.func @transform_4(%arg0: i32) -> (i32, i32) {
    %c0_i32 = arith.constant 0 : i32
    %c0_i32_0 = arith.constant 0 : i32
    %c0_i32_1 = arith.constant 0 : i32
    return %c0_i32, %c0_i32_0 : i32, i32
  }
  func.func @transform_5(%arg0: i32) -> (i32, i32) {
    %c0_i32 = arith.constant 0 : i32
    %c0_i32_0 = arith.constant 0 : i32
    %c0_i32_1 = arith.constant 0 : i32
    return %c0_i32, %c0_i32_0 : i32, i32
  }
  func.func @transform_6(%arg0: i32) -> (i32, i32) {
    %c0_i32 = arith.constant 0 : i32
    %c0_i32_0 = arith.constant 0 : i32
    return %arg0, %c0_i32 : i32, i32
  }
}

module attributes {stable_mosaic.version = 11 : i64} {
  func.func @_matmul_fused_kernel(%arg0: i32, %arg1: i32, %arg2: i32, %arg3: memref<128x384xbf16, #tpu.memory_space<vmem>>, %arg4: memref<384x128xbf16, #tpu.memory_space<vmem>>, %arg5: memref<1x128xf32, #tpu.memory_space<vmem>>, %arg6: memref<128x128xbf16, #tpu.memory_space<vmem>>, %arg7: memref<128x128xf32, #tpu.memory_space<vmem>>) attributes {dimension_semantics = [#tpu.dimension_semantics<parallel>, #tpu.dimension_semantics<parallel>, #tpu.dimension_semantics<arbitrary>], iteration_bounds = array<i64: 1, 1, 1>, scalar_prefetch = 0 : i64, scratch_operands = 1 : i64, tpu.core_type = #tpu.core_type<tc>, window_params = [{transform_indices = @transform_0, window_bounds = array<i64: 128, 384>}, {transform_indices = @transform_1, window_bounds = array<i64: 384, 128>}, {transform_indices = @transform_2, window_bounds = array<i64: 1, 128>}, {transform_indices = @transform_3, window_bounds = array<i64: 128, 128>}]} {
    %c0_i32 = arith.constant 0 : i32
    %0 = arith.cmpi eq, %arg2, %c0_i32 : i32
    %1 = arith.extui %0 : i1 to i32
    %c0_i32_0 = arith.constant 0 : i32
    %2 = arith.cmpi ne, %1, %c0_i32_0 : i32
    scf.if %2 {
      %cst_10 = arith.constant 0.000000e+00 : f32
      %12 = vector.broadcast %cst_10 : f32 to vector<128x128xf32>
      %c0_11 = arith.constant 0 : index
      %c0_12 = arith.constant 0 : index
      %13 = vector.load %arg7[%c0_11, %c0_12] : memref<128x128xf32, #tpu.memory_space<vmem>>, vector<128x128xf32>
      tpu.vector_store %arg7[%c0_11, %c0_12], %12 {strides = array<i32>} : memref<128x128xf32, #tpu.memory_space<vmem>>, vector<128x128xf32>,
    } else {
    }
    %c0 = arith.constant 0 : index
    %c0_1 = arith.constant 0 : index
    %3 = vector.load %arg7[%c0, %c0_1] : memref<128x128xf32, #tpu.memory_space<vmem>>, vector<128x128xf32>
    %c0_2 = arith.constant 0 : index
    %c0_3 = arith.constant 0 : index
    %4 = vector.load %arg3[%c0_2, %c0_3] : memref<128x384xbf16, #tpu.memory_space<vmem>>, vector<128x384xbf16>
    %c0_4 = arith.constant 0 : index
    %c0_5 = arith.constant 0 : index
    %5 = vector.load %arg4[%c0_4, %c0_5] : memref<384x128xbf16, #tpu.memory_space<vmem>>, vector<384x128xbf16>
    %cst = arith.constant dense<0.000000e+00> : vector<128x128xf32>
    %6 = tpu.matmul %4, %5, %cst {dimension_numbers = #tpu.dot_dimension_numbers<[1], [0], [0], [1], [0, 0, 1, 1], [], []>} : vector<128x384xbf16>, vector<384x128xbf16>, vector<128x128xf32> -> vector<128x128xf32>
    %7 = arith.addf %3, %6 : vector<128x128xf32>
    %c0_6 = arith.constant 0 : index
    %c0_7 = arith.constant 0 : index
    %8 = vector.load %arg7[%c0_6, %c0_7] : memref<128x128xf32, #tpu.memory_space<vmem>>, vector<128x128xf32>
    tpu.vector_store %arg7[%c0_6, %c0_7], %7 {strides = array<i32>} : memref<128x128xf32, #tpu.memory_space<vmem>>, vector<128x128xf32>,
    %c0_i32_8 = arith.constant 0 : i32
    %9 = arith.cmpi eq, %arg2, %c0_i32_8 : i32
    %10 = arith.extui %9 : i1 to i32
    %c0_i32_9 = arith.constant 0 : i32
    %11 = arith.cmpi ne, %10, %c0_i32_9 : i32
    scf.if %11 {
      %c0_10 = arith.constant 0 : index
      %c0_11 = arith.constant 0 : index
      %12 = vector.load %arg7[%c0_10, %c0_11] : memref<128x128xf32, #tpu.memory_space<vmem>>, vector<128x128xf32>
      %c0_12 = arith.constant 0 : index
      %c0_13 = arith.constant 0 : index
      %13 = vector.load %arg5[%c0_12, %c0_13] : memref<1x128xf32, #tpu.memory_space<vmem>>, vector<1x128xf32>
      %14 = vector.broadcast %13 : vector<1x128xf32> to vector<128x128xf32>
      %15 = arith.addf %12, %14 : vector<128x128xf32>
      %cst_14 = arith.constant 0.000000e+00 : f32
      %16 = vector.broadcast %cst_14 : f32 to vector<128x128xf32>
      %17 = arith.cmpf oge, %15, %16 : vector<128x128xf32>
      %cst_15 = arith.constant 2.500000e-01 : f32
      %18 = vector.broadcast %cst_15 : f32 to vector<128x128xf32>
      %19 = arith.mulf %18, %15 : vector<128x128xf32>
      %20 = arith.select %17, %15, %19 : vector<128x128xi1>, vector<128x128xf32>
      %21 = arith.truncf %20 : vector<128x128xf32> to vector<128x128xbf16>
      %c0_16 = arith.constant 0 : index
      %c0_17 = arith.constant 0 : index
      %22 = vector.load %arg6[%c0_16, %c0_17] : memref<128x128xbf16, #tpu.memory_space<vmem>>, vector<128x128xbf16>
      tpu.vector_store %arg6[%c0_16, %c0_17], %21 {strides = array<i32>} : memref<128x128xbf16, #tpu.memory_space<vmem>>, vector<128x128xbf16>,
    } else {
    }
    return
  }
  func.func @transform_0(%arg0: i32, %arg1: i32, %arg2: i32) -> (i32, i32) {
    %c0_i32 = arith.constant 0 : i32
    return %arg0, %arg2 : i32, i32
  }
  func.func @transform_1(%arg0: i32, %arg1: i32, %arg2: i32) -> (i32, i32) {
    %c0_i32 = arith.constant 0 : i32
    return %arg2, %arg1 : i32, i32
  }
  func.func @transform_2(%arg0: i32, %arg1: i32, %arg2: i32) -> (i32, i32) {
    %c0_i32 = arith.constant 0 : i32
    %c0_i32_0 = arith.constant 0 : i32
    return %c0_i32, %arg1 : i32, i32
  }
  func.func @transform_3(%arg0: i32, %arg1: i32, %arg2: i32) -> (i32, i32) {
    %c0_i32 = arith.constant 0 : i32
    return %arg0, %arg1 : i32, i32
  }
}

module attributes {stable_mosaic.version = 11 : i64} {
  func.func @_matmul_fused_kernel(%arg0: i32, %arg1: i32, %arg2: i32, %arg3: memref<128x256xbf16, #tpu.memory_space<vmem>>, %arg4: memref<256x128xbf16, #tpu.memory_space<vmem>>, %arg5: memref<1x128xf32, #tpu.memory_space<vmem>>, %arg6: memref<128x128xbf16, #tpu.memory_space<vmem>>, %arg7: memref<128x128xf32, #tpu.memory_space<vmem>>) attributes {dimension_semantics = [#tpu.dimension_semantics<parallel>, #tpu.dimension_semantics<parallel>, #tpu.dimension_semantics<arbitrary>], iteration_bounds = array<i64: 1, 1, 1>, scalar_prefetch = 0 : i64, scratch_operands = 1 : i64, tpu.core_type = #tpu.core_type<tc>, window_params = [{transform_indices = @transform_0, window_bounds = array<i64: 128, 256>}, {transform_indices = @transform_1, window_bounds = array<i64: 256, 128>}, {transform_indices = @transform_2, window_bounds = array<i64: 1, 128>}, {transform_indices = @transform_3, window_bounds = array<i64: 128, 128>}]} {
    %c0_i32 = arith.constant 0 : i32
    %0 = arith.cmpi eq, %arg2, %c0_i32 : i32
    %1 = arith.extui %0 : i1 to i32
    %c0_i32_0 = arith.constant 0 : i32
    %2 = arith.cmpi ne, %1, %c0_i32_0 : i32
    scf.if %2 {
      %cst_10 = arith.constant 0.000000e+00 : f32
      %12 = vector.broadcast %cst_10 : f32 to vector<128x128xf32>
      %c0_11 = arith.constant 0 : index
      %c0_12 = arith.constant 0 : index
      %13 = vector.load %arg7[%c0_11, %c0_12] : memref<128x128xf32, #tpu.memory_space<vmem>>, vector<128x128xf32>
      tpu.vector_store %arg7[%c0_11, %c0_12], %12 {strides = array<i32>} : memref<128x128xf32, #tpu.memory_space<vmem>>, vector<128x128xf32>,
    } else {
    }
    %c0 = arith.constant 0 : index
    %c0_1 = arith.constant 0 : index
    %3 = vector.load %arg7[%c0, %c0_1] : memref<128x128xf32, #tpu.memory_space<vmem>>, vector<128x128xf32>
    %c0_2 = arith.constant 0 : index
    %c0_3 = arith.constant 0 : index
    %4 = vector.load %arg3[%c0_2, %c0_3] : memref<128x256xbf16, #tpu.memory_space<vmem>>, vector<128x256xbf16>
    %c0_4 = arith.constant 0 : index
    %c0_5 = arith.constant 0 : index
    %5 = vector.load %arg4[%c0_4, %c0_5] : memref<256x128xbf16, #tpu.memory_space<vmem>>, vector<256x128xbf16>
    %cst = arith.constant dense<0.000000e+00> : vector<128x128xf32>
    %6 = tpu.matmul %4, %5, %cst {dimension_numbers = #tpu.dot_dimension_numbers<[1], [0], [0], [1], [0, 0, 1, 1], [], []>} : vector<128x256xbf16>, vector<256x128xbf16>, vector<128x128xf32> -> vector<128x128xf32>
    %7 = arith.addf %3, %6 : vector<128x128xf32>
    %c0_6 = arith.constant 0 : index
    %c0_7 = arith.constant 0 : index
    %8 = vector.load %arg7[%c0_6, %c0_7] : memref<128x128xf32, #tpu.memory_space<vmem>>, vector<128x128xf32>
    tpu.vector_store %arg7[%c0_6, %c0_7], %7 {strides = array<i32>} : memref<128x128xf32, #tpu.memory_space<vmem>>, vector<128x128xf32>,
    %c0_i32_8 = arith.constant 0 : i32
    %9 = arith.cmpi eq, %arg2, %c0_i32_8 : i32
    %10 = arith.extui %9 : i1 to i32
    %c0_i32_9 = arith.constant 0 : i32
    %11 = arith.cmpi ne, %10, %c0_i32_9 : i32
    scf.if %11 {
      %c0_10 = arith.constant 0 : index
      %c0_11 = arith.constant 0 : index
      %12 = vector.load %arg7[%c0_10, %c0_11] : memref<128x128xf32, #tpu.memory_space<vmem>>, vector<128x128xf32>
      %c0_12 = arith.constant 0 : index
      %c0_13 = arith.constant 0 : index
      %13 = vector.load %arg5[%c0_12, %c0_13] : memref<1x128xf32, #tpu.memory_space<vmem>>, vector<1x128xf32>
      %14 = vector.broadcast %13 : vector<1x128xf32> to vector<128x128xf32>
      %15 = arith.addf %12, %14 : vector<128x128xf32>
      %cst_14 = arith.constant 0.000000e+00 : f32
      %16 = vector.broadcast %cst_14 : f32 to vector<128x128xf32>
      %17 = arith.cmpf oge, %15, %16 : vector<128x128xf32>
      %cst_15 = arith.constant 2.500000e-01 : f32
      %18 = vector.broadcast %cst_15 : f32 to vector<128x128xf32>
      %19 = arith.mulf %18, %15 : vector<128x128xf32>
      %20 = arith.select %17, %15, %19 : vector<128x128xi1>, vector<128x128xf32>
      %21 = arith.truncf %20 : vector<128x128xf32> to vector<128x128xbf16>
      %c0_16 = arith.constant 0 : index
      %c0_17 = arith.constant 0 : index
      %22 = vector.load %arg6[%c0_16, %c0_17] : memref<128x128xbf16, #tpu.memory_space<vmem>>, vector<128x128xbf16>
      tpu.vector_store %arg6[%c0_16, %c0_17], %21 {strides = array<i32>} : memref<128x128xbf16, #tpu.memory_space<vmem>>, vector<128x128xbf16>,
    } else {
    }
    return
  }
  func.func @transform_0(%arg0: i32, %arg1: i32, %arg2: i32) -> (i32, i32) {
    %c0_i32 = arith.constant 0 : i32
    return %arg0, %arg2 : i32, i32
  }
  func.func @transform_1(%arg0: i32, %arg1: i32, %arg2: i32) -> (i32, i32) {
    %c0_i32 = arith.constant 0 : i32
    return %arg2, %arg1 : i32, i32
  }
  func.func @transform_2(%arg0: i32, %arg1: i32, %arg2: i32) -> (i32, i32) {
    %c0_i32 = arith.constant 0 : i32
    %c0_i32_0 = arith.constant 0 : i32
    return %c0_i32, %arg1 : i32, i32
  }
  func.func @transform_3(%arg0: i32, %arg1: i32, %arg2: i32) -> (i32, i32) {
    %c0_i32 = arith.constant 0 : i32
    return %arg0, %arg1 : i32, i32
  }
}

module attributes {stable_mosaic.version = 11 : i64} {
  func.func @_matmul_fused_kernel(%arg0: i32, %arg1: i32, %arg2: i32, %arg3: memref<128x256xbf16, #tpu.memory_space<vmem>>, %arg4: memref<256x128xbf16, #tpu.memory_space<vmem>>, %arg5: memref<1x128xf32, #tpu.memory_space<vmem>>, %arg6: memref<128x128xbf16, #tpu.memory_space<vmem>>, %arg7: memref<128x128xbf16, #tpu.memory_space<vmem>>, %arg8: memref<128x128xf32, #tpu.memory_space<vmem>>) attributes {dimension_semantics = [#tpu.dimension_semantics<parallel>, #tpu.dimension_semantics<parallel>, #tpu.dimension_semantics<arbitrary>], iteration_bounds = array<i64: 1, 1, 1>, scalar_prefetch = 0 : i64, scratch_operands = 1 : i64, tpu.core_type = #tpu.core_type<tc>, window_params = [{transform_indices = @transform_0, window_bounds = array<i64: 128, 256>}, {transform_indices = @transform_1, window_bounds = array<i64: 256, 128>}, {transform_indices = @transform_2, window_bounds = array<i64: 1, 128>}, {transform_indices = @transform_3, window_bounds = array<i64: 128, 128>}, {transform_indices = @transform_4, window_bounds = array<i64: 128, 128>}]} {
    %c0_i32 = arith.constant 0 : i32
    %0 = arith.cmpi eq, %arg2, %c0_i32 : i32
    %1 = arith.extui %0 : i1 to i32
    %c0_i32_0 = arith.constant 0 : i32
    %2 = arith.cmpi ne, %1, %c0_i32_0 : i32
    scf.if %2 {
      %cst_10 = arith.constant 0.000000e+00 : f32
      %12 = vector.broadcast %cst_10 : f32 to vector<128x128xf32>
      %c0_11 = arith.constant 0 : index
      %c0_12 = arith.constant 0 : index
      %13 = vector.load %arg8[%c0_11, %c0_12] : memref<128x128xf32, #tpu.memory_space<vmem>>, vector<128x128xf32>
      tpu.vector_store %arg8[%c0_11, %c0_12], %12 {strides = array<i32>} : memref<128x128xf32, #tpu.memory_space<vmem>>, vector<128x128xf32>,
    } else {
    }
    %c0 = arith.constant 0 : index
    %c0_1 = arith.constant 0 : index
    %3 = vector.load %arg8[%c0, %c0_1] : memref<128x128xf32, #tpu.memory_space<vmem>>, vector<128x128xf32>
    %c0_2 = arith.constant 0 : index
    %c0_3 = arith.constant 0 : index
    %4 = vector.load %arg3[%c0_2, %c0_3] : memref<128x256xbf16, #tpu.memory_space<vmem>>, vector<128x256xbf16>
    %c0_4 = arith.constant 0 : index
    %c0_5 = arith.constant 0 : index
    %5 = vector.load %arg4[%c0_4, %c0_5] : memref<256x128xbf16, #tpu.memory_space<vmem>>, vector<256x128xbf16>
    %cst = arith.constant dense<0.000000e+00> : vector<128x128xf32>
    %6 = tpu.matmul %4, %5, %cst {dimension_numbers = #tpu.dot_dimension_numbers<[1], [0], [0], [1], [0, 0, 1, 1], [], []>} : vector<128x256xbf16>, vector<256x128xbf16>, vector<128x128xf32> -> vector<128x128xf32>
    %7 = arith.addf %3, %6 : vector<128x128xf32>
    %c0_6 = arith.constant 0 : index
    %c0_7 = arith.constant 0 : index
    %8 = vector.load %arg8[%c0_6, %c0_7] : memref<128x128xf32, #tpu.memory_space<vmem>>, vector<128x128xf32>
    tpu.vector_store %arg8[%c0_6, %c0_7], %7 {strides = array<i32>} : memref<128x128xf32, #tpu.memory_space<vmem>>, vector<128x128xf32>,
    %c0_i32_8 = arith.constant 0 : i32
    %9 = arith.cmpi eq, %arg2, %c0_i32_8 : i32
    %10 = arith.extui %9 : i1 to i32
    %c0_i32_9 = arith.constant 0 : i32
    %11 = arith.cmpi ne, %10, %c0_i32_9 : i32
    scf.if %11 {
      %c0_10 = arith.constant 0 : index
      %c0_11 = arith.constant 0 : index
      %12 = vector.load %arg8[%c0_10, %c0_11] : memref<128x128xf32, #tpu.memory_space<vmem>>, vector<128x128xf32>
      %c0_12 = arith.constant 0 : index
      %c0_13 = arith.constant 0 : index
      %13 = vector.load %arg5[%c0_12, %c0_13] : memref<1x128xf32, #tpu.memory_space<vmem>>, vector<1x128xf32>
      %14 = vector.broadcast %13 : vector<1x128xf32> to vector<128x128xf32>
      %15 = arith.addf %12, %14 : vector<128x128xf32>
      %c0_14 = arith.constant 0 : index
      %c0_15 = arith.constant 0 : index
      %16 = vector.load %arg6[%c0_14, %c0_15] : memref<128x128xbf16, #tpu.memory_space<vmem>>, vector<128x128xbf16>
      %17 = arith.extf %16 : vector<128x128xbf16> to vector<128x128xf32>
      %18 = arith.addf %15, %17 : vector<128x128xf32>
      %cst_16 = arith.constant 0.000000e+00 : f32
      %19 = vector.broadcast %cst_16 : f32 to vector<128x128xf32>
      %20 = arith.cmpf oge, %18, %19 : vector<128x128xf32>
      %cst_17 = arith.constant 2.500000e-01 : f32
      %21 = vector.broadcast %cst_17 : f32 to vector<128x128xf32>
      %22 = arith.mulf %21, %18 : vector<128x128xf32>
      %23 = arith.select %20, %18, %22 : vector<128x128xi1>, vector<128x128xf32>
      %24 = arith.truncf %23 : vector<128x128xf32> to vector<128x128xbf16>
      %c0_18 = arith.constant 0 : index
      %c0_19 = arith.constant 0 : index
      %25 = vector.load %arg7[%c0_18, %c0_19] : memref<128x128xbf16, #tpu.memory_space<vmem>>, vector<128x128xbf16>
      tpu.vector_store %arg7[%c0_18, %c0_19], %24 {strides = array<i32>} : memref<128x128xbf16, #tpu.memory_space<vmem>>, vector<128x128xbf16>,
    } else {
    }
    return
  }
  func.func @transform_0(%arg0: i32, %arg1: i32, %arg2: i32) -> (i32, i32) {
    %c0_i32 = arith.constant 0 : i32
    return %arg0, %arg2 : i32, i32
  }
  func.func @transform_1(%arg0: i32, %arg1: i32, %arg2: i32) -> (i32, i32) {
    %c0_i32 = arith.constant 0 : i32
    return %arg2, %arg1 : i32, i32
  }
  func.func @transform_2(%arg0: i32, %arg1: i32, %arg2: i32) -> (i32, i32) {
    %c0_i32 = arith.constant 0 : i32
    %c0_i32_0 = arith.constant 0 : i32
    return %c0_i32, %arg1 : i32, i32
  }
  func.func @transform_3(%arg0: i32, %arg1: i32, %arg2: i32) -> (i32, i32) {
    %c0_i32 = arith.constant 0 : i32
    return %arg0, %arg1 : i32, i32
  }
  func.func @transform_4(%arg0: i32, %arg1: i32, %arg2: i32) -> (i32, i32) {
    %c0_i32 = arith.constant 0 : i32
    return %arg0, %arg1 : i32, i32
  }
}

module attributes {stable_mosaic.version = 11 : i64} {
  func.func @_pool_affine_act_kernel(%arg0: i32, %arg1: memref<32x128xbf16, #tpu.memory_space<vmem>>, %arg2: memref<32x128xbf16, #tpu.memory_space<vmem>>, %arg3: memref<32x128xbf16, #tpu.memory_space<vmem>>, %arg4: memref<32x128xbf16, #tpu.memory_space<vmem>>, %arg5: memref<1x128xf32, #tpu.memory_space<vmem>>, %arg6: memref<1x128xf32, #tpu.memory_space<vmem>>, %arg7: memref<32x128xbf16, #tpu.memory_space<vmem>>) attributes {dimension_semantics = [#tpu.dimension_semantics<parallel>], iteration_bounds = array<i64: 1>, scalar_prefetch = 0 : i64, scratch_operands = 0 : i64, tpu.core_type = #tpu.core_type<tc>, window_params = [{transform_indices = @transform_0, window_bounds = array<i64: 32, 128>}, {transform_indices = @transform_1, window_bounds = array<i64: 32, 128>}, {transform_indices = @transform_2, window_bounds = array<i64: 32, 128>}, {transform_indices = @transform_3, window_bounds = array<i64: 32, 128>}, {pipeline_mode = #tpu.pipeline_mode<synchronous>, transform_indices = @transform_4, window_bounds = array<i64: 1, 128>}, {pipeline_mode = #tpu.pipeline_mode<synchronous>, transform_indices = @transform_5, window_bounds = array<i64: 1, 128>}, {transform_indices = @transform_6, window_bounds = array<i64: 32, 128>}]} {
    %c0 = arith.constant 0 : index
    %c0_0 = arith.constant 0 : index
    %0 = vector.load %arg1[%c0, %c0_0] : memref<32x128xbf16, #tpu.memory_space<vmem>>, vector<32x128xbf16>
    %c0_1 = arith.constant 0 : index
    %c0_2 = arith.constant 0 : index
    %1 = vector.load %arg2[%c0_1, %c0_2] : memref<32x128xbf16, #tpu.memory_space<vmem>>, vector<32x128xbf16>
    %2 = arith.maximumf %0, %1 : vector<32x128xbf16>
    %c0_3 = arith.constant 0 : index
    %c0_4 = arith.constant 0 : index
    %3 = vector.load %arg3[%c0_3, %c0_4] : memref<32x128xbf16, #tpu.memory_space<vmem>>, vector<32x128xbf16>
    %c0_5 = arith.constant 0 : index
    %c0_6 = arith.constant 0 : index
    %4 = vector.load %arg4[%c0_5, %c0_6] : memref<32x128xbf16, #tpu.memory_space<vmem>>, vector<32x128xbf16>
    %5 = arith.maximumf %3, %4 : vector<32x128xbf16>
    %6 = arith.maximumf %2, %5 : vector<32x128xbf16>
    %7 = arith.extf %6 : vector<32x128xbf16> to vector<32x128xf32>
    %c0_7 = arith.constant 0 : index
    %c0_8 = arith.constant 0 : index
    %8 = vector.load %arg5[%c0_7, %c0_8] : memref<1x128xf32, #tpu.memory_space<vmem>>, vector<1x128xf32>
    %9 = vector.broadcast %8 : vector<1x128xf32> to vector<32x128xf32>
    %10 = arith.mulf %7, %9 : vector<32x128xf32>
    %c0_9 = arith.constant 0 : index
    %c0_10 = arith.constant 0 : index
    %11 = vector.load %arg6[%c0_9, %c0_10] : memref<1x128xf32, #tpu.memory_space<vmem>>, vector<1x128xf32>
    %12 = vector.broadcast %11 : vector<1x128xf32> to vector<32x128xf32>
    %13 = arith.addf %10, %12 : vector<32x128xf32>
    %cst = arith.constant 0.000000e+00 : f32
    %14 = vector.broadcast %cst : f32 to vector<32x128xf32>
    %15 = arith.cmpf oge, %13, %14 : vector<32x128xf32>
    %cst_11 = arith.constant 2.500000e-01 : f32
    %16 = vector.broadcast %cst_11 : f32 to vector<32x128xf32>
    %17 = arith.mulf %16, %13 : vector<32x128xf32>
    %18 = arith.select %15, %13, %17 : vector<32x128xi1>, vector<32x128xf32>
    %19 = arith.truncf %18 : vector<32x128xf32> to vector<32x128xbf16>
    %c0_12 = arith.constant 0 : index
    %c0_13 = arith.constant 0 : index
    %20 = vector.load %arg7[%c0_12, %c0_13] : memref<32x128xbf16, #tpu.memory_space<vmem>>, vector<32x128xbf16>
    tpu.vector_store %arg7[%c0_12, %c0_13], %19 {strides = array<i32>} : memref<32x128xbf16, #tpu.memory_space<vmem>>, vector<32x128xbf16>,
    return
  }
  func.func @transform_0(%arg0: i32) -> (i32, i32) {
    %c0_i32 = arith.constant 0 : i32
    %c0_i32_0 = arith.constant 0 : i32
    return %arg0, %c0_i32 : i32, i32
  }
  func.func @transform_1(%arg0: i32) -> (i32, i32) {
    %c0_i32 = arith.constant 0 : i32
    %c0_i32_0 = arith.constant 0 : i32
    return %arg0, %c0_i32 : i32, i32
  }
  func.func @transform_2(%arg0: i32) -> (i32, i32) {
    %c0_i32 = arith.constant 0 : i32
    %c0_i32_0 = arith.constant 0 : i32
    return %arg0, %c0_i32 : i32, i32
  }
  func.func @transform_3(%arg0: i32) -> (i32, i32) {
    %c0_i32 = arith.constant 0 : i32
    %c0_i32_0 = arith.constant 0 : i32
    return %arg0, %c0_i32 : i32, i32
  }
  func.func @transform_4(%arg0: i32) -> (i32, i32) {
    %c0_i32 = arith.constant 0 : i32
    %c0_i32_0 = arith.constant 0 : i32
    %c0_i32_1 = arith.constant 0 : i32
    return %c0_i32, %c0_i32_0 : i32, i32
  }
  func.func @transform_5(%arg0: i32) -> (i32, i32) {
    %c0_i32 = arith.constant 0 : i32
    %c0_i32_0 = arith.constant 0 : i32
    %c0_i32_1 = arith.constant 0 : i32
    return %c0_i32, %c0_i32_0 : i32, i32
  }
  func.func @transform_6(%arg0: i32) -> (i32, i32) {
    %c0_i32 = arith.constant 0 : i32
    %c0_i32_0 = arith.constant 0 : i32
    return %arg0, %c0_i32 : i32, i32
  }
}

module attributes {stable_mosaic.version = 11 : i64} {
  func.func @_matmul_fused_kernel(%arg0: i32, %arg1: i32, %arg2: i32, %arg3: memref<32x512xbf16, #tpu.memory_space<vmem>>, %arg4: memref<512x128xbf16, #tpu.memory_space<vmem>>, %arg5: memref<1x128xf32, #tpu.memory_space<vmem>>, %arg6: memref<32x128xbf16, #tpu.memory_space<vmem>>, %arg7: memref<32x128xf32, #tpu.memory_space<vmem>>) attributes {dimension_semantics = [#tpu.dimension_semantics<parallel>, #tpu.dimension_semantics<parallel>, #tpu.dimension_semantics<arbitrary>], iteration_bounds = array<i64: 1, 1, 2>, scalar_prefetch = 0 : i64, scratch_operands = 1 : i64, tpu.core_type = #tpu.core_type<tc>, window_params = [{transform_indices = @transform_0, window_bounds = array<i64: 32, 512>}, {transform_indices = @transform_1, window_bounds = array<i64: 512, 128>}, {transform_indices = @transform_2, window_bounds = array<i64: 1, 128>}, {transform_indices = @transform_3, window_bounds = array<i64: 32, 128>}]} {
    %c0_i32 = arith.constant 0 : i32
    %0 = arith.cmpi eq, %arg2, %c0_i32 : i32
    %1 = arith.extui %0 : i1 to i32
    %c0_i32_0 = arith.constant 0 : i32
    %2 = arith.cmpi ne, %1, %c0_i32_0 : i32
    scf.if %2 {
      %cst_9 = arith.constant 0.000000e+00 : f32
      %12 = vector.broadcast %cst_9 : f32 to vector<32x128xf32>
      %c0_10 = arith.constant 0 : index
      %c0_11 = arith.constant 0 : index
      %13 = vector.load %arg7[%c0_10, %c0_11] : memref<32x128xf32, #tpu.memory_space<vmem>>, vector<32x128xf32>
      tpu.vector_store %arg7[%c0_10, %c0_11], %12 {strides = array<i32>} : memref<32x128xf32, #tpu.memory_space<vmem>>, vector<32x128xf32>,
    } else {
    }
    %c0 = arith.constant 0 : index
    %c0_1 = arith.constant 0 : index
    %3 = vector.load %arg7[%c0, %c0_1] : memref<32x128xf32, #tpu.memory_space<vmem>>, vector<32x128xf32>
    %c0_2 = arith.constant 0 : index
    %c0_3 = arith.constant 0 : index
    %4 = vector.load %arg3[%c0_2, %c0_3] : memref<32x512xbf16, #tpu.memory_space<vmem>>, vector<32x512xbf16>
    %c0_4 = arith.constant 0 : index
    %c0_5 = arith.constant 0 : index
    %5 = vector.load %arg4[%c0_4, %c0_5] : memref<512x128xbf16, #tpu.memory_space<vmem>>, vector<512x128xbf16>
    %cst = arith.constant dense<0.000000e+00> : vector<32x128xf32>
    %6 = tpu.matmul %4, %5, %cst {dimension_numbers = #tpu.dot_dimension_numbers<[1], [0], [0], [1], [0, 0, 1, 1], [], []>} : vector<32x512xbf16>, vector<512x128xbf16>, vector<32x128xf32> -> vector<32x128xf32>
    %7 = arith.addf %3, %6 : vector<32x128xf32>
    %c0_6 = arith.constant 0 : index
    %c0_7 = arith.constant 0 : index
    %8 = vector.load %arg7[%c0_6, %c0_7] : memref<32x128xf32, #tpu.memory_space<vmem>>, vector<32x128xf32>
    tpu.vector_store %arg7[%c0_6, %c0_7], %7 {strides = array<i32>} : memref<32x128xf32, #tpu.memory_space<vmem>>, vector<32x128xf32>,
    %c1_i32 = arith.constant 1 : i32
    %9 = arith.cmpi eq, %arg2, %c1_i32 : i32
    %10 = arith.extui %9 : i1 to i32
    %c0_i32_8 = arith.constant 0 : i32
    %11 = arith.cmpi ne, %10, %c0_i32_8 : i32
    scf.if %11 {
      %c0_9 = arith.constant 0 : index
      %c0_10 = arith.constant 0 : index
      %12 = vector.load %arg7[%c0_9, %c0_10] : memref<32x128xf32, #tpu.memory_space<vmem>>, vector<32x128xf32>
      %c0_11 = arith.constant 0 : index
      %c0_12 = arith.constant 0 : index
      %13 = vector.load %arg5[%c0_11, %c0_12] : memref<1x128xf32, #tpu.memory_space<vmem>>, vector<1x128xf32>
      %14 = vector.broadcast %13 : vector<1x128xf32> to vector<32x128xf32>
      %15 = arith.addf %12, %14 : vector<32x128xf32>
      %cst_13 = arith.constant 0.000000e+00 : f32
      %16 = vector.broadcast %cst_13 : f32 to vector<32x128xf32>
      %17 = arith.cmpf oge, %15, %16 : vector<32x128xf32>
      %cst_14 = arith.constant 2.500000e-01 : f32
      %18 = vector.broadcast %cst_14 : f32 to vector<32x128xf32>
      %19 = arith.mulf %18, %15 : vector<32x128xf32>
      %20 = arith.select %17, %15, %19 : vector<32x128xi1>, vector<32x128xf32>
      %21 = arith.truncf %20 : vector<32x128xf32> to vector<32x128xbf16>
      %c0_15 = arith.constant 0 : index
      %c0_16 = arith.constant 0 : index
      %22 = vector.load %arg6[%c0_15, %c0_16] : memref<32x128xbf16, #tpu.memory_space<vmem>>, vector<32x128xbf16>
      tpu.vector_store %arg6[%c0_15, %c0_16], %21 {strides = array<i32>} : memref<32x128xbf16, #tpu.memory_space<vmem>>, vector<32x128xbf16>,
    } else {
    }
    return
  }
  func.func @transform_0(%arg0: i32, %arg1: i32, %arg2: i32) -> (i32, i32) {
    %c0_i32 = arith.constant 0 : i32
    return %arg0, %arg2 : i32, i32
  }
  func.func @transform_1(%arg0: i32, %arg1: i32, %arg2: i32) -> (i32, i32) {
    %c0_i32 = arith.constant 0 : i32
    return %arg2, %arg1 : i32, i32
  }
  func.func @transform_2(%arg0: i32, %arg1: i32, %arg2: i32) -> (i32, i32) {
    %c0_i32 = arith.constant 0 : i32
    %c0_i32_0 = arith.constant 0 : i32
    return %c0_i32, %arg1 : i32, i32
  }
  func.func @transform_3(%arg0: i32, %arg1: i32, %arg2: i32) -> (i32, i32) {
    %c0_i32 = arith.constant 0 : i32
    return %arg0, %arg1 : i32, i32
  }
}

module attributes {stable_mosaic.version = 11 : i64} {
  func.func @_matmul_fused_kernel(%arg0: i32, %arg1: i32, %arg2: i32, %arg3: memref<32x384xbf16, #tpu.memory_space<vmem>>, %arg4: memref<384x128xbf16, #tpu.memory_space<vmem>>, %arg5: memref<1x128xf32, #tpu.memory_space<vmem>>, %arg6: memref<32x128xbf16, #tpu.memory_space<vmem>>, %arg7: memref<32x128xf32, #tpu.memory_space<vmem>>) attributes {dimension_semantics = [#tpu.dimension_semantics<parallel>, #tpu.dimension_semantics<parallel>, #tpu.dimension_semantics<arbitrary>], iteration_bounds = array<i64: 1, 1, 1>, scalar_prefetch = 0 : i64, scratch_operands = 1 : i64, tpu.core_type = #tpu.core_type<tc>, window_params = [{transform_indices = @transform_0, window_bounds = array<i64: 32, 384>}, {transform_indices = @transform_1, window_bounds = array<i64: 384, 128>}, {transform_indices = @transform_2, window_bounds = array<i64: 1, 128>}, {transform_indices = @transform_3, window_bounds = array<i64: 32, 128>}]} {
    %c0_i32 = arith.constant 0 : i32
    %0 = arith.cmpi eq, %arg2, %c0_i32 : i32
    %1 = arith.extui %0 : i1 to i32
    %c0_i32_0 = arith.constant 0 : i32
    %2 = arith.cmpi ne, %1, %c0_i32_0 : i32
    scf.if %2 {
      %cst_10 = arith.constant 0.000000e+00 : f32
      %12 = vector.broadcast %cst_10 : f32 to vector<32x128xf32>
      %c0_11 = arith.constant 0 : index
      %c0_12 = arith.constant 0 : index
      %13 = vector.load %arg7[%c0_11, %c0_12] : memref<32x128xf32, #tpu.memory_space<vmem>>, vector<32x128xf32>
      tpu.vector_store %arg7[%c0_11, %c0_12], %12 {strides = array<i32>} : memref<32x128xf32, #tpu.memory_space<vmem>>, vector<32x128xf32>,
    } else {
    }
    %c0 = arith.constant 0 : index
    %c0_1 = arith.constant 0 : index
    %3 = vector.load %arg7[%c0, %c0_1] : memref<32x128xf32, #tpu.memory_space<vmem>>, vector<32x128xf32>
    %c0_2 = arith.constant 0 : index
    %c0_3 = arith.constant 0 : index
    %4 = vector.load %arg3[%c0_2, %c0_3] : memref<32x384xbf16, #tpu.memory_space<vmem>>, vector<32x384xbf16>
    %c0_4 = arith.constant 0 : index
    %c0_5 = arith.constant 0 : index
    %5 = vector.load %arg4[%c0_4, %c0_5] : memref<384x128xbf16, #tpu.memory_space<vmem>>, vector<384x128xbf16>
    %cst = arith.constant dense<0.000000e+00> : vector<32x128xf32>
    %6 = tpu.matmul %4, %5, %cst {dimension_numbers = #tpu.dot_dimension_numbers<[1], [0], [0], [1], [0, 0, 1, 1], [], []>} : vector<32x384xbf16>, vector<384x128xbf16>, vector<32x128xf32> -> vector<32x128xf32>
    %7 = arith.addf %3, %6 : vector<32x128xf32>
    %c0_6 = arith.constant 0 : index
    %c0_7 = arith.constant 0 : index
    %8 = vector.load %arg7[%c0_6, %c0_7] : memref<32x128xf32, #tpu.memory_space<vmem>>, vector<32x128xf32>
    tpu.vector_store %arg7[%c0_6, %c0_7], %7 {strides = array<i32>} : memref<32x128xf32, #tpu.memory_space<vmem>>, vector<32x128xf32>,
    %c0_i32_8 = arith.constant 0 : i32
    %9 = arith.cmpi eq, %arg2, %c0_i32_8 : i32
    %10 = arith.extui %9 : i1 to i32
    %c0_i32_9 = arith.constant 0 : i32
    %11 = arith.cmpi ne, %10, %c0_i32_9 : i32
    scf.if %11 {
      %c0_10 = arith.constant 0 : index
      %c0_11 = arith.constant 0 : index
      %12 = vector.load %arg7[%c0_10, %c0_11] : memref<32x128xf32, #tpu.memory_space<vmem>>, vector<32x128xf32>
      %c0_12 = arith.constant 0 : index
      %c0_13 = arith.constant 0 : index
      %13 = vector.load %arg5[%c0_12, %c0_13] : memref<1x128xf32, #tpu.memory_space<vmem>>, vector<1x128xf32>
      %14 = vector.broadcast %13 : vector<1x128xf32> to vector<32x128xf32>
      %15 = arith.addf %12, %14 : vector<32x128xf32>
      %cst_14 = arith.constant 0.000000e+00 : f32
      %16 = vector.broadcast %cst_14 : f32 to vector<32x128xf32>
      %17 = arith.cmpf oge, %15, %16 : vector<32x128xf32>
      %cst_15 = arith.constant 2.500000e-01 : f32
      %18 = vector.broadcast %cst_15 : f32 to vector<32x128xf32>
      %19 = arith.mulf %18, %15 : vector<32x128xf32>
      %20 = arith.select %17, %15, %19 : vector<32x128xi1>, vector<32x128xf32>
      %21 = arith.truncf %20 : vector<32x128xf32> to vector<32x128xbf16>
      %c0_16 = arith.constant 0 : index
      %c0_17 = arith.constant 0 : index
      %22 = vector.load %arg6[%c0_16, %c0_17] : memref<32x128xbf16, #tpu.memory_space<vmem>>, vector<32x128xbf16>
      tpu.vector_store %arg6[%c0_16, %c0_17], %21 {strides = array<i32>} : memref<32x128xbf16, #tpu.memory_space<vmem>>, vector<32x128xbf16>,
    } else {
    }
    return
  }
  func.func @transform_0(%arg0: i32, %arg1: i32, %arg2: i32) -> (i32, i32) {
    %c0_i32 = arith.constant 0 : i32
    return %arg0, %arg2 : i32, i32
  }
  func.func @transform_1(%arg0: i32, %arg1: i32, %arg2: i32) -> (i32, i32) {
    %c0_i32 = arith.constant 0 : i32
    return %arg2, %arg1 : i32, i32
  }
  func.func @transform_2(%arg0: i32, %arg1: i32, %arg2: i32) -> (i32, i32) {
    %c0_i32 = arith.constant 0 : i32
    %c0_i32_0 = arith.constant 0 : i32
    return %c0_i32, %arg1 : i32, i32
  }
  func.func @transform_3(%arg0: i32, %arg1: i32, %arg2: i32) -> (i32, i32) {
    %c0_i32 = arith.constant 0 : i32
    return %arg0, %arg1 : i32, i32
  }
}

module attributes {stable_mosaic.version = 11 : i64} {
  func.func @_matmul_fused_kernel(%arg0: i32, %arg1: i32, %arg2: i32, %arg3: memref<32x384xbf16, #tpu.memory_space<vmem>>, %arg4: memref<384x128xbf16, #tpu.memory_space<vmem>>, %arg5: memref<1x128xf32, #tpu.memory_space<vmem>>, %arg6: memref<32x128xbf16, #tpu.memory_space<vmem>>, %arg7: memref<32x128xbf16, #tpu.memory_space<vmem>>, %arg8: memref<32x128xf32, #tpu.memory_space<vmem>>) attributes {dimension_semantics = [#tpu.dimension_semantics<parallel>, #tpu.dimension_semantics<parallel>, #tpu.dimension_semantics<arbitrary>], iteration_bounds = array<i64: 1, 1, 1>, scalar_prefetch = 0 : i64, scratch_operands = 1 : i64, tpu.core_type = #tpu.core_type<tc>, window_params = [{transform_indices = @transform_0, window_bounds = array<i64: 32, 384>}, {transform_indices = @transform_1, window_bounds = array<i64: 384, 128>}, {transform_indices = @transform_2, window_bounds = array<i64: 1, 128>}, {transform_indices = @transform_3, window_bounds = array<i64: 32, 128>}, {transform_indices = @transform_4, window_bounds = array<i64: 32, 128>}]} {
    %c0_i32 = arith.constant 0 : i32
    %0 = arith.cmpi eq, %arg2, %c0_i32 : i32
    %1 = arith.extui %0 : i1 to i32
    %c0_i32_0 = arith.constant 0 : i32
    %2 = arith.cmpi ne, %1, %c0_i32_0 : i32
    scf.if %2 {
      %cst_10 = arith.constant 0.000000e+00 : f32
      %12 = vector.broadcast %cst_10 : f32 to vector<32x128xf32>
      %c0_11 = arith.constant 0 : index
      %c0_12 = arith.constant 0 : index
      %13 = vector.load %arg8[%c0_11, %c0_12] : memref<32x128xf32, #tpu.memory_space<vmem>>, vector<32x128xf32>
      tpu.vector_store %arg8[%c0_11, %c0_12], %12 {strides = array<i32>} : memref<32x128xf32, #tpu.memory_space<vmem>>, vector<32x128xf32>,
    } else {
    }
    %c0 = arith.constant 0 : index
    %c0_1 = arith.constant 0 : index
    %3 = vector.load %arg8[%c0, %c0_1] : memref<32x128xf32, #tpu.memory_space<vmem>>, vector<32x128xf32>
    %c0_2 = arith.constant 0 : index
    %c0_3 = arith.constant 0 : index
    %4 = vector.load %arg3[%c0_2, %c0_3] : memref<32x384xbf16, #tpu.memory_space<vmem>>, vector<32x384xbf16>
    %c0_4 = arith.constant 0 : index
    %c0_5 = arith.constant 0 : index
    %5 = vector.load %arg4[%c0_4, %c0_5] : memref<384x128xbf16, #tpu.memory_space<vmem>>, vector<384x128xbf16>
    %cst = arith.constant dense<0.000000e+00> : vector<32x128xf32>
    %6 = tpu.matmul %4, %5, %cst {dimension_numbers = #tpu.dot_dimension_numbers<[1], [0], [0], [1], [0, 0, 1, 1], [], []>} : vector<32x384xbf16>, vector<384x128xbf16>, vector<32x128xf32> -> vector<32x128xf32>
    %7 = arith.addf %3, %6 : vector<32x128xf32>
    %c0_6 = arith.constant 0 : index
    %c0_7 = arith.constant 0 : index
    %8 = vector.load %arg8[%c0_6, %c0_7] : memref<32x128xf32, #tpu.memory_space<vmem>>, vector<32x128xf32>
    tpu.vector_store %arg8[%c0_6, %c0_7], %7 {strides = array<i32>} : memref<32x128xf32, #tpu.memory_space<vmem>>, vector<32x128xf32>,
    %c0_i32_8 = arith.constant 0 : i32
    %9 = arith.cmpi eq, %arg2, %c0_i32_8 : i32
    %10 = arith.extui %9 : i1 to i32
    %c0_i32_9 = arith.constant 0 : i32
    %11 = arith.cmpi ne, %10, %c0_i32_9 : i32
    scf.if %11 {
      %c0_10 = arith.constant 0 : index
      %c0_11 = arith.constant 0 : index
      %12 = vector.load %arg8[%c0_10, %c0_11] : memref<32x128xf32, #tpu.memory_space<vmem>>, vector<32x128xf32>
      %c0_12 = arith.constant 0 : index
      %c0_13 = arith.constant 0 : index
      %13 = vector.load %arg5[%c0_12, %c0_13] : memref<1x128xf32, #tpu.memory_space<vmem>>, vector<1x128xf32>
      %14 = vector.broadcast %13 : vector<1x128xf32> to vector<32x128xf32>
      %15 = arith.addf %12, %14 : vector<32x128xf32>
      %c0_14 = arith.constant 0 : index
      %c0_15 = arith.constant 0 : index
      %16 = vector.load %arg6[%c0_14, %c0_15] : memref<32x128xbf16, #tpu.memory_space<vmem>>, vector<32x128xbf16>
      %17 = arith.extf %16 : vector<32x128xbf16> to vector<32x128xf32>
      %18 = arith.addf %15, %17 : vector<32x128xf32>
      %cst_16 = arith.constant 0.000000e+00 : f32
      %19 = vector.broadcast %cst_16 : f32 to vector<32x128xf32>
      %20 = arith.cmpf oge, %18, %19 : vector<32x128xf32>
      %cst_17 = arith.constant 2.500000e-01 : f32
      %21 = vector.broadcast %cst_17 : f32 to vector<32x128xf32>
      %22 = arith.mulf %21, %18 : vector<32x128xf32>
      %23 = arith.select %20, %18, %22 : vector<32x128xi1>, vector<32x128xf32>
      %24 = arith.truncf %23 : vector<32x128xf32> to vector<32x128xbf16>
      %c0_18 = arith.constant 0 : index
      %c0_19 = arith.constant 0 : index
      %25 = vector.load %arg7[%c0_18, %c0_19] : memref<32x128xbf16, #tpu.memory_space<vmem>>, vector<32x128xbf16>
      tpu.vector_store %arg7[%c0_18, %c0_19], %24 {strides = array<i32>} : memref<32x128xbf16, #tpu.memory_space<vmem>>, vector<32x128xbf16>,
    } else {
    }
    return
  }
  func.func @transform_0(%arg0: i32, %arg1: i32, %arg2: i32) -> (i32, i32) {
    %c0_i32 = arith.constant 0 : i32
    return %arg0, %arg2 : i32, i32
  }
  func.func @transform_1(%arg0: i32, %arg1: i32, %arg2: i32) -> (i32, i32) {
    %c0_i32 = arith.constant 0 : i32
    return %arg2, %arg1 : i32, i32
  }
  func.func @transform_2(%arg0: i32, %arg1: i32, %arg2: i32) -> (i32, i32) {
    %c0_i32 = arith.constant 0 : i32
    %c0_i32_0 = arith.constant 0 : i32
    return %c0_i32, %arg1 : i32, i32
  }
  func.func @transform_3(%arg0: i32, %arg1: i32, %arg2: i32) -> (i32, i32) {
    %c0_i32 = arith.constant 0 : i32
    return %arg0, %arg1 : i32, i32
  }
  func.func @transform_4(%arg0: i32, %arg1: i32, %arg2: i32) -> (i32, i32) {
    %c0_i32 = arith.constant 0 : i32
    return %arg0, %arg1 : i32, i32
  }
}

module attributes {stable_mosaic.version = 11 : i64} {
  func.func @_matvec_fused_kernel(%arg0: i32, %arg1: i32, %arg2: memref<16x512xbf16, #tpu.memory_space<vmem>>, %arg3: memref<1x512xf32, #tpu.memory_space<vmem>>, %arg4: memref<1x1xf32, #tpu.memory_space<vmem>>, %arg5: memref<16x1xf32, #tpu.memory_space<vmem>>, %arg6: memref<16x1xf32, #tpu.memory_space<vmem>>) attributes {dimension_semantics = [#tpu.dimension_semantics<parallel>, #tpu.dimension_semantics<arbitrary>], iteration_bounds = array<i64: 1, 13>, scalar_prefetch = 0 : i64, scratch_operands = 1 : i64, tpu.core_type = #tpu.core_type<tc>, window_params = [{transform_indices = @transform_0, window_bounds = array<i64: 16, 512>}, {transform_indices = @transform_1, window_bounds = array<i64: 1, 512>}, {pipeline_mode = #tpu.pipeline_mode<synchronous>, transform_indices = @transform_2, window_bounds = array<i64: 1, 1>}, {transform_indices = @transform_3, window_bounds = array<i64: 16, 1>}]} {
    %c0_i32 = arith.constant 0 : i32
    %0 = arith.cmpi eq, %arg1, %c0_i32 : i32
    %1 = arith.extui %0 : i1 to i32
    %c0_i32_0 = arith.constant 0 : i32
    %2 = arith.cmpi ne, %1, %c0_i32_0 : i32
    scf.if %2 {
      %cst_9 = arith.constant 0.000000e+00 : f32
      %16 = vector.broadcast %cst_9 : f32 to vector<16x1xf32>
      %c0_10 = arith.constant 0 : index
      %c0_11 = arith.constant 0 : index
      %17 = vector.load %arg6[%c0_10, %c0_11] : memref<16x1xf32, #tpu.memory_space<vmem>>, vector<16x1xf32>
      tpu.vector_store %arg6[%c0_10, %c0_11], %16 {strides = array<i32>} : memref<16x1xf32, #tpu.memory_space<vmem>>, vector<16x1xf32>,
    } else {
    }
    %c0 = arith.constant 0 : index
    %c0_1 = arith.constant 0 : index
    %3 = vector.load %arg2[%c0, %c0_1] : memref<16x512xbf16, #tpu.memory_space<vmem>>, vector<16x512xbf16>
    %4 = arith.extf %3 : vector<16x512xbf16> to vector<16x512xf32>
    %c0_2 = arith.constant 0 : index
    %c0_3 = arith.constant 0 : index
    %5 = vector.load %arg3[%c0_2, %c0_3] : memref<1x512xf32, #tpu.memory_space<vmem>>, vector<1x512xf32>
    %c0_4 = arith.constant 0 : index
    %c0_5 = arith.constant 0 : index
    %6 = vector.load %arg6[%c0_4, %c0_5] : memref<16x1xf32, #tpu.memory_space<vmem>>, vector<16x1xf32>
    %7 = vector.broadcast %5 : vector<1x512xf32> to vector<16x512xf32>
    %8 = arith.mulf %4, %7 : vector<16x512xf32>
    %cst = arith.constant dense<0.000000e+00> : vector<16xf32>
    %9 = vector.multi_reduction <add>, %8, %cst [1] : vector<16x512xf32> to vector<16xf32>
    %10 = vector.shape_cast %9 : vector<16xf32> to vector<16x1xf32>
    %11 = arith.addf %6, %10 : vector<16x1xf32>
    %c0_6 = arith.constant 0 : index
    %c0_7 = arith.constant 0 : index
    %12 = vector.load %arg6[%c0_6, %c0_7] : memref<16x1xf32, #tpu.memory_space<vmem>>, vector<16x1xf32>
    tpu.vector_store %arg6[%c0_6, %c0_7], %11 {strides = array<i32>} : memref<16x1xf32, #tpu.memory_space<vmem>>, vector<16x1xf32>,
    %c12_i32 = arith.constant 12 : i32
    %13 = arith.cmpi eq, %arg1, %c12_i32 : i32
    %14 = arith.extui %13 : i1 to i32
    %c0_i32_8 = arith.constant 0 : i32
    %15 = arith.cmpi ne, %14, %c0_i32_8 : i32
    scf.if %15 {
      %c0_9 = arith.constant 0 : index
      %c0_10 = arith.constant 0 : index
      %16 = vector.load %arg6[%c0_9, %c0_10] : memref<16x1xf32, #tpu.memory_space<vmem>>, vector<16x1xf32>
      %c0_11 = arith.constant 0 : index
      %c0_12 = arith.constant 0 : index
      %17 = vector.load %arg4[%c0_11, %c0_12] : memref<1x1xf32, #tpu.memory_space<vmem>>, vector<1x1xf32>
      %18 = vector.broadcast %17 : vector<1x1xf32> to vector<16x1xf32>
      %19 = arith.addf %16, %18 : vector<16x1xf32>
      %cst_13 = arith.constant 0.000000e+00 : f32
      %20 = vector.broadcast %cst_13 : f32 to vector<16x1xf32>
      %21 = arith.maximumf %19, %20 : vector<16x1xf32>
      %c0_14 = arith.constant 0 : index
      %c0_15 = arith.constant 0 : index
      %22 = vector.load %arg5[%c0_14, %c0_15] : memref<16x1xf32, #tpu.memory_space<vmem>>, vector<16x1xf32>
      tpu.vector_store %arg5[%c0_14, %c0_15], %21 {strides = array<i32>} : memref<16x1xf32, #tpu.memory_space<vmem>>, vector<16x1xf32>,
    } else {
    }
    return
  }
  func.func @transform_0(%arg0: i32, %arg1: i32) -> (i32, i32) {
    %c0_i32 = arith.constant 0 : i32
    return %arg0, %arg1 : i32, i32
  }
  func.func @transform_1(%arg0: i32, %arg1: i32) -> (i32, i32) {
    %c0_i32 = arith.constant 0 : i32
    %c0_i32_0 = arith.constant 0 : i32
    return %c0_i32, %arg1 : i32, i32
  }
  func.func @transform_2(%arg0: i32, %arg1: i32) -> (i32, i32) {
    %c0_i32 = arith.constant 0 : i32
    %c0_i32_0 = arith.constant 0 : i32
    %c0_i32_1 = arith.constant 0 : i32
    return %c0_i32, %c0_i32_0 : i32, i32
  }
  func.func @transform_3(%arg0: i32, %arg1: i32) -> (i32, i32) {
    %c0_i32 = arith.constant 0 : i32
    %c0_i32_0 = arith.constant 0 : i32
    return %arg0, %c0_i32 : i32, i32
  }
}

module attributes {stable_mosaic.version = 11 : i64} {
  func.func @_matvec_fused_kernel(%arg0: i32, %arg1: i32, %arg2: memref<16x128xf32, #tpu.memory_space<vmem>>, %arg3: memref<1x128xf32, #tpu.memory_space<vmem>>, %arg4: memref<1x1xf32, #tpu.memory_space<vmem>>, %arg5: memref<16x1xf32, #tpu.memory_space<vmem>>, %arg6: memref<16x1xf32, #tpu.memory_space<vmem>>) attributes {dimension_semantics = [#tpu.dimension_semantics<parallel>, #tpu.dimension_semantics<arbitrary>], iteration_bounds = array<i64: 1, 1>, scalar_prefetch = 0 : i64, scratch_operands = 1 : i64, tpu.core_type = #tpu.core_type<tc>, window_params = [{transform_indices = @transform_0, window_bounds = array<i64: 16, 128>}, {transform_indices = @transform_1, window_bounds = array<i64: 1, 128>}, {pipeline_mode = #tpu.pipeline_mode<synchronous>, transform_indices = @transform_2, window_bounds = array<i64: 1, 1>}, {transform_indices = @transform_3, window_bounds = array<i64: 16, 1>}]} {
    %c0_i32 = arith.constant 0 : i32
    %0 = arith.cmpi eq, %arg1, %c0_i32 : i32
    %1 = arith.extui %0 : i1 to i32
    %c0_i32_0 = arith.constant 0 : i32
    %2 = arith.cmpi ne, %1, %c0_i32_0 : i32
    scf.if %2 {
      %cst_10 = arith.constant 0.000000e+00 : f32
      %15 = vector.broadcast %cst_10 : f32 to vector<16x1xf32>
      %c0_11 = arith.constant 0 : index
      %c0_12 = arith.constant 0 : index
      %16 = vector.load %arg6[%c0_11, %c0_12] : memref<16x1xf32, #tpu.memory_space<vmem>>, vector<16x1xf32>
      tpu.vector_store %arg6[%c0_11, %c0_12], %15 {strides = array<i32>} : memref<16x1xf32, #tpu.memory_space<vmem>>, vector<16x1xf32>,
    } else {
    }
    %c0 = arith.constant 0 : index
    %c0_1 = arith.constant 0 : index
    %3 = vector.load %arg2[%c0, %c0_1] : memref<16x128xf32, #tpu.memory_space<vmem>>, vector<16x128xf32>
    %c0_2 = arith.constant 0 : index
    %c0_3 = arith.constant 0 : index
    %4 = vector.load %arg3[%c0_2, %c0_3] : memref<1x128xf32, #tpu.memory_space<vmem>>, vector<1x128xf32>
    %c0_4 = arith.constant 0 : index
    %c0_5 = arith.constant 0 : index
    %5 = vector.load %arg6[%c0_4, %c0_5] : memref<16x1xf32, #tpu.memory_space<vmem>>, vector<16x1xf32>
    %6 = vector.broadcast %4 : vector<1x128xf32> to vector<16x128xf32>
    %7 = arith.mulf %3, %6 : vector<16x128xf32>
    %cst = arith.constant dense<0.000000e+00> : vector<16xf32>
    %8 = vector.multi_reduction <add>, %7, %cst [1] : vector<16x128xf32> to vector<16xf32>
    %9 = vector.shape_cast %8 : vector<16xf32> to vector<16x1xf32>
    %10 = arith.addf %5, %9 : vector<16x1xf32>
    %c0_6 = arith.constant 0 : index
    %c0_7 = arith.constant 0 : index
    %11 = vector.load %arg6[%c0_6, %c0_7] : memref<16x1xf32, #tpu.memory_space<vmem>>, vector<16x1xf32>
    tpu.vector_store %arg6[%c0_6, %c0_7], %10 {strides = array<i32>} : memref<16x1xf32, #tpu.memory_space<vmem>>, vector<16x1xf32>,
    %c0_i32_8 = arith.constant 0 : i32
    %12 = arith.cmpi eq, %arg1, %c0_i32_8 : i32
    %13 = arith.extui %12 : i1 to i32
    %c0_i32_9 = arith.constant 0 : i32
    %14 = arith.cmpi ne, %13, %c0_i32_9 : i32
    scf.if %14 {
      %c0_10 = arith.constant 0 : index
      %c0_11 = arith.constant 0 : index
      %15 = vector.load %arg6[%c0_10, %c0_11] : memref<16x1xf32, #tpu.memory_space<vmem>>, vector<16x1xf32>
      %c0_12 = arith.constant 0 : index
      %c0_13 = arith.constant 0 : index
      %16 = vector.load %arg4[%c0_12, %c0_13] : memref<1x1xf32, #tpu.memory_space<vmem>>, vector<1x1xf32>
      %17 = vector.broadcast %16 : vector<1x1xf32> to vector<16x1xf32>
      %18 = arith.addf %15, %17 : vector<16x1xf32>
      %cst_14 = arith.constant 0.000000e+00 : f32
      %19 = vector.broadcast %cst_14 : f32 to vector<16x1xf32>
      %20 = arith.maximumf %18, %19 : vector<16x1xf32>
      %c0_15 = arith.constant 0 : index
      %c0_16 = arith.constant 0 : index
      %21 = vector.load %arg5[%c0_15, %c0_16] : memref<16x1xf32, #tpu.memory_space<vmem>>, vector<16x1xf32>
      tpu.vector_store %arg5[%c0_15, %c0_16], %20 {strides = array<i32>} : memref<16x1xf32, #tpu.memory_space<vmem>>, vector<16x1xf32>,
    } else {
    }
    return
  }
  func.func @transform_0(%arg0: i32, %arg1: i32) -> (i32, i32) {
    %c0_i32 = arith.constant 0 : i32
    return %arg0, %arg1 : i32, i32
  }
  func.func @transform_1(%arg0: i32, %arg1: i32) -> (i32, i32) {
    %c0_i32 = arith.constant 0 : i32
    %c0_i32_0 = arith.constant 0 : i32
    return %c0_i32, %arg1 : i32, i32
  }
  func.func @transform_2(%arg0: i32, %arg1: i32) -> (i32, i32) {
    %c0_i32 = arith.constant 0 : i32
    %c0_i32_0 = arith.constant 0 : i32
    %c0_i32_1 = arith.constant 0 : i32
    return %c0_i32, %c0_i32_0 : i32, i32
  }
  func.func @transform_3(%arg0: i32, %arg1: i32) -> (i32, i32) {
    %c0_i32 = arith.constant 0 : i32
    %c0_i32_0 = arith.constant 0 : i32
    return %arg0, %c0_i32 : i32, i32
  }
}

module attributes {stable_mosaic.version = 11 : i64} {
  func.func @_matvec_fused_kernel(%arg0: i32, %arg1: i32, %arg2: memref<16x128xf32, #tpu.memory_space<vmem>>, %arg3: memref<1x128xf32, #tpu.memory_space<vmem>>, %arg4: memref<1x1xf32, #tpu.memory_space<vmem>>, %arg5: memref<16x1xf32, #tpu.memory_space<vmem>>, %arg6: memref<16x1xf32, #tpu.memory_space<vmem>>, %arg7: memref<16x1xf32, #tpu.memory_space<vmem>>) attributes {dimension_semantics = [#tpu.dimension_semantics<parallel>, #tpu.dimension_semantics<arbitrary>], iteration_bounds = array<i64: 1, 1>, scalar_prefetch = 0 : i64, scratch_operands = 1 : i64, tpu.core_type = #tpu.core_type<tc>, window_params = [{transform_indices = @transform_0, window_bounds = array<i64: 16, 128>}, {transform_indices = @transform_1, window_bounds = array<i64: 1, 128>}, {pipeline_mode = #tpu.pipeline_mode<synchronous>, transform_indices = @transform_2, window_bounds = array<i64: 1, 1>}, {transform_indices = @transform_3, window_bounds = array<i64: 16, 1>}, {transform_indices = @transform_4, window_bounds = array<i64: 16, 1>}]} {
    %c0_i32 = arith.constant 0 : i32
    %0 = arith.cmpi eq, %arg1, %c0_i32 : i32
    %1 = arith.extui %0 : i1 to i32
    %c0_i32_0 = arith.constant 0 : i32
    %2 = arith.cmpi ne, %1, %c0_i32_0 : i32
    scf.if %2 {
      %cst_10 = arith.constant 0.000000e+00 : f32
      %15 = vector.broadcast %cst_10 : f32 to vector<16x1xf32>
      %c0_11 = arith.constant 0 : index
      %c0_12 = arith.constant 0 : index
      %16 = vector.load %arg7[%c0_11, %c0_12] : memref<16x1xf32, #tpu.memory_space<vmem>>, vector<16x1xf32>
      tpu.vector_store %arg7[%c0_11, %c0_12], %15 {strides = array<i32>} : memref<16x1xf32, #tpu.memory_space<vmem>>, vector<16x1xf32>,
    } else {
    }
    %c0 = arith.constant 0 : index
    %c0_1 = arith.constant 0 : index
    %3 = vector.load %arg2[%c0, %c0_1] : memref<16x128xf32, #tpu.memory_space<vmem>>, vector<16x128xf32>
    %c0_2 = arith.constant 0 : index
    %c0_3 = arith.constant 0 : index
    %4 = vector.load %arg3[%c0_2, %c0_3] : memref<1x128xf32, #tpu.memory_space<vmem>>, vector<1x128xf32>
    %c0_4 = arith.constant 0 : index
    %c0_5 = arith.constant 0 : index
    %5 = vector.load %arg7[%c0_4, %c0_5] : memref<16x1xf32, #tpu.memory_space<vmem>>, vector<16x1xf32>
    %6 = vector.broadcast %4 : vector<1x128xf32> to vector<16x128xf32>
    %7 = arith.mulf %3, %6 : vector<16x128xf32>
    %cst = arith.constant dense<0.000000e+00> : vector<16xf32>
    %8 = vector.multi_reduction <add>, %7, %cst [1] : vector<16x128xf32> to vector<16xf32>
    %9 = vector.shape_cast %8 : vector<16xf32> to vector<16x1xf32>
    %10 = arith.addf %5, %9 : vector<16x1xf32>
    %c0_6 = arith.constant 0 : index
    %c0_7 = arith.constant 0 : index
    %11 = vector.load %arg7[%c0_6, %c0_7] : memref<16x1xf32, #tpu.memory_space<vmem>>, vector<16x1xf32>
    tpu.vector_store %arg7[%c0_6, %c0_7], %10 {strides = array<i32>} : memref<16x1xf32, #tpu.memory_space<vmem>>, vector<16x1xf32>,
    %c0_i32_8 = arith.constant 0 : i32
    %12 = arith.cmpi eq, %arg1, %c0_i32_8 : i32
    %13 = arith.extui %12 : i1 to i32
    %c0_i32_9 = arith.constant 0 : i32
    %14 = arith.cmpi ne, %13, %c0_i32_9 : i32
    scf.if %14 {
      %c0_10 = arith.constant 0 : index
      %c0_11 = arith.constant 0 : index
      %15 = vector.load %arg7[%c0_10, %c0_11] : memref<16x1xf32, #tpu.memory_space<vmem>>, vector<16x1xf32>
      %c0_12 = arith.constant 0 : index
      %c0_13 = arith.constant 0 : index
      %16 = vector.load %arg4[%c0_12, %c0_13] : memref<1x1xf32, #tpu.memory_space<vmem>>, vector<1x1xf32>
      %17 = vector.broadcast %16 : vector<1x1xf32> to vector<16x1xf32>
      %18 = arith.addf %15, %17 : vector<16x1xf32>
      %cst_14 = arith.constant 0.000000e+00 : f32
      %19 = vector.broadcast %cst_14 : f32 to vector<16x1xf32>
      %20 = arith.maximumf %18, %19 : vector<16x1xf32>
      %c0_15 = arith.constant 0 : index
      %c0_16 = arith.constant 0 : index
      %21 = vector.load %arg5[%c0_15, %c0_16] : memref<16x1xf32, #tpu.memory_space<vmem>>, vector<16x1xf32>
      %22 = arith.addf %20, %21 : vector<16x1xf32>
      %c0_17 = arith.constant 0 : index
      %c0_18 = arith.constant 0 : index
      %23 = vector.load %arg6[%c0_17, %c0_18] : memref<16x1xf32, #tpu.memory_space<vmem>>, vector<16x1xf32>
      tpu.vector_store %arg6[%c0_17, %c0_18], %22 {strides = array<i32>} : memref<16x1xf32, #tpu.memory_space<vmem>>, vector<16x1xf32>,
    } else {
    }
    return
  }
  func.func @transform_0(%arg0: i32, %arg1: i32) -> (i32, i32) {
    %c0_i32 = arith.constant 0 : i32
    return %arg0, %arg1 : i32, i32
  }
  func.func @transform_1(%arg0: i32, %arg1: i32) -> (i32, i32) {
    %c0_i32 = arith.constant 0 : i32
    %c0_i32_0 = arith.constant 0 : i32
    return %c0_i32, %arg1 : i32, i32
  }
  func.func @transform_2(%arg0: i32, %arg1: i32) -> (i32, i32) {
    %c0_i32 = arith.constant 0 : i32
    %c0_i32_0 = arith.constant 0 : i32
    %c0_i32_1 = arith.constant 0 : i32
    return %c0_i32, %c0_i32_0 : i32, i32
  }
  func.func @transform_3(%arg0: i32, %arg1: i32) -> (i32, i32) {
    %c0_i32 = arith.constant 0 : i32
    %c0_i32_0 = arith.constant 0 : i32
    return %arg0, %c0_i32 : i32, i32
  }
  func.func @transform_4(%arg0: i32, %arg1: i32) -> (i32, i32) {
    %c0_i32 = arith.constant 0 : i32
    %c0_i32_0 = arith.constant 0 : i32
    return %arg0, %c0_i32 : i32, i32
  }
}

module attributes {stable_mosaic.version = 11 : i64} {
  func.func @_matmul_fused_kernel(%arg0: i32, %arg1: i32, %arg2: i32, %arg3: memref<16x128xbf16, #tpu.memory_space<vmem>>, %arg4: memref<128x128xbf16, #tpu.memory_space<vmem>>, %arg5: memref<1x128xf32, #tpu.memory_space<vmem>>, %arg6: memref<16x128xf32, #tpu.memory_space<vmem>>, %arg7: memref<16x128xf32, #tpu.memory_space<vmem>>) attributes {dimension_semantics = [#tpu.dimension_semantics<parallel>, #tpu.dimension_semantics<parallel>, #tpu.dimension_semantics<arbitrary>], iteration_bounds = array<i64: 1, 1, 1>, scalar_prefetch = 0 : i64, scratch_operands = 1 : i64, tpu.core_type = #tpu.core_type<tc>, window_params = [{transform_indices = @transform_0, window_bounds = array<i64: 16, 128>}, {transform_indices = @transform_1, window_bounds = array<i64: 128, 128>}, {transform_indices = @transform_2, window_bounds = array<i64: 1, 128>}, {transform_indices = @transform_3, window_bounds = array<i64: 16, 128>}]} {
    %c0_i32 = arith.constant 0 : i32
    %0 = arith.cmpi eq, %arg2, %c0_i32 : i32
    %1 = arith.extui %0 : i1 to i32
    %c0_i32_0 = arith.constant 0 : i32
    %2 = arith.cmpi ne, %1, %c0_i32_0 : i32
    scf.if %2 {
      %cst_10 = arith.constant 0.000000e+00 : f32
      %12 = vector.broadcast %cst_10 : f32 to vector<16x128xf32>
      %c0_11 = arith.constant 0 : index
      %c0_12 = arith.constant 0 : index
      %13 = vector.load %arg7[%c0_11, %c0_12] : memref<16x128xf32, #tpu.memory_space<vmem>>, vector<16x128xf32>
      tpu.vector_store %arg7[%c0_11, %c0_12], %12 {strides = array<i32>} : memref<16x128xf32, #tpu.memory_space<vmem>>, vector<16x128xf32>,
    } else {
    }
    %c0 = arith.constant 0 : index
    %c0_1 = arith.constant 0 : index
    %3 = vector.load %arg7[%c0, %c0_1] : memref<16x128xf32, #tpu.memory_space<vmem>>, vector<16x128xf32>
    %c0_2 = arith.constant 0 : index
    %c0_3 = arith.constant 0 : index
    %4 = vector.load %arg3[%c0_2, %c0_3] : memref<16x128xbf16, #tpu.memory_space<vmem>>, vector<16x128xbf16>
    %c0_4 = arith.constant 0 : index
    %c0_5 = arith.constant 0 : index
    %5 = vector.load %arg4[%c0_4, %c0_5] : memref<128x128xbf16, #tpu.memory_space<vmem>>, vector<128x128xbf16>
    %cst = arith.constant dense<0.000000e+00> : vector<16x128xf32>
    %6 = tpu.matmul %4, %5, %cst {dimension_numbers = #tpu.dot_dimension_numbers<[1], [0], [0], [1], [0, 0, 1, 1], [], []>} : vector<16x128xbf16>, vector<128x128xbf16>, vector<16x128xf32> -> vector<16x128xf32>
    %7 = arith.addf %3, %6 : vector<16x128xf32>
    %c0_6 = arith.constant 0 : index
    %c0_7 = arith.constant 0 : index
    %8 = vector.load %arg7[%c0_6, %c0_7] : memref<16x128xf32, #tpu.memory_space<vmem>>, vector<16x128xf32>
    tpu.vector_store %arg7[%c0_6, %c0_7], %7 {strides = array<i32>} : memref<16x128xf32, #tpu.memory_space<vmem>>, vector<16x128xf32>,
    %c0_i32_8 = arith.constant 0 : i32
    %9 = arith.cmpi eq, %arg2, %c0_i32_8 : i32
    %10 = arith.extui %9 : i1 to i32
    %c0_i32_9 = arith.constant 0 : i32
    %11 = arith.cmpi ne, %10, %c0_i32_9 : i32
    scf.if %11 {
      %c0_10 = arith.constant 0 : index
      %c0_11 = arith.constant 0 : index
      %12 = vector.load %arg7[%c0_10, %c0_11] : memref<16x128xf32, #tpu.memory_space<vmem>>, vector<16x128xf32>
      %c0_12 = arith.constant 0 : index
      %c0_13 = arith.constant 0 : index
      %13 = vector.load %arg5[%c0_12, %c0_13] : memref<1x128xf32, #tpu.memory_space<vmem>>, vector<1x128xf32>
      %14 = vector.broadcast %13 : vector<1x128xf32> to vector<16x128xf32>
      %15 = arith.addf %12, %14 : vector<16x128xf32>
      %c0_14 = arith.constant 0 : index
      %c0_15 = arith.constant 0 : index
      %16 = vector.load %arg6[%c0_14, %c0_15] : memref<16x128xf32, #tpu.memory_space<vmem>>, vector<16x128xf32>
      tpu.vector_store %arg6[%c0_14, %c0_15], %15 {strides = array<i32>} : memref<16x128xf32, #tpu.memory_space<vmem>>, vector<16x128xf32>,
    } else {
    }
    return
  }
  func.func @transform_0(%arg0: i32, %arg1: i32, %arg2: i32) -> (i32, i32) {
    %c0_i32 = arith.constant 0 : i32
    return %arg0, %arg2 : i32, i32
  }
  func.func @transform_1(%arg0: i32, %arg1: i32, %arg2: i32) -> (i32, i32) {
    %c0_i32 = arith.constant 0 : i32
    return %arg2, %arg1 : i32, i32
  }
  func.func @transform_2(%arg0: i32, %arg1: i32, %arg2: i32) -> (i32, i32) {
    %c0_i32 = arith.constant 0 : i32
    %c0_i32_0 = arith.constant 0 : i32
    return %c0_i32, %arg1 : i32, i32
  }
  func.func @transform_3(%arg0: i32, %arg1: i32, %arg2: i32) -> (i32, i32) {
    %c0_i32 = arith.constant 0 : i32
    return %arg0, %arg1 : i32, i32
  }
}

module attributes {stable_mosaic.version = 11 : i64} {
  func.func @_matmul_fused_kernel(%arg0: i32, %arg1: i32, %arg2: i32, %arg3: memref<32x128xbf16, #tpu.memory_space<vmem>>, %arg4: memref<128x128xbf16, #tpu.memory_space<vmem>>, %arg5: memref<1x128xf32, #tpu.memory_space<vmem>>, %arg6: memref<32x128xf32, #tpu.memory_space<vmem>>, %arg7: memref<32x128xf32, #tpu.memory_space<vmem>>, %arg8: memref<32x128xf32, #tpu.memory_space<vmem>>, %arg9: memref<32x128xf32, #tpu.memory_space<vmem>>) attributes {dimension_semantics = [#tpu.dimension_semantics<parallel>, #tpu.dimension_semantics<parallel>, #tpu.dimension_semantics<arbitrary>], iteration_bounds = array<i64: 1, 1, 1>, scalar_prefetch = 0 : i64, scratch_operands = 1 : i64, tpu.core_type = #tpu.core_type<tc>, window_params = [{transform_indices = @transform_0, window_bounds = array<i64: 32, 128>}, {transform_indices = @transform_1, window_bounds = array<i64: 128, 128>}, {transform_indices = @transform_2, window_bounds = array<i64: 1, 128>}, {transform_indices = @transform_3, window_bounds = array<i64: 32, 128>}, {transform_indices = @transform_4, window_bounds = array<i64: 32, 128>}, {transform_indices = @transform_5, window_bounds = array<i64: 32, 128>}]} {
    %c0_i32 = arith.constant 0 : i32
    %0 = arith.cmpi eq, %arg2, %c0_i32 : i32
    %1 = arith.extui %0 : i1 to i32
    %c0_i32_0 = arith.constant 0 : i32
    %2 = arith.cmpi ne, %1, %c0_i32_0 : i32
    scf.if %2 {
      %cst_10 = arith.constant 0.000000e+00 : f32
      %12 = vector.broadcast %cst_10 : f32 to vector<32x128xf32>
      %c0_11 = arith.constant 0 : index
      %c0_12 = arith.constant 0 : index
      %13 = vector.load %arg9[%c0_11, %c0_12] : memref<32x128xf32, #tpu.memory_space<vmem>>, vector<32x128xf32>
      tpu.vector_store %arg9[%c0_11, %c0_12], %12 {strides = array<i32>} : memref<32x128xf32, #tpu.memory_space<vmem>>, vector<32x128xf32>,
    } else {
    }
    %c0 = arith.constant 0 : index
    %c0_1 = arith.constant 0 : index
    %3 = vector.load %arg9[%c0, %c0_1] : memref<32x128xf32, #tpu.memory_space<vmem>>, vector<32x128xf32>
    %c0_2 = arith.constant 0 : index
    %c0_3 = arith.constant 0 : index
    %4 = vector.load %arg3[%c0_2, %c0_3] : memref<32x128xbf16, #tpu.memory_space<vmem>>, vector<32x128xbf16>
    %c0_4 = arith.constant 0 : index
    %c0_5 = arith.constant 0 : index
    %5 = vector.load %arg4[%c0_4, %c0_5] : memref<128x128xbf16, #tpu.memory_space<vmem>>, vector<128x128xbf16>
    %cst = arith.constant dense<0.000000e+00> : vector<32x128xf32>
    %6 = tpu.matmul %4, %5, %cst {dimension_numbers = #tpu.dot_dimension_numbers<[1], [0], [0], [1], [0, 0, 1, 1], [], []>} : vector<32x128xbf16>, vector<128x128xbf16>, vector<32x128xf32> -> vector<32x128xf32>
    %7 = arith.addf %3, %6 : vector<32x128xf32>
    %c0_6 = arith.constant 0 : index
    %c0_7 = arith.constant 0 : index
    %8 = vector.load %arg9[%c0_6, %c0_7] : memref<32x128xf32, #tpu.memory_space<vmem>>, vector<32x128xf32>
    tpu.vector_store %arg9[%c0_6, %c0_7], %7 {strides = array<i32>} : memref<32x128xf32, #tpu.memory_space<vmem>>, vector<32x128xf32>,
    %c0_i32_8 = arith.constant 0 : i32
    %9 = arith.cmpi eq, %arg2, %c0_i32_8 : i32
    %10 = arith.extui %9 : i1 to i32
    %c0_i32_9 = arith.constant 0 : i32
    %11 = arith.cmpi ne, %10, %c0_i32_9 : i32
    scf.if %11 {
      %c0_10 = arith.constant 0 : index
      %c0_11 = arith.constant 0 : index
      %12 = vector.load %arg9[%c0_10, %c0_11] : memref<32x128xf32, #tpu.memory_space<vmem>>, vector<32x128xf32>
      %c0_12 = arith.constant 0 : index
      %c0_13 = arith.constant 0 : index
      %13 = vector.load %arg5[%c0_12, %c0_13] : memref<1x128xf32, #tpu.memory_space<vmem>>, vector<1x128xf32>
      %14 = vector.broadcast %13 : vector<1x128xf32> to vector<32x128xf32>
      %15 = arith.addf %12, %14 : vector<32x128xf32>
      %c0_14 = arith.constant 0 : index
      %c0_15 = arith.constant 0 : index
      %16 = vector.load %arg6[%c0_14, %c0_15] : memref<32x128xf32, #tpu.memory_space<vmem>>, vector<32x128xf32>
      %17 = arith.mulf %15, %16 : vector<32x128xf32>
      %c0_16 = arith.constant 0 : index
      %c0_17 = arith.constant 0 : index
      %18 = vector.load %arg7[%c0_16, %c0_17] : memref<32x128xf32, #tpu.memory_space<vmem>>, vector<32x128xf32>
      %19 = arith.addf %17, %18 : vector<32x128xf32>
      %c0_18 = arith.constant 0 : index
      %c0_19 = arith.constant 0 : index
      %20 = vector.load %arg8[%c0_18, %c0_19] : memref<32x128xf32, #tpu.memory_space<vmem>>, vector<32x128xf32>
      tpu.vector_store %arg8[%c0_18, %c0_19], %19 {strides = array<i32>} : memref<32x128xf32, #tpu.memory_space<vmem>>, vector<32x128xf32>,
    } else {
    }
    return
  }
  func.func @transform_0(%arg0: i32, %arg1: i32, %arg2: i32) -> (i32, i32) {
    %c0_i32 = arith.constant 0 : i32
    return %arg0, %arg2 : i32, i32
  }
  func.func @transform_1(%arg0: i32, %arg1: i32, %arg2: i32) -> (i32, i32) {
    %c0_i32 = arith.constant 0 : i32
    return %arg2, %arg1 : i32, i32
  }
  func.func @transform_2(%arg0: i32, %arg1: i32, %arg2: i32) -> (i32, i32) {
    %c0_i32 = arith.constant 0 : i32
    %c0_i32_0 = arith.constant 0 : i32
    return %c0_i32, %arg1 : i32, i32
  }
  func.func @transform_3(%arg0: i32, %arg1: i32, %arg2: i32) -> (i32, i32) {
    %c0_i32 = arith.constant 0 : i32
    return %arg0, %arg1 : i32, i32
  }
  func.func @transform_4(%arg0: i32, %arg1: i32, %arg2: i32) -> (i32, i32) {
    %c0_i32 = arith.constant 0 : i32
    return %arg0, %arg1 : i32, i32
  }
  func.func @transform_5(%arg0: i32, %arg1: i32, %arg2: i32) -> (i32, i32) {
    %c0_i32 = arith.constant 0 : i32
    return %arg0, %arg1 : i32, i32
  }
}

</mosaic_0001>

<llo_original>
// kernel: lednet_forward.66
$region0: #{lednet_forward.66}
  #allocation0 [shape = 'u32[]', space=smem, size = 0x4, offset = 0x4, fixed_abs, tag = 'smem constant byte address 0x4 - core index']
  #allocation1 [shape = 'u32[144,128]{1,0:T(1,128)}', space=vmem, size = 0x12000, scoped, tag = 'internal scratch']
  #allocation2 [shape = 'f32[256,128]{1,0:T(8,128)}', space=vmem, size = 0x20000, scoped, tag = 'scratch operand']
  %s0 = inlined_call_operand.vmem [shape: bf16[512,128], index: 0, kind: input, shape index: {}]
  %s1 = inlined_call_operand.vmem [shape: bf16[128,128], index: 1, kind: input, shape index: {}]
  %s2 = inlined_call_operand.vmem [shape: f32[1,128], index: 2, kind: input, shape index: {}]
  %s3 = inlined_call_operand.vmem [shape: bf16[512,128], index: 3, kind: output, shape index: {}]
  %s4 = sld [smem:[#allocation0]]
  $region53: #{lednet_forward.66} parent=0
    _
  %s6 = ssub.s32 1, %s4
  %s7 = scalar_select 0, %s6, %s4
  loop: start=0, step=1, limit=4
  $region2: #{lednet_forward.66} parent=0 // loop_pre_header
    _
  $region3: #{lednet_forward.66} parent=0 // loop_header
    %s9 = sphi 0, %s13
    %p10 = scmp.ge.s32.totalorder %s9, 4
    %s16 = sphi 0, %s35
    %s17 = sphi 0, %s31
    %s18 = sphi 0, %s27
    %s19 = sphi 0, %s16
    %s20 = sphi 0, %s17
    %s21 = sphi 0, %s18
    %s22 = sphi 0, %s19
    %s23 = sphi 0, %s20
    %s24 = sphi 0, %s21
    %s40 = sphi 0, %s42
    %s43 = sphi 0, %s40
    %s44 = sphi 0, %s43
    %s60 = sphi 0, %s44
    %s68 = sphi 0, %s70
    %s71 = sphi 0, %s68
    %s72 = sphi 0, %s71
    %s88 = sphi 0, %s72
    %s94 = sphi 0, %s96
    %s97 = sphi 0, %s94
    %s98 = sphi 0, %s97
    %s114 = sphi 0, %s98
    %s122 = sphi 0, %s124
    %s125 = sphi 0, %s122
    %s126 = sphi 0, %s125
    %s142 = sphi 0, %s126
  $region4: #{lednet_forward.66} parent=0 // loop_header_branch
    %12 = sbr.rel (%p10) target = $region8
  $region5: #{lednet_forward.66} parent=0 // loop_body
    %s14 = ssub.s32 %s9, 1
    %s15 = ssub.s32 %s9, 2
    %s25 = sadd.s32 1, %s18
    %p26 = scmp.ge.s32.totalorder %s25, 1
    %s27 = scalar_select %p26, 0, %s25
    %s28 = sadd.s32 1, %s17
    %s29 = scalar_select %p26, %s28, %s17
    %p30 = scmp.ge.s32.totalorder %s29, 1
    %s31 = scalar_select %p30, 0, %s29
    %s32 = sadd.s32 1, %s16
    %s33 = scalar_select %p30, %s32, %s16
    %p34 = scmp.ge.s32.totalorder %s33, 2
    %s35 = scalar_select %p34, 0, %s33
    %s36 = ssub.s32 %s16, %s35
    %s37 = ssub.s32 %s18, %s27
    %s38 = sor.u32 %s36, %s37
    %p39 = scmp.eq.s32.totalorder %s38, 0
    %s41 = sadd.s32 %s40, 1
    %s42 = scalar_select %p39, %s40, %s41
    %p45 = pneg %p39
    %p46 = scmp.eq.s32.totalorder %s9, 1
    %p47 = por %p45, %p46
    %p48 = scmp.ne.s32.totalorder %s40, %s43
    %p49 = scmp.eq.s32.totalorder %s9, 0
    %p50 = por %p48, %p49
    %p51 = scmp.ne.s32.totalorder %s40, %s43
    %p52 = scmp.eq.s32.totalorder %s14, 1
    %p53 = por %p51, %p52
    %p54 = scmp.ne.s32.totalorder %s43, %s44
    %p55 = scmp.eq.s32.totalorder %s14, 0
    %p56 = por %p54, %p55
    %p57 = scmp.ne.s32.totalorder %s43, %s44
    %p58 = scmp.eq.s32.totalorder %s15, 1
    %p59 = por %p57, %p58
    %p61 = scmp.ne.s32.totalorder %s44, %s60
    %p62 = scmp.eq.s32.totalorder %s15, 0
    %p63 = por %p61, %p62
    %s64 = ssub.s32 %s18, %s27
    %s65 = ssub.s32 %s17, %s31
    %s66 = sor.u32 %s64, %s65
    %p67 = scmp.eq.s32.totalorder %s66, 0
    %s69 = sadd.s32 %s68, 1
    %s70 = scalar_select %p67, %s68, %s69
    %p73 = pneg %p67
    %p74 = scmp.eq.s32.totalorder %s9, 1
    %p75 = por %p73, %p74
    %p76 = scmp.ne.s32.totalorder %s68, %s71
    %p77 = scmp.eq.s32.totalorder %s9, 0
    %p78 = por %p76, %p77
    %p79 = scmp.ne.s32.totalorder %s68, %s71
    %p80 = scmp.eq.s32.totalorder %s14, 1
    %p81 = por %p79, %p80
    %p82 = scmp.ne.s32.totalorder %s71, %s72
    %p83 = scmp.eq.s32.totalorder %s14, 0
    %p84 = por %p82, %p83
    %p85 = scmp.ne.s32.totalorder %s71, %s72
    %p86 = scmp.eq.s32.totalorder %s15, 1
    %p87 = por %p85, %p86
    %p89 = scmp.ne.s32.totalorder %s72, %s88
    %p90 = scmp.eq.s32.totalorder %s15, 0
    %p91 = por %p89, %p90
    %s92 = ssub.s32 %s17, %s31
    %p93 = scmp.eq.s32.totalorder %s92, 0
    %s95 = sadd.s32 %s94, 1
    %s96 = scalar_select %p93, %s94, %s95
    %p99 = pneg %p93
    %p100 = scmp.eq.s32.totalorder %s9, 1
    %p101 = por %p99, %p100
    %p102 = scmp.ne.s32.totalorder %s94, %s97
    %p103 = scmp.eq.s32.totalorder %s9, 0
    %p104 = por %p102, %p103
    %p105 = scmp.ne.s32.totalorder %s94, %s97
    %p106 = scmp.eq.s32.totalorder %s14, 1
    %p107 = por %p105, %p106
    %p108 = scmp.ne.s32.totalorder %s97, %s98
    %p109 = scmp.eq.s32.totalorder %s14, 0
    %p110 = por %p108, %p109
    %p111 = scmp.ne.s32.totalorder %s97, %s98
    %p112 = scmp.eq.s32.totalorder %s15, 1
    %p113 = por %p111, %p112
    %p115 = scmp.ne.s32.totalorder %s98, %s114
    %p116 = scmp.eq.s32.totalorder %s15, 0
    %p117 = por %p115, %p116
    %s118 = ssub.s32 %s16, %s35
    %s119 = ssub.s32 %s17, %s31
    %s120 = sor.u32 %s118, %s119
    %p121 = scmp.eq.s32.totalorder %s120, 0
    %s123 = sadd.s32 %s122, 1
    %s124 = scalar_select %p121, %s122, %s123
    %p127 = pneg %p121
    %p128 = scmp.eq.s32.totalorder %s9, 1
    %p129 = por %p127, %p128
    %p130 = scmp.ne.s32.totalorder %s122, %s125
    %p131 = scmp.eq.s32.totalorder %s9, 0
    %p132 = por %p130, %p131
    %p133 = scmp.ne.s32.totalorder %s122, %s125
    %p134 = scmp.eq.s32.totalorder %s14, 1
    %p135 = por %p133, %p134
    %p136 = scmp.ne.s32.totalorder %s125, %s126
    %p137 = scmp.eq.s32.totalorder %s14, 0
    %p138 = por %p136, %p137
    %p139 = scmp.ne.s32.totalorder %s125, %s126
    %p140 = scmp.eq.s32.totalorder %s15, 1
    %p141 = por %p139, %p140
    %p143 = scmp.ne.s32.totalorder %s126, %s142
    %p144 = scmp.eq.s32.totalorder %s15, 0
    %p145 = por %p143, %p144
    %p146 = scmp.le.s32.totalorder 1, %s9
    %p147 = scmp.lt.s32.totalorder %s9, 3
    %p148 = pnand %p146, %p147
    %p149 = pneg %p148
    // Predicated region
    $region9: #{lednet_forward.66} parent=5 // pred_check
      _
    $region10: #{lednet_forward.66} parent=5 // pred_check_branch
      %151 = sbr.rel (%p148) target = $region12
    $region11: #{lednet_forward.66} parent=5 // pred_region
      %s152 = ssub.s32 %s9, 1
      // Predicated region
      $region13: #{lednet_forward.66} parent=11 // pred_check
        %p153 = pneg %p84
      $region14: #{lednet_forward.66} parent=11 // pred_check_branch
        %155 = sbr.rel (%p153) target = $region16
      $region15: #{lednet_forward.66} parent=11 // pred_region
        %s156 = smul.u32 16, %s21
        %p157 = scmp.lt.s32.totalorder %s156, 15
        %s158 = scalar_select %p157, %s156, 15
        %p159 = scmp.lt.s32.totalorder %s20, 0
        %s160 = scalar_select %p159, %s20, 0
        %s161 = sadd.s32 %s160, %s158
        %s162 = smul.addr %s161, 4
        %s163 = scalar_lea.vmem %s1, %s162
        %s164 = smul.u32 16, %s21
      $region16: #{lednet_forward.66} parent=11 // pred_fallthru
        _
      // Predicated region
      $region17: #{lednet_forward.66} parent=11 // pred_check
        %p165 = pneg %p110
      $region18: #{lednet_forward.66} parent=11 // pred_check_branch
        %167 = sbr.rel (%p165) target = $region20
      $region19: #{lednet_forward.66} parent=11 // pred_region
        %p168 = scmp.lt.s32.totalorder %s20, 0
        %s169 = scalar_select %p168, %s20, 0
        %s170 = scalar_lea.vmem %s2, %s169
      $region20: #{lednet_forward.66} parent=11 // pred_fallthru
        _
    $region12: #{lednet_forward.66} parent=5 // pred_fallthru
      _
    %p171 = scmp.lt.s32.totalorder %s9, 2
    // Predicated region
    $region21: #{lednet_forward.66} parent=5 // pred_check
      %p172 = pneg %p171
    $region22: #{lednet_forward.66} parent=5 // pred_check_branch
      %174 = sbr.rel (%p172) target = $region24
    $region23: #{lednet_forward.66} parent=5 // pred_region
      // Predicated region
      $region25: #{lednet_forward.66} parent=23 // pred_check
        %p175 = pneg %p50
      $region26: #{lednet_forward.66} parent=23 // pred_check_branch
        %177 = sbr.rel (%p175) target = $region28
      $region27: #{lednet_forward.66} parent=23 // pred_region
        %s178 = smul.u32 32, %s16
        %p179 = scmp.lt.s32.totalorder %s178, 63
        %s180 = scalar_select %p179, %s178, 63
        %p181 = scmp.lt.s32.totalorder %s18, 0
        %s182 = scalar_select %p181, %s18, 0
        %s183 = sadd.s32 %s182, %s180
        %s184 = smul.addr %s183, 4
        %s185 = scalar_lea.vmem %s0, %s184
        %s186 = smul.u32 32, %s16
      $region28: #{lednet_forward.66} parent=23 // pred_fallthru
        _
    $region24: #{lednet_forward.66} parent=5 // pred_fallthru
      _
    %p187 = scmp.le.s32.totalorder 1, %s9
    %p188 = scmp.lt.s32.totalorder %s9, 3
    %p189 = pnand %p187, %p188
    %p190 = pneg %p189
    // Predicated region
    $region29: #{lednet_forward.66} parent=5 // pred_check
      _
    $region30: #{lednet_forward.66} parent=5 // pred_check_branch
      %192 = sbr.rel (%p189) target = $region32
    $region31: #{lednet_forward.66} parent=5 // pred_region
      %s193 = ssub.s32 %s9, 1
      %s194 = smul.u32 32, %s19
      %p195 = scmp.lt.s32.totalorder %s194, 63
      %s196 = scalar_select %p195, %s194, 63
      %p197 = scmp.lt.s32.totalorder %s21, 0
      %s198 = scalar_select %p197, %s21, 0
      %s199 = sadd.s32 %s198, %s196
      %s200 = smul.addr %s199, 4
      %s201 = scalar_lea.vmem %s0, %s200
      %p202 = pneg %p56
      %p203 = pneg %p53
      %s204 = smul.u32 16, %s21
      %p205 = scmp.lt.s32.totalorder %s204, 15
      %s206 = scalar_select %p205, %s204, 15
      %p207 = scmp.lt.s32.totalorder %s20, 0
      %s208 = scalar_select %p207, %s20, 0
      %s209 = sadd.s32 %s208, %s206
      %s210 = smul.addr %s209, 4
      %s211 = scalar_lea.vmem %s1, %s210
      %p212 = pneg %p84
      %p213 = pneg %p81
      %p214 = scmp.lt.s32.totalorder %s20, 0
      %s215 = scalar_select %p214, %s20, 0
      %s216 = scalar_lea.vmem %s2, %s215
      %p217 = pneg %p110
      %p218 = pneg %p107
      %p219 = pneg %p138
      %p220 = pneg %p135
      %s221 = smul.u32 32, %s19
      %p222 = scmp.lt.s32.totalorder %s221, 63
      %s223 = scalar_select %p222, %s221, 63
      %p224 = scmp.lt.s32.totalorder %s20, 0
      %s225 = scalar_select %p224, %s20, 0
      %s226 = sadd.s32 %s225, %s223
      %s227 = smul.addr %s226, 4
      %s228 = scalar_lea.vmem %s3, %s227
      %s229 = smul.u32 32, %s19
      %p230 = scmp.lt.s32.totalorder %s229, 63
      %s231 = scalar_select %p230, %s229, 63
      %p232 = scmp.lt.s32.totalorder %s21, 0
      %s233 = scalar_select %p232, %s21, 0
      %s234 = sadd.s32 %s233, %s231
      %s235 = smul.addr %s234, 4
      %s236 = scalar_lea.vmem %s0, %s235
      %s237 = smul.u32 32, %s19
      %s238 = smul.u32 16, %s21
      %p239 = scmp.lt.s32.totalorder %s238, 15
      %s240 = scalar_select %p239, %s238, 15
      %p241 = scmp.lt.s32.totalorder %s20, 0
      %s242 = scalar_select %p241, %s20, 0
      %s243 = sadd.s32 %s242, %s240
      %s244 = smul.addr %s243, 4
      %s245 = scalar_lea.vmem %s1, %s244
      %s246 = smul.u32 16, %s21
      %p247 = scmp.lt.s32.totalorder %s20, 0
      %s248 = scalar_select %p247, %s20, 0
      %s249 = scalar_lea.vmem %s2, %s248
      %s250 = smul.u32 32, %s19
      %p251 = scmp.lt.s32.totalorder %s250, 63
      %s252 = scalar_select %p251, %s250, 63
      %p253 = scmp.lt.s32.totalorder %s20, 0
      %s254 = scalar_select %p253, %s20, 0
      %s255 = sadd.s32 %s254, %s252
      %s256 = smul.addr %s255, 4
      %s257 = scalar_lea.vmem %s3, %s256
      %s258 = smul.u32 32, %s19
      %p260 = scmp.eq.s32.totalorder %s21, 0
      // Predicated region
      $region33: #{lednet_forward.66} parent=31 // pred_check
        %p261 = pneg %p260
      $region34: #{lednet_forward.66} parent=31 // pred_check_branch
        %263 = sbr.rel (%p261) target = $region36
      $region35: #{lednet_forward.66} parent=31 // pred_region
        %264 = vst [vmem:[#allocation2] sm:$0xff] 0.0
        %265 = vst [vmem:[#allocation2 + $0x8] sm:$0xff] 0.0
        %266 = vst [vmem:[#allocation2 + $0x10] sm:$0xff] 0.0
        %267 = vst [vmem:[#allocation2 + $0x18] sm:$0xff] 0.0
        %268 = vst [vmem:[#allocation2 + $0x20] sm:$0xff] 0.0
        %269 = vst [vmem:[#allocation2 + $0x28] sm:$0xff] 0.0
        %270 = vst [vmem:[#allocation2 + $0x30] sm:$0xff] 0.0
        %271 = vst [vmem:[#allocation2 + $0x38] sm:$0xff] 0.0
        %272 = vst [vmem:[#allocation2 + $0x40] sm:$0xff] 0.0
        %273 = vst [vmem:[#allocation2 + $0x48] sm:$0xff] 0.0
        %274 = vst [vmem:[#allocation2 + $0x50] sm:$0xff] 0.0
        %275 = vst [vmem:[#allocation2 + $0x58] sm:$0xff] 0.0
        %276 = vst [vmem:[#allocation2 + $0x60] sm:$0xff] 0.0
        %277 = vst [vmem:[#allocation2 + $0x68] sm:$0xff] 0.0
        %278 = vst [vmem:[#allocation2 + $0x70] sm:$0xff] 0.0
        %279 = vst [vmem:[#allocation2 + $0x78] sm:$0xff] 0.0
        %280 = vst [vmem:[#allocation2 + $0x80] sm:$0xff] 0.0
        %281 = vst [vmem:[#allocation2 + $0x88] sm:$0xff] 0.0
        %282 = vst [vmem:[#allocation2 + $0x90] sm:$0xff] 0.0
        %283 = vst [vmem:[#allocation2 + $0x98] sm:$0xff] 0.0
        %284 = vst [vmem:[#allocation2 + $0xa0] sm:$0xff] 0.0
        %285 = vst [vmem:[#allocation2 + $0xa8] sm:$0xff] 0.0
        %286 = vst [vmem:[#allocation2 + $0xb0] sm:$0xff] 0.0
        %287 = vst [vmem:[#allocation2 + $0xb8] sm:$0xff] 0.0
        %288 = vst [vmem:[#allocation2 + $0xc0] sm:$0xff] 0.0
        %289 = vst [vmem:[#allocation2 + $0xc8] sm:$0xff] 0.0
        %290 = vst [vmem:[#allocation2 + $0xd0] sm:$0xff] 0.0
        %291 = vst [vmem:[#allocation2 + $0xd8] sm:$0xff] 0.0
        %292 = vst [vmem:[#allocation2 + $0xe0] sm:$0xff] 0.0
        %293 = vst [vmem:[#allocation2 + $0xe8] sm:$0xff] 0.0
        %294 = vst [vmem:[#allocation2 + $0xf0] sm:$0xff] 0.0
        %295 = vst [vmem:[#allocation2 + $0xf8] sm:$0xff] 0.0
      $region36: #{lednet_forward.66} parent=31 // pred_fallthru
        _
      %v296 = vld [vmem:[#allocation2] sm:$0xff]
      %v297 = vld [vmem:[#allocation2 + $0x8] sm:$0xff]
      %v298 = vld [vmem:[#allocation2 + $0x10] sm:$0xff]
      %v299 = vld [vmem:[#allocation2 + $0x18] sm:$0xff]
      %v300 = vld [vmem:[#allocation2 + $0x20] sm:$0xff]
      %v301 = vld [vmem:[#allocation2 + $0x28] sm:$0xff]
      %v302 = vld [vmem:[#allocation2 + $0x30] sm:$0xff]
      %v303 = vld [vmem:[#allocation2 + $0x38] sm:$0xff]
      %v304 = vld [vmem:[#allocation2 + $0x40] sm:$0xff]
      %v305 = vld [vmem:[#allocation2 + $0x48] sm:$0xff]
      %v306 = vld [vmem:[#allocation2 + $0x50] sm:$0xff]
      %v307 = vld [vmem:[#allocation2 + $0x58] sm:$0xff]
      %v308 = vld [vmem:[#allocation2 + $0x60] sm:$0xff]
      %v309 = vld [vmem:[#allocation2 + $0x68] sm:$0xff]
      %v310 = vld [vmem:[#allocation2 + $0x70] sm:$0xff]
      %v311 = vld [vmem:[#allocation2 + $0x78] sm:$0xff]
      %v312 = vld [vmem:[#allocation2 + $0x80] sm:$0xff]
      %v313 = vld [vmem:[#allocation2 + $0x88] sm:$0xff]
      %v314 = vld [vmem:[#allocation2 + $0x90] sm:$0xff]
      %v315 = vld [vmem:[#allocation2 + $0x98] sm:$0xff]
      %v316 = vld [vmem:[#allocation2 + $0xa0] sm:$0xff]
      %v317 = vld [vmem:[#allocation2 + $0xa8] sm:$0xff]
      %v318 = vld [vmem:[#allocation2 + $0xb0] sm:$0xff]
      %v319 = vld [vmem:[#allocation2 + $0xb8] sm:$0xff]
      %v320 = vld [vmem:[#allocation2 + $0xc0] sm:$0xff]
      %v321 = vld [vmem:[#allocation2 + $0xc8] sm:$0xff]
      %v322 = vld [vmem:[#allocation2 + $0xd0] sm:$0xff]
      %v323 = vld [vmem:[#allocation2 + $0xd8] sm:$0xff]
      %v324 = vld [vmem:[#allocation2 + $0xe0] sm:$0xff]
      %v325 = vld [vmem:[#allocation2 + $0xe8] sm:$0xff]
      %v326 = vld [vmem:[#allocation2 + $0xf0] sm:$0xff]
      %v327 = vld [vmem:[#allocation2 + $0xf8] sm:$0xff]
      %v328 = vld [vmem:[%s236] sm:$0xf]
      %v329 = vld [vmem:[%s236 + $0x4] sm:$0xf]
      %v330 = vld [vmem:[%s236 + $0x8] sm:$0xf]
      %v331 = vld [vmem:[%s236 + $0xc] sm:$0xf]
      %v332 = vld [vmem:[%s236 + $0x10] sm:$0xf]
      %v333 = vld [vmem:[%s236 + $0x14] sm:$0xf]
      %v334 = vld [vmem:[%s236 + $0x18] sm:$0xf]
      %v335 = vld [vmem:[%s236 + $0x1c] sm:$0xf]
      %v336 = vld [vmem:[%s236 + $0x20] sm:$0xf]
      %v337 = vld [vmem:[%s236 + $0x24] sm:$0xf]
      %v338 = vld [vmem:[%s236 + $0x28] sm:$0xf]
      %v339 = vld [vmem:[%s236 + $0x2c] sm:$0xf]
      %v340 = vld [vmem:[%s236 + $0x30] sm:$0xf]
      %v341 = vld [vmem:[%s236 + $0x34] sm:$0xf]
      %v342 = vld [vmem:[%s236 + $0x38] sm:$0xf]
      %v343 = vld [vmem:[%s236 + $0x3c] sm:$0xf]
      %v344 = vld [vmem:[%s236 + $0x40] sm:$0xf]
      %v345 = vld [vmem:[%s236 + $0x44] sm:$0xf]
      %v346 = vld [vmem:[%s236 + $0x48] sm:$0xf]
      %v347 = vld [vmem:[%s236 + $0x4c] sm:$0xf]
      %v348 = vld [vmem:[%s236 + $0x50] sm:$0xf]
      %v349 = vld [vmem:[%s236 + $0x54] sm:$0xf]
      %v350 = vld [vmem:[%s236 + $0x58] sm:$0xf]
      %v351 = vld [vmem:[%s236 + $0x5c] sm:$0xf]
      %v352 = vld [vmem:[%s236 + $0x60] sm:$0xf]
      %v353 = vld [vmem:[%s236 + $0x64] sm:$0xf]
      %v354 = vld [vmem:[%s236 + $0x68] sm:$0xf]
      %v355 = vld [vmem:[%s236 + $0x6c] sm:$0xf]
      %v356 = vld [vmem:[%s236 + $0x70] sm:$0xf]
      %v357 = vld [vmem:[%s236 + $0x74] sm:$0xf]
      %v358 = vld [vmem:[%s236 + $0x78] sm:$0xf]
      %v359 = vld [vmem:[%s236 + $0x7c] sm:$0xf]
      %v360 = vld [vmem:[%s245] sm:$0xf]
      %v361 = vld [vmem:[%s245 + $0x4] sm:$0xf]
      %v362 = vld [vmem:[%s245 + $0x8] sm:$0xf]
      %v363 = vld [vmem:[%s245 + $0xc] sm:$0xf]
      %v364 = vld [vmem:[%s245 + $0x10] sm:$0xf]
      %v365 = vld [vmem:[%s245 + $0x14] sm:$0xf]
      %v366 = vld [vmem:[%s245 + $0x18] sm:$0xf]
      %v367 = vld [vmem:[%s245 + $0x1c] sm:$0xf]
      %v368 = vld [vmem:[%s245 + $0x20] sm:$0xf]
      %v369 = vld [vmem:[%s245 + $0x24] sm:$0xf]
      %v370 = vld [vmem:[%s245 + $0x28] sm:$0xf]
      %v371 = vld [vmem:[%s245 + $0x2c] sm:$0xf]
      %v372 = vld [vmem:[%s245 + $0x30] sm:$0xf]
      %v373 = vld [vmem:[%s245 + $0x34] sm:$0xf]
      %v374 = vld [vmem:[%s245 + $0x38] sm:$0xf]
      %v375 = vld [vmem:[%s245 + $0x3c] sm:$0xf]
      %v408 = vunpack.c.l.b16 %v328
      %v409 = vunpack.c.l.b16 %v329
      %v410 = vunpack.c.l.b16 %v330
      %v411 = vunpack.c.l.b16 %v331
      %v412 = vunpack.c.l.b16 %v332
      %v413 = vunpack.c.l.b16 %v333
      %v414 = vunpack.c.l.b16 %v334
      %v415 = vunpack.c.l.b16 %v335
      %v416 = vunpack.c.l.b16 %v336
      %v417 = vunpack.c.l.b16 %v337
      %v418 = vunpack.c.l.b16 %v338
      %v419 = vunpack.c.l.b16 %v339
      %v420 = vunpack.c.l.b16 %v340
      %v421 = vunpack.c.l.b16 %v341
      %v422 = vunpack.c.l.b16 %v342
      %v423 = vunpack.c.l.b16 %v343
      %v424 = vunpack.c.l.b16 %v344
      %v425 = vunpack.c.l.b16 %v345
      %v426 = vunpack.c.l.b16 %v346
      %v427 = vunpack.c.l.b16 %v347
      %v428 = vunpack.c.l.b16 %v348
      %v429 = vunpack.c.l.b16 %v349
      %v430 = vunpack.c.l.b16 %v350
      %v431 = vunpack.c.l.b16 %v351
      %v432 = vunpack.c.l.b16 %v352
      %v433 = vunpack.c.l.b16 %v353
      %v434 = vunpack.c.l.b16 %v354
      %v435 = vunpack.c.l.b16 %v355
      %v436 = vunpack.c.l.b16 %v356
      %v437 = vunpack.c.l.b16 %v357
      %v438 = vunpack.c.l.b16 %v358
      %v439 = vunpack.c.l.b16 %v359
      %v440 = vpack.c.b16 %v409, %v408
      %v441 = vpack.c.b16 %v411, %v410
      %v442 = vpack.c.b16 %v413, %v412
      %v443 = vpack.c.b16 %v415, %v414
      %v444 = vpack.c.b16 %v417, %v416
      %v445 = vpack.c.b16 %v419, %v418
      %v446 = vpack.c.b16 %v421, %v420
      %v447 = vpack.c.b16 %v423, %v422
      %v448 = vpack.c.b16 %v425, %v424
      %v449 = vpack.c.b16 %v427, %v426
      %v450 = vpack.c.b16 %v429, %v428
      %v451 = vpack.c.b16 %v431, %v430
      %v452 = vpack.c.b16 %v433, %v432
      %v453 = vpack.c.b16 %v435, %v434
      %v454 = vpack.c.b16 %v437, %v436
      %v455 = vpack.c.b16 %v439, %v438
      %v488 = vunpack.c.l.b16 %v360
      %v489 = vunpack.c.l.b16 %v361
      %v490 = vunpack.c.l.b16 %v362
      %v491 = vunpack.c.l.b16 %v363
      %v492 = vunpack.c.l.b16 %v364
      %v493 = vunpack.c.l.b16 %v365
      %v494 = vunpack.c.l.b16 %v366
      %v495 = vunpack.c.l.b16 %v367
      %v496 = vunpack.c.l.b16 %v368
      %v497 = vunpack.c.l.b16 %v369
      %v498 = vunpack.c.l.b16 %v370
      %v499 = vunpack.c.l.b16 %v371
      %v500 = vunpack.c.l.b16 %v372
      %v501 = vunpack.c.l.b16 %v373
      %v502 = vunpack.c.l.b16 %v374
      %v503 = vunpack.c.l.b16 %v375
      %v504 = vpack.c.b16 %v489, %v488
      %v505 = vpack.c.b16 %v491, %v490
      %v506 = vpack.c.b16 %v493, %v492
      %v507 = vpack.c.b16 %v495, %v494
      %v508 = vpack.c.b16 %v497, %v496
      %v509 = vpack.c.b16 %v499, %v498
      %v510 = vpack.c.b16 %v501, %v500
      %v511 = vpack.c.b16 %v503, %v502
      %520 = vmatprep.subr.bf16.mxu0 0
      %521 = vmatpush1.bf16.msra.mxu0 %v511
      %522 = vmatprep.subr.bf16.mxu0 0
      %523 = vmatpush1.bf16.msra.mxu0 %v510
      %524 = vmatprep.subr.bf16.mxu0 0
      %525 = vmatpush1.bf16.msra.mxu0 %v509
      %526 = vmatprep.subr.bf16.mxu0 0
      %527 = vmatpush1.bf16.msra.mxu0 %v508
      %528 = vmatprep.subr.bf16.mxu0 0
      %529 = vmatpush1.bf16.msra.mxu0 %v507
      %530 = vmatprep.subr.bf16.mxu0 0
      %531 = vmatpush1.bf16.msra.mxu0 %v506
      %532 = vmatprep.subr.bf16.mxu0 0
      %533 = vmatpush1.bf16.msra.mxu0 %v505
      %534 = vmatprep.subr.bf16.mxu0 0
      %535 = vmatpush1.bf16.msra.mxu0 %v504
      %536 = vmatprep.subr.bf16.mxu0 0
      %537 = vmatpush2.bf16.msra.mxu0 0
      %538 = vmatprep.subr.bf16.mxu0 0
      %539 = vmatpush2.bf16.msra.mxu0 0
      %540 = vmatprep.subr.bf16.mxu0 0
      %541 = vmatpush2.bf16.msra.mxu0 0
      %542 = vmatprep.subr.bf16.mxu0 0
      %543 = vmatpush2.bf16.msra.mxu0 0
      %544 = vmatprep.subr.bf16.mxu0 0
      %545 = vmatpush2.bf16.msra.mxu0 0
      %546 = vmatprep.subr.bf16.mxu0 0
      %547 = vmatpush2.bf16.msra.mxu0 0
      %548 = vmatprep.subr.bf16.mxu0 0
      %549 = vmatpush2.bf16.msra.mxu0 0
      %550 = vmatprep.subr.bf16.mxu0 0
      %551 = vmatpush2.bf16.msra.mxu0 0
      %552 = vmatprep.mubr.bf16.mxu0 0
      %553 = vmatmul.mubr.bf16.gmra.mxu0 %v440
      %v554 = vpop.f32.mrf.mxu0
      %v555 = vadd.f32 0.0, %v554
      %v556 = vpop.f32.mrf.mxu0
      %v557 = vpop.f32.mrf.mxu0
      %v558 = vadd.f32 0.0, %v557
      %v559 = vpop.f32.mrf.mxu0
      %560 = vmatprep.mubr.bf16.mxu0 0
      %561 = vmatmul.mubr.bf16.gmra.mxu0 %v441
      %v562 = vpop.f32.mrf.mxu0
      %v563 = vadd.f32 0.0, %v562
      %v564 = vpop.f32.mrf.mxu0
      %v565 = vpop.f32.mrf.mxu0
      %v566 = vadd.f32 0.0, %v565
      %v567 = vpop.f32.mrf.mxu0
      %568 = vmatprep.mubr.bf16.mxu0 0
      %569 = vmatmul.mubr.bf16.gmra.mxu0 %v442
      %v570 = vpop.f32.mrf.mxu0
      %v571 = vadd.f32 0.0, %v570
      %v572 = vpop.f32.mrf.mxu0
      %v573 = vpop.f32.mrf.mxu0
      %v574 = vadd.f32 0.0, %v573
      %v575 = vpop.f32.mrf.mxu0
      %576 = vmatprep.mubr.bf16.mxu0 0
      %577 = vmatmul.mubr.bf16.gmra.mxu0 %v443
      %v578 = vpop.f32.mrf.mxu0
      %v579 = vadd.f32 0.0, %v578
      %v580 = vpop.f32.mrf.mxu0
      %v581 = vpop.f32.mrf.mxu0
      %v582 = vadd.f32 0.0, %v581
      %v583 = vpop.f32.mrf.mxu0
      %584 = vmatprep.mubr.bf16.mxu0 0
      %585 = vmatmul.mubr.bf16.gmra.mxu0 %v444
      %v586 = vpop.f32.mrf.mxu0
      %v587 = vadd.f32 0.0, %v586
      %v588 = vpop.f32.mrf.mxu0
      %v589 = vpop.f32.mrf.mxu0
      %v590 = vadd.f32 0.0, %v589
      %v591 = vpop.f32.mrf.mxu0
      %592 = vmatprep.mubr.bf16.mxu0 0
      %593 = vmatmul.mubr.bf16.gmra.mxu0 %v445
      %v594 = vpop.f32.mrf.mxu0
      %v595 = vadd.f32 0.0, %v594
      %v596 = vpop.f32.mrf.mxu0
      %v597 = vpop.f32.mrf.mxu0
      %v598 = vadd.f32 0.0, %v597
      %v599 = vpop.f32.mrf.mxu0
      %600 = vmatprep.mubr.bf16.mxu0 0
      %601 = vmatmul.mubr.bf16.gmra.mxu0 %v446
      %v602 = vpop.f32.mrf.mxu0
      %v603 = vadd.f32 0.0, %v602
      %v604 = vpop.f32.mrf.mxu0
      %v605 = vpop.f32.mrf.mxu0
      %v606 = vadd.f32 0.0, %v605
      %v607 = vpop.f32.mrf.mxu0
      %608 = vmatprep.mubr.bf16.mxu0 0
      %609 = vmatmul.mubr.bf16.gmra.mxu0 %v447
      %v610 = vpop.f32.mrf.mxu0
      %v611 = vadd.f32 0.0, %v610
      %v612 = vpop.f32.mrf.mxu0
      %v613 = vpop.f32.mrf.mxu0
      %v614 = vadd.f32 0.0, %v613
      %v615 = vpop.f32.mrf.mxu0
      %616 = vmatprep.mubr.bf16.mxu0 0
      %617 = vmatmul.mubr.bf16.gmra.mxu0 %v448
      %v618 = vpop.f32.mrf.mxu0
      %v619 = vadd.f32 0.0, %v618
      %v620 = vpop.f32.mrf.mxu0
      %v621 = vpop.f32.mrf.mxu0
      %v622 = vadd.f32 0.0, %v621
      %v623 = vpop.f32.mrf.mxu0
      %624 = vmatprep.mubr.bf16.mxu0 0
      %625 = vmatmul.mubr.bf16.gmra.mxu0 %v449
      %v626 = vpop.f32.mrf.mxu0
      %v627 = vadd.f32 0.0, %v626
      %v628 = vpop.f32.mrf.mxu0
      %v629 = vpop.f32.mrf.mxu0
      %v630 = vadd.f32 0.0, %v629
      %v631 = vpop.f32.mrf.mxu0
      %632 = vmatprep.mubr.bf16.mxu0 0
      %633 = vmatmul.mubr.bf16.gmra.mxu0 %v450
      %v634 = vpop.f32.mrf.mxu0
      %v635 = vadd.f32 0.0, %v634
      %v636 = vpop.f32.mrf.mxu0
      %v637 = vpop.f32.mrf.mxu0
      %v638 = vadd.f32 0.0, %v637
      %v639 = vpop.f32.mrf.mxu0
      %640 = vmatprep.mubr.bf16.mxu0 0
      %641 = vmatmul.mubr.bf16.gmra.mxu0 %v451
      %v642 = vpop.f32.mrf.mxu0
      %v643 = vadd.f32 0.0, %v642
      %v644 = vpop.f32.mrf.mxu0
      %v645 = vpop.f32.mrf.mxu0
      %v646 = vadd.f32 0.0, %v645
      %v647 = vpop.f32.mrf.mxu0
      %648 = vmatprep.mubr.bf16.mxu0 0
      %649 = vmatmul.mubr.bf16.gmra.mxu0 %v452
      %v650 = vpop.f32.mrf.mxu0
      %v651 = vadd.f32 0.0, %v650
      %v652 = vpop.f32.mrf.mxu0
      %v653 = vpop.f32.mrf.mxu0
      %v654 = vadd.f32 0.0, %v653
      %v655 = vpop.f32.mrf.mxu0
      %656 = vmatprep.mubr.bf16.mxu0 0
      %657 = vmatmul.mubr.bf16.gmra.mxu0 %v453
      %v658 = vpop.f32.mrf.mxu0
      %v659 = vadd.f32 0.0, %v658
      %v660 = vpop.f32.mrf.mxu0
      %v661 = vpop.f32.mrf.mxu0
      %v662 = vadd.f32 0.0, %v661
      %v663 = vpop.f32.mrf.mxu0
      %664 = vmatprep.mubr.bf16.mxu0 0
      %665 = vmatmul.mubr.bf16.gmra.mxu0 %v454
      %v666 = vpop.f32.mrf.mxu0
      %v667 = vadd.f32 0.0, %v666
      %v668 = vpop.f32.mrf.mxu0
      %v669 = vpop.f32.mrf.mxu0
      %v670 = vadd.f32 0.0, %v669
      %v671 = vpop.f32.mrf.mxu0
      %672 = vmatprep.mubr.bf16.mxu0 0
      %673 = vmatmul.mubr.bf16.gmra.mxu0 %v455
      %v674 = vpop.f32.mrf.mxu0
      %v675 = vadd.f32 0.0, %v674
      %v676 = vpop.f32.mrf.mxu0
      %v677 = vpop.f32.mrf.mxu0
      %v678 = vadd.f32 0.0, %v677
      %v679 = vpop.f32.mrf.mxu0
      %680 = vdwg.mxu0
      %v681 = vadd.f32 %v296, %v555
      %v682 = vadd.f32 %v297, %v558
      %v683 = vadd.f32 %v298, %v563
      %v684 = vadd.f32 %v299, %v566
      %v685 = vadd.f32 %v300, %v571
      %v686 = vadd.f32 %v301, %v574
      %v687 = vadd.f32 %v302, %v579
      %v688 = vadd.f32 %v303, %v582
      %v689 = vadd.f32 %v304, %v587
      %v690 = vadd.f32 %v305, %v590
      %v691 = vadd.f32 %v306, %v595
      %v692 = vadd.f32 %v307, %v598
      %v693 = vadd.f32 %v308, %v603
      %v694 = vadd.f32 %v309, %v606
      %v695 = vadd.f32 %v310, %v611
      %v696 = vadd.f32 %v311, %v614
      %v697 = vadd.f32 %v312, %v619
      %v698 = vadd.f32 %v313, %v622
      %v699 = vadd.f32 %v314, %v627
      %v700 = vadd.f32 %v315, %v630
      %v701 = vadd.f32 %v316, %v635
      %v702 = vadd.f32 %v317, %v638
      %v703 = vadd.f32 %v318, %v643
      %v704 = vadd.f32 %v319, %v646
      %v705 = vadd.f32 %v320, %v651
      %v706 = vadd.f32 %v321, %v654
      %v707 = vadd.f32 %v322, %v659
      %v708 = vadd.f32 %v323, %v662
      %v709 = vadd.f32 %v324, %v667
      %v710 = vadd.f32 %v325, %v670
      %v711 = vadd.f32 %v326, %v675
      %v712 = vadd.f32 %v327, %v678
      %713 = vst [vmem:[#allocation2] sm:$0xff] %v681
      %714 = vst [vmem:[#allocation2 + $0x8] sm:$0xff] %v682
      %715 = vst [vmem:[#allocation2 + $0x10] sm:$0xff] %v683
      %716 = vst [vmem:[#allocation2 + $0x18] sm:$0xff] %v684
      %717 = vst [vmem:[#allocation2 + $0x20] sm:$0xff] %v685
      %718 = vst [vmem:[#allocation2 + $0x28] sm:$0xff] %v686
      %719 = vst [vmem:[#allocation2 + $0x30] sm:$0xff] %v687
      %720 = vst [vmem:[#allocation2 + $0x38] sm:$0xff] %v688
      %721 = vst [vmem:[#allocation2 + $0x40] sm:$0xff] %v689
      %722 = vst [vmem:[#allocation2 + $0x48] sm:$0xff] %v690
      %723 = vst [vmem:[#allocation2 + $0x50] sm:$0xff] %v691
      %724 = vst [vmem:[#allocation2 + $0x58] sm:$0xff] %v692
      %725 = vst [vmem:[#allocation2 + $0x60] sm:$0xff] %v693
      %726 = vst [vmem:[#allocation2 + $0x68] sm:$0xff] %v694
      %727 = vst [vmem:[#allocation2 + $0x70] sm:$0xff] %v695
      %728 = vst [vmem:[#allocation2 + $0x78] sm:$0xff] %v696
      %729 = vst [vmem:[#allocation2 + $0x80] sm:$0xff] %v697
      %730 = vst [vmem:[#allocation2 + $0x88] sm:$0xff] %v698
      %731 = vst [vmem:[#allocation2 + $0x90] sm:$0xff] %v699
      %732 = vst [vmem:[#allocation2 + $0x98] sm:$0xff] %v700
      %733 = vst [vmem:[#allocation2 + $0xa0] sm:$0xff] %v701
      %734 = vst [vmem:[#allocation2 + $0xa8] sm:$0xff] %v702
      %735 = vst [vmem:[#allocation2 + $0xb0] sm:$0xff] %v703
      %736 = vst [vmem:[#allocation2 + $0xb8] sm:$0xff] %v704
      %737 = vst [vmem:[#allocation2 + $0xc0] sm:$0xff] %v705
      %738 = vst [vmem:[#allocation2 + $0xc8] sm:$0xff] %v706
      %739 = vst [vmem:[#allocation2 + $0xd0] sm:$0xff] %v707
      %740 = vst [vmem:[#allocation2 + $0xd8] sm:$0xff] %v708
      %741 = vst [vmem:[#allocation2 + $0xe0] sm:$0xff] %v709
      %742 = vst [vmem:[#allocation2 + $0xe8] sm:$0xff] %v710
      %743 = vst [vmem:[#allocation2 + $0xf0] sm:$0xff] %v711
      %744 = vst [vmem:[#allocation2 + $0xf8] sm:$0xff] %v712
      // Predicated region
      $region37: #{lednet_forward.66} parent=31 // pred_check
        %p745 = pneg %p260
      $region38: #{lednet_forward.66} parent=31 // pred_check_branch
        %747 = sbr.rel (%p745) target = $region40
      $region39: #{lednet_forward.66} parent=31 // pred_region
        %v748 = vld [vmem:[#allocation2] sm:$0xff]
        %v749 = vld [vmem:[#allocation2 + $0x8] sm:$0xff]
        %v750 = vld [vmem:[#allocation2 + $0x10] sm:$0xff]
        %v751 = vld [vmem:[#allocation2 + $0x18] sm:$0xff]
        %v752 = vld [vmem:[#allocation2 + $0x20] sm:$0xff]
        %v753 = vld [vmem:[#allocation2 + $0x28] sm:$0xff]
        %v754 = vld [vmem:[#allocation2 + $0x30] sm:$0xff]
        %v755 = vld [vmem:[#allocation2 + $0x38] sm:$0xff]
        %v756 = vld [vmem:[#allocation2 + $0x40] sm:$0xff]
        %v757 = vld [vmem:[#allocation2 + $0x48] sm:$0xff]
        %v758 = vld [vmem:[#allocation2 + $0x50] sm:$0xff]
        %v759 = vld [vmem:[#allocation2 + $0x58] sm:$0xff]
        %v760 = vld [vmem:[#allocation2 + $0x60] sm:$0xff]
        %v761 = vld [vmem:[#allocation2 + $0x68] sm:$0xff]
        %v762 = vld [vmem:[#allocation2 + $0x70] sm:$0xff]
        %v763 = vld [vmem:[#allocation2 + $0x78] sm:$0xff]
        %v764 = vld [vmem:[#allocation2 + $0x80] sm:$0xff]
        %v765 = vld [vmem:[#allocation2 + $0x88] sm:$0xff]
        %v766 = vld [vmem:[#allocation2 + $0x90] sm:$0xff]
        %v767 = vld [vmem:[#allocation2 + $0x98] sm:$0xff]
        %v768 = vld [vmem:[#allocation2 + $0xa0] sm:$0xff]
        %v769 = vld [vmem:[#allocation2 + $0xa8] sm:$0xff]
        %v770 = vld [vmem:[#allocation2 + $0xb0] sm:$0xff]
        %v771 = vld [vmem:[#allocation2 + $0xb8] sm:$0xff]
        %v772 = vld [vmem:[#allocation2 + $0xc0] sm:$0xff]
        %v773 = vld [vmem:[#allocation2 + $0xc8] sm:$0xff]
        %v774 = vld [vmem:[#allocation2 + $0xd0] sm:$0xff]
        %v775 = vld [vmem:[#allocation2 + $0xd8] sm:$0xff]
        %v776 = vld [vmem:[#allocation2 + $0xe0] sm:$0xff]
        %v777 = vld [vmem:[#allocation2 + $0xe8] sm:$0xff]
        %v778 = vld [vmem:[#allocation2 + $0xf0] sm:$0xff]
        %v779 = vld [vmem:[#allocation2 + $0xf8] sm:$0xff]
        %v780 = vld [vmem:[%s249] sm:$0x1]
        %v782 = vlaneseq
        %v783 = vshrl.u32 %v782, 7
        %v784 = vsub.s32 0, %v783
        %v785 = vrot.slane %v780, %v784
        %v787 = vadd.f32 %v748, %v785
        %v788 = vadd.f32 %v749, %v785
        %v789 = vadd.f32 %v750, %v785
        %v790 = vadd.f32 %v751, %v785
        %v791 = vadd.f32 %v752, %v785
        %v792 = vadd.f32 %v753, %v785
        %v793 = vadd.f32 %v754, %v785
        %v794 = vadd.f32 %v755, %v785
        %v795 = vadd.f32 %v756, %v785
        %v796 = vadd.f32 %v757, %v785
        %v797 = vadd.f32 %v758, %v785
        %v798 = vadd.f32 %v759, %v785
        %v799 = vadd.f32 %v760, %v785
        %v800 = vadd.f32 %v761, %v785
        %v801 = vadd.f32 %v762, %v785
        %v802 = vadd.f32 %v763, %v785
        %v803 = vadd.f32 %v764, %v785
        %v804 = vadd.f32 %v765, %v785
        %v805 = vadd.f32 %v766, %v785
        %v806 = vadd.f32 %v767, %v785
        %v807 = vadd.f32 %v768, %v785
        %v808 = vadd.f32 %v769, %v785
        %v809 = vadd.f32 %v770, %v785
        %v810 = vadd.f32 %v771, %v785
        %v811 = vadd.f32 %v772, %v785
        %v812 = vadd.f32 %v773, %v785
        %v813 = vadd.f32 %v774, %v785
        %v814 = vadd.f32 %v775, %v785
        %v815 = vadd.f32 %v776, %v785
        %v816 = vadd.f32 %v777, %v785
        %v817 = vadd.f32 %v778, %v785
        %v818 = vadd.f32 %v779, %v785
        %vm819 = vcmp.ge.f32.partialorder %v787, 0.0
        %vm820 = vcmp.ge.f32.partialorder %v788, 0.0
        %vm821 = vcmp.ge.f32.partialorder %v789, 0.0
        %vm822 = vcmp.ge.f32.partialorder %v790, 0.0
        %vm823 = vcmp.ge.f32.partialorder %v791, 0.0
        %vm824 = vcmp.ge.f32.partialorder %v792, 0.0
        %vm825 = vcmp.ge.f32.partialorder %v793, 0.0
        %vm826 = vcmp.ge.f32.partialorder %v794, 0.0
        %vm827 = vcmp.ge.f32.partialorder %v795, 0.0
        %vm828 = vcmp.ge.f32.partialorder %v796, 0.0
        %vm829 = vcmp.ge.f32.partialorder %v797, 0.0
        %vm830 = vcmp.ge.f32.partialorder %v798, 0.0
        %vm831 = vcmp.ge.f32.partialorder %v799, 0.0
        %vm832 = vcmp.ge.f32.partialorder %v800, 0.0
        %vm833 = vcmp.ge.f32.partialorder %v801, 0.0
        %vm834 = vcmp.ge.f32.partialorder %v802, 0.0
        %vm835 = vcmp.ge.f32.partialorder %v803, 0.0
        %vm836 = vcmp.ge.f32.partialorder %v804, 0.0
        %vm837 = vcmp.ge.f32.partialorder %v805, 0.0
        %vm838 = vcmp.ge.f32.partialorder %v806, 0.0
        %vm839 = vcmp.ge.f32.partialorder %v807, 0.0
        %vm840 = vcmp.ge.f32.partialorder %v808, 0.0
        %vm841 = vcmp.ge.f32.partialorder %v809, 0.0
        %vm842 = vcmp.ge.f32.partialorder %v810, 0.0
        %vm843 = vcmp.ge.f32.partialorder %v811, 0.0
        %vm844 = vcmp.ge.f32.partialorder %v812, 0.0
        %vm845 = vcmp.ge.f32.partialorder %v813, 0.0
        %vm846 = vcmp.ge.f32.partialorder %v814, 0.0
        %vm847 = vcmp.ge.f32.partialorder %v815, 0.0
        %vm848 = vcmp.ge.f32.partialorder %v816, 0.0
        %vm849 = vcmp.ge.f32.partialorder %v817, 0.0
        %vm850 = vcmp.ge.f32.partialorder %v818, 0.0
        %v851 = vmul.f32 %v787, 0.25
        %v852 = vmul.f32 %v788, 0.25
        %v853 = vmul.f32 %v789, 0.25
        %v854 = vmul.f32 %v790, 0.25
        %v855 = vmul.f32 %v791, 0.25
        %v856 = vmul.f32 %v792, 0.25
        %v857 = vmul.f32 %v793, 0.25
        %v858 = vmul.f32 %v794, 0.25
        %v859 = vmul.f32 %v795, 0.25
        %v860 = vmul.f32 %v796, 0.25
        %v861 = vmul.f32 %v797, 0.25
        %v862 = vmul.f32 %v798, 0.25
        %v863 = vmul.f32 %v799, 0.25
        %v864 = vmul.f32 %v800, 0.25
        %v865 = vmul.f32 %v801, 0.25
        %v866 = vmul.f32 %v802, 0.25
        %v867 = vmul.f32 %v803, 0.25
        %v868 = vmul.f32 %v804, 0.25
        %v869 = vmul.f32 %v805, 0.25
        %v870 = vmul.f32 %v806, 0.25
        %v871 = vmul.f32 %v807, 0.25
        %v872 = vmul.f32 %v808, 0.25
        %v873 = vmul.f32 %v809, 0.25
        %v874 = vmul.f32 %v810, 0.25
        %v875 = vmul.f32 %v811, 0.25
        %v876 = vmul.f32 %v812, 0.25
        %v877 = vmul.f32 %v813, 0.25
        %v878 = vmul.f32 %v814, 0.25
        %v879 = vmul.f32 %v815, 0.25
        %v880 = vmul.f32 %v816, 0.25
        %v881 = vmul.f32 %v817, 0.25
        %v882 = vmul.f32 %v818, 0.25
        %v883 = vsel %vm819, %v787, %v851
        %v884 = vsel %vm820, %v788, %v852
        %v885 = vsel %vm821, %v789, %v853
        %v886 = vsel %vm822, %v790, %v854
        %v887 = vsel %vm823, %v791, %v855
        %v888 = vsel %vm824, %v792, %v856
        %v889 = vsel %vm825, %v793, %v857
        %v890 = vsel %vm826, %v794, %v858
        %v891 = vsel %vm827, %v795, %v859
        %v892 = vsel %vm828, %v796, %v860
        %v893 = vsel %vm829, %v797, %v861
        %v894 = vsel %vm830, %v798, %v862
        %v895 = vsel %vm831, %v799, %v863
        %v896 = vsel %vm832, %v800, %v864
        %v897 = vsel %vm833, %v801, %v865
        %v898 = vsel %vm834, %v802, %v866
        %v899 = vsel %vm835, %v803, %v867
        %v900 = vsel %vm836, %v804, %v868
        %v901 = vsel %vm837, %v805, %v869
        %v902 = vsel %vm838, %v806, %v870
        %v903 = vsel %vm839, %v807, %v871
        %v904 = vsel %vm840, %v808, %v872
        %v905 = vsel %vm841, %v809, %v873
        %v906 = vsel %vm842, %v810, %v874
        %v907 = vsel %vm843, %v811, %v875
        %v908 = vsel %vm844, %v812, %v876
        %v909 = vsel %vm845, %v813, %v877
        %v910 = vsel %vm846, %v814, %v878
        %v911 = vsel %vm847, %v815, %v879
        %v912 = vsel %vm848, %v816, %v880
        %v913 = vsel %vm849, %v817, %v881
        %v914 = vsel %vm850, %v818, %v882
        %v915 = vpack.c.bf16 %v884, %v883
        %v916 = vpack.c.bf16 %v886, %v885
        %v917 = vpack.c.bf16 %v888, %v887
        %v918 = vpack.c.bf16 %v890, %v889
        %v919 = vpack.c.bf16 %v892, %v891
        %v920 = vpack.c.bf16 %v894, %v893
        %v921 = vpack.c.bf16 %v896, %v895
        %v922 = vpack.c.bf16 %v898, %v897
        %v923 = vpack.c.bf16 %v900, %v899
        %v924 = vpack.c.bf16 %v902, %v901
        %v925 = vpack.c.bf16 %v904, %v903
        %v926 = vpack.c.bf16 %v906, %v905
        %v927 = vpack.c.bf16 %v908, %v907
        %v928 = vpack.c.bf16 %v910, %v909
        %v929 = vpack.c.bf16 %v912, %v911
        %v930 = vpack.c.bf16 %v914, %v913
        %v947 = vunpack.c.l.b16 %v915
        %v948 = vunpack.c.h.b16 %v915
        %v949 = vunpack.c.l.b16 %v916
        %v950 = vunpack.c.h.b16 %v916
        %v951 = vunpack.c.l.b16 %v917
        %v952 = vunpack.c.h.b16 %v917
        %v953 = vunpack.c.l.b16 %v918
        %v954 = vunpack.c.h.b16 %v918
        %v955 = vunpack.c.l.b16 %v919
        %v956 = vunpack.c.h.b16 %v919
        %v957 = vunpack.c.l.b16 %v920
        %v958 = vunpack.c.h.b16 %v920
        %v959 = vunpack.c.l.b16 %v921
        %v960 = vunpack.c.h.b16 %v921
        %v961 = vunpack.c.l.b16 %v922
        %v962 = vunpack.c.h.b16 %v922
        %v963 = vunpack.c.l.b16 %v923
        %v964 = vunpack.c.h.b16 %v923
        %v965 = vunpack.c.l.b16 %v924
        %v966 = vunpack.c.h.b16 %v924
        %v967 = vunpack.c.l.b16 %v925
        %v968 = vunpack.c.h.b16 %v925
        %v969 = vunpack.c.l.b16 %v926
        %v970 = vunpack.c.h.b16 %v926
        %v971 = vunpack.c.l.b16 %v927
        %v972 = vunpack.c.h.b16 %v927
        %v973 = vunpack.c.l.b16 %v928
        %v974 = vunpack.c.h.b16 %v928
        %v975 = vunpack.c.l.b16 %v929
        %v976 = vunpack.c.h.b16 %v929
        %v977 = vunpack.c.l.b16 %v930
        %v978 = vunpack.c.h.b16 %v930
        %v979 = vpack.c.b16 %v947, %v947
        %v980 = vpack.c.b16 %v948, %v948
        %v981 = vpack.c.b16 %v949, %v949
        %v982 = vpack.c.b16 %v950, %v950
        %v983 = vpack.c.b16 %v951, %v951
        %v984 = vpack.c.b16 %v952, %v952
        %v985 = vpack.c.b16 %v953, %v953
        %v986 = vpack.c.b16 %v954, %v954
        %v987 = vpack.c.b16 %v955, %v955
        %v988 = vpack.c.b16 %v956, %v956
        %v989 = vpack.c.b16 %v957, %v957
        %v990 = vpack.c.b16 %v958, %v958
        %v991 = vpack.c.b16 %v959, %v959
        %v992 = vpack.c.b16 %v960, %v960
        %v993 = vpack.c.b16 %v961, %v961
        %v994 = vpack.c.b16 %v962, %v962
        %v995 = vpack.c.b16 %v963, %v963
        %v996 = vpack.c.b16 %v964, %v964
        %v997 = vpack.c.b16 %v965, %v965
        %v998 = vpack.c.b16 %v966, %v966
        %v999 = vpack.c.b16 %v967, %v967
        %v1000 = vpack.c.b16 %v968, %v968
        %v1001 = vpack.c.b16 %v969, %v969
        %v1002 = vpack.c.b16 %v970, %v970
        %v1003 = vpack.c.b16 %v971, %v971
        %v1004 = vpack.c.b16 %v972, %v972
        %v1005 = vpack.c.b16 %v973, %v973
        %v1006 = vpack.c.b16 %v974, %v974
        %v1007 = vpack.c.b16 %v975, %v975
        %v1008 = vpack.c.b16 %v976, %v976
        %v1009 = vpack.c.b16 %v977, %v977
        %v1010 = vpack.c.b16 %v978, %v978
        %1043 = vst [vmem:[%s257] sm:$0xf] %v979
        %1044 = vst [vmem:[%s257 + $0x4] sm:$0xf] %v980
        %1045 = vst [vmem:[%s257 + $0x8] sm:$0xf] %v981
        %1046 = vst [vmem:[%s257 + $0xc] sm:$0xf] %v982
        %1047 = vst [vmem:[%s257 + $0x10] sm:$0xf] %v983
        %1048 = vst [vmem:[%s257 + $0x14] sm:$0xf] %v984
        %1049 = vst [vmem:[%s257 + $0x18] sm:$0xf] %v985
        %1050 = vst [vmem:[%s257 + $0x1c] sm:$0xf] %v986
        %1051 = vst [vmem:[%s257 + $0x20] sm:$0xf] %v987
        %1052 = vst [vmem:[%s257 + $0x24] sm:$0xf] %v988
        %1053 = vst [vmem:[%s257 + $0x28] sm:$0xf] %v989
        %1054 = vst [vmem:[%s257 + $0x2c] sm:$0xf] %v990
        %1055 = vst [vmem:[%s257 + $0x30] sm:$0xf] %v991
        %1056 = vst [vmem:[%s257 + $0x34] sm:$0xf] %v992
        %1057 = vst [vmem:[%s257 + $0x38] sm:$0xf] %v993
        %1058 = vst [vmem:[%s257 + $0x3c] sm:$0xf] %v994
        %1059 = vst [vmem:[%s257 + $0x40] sm:$0xf] %v995
        %1060 = vst [vmem:[%s257 + $0x44] sm:$0xf] %v996
        %1061 = vst [vmem:[%s257 + $0x48] sm:$0xf] %v997
        %1062 = vst [vmem:[%s257 + $0x4c] sm:$0xf] %v998
        %1063 = vst [vmem:[%s257 + $0x50] sm:$0xf] %v999
        %1064 = vst [vmem:[%s257 + $0x54] sm:$0xf] %v1000
        %1065 = vst [vmem:[%s257 + $0x58] sm:$0xf] %v1001
        %1066 = vst [vmem:[%s257 + $0x5c] sm:$0xf] %v1002
        %1067 = vst [vmem:[%s257 + $0x60] sm:$0xf] %v1003
        %1068 = vst [vmem:[%s257 + $0x64] sm:$0xf] %v1004
        %1069 = vst [vmem:[%s257 + $0x68] sm:$0xf] %v1005
        %1070 = vst [vmem:[%s257 + $0x6c] sm:$0xf] %v1006
        %1071 = vst [vmem:[%s257 + $0x70] sm:$0xf] %v1007
        %1072 = vst [vmem:[%s257 + $0x74] sm:$0xf] %v1008
        %1073 = vst [vmem:[%s257 + $0x78] sm:$0xf] %v1009
        %1074 = vst [vmem:[%s257 + $0x7c] sm:$0xf] %v1010
      $region40: #{lednet_forward.66} parent=31 // pred_fallthru
        _
      %s1075 = smul.u32 32, %s19
      %p1076 = scmp.lt.s32.totalorder %s1075, 63
      %s1077 = scalar_select %p1076, %s1075, 63
      %p1078 = scmp.lt.s32.totalorder %s20, 0
      %s1079 = scalar_select %p1078, %s20, 0
      %s1080 = sadd.s32 %s1079, %s1077
      %s1081 = smul.addr %s1080, 4
      %s1082 = scalar_lea.vmem %s3, %s1081
      // Predicated region
      $region41: #{lednet_forward.66} parent=31 // pred_check
        %p1083 = pneg %p135
      $region42: #{lednet_forward.66} parent=31 // pred_check_branch
        %1085 = sbr.rel (%p1083) target = $region44
      $region43: #{lednet_forward.66} parent=31 // pred_region
        %s1086 = smul.u32 32, %s19
      $region44: #{lednet_forward.66} parent=31 // pred_fallthru
        _
    $region32: #{lednet_forward.66} parent=5 // pred_fallthru
      _
    %p1087 = scmp.le.s32.totalorder 2, %s9
    // Predicated region
    $region45: #{lednet_forward.66} parent=5 // pred_check
      %p1088 = pneg %p1087
    $region46: #{lednet_forward.66} parent=5 // pred_check_branch
      %1090 = sbr.rel (%p1088) target = $region48
    $region47: #{lednet_forward.66} parent=5 // pred_region
      %s1091 = ssub.s32 %s9, 2
      // Predicated region
      $region49: #{lednet_forward.66} parent=47 // pred_check
        %p1092 = pneg %p141
      $region50: #{lednet_forward.66} parent=47 // pred_check_branch
        %1094 = sbr.rel (%p1092) target = $region52
      $region51: #{lednet_forward.66} parent=47 // pred_region
        %s1095 = smul.u32 32, %s22
        %p1096 = scmp.lt.s32.totalorder %s1095, 63
        %s1097 = scalar_select %p1096, %s1095, 63
        %p1098 = scmp.lt.s32.totalorder %s23, 0
        %s1099 = scalar_select %p1098, %s23, 0
        %s1100 = sadd.s32 %s1099, %s1097
        %s1101 = smul.addr %s1100, 4
        %s1102 = scalar_lea.vmem %s3, %s1101
      $region52: #{lednet_forward.66} parent=47 // pred_fallthru
        _
    $region48: #{lednet_forward.66} parent=5 // pred_fallthru
      _
  $region6: #{lednet_forward.66} parent=0 // loop_footer
    %s13 = sadd.s32 1, %s9
  $region7: #{lednet_forward.66} parent=0 // loop_footer_branch
    %8 = sbr.rel target = $region3
  $region8: #{lednet_forward.66} parent=0 // loop_exit
    _

// kernel: lednet_forward.67
$region0: #{lednet_forward.67}
  #allocation0 [shape = 'u32[]', space=smem, size = 0x4, offset = 0x4, fixed_abs, tag = 'smem constant byte address 0x4 - core index']
  #allocation1 [shape = 'u32[144,128]{1,0:T(1,128)}', space=vmem, size = 0x12000, scoped, tag = 'internal scratch']
  %s0 = inlined_call_operand.vmem [shape: f32[512,128], index: 0, kind: input, shape index: {}]
  %s1 = inlined_call_operand.vmem [shape: f32[512,128], index: 1, kind: input, shape index: {}]
  %s2 = inlined_call_operand.vmem [shape: f32[512,128], index: 2, kind: input, shape index: {}]
  %s3 = inlined_call_operand.vmem [shape: f32[512,128], index: 3, kind: input, shape index: {}]
  %s4 = inlined_call_operand.vmem [shape: f32[1,128], index: 4, kind: input, shape index: {}]
  %s5 = inlined_call_operand.vmem [shape: f32[1,128], index: 5, kind: input, shape index: {}]
  %s6 = inlined_call_operand.vmem [shape: bf16[512,128], index: 6, kind: output, shape index: {}]
  %s7 = sld [smem:[#allocation0]]
  $region34: #{lednet_forward.67} parent=0
    _
  %s9 = ssub.s32 1, %s7
  %s10 = scalar_select 0, %s9, %s7
  // Predicated region
  $region2: #{lednet_forward.67} parent=0 // pred_check
    _
  $region3: #{lednet_forward.67} parent=0 // pred_check_branch
    %12 = sbr.rel (0) target = $region5
  $region4: #{lednet_forward.67} parent=0 // pred_region
    _
  $region5: #{lednet_forward.67} parent=0 // pred_fallthru
    _
  // Predicated region
  $region6: #{lednet_forward.67} parent=0 // pred_check
    _
  $region7: #{lednet_forward.67} parent=0 // pred_check_branch
    %14 = sbr.rel (0) target = $region9
  $region8: #{lednet_forward.67} parent=0 // pred_region
    _
  $region9: #{lednet_forward.67} parent=0 // pred_fallthru
    _
  // Predicated region
  $region10: #{lednet_forward.67} parent=0 // pred_check
    _
  $region11: #{lednet_forward.67} parent=0 // pred_check_branch
    %16 = sbr.rel (0) target = $region13
  $region12: #{lednet_forward.67} parent=0 // pred_region
    _
  $region13: #{lednet_forward.67} parent=0 // pred_fallthru
    _
  // Predicated region
  $region14: #{lednet_forward.67} parent=0 // pred_check
    _
  $region15: #{lednet_forward.67} parent=0 // pred_check_branch
    %18 = sbr.rel (0) target = $region17
  $region16: #{lednet_forward.67} parent=0 // pred_region
    _
  $region17: #{lednet_forward.67} parent=0 // pred_fallthru
    _
  // Predicated region
  $region18: #{lednet_forward.67} parent=0 // pred_check
    _
  $region19: #{lednet_forward.67} parent=0 // pred_check_branch
    %20 = sbr.rel (0) target = $region21
  $region20: #{lednet_forward.67} parent=0 // pred_region
    _
  $region21: #{lednet_forward.67} parent=0 // pred_fallthru
    _
  // Predicated region
  $region22: #{lednet_forward.67} parent=0 // pred_check
    _
  $region23: #{lednet_forward.67} parent=0 // pred_check_branch
    %22 = sbr.rel (0) target = $region25
  $region24: #{lednet_forward.67} parent=0 // pred_region
    _
  $region25: #{lednet_forward.67} parent=0 // pred_fallthru
    _
  %v23 = vld [vmem:[%s0] sm:$0xff]
  %v24 = vld [vmem:[%s0 + $0x8] sm:$0xff]
  %v25 = vld [vmem:[%s0 + $0x10] sm:$0xff]
  %v26 = vld [vmem:[%s0 + $0x18] sm:$0xff]
  %v27 = vld [vmem:[%s0 + $0x20] sm:$0xff]
  %v28 = vld [vmem:[%s0 + $0x28] sm:$0xff]
  %v29 = vld [vmem:[%s0 + $0x30] sm:$0xff]
  %v30 = vld [vmem:[%s0 + $0x38] sm:$0xff]
  %v31 = vld [vmem:[%s0 + $0x40] sm:$0xff]
  %v32 = vld [vmem:[%s0 + $0x48] sm:$0xff]
  %v33 = vld [vmem:[%s0 + $0x50] sm:$0xff]
  %v34 = vld [vmem:[%s0 + $0x58] sm:$0xff]
  %v35 = vld [vmem:[%s0 + $0x60] sm:$0xff]
  %v36 = vld [vmem:[%s0 + $0x68] sm:$0xff]
  %v37 = vld [vmem:[%s0 + $0x70] sm:$0xff]
  %v38 = vld [vmem:[%s0 + $0x78] sm:$0xff]
  %v39 = vld [vmem:[%s0 + $0x80] sm:$0xff]
  %v40 = vld [vmem:[%s0 + $0x88] sm:$0xff]
  %v41 = vld [vmem:[%s0 + $0x90] sm:$0xff]
  %v42 = vld [vmem:[%s0 + $0x98] sm:$0xff]
  %v43 = vld [vmem:[%s0 + $0xa0] sm:$0xff]
  %v44 = vld [vmem:[%s0 + $0xa8] sm:$0xff]
  %v45 = vld [vmem:[%s0 + $0xb0] sm:$0xff]
  %v46 = vld [vmem:[%s0 + $0xb8] sm:$0xff]
  %v47 = vld [vmem:[%s0 + $0xc0] sm:$0xff]
  %v48 = vld [vmem:[%s0 + $0xc8] sm:$0xff]
  %v49 = vld [vmem:[%s0 + $0xd0] sm:$0xff]
  %v50 = vld [vmem:[%s0 + $0xd8] sm:$0xff]
  %v51 = vld [vmem:[%s0 + $0xe0] sm:$0xff]
  %v52 = vld [vmem:[%s0 + $0xe8] sm:$0xff]
  %v53 = vld [vmem:[%s0 + $0xf0] sm:$0xff]
  %v54 = vld [vmem:[%s0 + $0xf8] sm:$0xff]
  %v55 = vld [vmem:[%s0 + $0x100] sm:$0xff]
  %v56 = vld [vmem:[%s0 + $0x108] sm:$0xff]
  %v57 = vld [vmem:[%s0 + $0x110] sm:$0xff]
  %v58 = vld [vmem:[%s0 + $0x118] sm:$0xff]
  %v59 = vld [vmem:[%s0 + $0x120] sm:$0xff]
  %v60 = vld [vmem:[%s0 + $0x128] sm:$0xff]
  %v61 = vld [vmem:[%s0 + $0x130] sm:$0xff]
  %v62 = vld [vmem:[%s0 + $0x138] sm:$0xff]
  %v63 = vld [vmem:[%s0 + $0x140] sm:$0xff]
  %v64 = vld [vmem:[%s0 + $0x148] sm:$0xff]
  %v65 = vld [vmem:[%s0 + $0x150] sm:$0xff]
  %v66 = vld [vmem:[%s0 + $0x158] sm:$0xff]
  %v67 = vld [vmem:[%s0 + $0x160] sm:$0xff]
  %v68 = vld [vmem:[%s0 + $0x168] sm:$0xff]
  %v69 = vld [vmem:[%s0 + $0x170] sm:$0xff]
  %v70 = vld [vmem:[%s0 + $0x178] sm:$0xff]
  %v71 = vld [vmem:[%s0 + $0x180] sm:$0xff]
  %v72 = vld [vmem:[%s0 + $0x188] sm:$0xff]
  %v73 = vld [vmem:[%s0 + $0x190] sm:$0xff]
  %v74 = vld [vmem:[%s0 + $0x198] sm:$0xff]
  %v75 = vld [vmem:[%s0 + $0x1a0] sm:$0xff]
  %v76 = vld [vmem:[%s0 + $0x1a8] sm:$0xff]
  %v77 = vld [vmem:[%s0 + $0x1b0] sm:$0xff]
  %v78 = vld [vmem:[%s0 + $0x1b8] sm:$0xff]
  %v79 = vld [vmem:[%s0 + $0x1c0] sm:$0xff]
  %v80 = vld [vmem:[%s0 + $0x1c8] sm:$0xff]
  %v81 = vld [vmem:[%s0 + $0x1d0] sm:$0xff]
  %v82 = vld [vmem:[%s0 + $0x1d8] sm:$0xff]
  %v83 = vld [vmem:[%s0 + $0x1e0] sm:$0xff]
  %v84 = vld [vmem:[%s0 + $0x1e8] sm:$0xff]
  %v85 = vld [vmem:[%s0 + $0x1f0] sm:$0xff]
  %v86 = vld [vmem:[%s0 + $0x1f8] sm:$0xff]
  %v87 = vld [vmem:[%s1] sm:$0xff]
  %v88 = vld [vmem:[%s1 + $0x8] sm:$0xff]
  %v89 = vld [vmem:[%s1 + $0x10] sm:$0xff]
  %v90 = vld [vmem:[%s1 + $0x18] sm:$0xff]
  %v91 = vld [vmem:[%s1 + $0x20] sm:$0xff]
  %v92 = vld [vmem:[%s1 + $0x28] sm:$0xff]
  %v93 = vld [vmem:[%s1 + $0x30] sm:$0xff]
  %v94 = vld [vmem:[%s1 + $0x38] sm:$0xff]
  %v95 = vld [vmem:[%s1 + $0x40] sm:$0xff]
  %v96 = vld [vmem:[%s1 + $0x48] sm:$0xff]
  %v97 = vld [vmem:[%s1 + $0x50] sm:$0xff]
  %v98 = vld [vmem:[%s1 + $0x58] sm:$0xff]
  %v99 = vld [vmem:[%s1 + $0x60] sm:$0xff]
  %v100 = vld [vmem:[%s1 + $0x68] sm:$0xff]
  %v101 = vld [vmem:[%s1 + $0x70] sm:$0xff]
  %v102 = vld [vmem:[%s1 + $0x78] sm:$0xff]
  %v103 = vld [vmem:[%s1 + $0x80] sm:$0xff]
  %v104 = vld [vmem:[%s1 + $0x88] sm:$0xff]
  %v105 = vld [vmem:[%s1 + $0x90] sm:$0xff]
  %v106 = vld [vmem:[%s1 + $0x98] sm:$0xff]
  %v107 = vld [vmem:[%s1 + $0xa0] sm:$0xff]
  %v108 = vld [vmem:[%s1 + $0xa8] sm:$0xff]
  %v109 = vld [vmem:[%s1 + $0xb0] sm:$0xff]
  %v110 = vld [vmem:[%s1 + $0xb8] sm:$0xff]
  %v111 = vld [vmem:[%s1 + $0xc0] sm:$0xff]
  %v112 = vld [vmem:[%s1 + $0xc8] sm:$0xff]
  %v113 = vld [vmem:[%s1 + $0xd0] sm:$0xff]
  %v114 = vld [vmem:[%s1 + $0xd8] sm:$0xff]
  %v115 = vld [vmem:[%s1 + $0xe0] sm:$0xff]
  %v116 = vld [vmem:[%s1 + $0xe8] sm:$0xff]
  %v117 = vld [vmem:[%s1 + $0xf0] sm:$0xff]
  %v118 = vld [vmem:[%s1 + $0xf8] sm:$0xff]
  %v119 = vld [vmem:[%s1 + $0x100] sm:$0xff]
  %v120 = vld [vmem:[%s1 + $0x108] sm:$0xff]
  %v121 = vld [vmem:[%s1 + $0x110] sm:$0xff]
  %v122 = vld [vmem:[%s1 + $0x118] sm:$0xff]
  %v123 = vld [vmem:[%s1 + $0x120] sm:$0xff]
  %v124 = vld [vmem:[%s1 + $0x128] sm:$0xff]
  %v125 = vld [vmem:[%s1 + $0x130] sm:$0xff]
  %v126 = vld [vmem:[%s1 + $0x138] sm:$0xff]
  %v127 = vld [vmem:[%s1 + $0x140] sm:$0xff]
  %v128 = vld [vmem:[%s1 + $0x148] sm:$0xff]
  %v129 = vld [vmem:[%s1 + $0x150] sm:$0xff]
  %v130 = vld [vmem:[%s1 + $0x158] sm:$0xff]
  %v131 = vld [vmem:[%s1 + $0x160] sm:$0xff]
  %v132 = vld [vmem:[%s1 + $0x168] sm:$0xff]
  %v133 = vld [vmem:[%s1 + $0x170] sm:$0xff]
  %v134 = vld [vmem:[%s1 + $0x178] sm:$0xff]
  %v135 = vld [vmem:[%s1 + $0x180] sm:$0xff]
  %v136 = vld [vmem:[%s1 + $0x188] sm:$0xff]
  %v137 = vld [vmem:[%s1 + $0x190] sm:$0xff]
  %v138 = vld [vmem:[%s1 + $0x198] sm:$0xff]
  %v139 = vld [vmem:[%s1 + $0x1a0] sm:$0xff]
  %v140 = vld [vmem:[%s1 + $0x1a8] sm:$0xff]
  %v141 = vld [vmem:[%s1 + $0x1b0] sm:$0xff]
  %v142 = vld [vmem:[%s1 + $0x1b8] sm:$0xff]
  %v143 = vld [vmem:[%s1 + $0x1c0] sm:$0xff]
  %v144 = vld [vmem:[%s1 + $0x1c8] sm:$0xff]
  %v145 = vld [vmem:[%s1 + $0x1d0] sm:$0xff]
  %v146 = vld [vmem:[%s1 + $0x1d8] sm:$0xff]
  %v147 = vld [vmem:[%s1 + $0x1e0] sm:$0xff]
  %v148 = vld [vmem:[%s1 + $0x1e8] sm:$0xff]
  %v149 = vld [vmem:[%s1 + $0x1f0] sm:$0xff]
  %v150 = vld [vmem:[%s1 + $0x1f8] sm:$0xff]
  %v151 = vmax.f32 %v23, %v87
  %v152 = vmax.f32 %v24, %v88
  %v153 = vmax.f32 %v25, %v89
  %v154 = vmax.f32 %v26, %v90
  %v155 = vmax.f32 %v27, %v91
  %v156 = vmax.f32 %v28, %v92
  %v157 = vmax.f32 %v29, %v93
  %v158 = vmax.f32 %v30, %v94
  %v159 = vmax.f32 %v31, %v95
  %v160 = vmax.f32 %v32, %v96
  %v161 = vmax.f32 %v33, %v97
  %v162 = vmax.f32 %v34, %v98
  %v163 = vmax.f32 %v35, %v99
  %v164 = vmax.f32 %v36, %v100
  %v165 = vmax.f32 %v37, %v101
  %v166 = vmax.f32 %v38, %v102
  %v167 = vmax.f32 %v39, %v103
  %v168 = vmax.f32 %v40, %v104
  %v169 = vmax.f32 %v41, %v105
  %v170 = vmax.f32 %v42, %v106
  %v171 = vmax.f32 %v43, %v107
  %v172 = vmax.f32 %v44, %v108
  %v173 = vmax.f32 %v45, %v109
  %v174 = vmax.f32 %v46, %v110
  %v175 = vmax.f32 %v47, %v111
  %v176 = vmax.f32 %v48, %v112
  %v177 = vmax.f32 %v49, %v113
  %v178 = vmax.f32 %v50, %v114
  %v179 = vmax.f32 %v51, %v115
  %v180 = vmax.f32 %v52, %v116
  %v181 = vmax.f32 %v53, %v117
  %v182 = vmax.f32 %v54, %v118
  %v183 = vmax.f32 %v55, %v119
  %v184 = vmax.f32 %v56, %v120
  %v185 = vmax.f32 %v57, %v121
  %v186 = vmax.f32 %v58, %v122
  %v187 = vmax.f32 %v59, %v123
  %v188 = vmax.f32 %v60, %v124
  %v189 = vmax.f32 %v61, %v125
  %v190 = vmax.f32 %v62, %v126
  %v191 = vmax.f32 %v63, %v127
  %v192 = vmax.f32 %v64, %v128
  %v193 = vmax.f32 %v65, %v129
  %v194 = vmax.f32 %v66, %v130
  %v195 = vmax.f32 %v67, %v131
  %v196 = vmax.f32 %v68, %v132
  %v197 = vmax.f32 %v69, %v133
  %v198 = vmax.f32 %v70, %v134
  %v199 = vmax.f32 %v71, %v135
  %v200 = vmax.f32 %v72, %v136
  %v201 = vmax.f32 %v73, %v137
  %v202 = vmax.f32 %v74, %v138
  %v203 = vmax.f32 %v75, %v139
  %v204 = vmax.f32 %v76, %v140
  %v205 = vmax.f32 %v77, %v141
  %v206 = vmax.f32 %v78, %v142
  %v207 = vmax.f32 %v79, %v143
  %v208 = vmax.f32 %v80, %v144
  %v209 = vmax.f32 %v81, %v145
  %v210 = vmax.f32 %v82, %v146
  %v211 = vmax.f32 %v83, %v147
  %v212 = vmax.f32 %v84, %v148
  %v213 = vmax.f32 %v85, %v149
  %v214 = vmax.f32 %v86, %v150
  %v215 = vld [vmem:[%s2] sm:$0xff]
  %v216 = vld [vmem:[%s2 + $0x8] sm:$0xff]
  %v217 = vld [vmem:[%s2 + $0x10] sm:$0xff]
  %v218 = vld [vmem:[%s2 + $0x18] sm:$0xff]
  %v219 = vld [vmem:[%s2 + $0x20] sm:$0xff]
  %v220 = vld [vmem:[%s2 + $0x28] sm:$0xff]
  %v221 = vld [vmem:[%s2 + $0x30] sm:$0xff]
  %v222 = vld [vmem:[%s2 + $0x38] sm:$0xff]
  %v223 = vld [vmem:[%s2 + $0x40] sm:$0xff]
  %v224 = vld [vmem:[%s2 + $0x48] sm:$0xff]
  %v225 = vld [vmem:[%s2 + $0x50] sm:$0xff]
  %v226 = vld [vmem:[%s2 + $0x58] sm:$0xff]
  %v227 = vld [vmem:[%s2 + $0x60] sm:$0xff]
  %v228 = vld [vmem:[%s2 + $0x68] sm:$0xff]
  %v229 = vld [vmem:[%s2 + $0x70] sm:$0xff]
  %v230 = vld [vmem:[%s2 + $0x78] sm:$0xff]
  %v231 = vld [vmem:[%s2 + $0x80] sm:$0xff]
  %v232 = vld [vmem:[%s2 + $0x88] sm:$0xff]
  %v233 = vld [vmem:[%s2 + $0x90] sm:$0xff]
  %v234 = vld [vmem:[%s2 + $0x98] sm:$0xff]
  %v235 = vld [vmem:[%s2 + $0xa0] sm:$0xff]
  %v236 = vld [vmem:[%s2 + $0xa8] sm:$0xff]
  %v237 = vld [vmem:[%s2 + $0xb0] sm:$0xff]
  %v238 = vld [vmem:[%s2 + $0xb8] sm:$0xff]
  %v239 = vld [vmem:[%s2 + $0xc0] sm:$0xff]
  %v240 = vld [vmem:[%s2 + $0xc8] sm:$0xff]
  %v241 = vld [vmem:[%s2 + $0xd0] sm:$0xff]
  %v242 = vld [vmem:[%s2 + $0xd8] sm:$0xff]
  %v243 = vld [vmem:[%s2 + $0xe0] sm:$0xff]
  %v244 = vld [vmem:[%s2 + $0xe8] sm:$0xff]
  %v245 = vld [vmem:[%s2 + $0xf0] sm:$0xff]
  %v246 = vld [vmem:[%s2 + $0xf8] sm:$0xff]
  %v247 = vld [vmem:[%s2 + $0x100] sm:$0xff]
  %v248 = vld [vmem:[%s2 + $0x108] sm:$0xff]
  %v249 = vld [vmem:[%s2 + $0x110] sm:$0xff]
  %v250 = vld [vmem:[%s2 + $0x118] sm:$0xff]
  %v251 = vld [vmem:[%s2 + $0x120] sm:$0xff]
  %v252 = vld [vmem:[%s2 + $0x128] sm:$0xff]
  %v253 = vld [vmem:[%s2 + $0x130] sm:$0xff]
  %v254 = vld [vmem:[%s2 + $0x138] sm:$0xff]
  %v255 = vld [vmem:[%s2 + $0x140] sm:$0xff]
  %v256 = vld [vmem:[%s2 + $0x148] sm:$0xff]
  %v257 = vld [vmem:[%s2 + $0x150] sm:$0xff]
  %v258 = vld [vmem:[%s2 + $0x158] sm:$0xff]
  %v259 = vld [vmem:[%s2 + $0x160] sm:$0xff]
  %v260 = vld [vmem:[%s2 + $0x168] sm:$0xff]
  %v261 = vld [vmem:[%s2 + $0x170] sm:$0xff]
  %v262 = vld [vmem:[%s2 + $0x178] sm:$0xff]
  %v263 = vld [vmem:[%s2 + $0x180] sm:$0xff]
  %v264 = vld [vmem:[%s2 + $0x188] sm:$0xff]
  %v265 = vld [vmem:[%s2 + $0x190] sm:$0xff]
  %v266 = vld [vmem:[%s2 + $0x198] sm:$0xff]
  %v267 = vld [vmem:[%s2 + $0x1a0] sm:$0xff]
  %v268 = vld [vmem:[%s2 + $0x1a8] sm:$0xff]
  %v269 = vld [vmem:[%s2 + $0x1b0] sm:$0xff]
  %v270 = vld [vmem:[%s2 + $0x1b8] sm:$0xff]
  %v271 = vld [vmem:[%s2 + $0x1c0] sm:$0xff]
  %v272 = vld [vmem:[%s2 + $0x1c8] sm:$0xff]
  %v273 = vld [vmem:[%s2 + $0x1d0] sm:$0xff]
  %v274 = vld [vmem:[%s2 + $0x1d8] sm:$0xff]
  %v275 = vld [vmem:[%s2 + $0x1e0] sm:$0xff]
  %v276 = vld [vmem:[%s2 + $0x1e8] sm:$0xff]
  %v277 = vld [vmem:[%s2 + $0x1f0] sm:$0xff]
  %v278 = vld [vmem:[%s2 + $0x1f8] sm:$0xff]
  %v279 = vld [vmem:[%s3] sm:$0xff]
  %v280 = vld [vmem:[%s3 + $0x8] sm:$0xff]
  %v281 = vld [vmem:[%s3 + $0x10] sm:$0xff]
  %v282 = vld [vmem:[%s3 + $0x18] sm:$0xff]
  %v283 = vld [vmem:[%s3 + $0x20] sm:$0xff]
  %v284 = vld [vmem:[%s3 + $0x28] sm:$0xff]
  %v285 = vld [vmem:[%s3 + $0x30] sm:$0xff]
  %v286 = vld [vmem:[%s3 + $0x38] sm:$0xff]
  %v287 = vld [vmem:[%s3 + $0x40] sm:$0xff]
  %v288 = vld [vmem:[%s3 + $0x48] sm:$0xff]
  %v289 = vld [vmem:[%s3 + $0x50] sm:$0xff]
  %v290 = vld [vmem:[%s3 + $0x58] sm:$0xff]
  %v291 = vld [vmem:[%s3 + $0x60] sm:$0xff]
  %v292 = vld [vmem:[%s3 + $0x68] sm:$0xff]
  %v293 = vld [vmem:[%s3 + $0x70] sm:$0xff]
  %v294 = vld [vmem:[%s3 + $0x78] sm:$0xff]
  %v295 = vld [vmem:[%s3 + $0x80] sm:$0xff]
  %v296 = vld [vmem:[%s3 + $0x88] sm:$0xff]
  %v297 = vld [vmem:[%s3 + $0x90] sm:$0xff]
  %v298 = vld [vmem:[%s3 + $0x98] sm:$0xff]
  %v299 = vld [vmem:[%s3 + $0xa0] sm:$0xff]
  %v300 = vld [vmem:[%s3 + $0xa8] sm:$0xff]
  %v301 = vld [vmem:[%s3 + $0xb0] sm:$0xff]
  %v302 = vld [vmem:[%s3 + $0xb8] sm:$0xff]
  %v303 = vld [vmem:[%s3 + $0xc0] sm:$0xff]
  %v304 = vld [vmem:[%s3 + $0xc8] sm:$0xff]
  %v305 = vld [vmem:[%s3 + $0xd0] sm:$0xff]
  %v306 = vld [vmem:[%s3 + $0xd8] sm:$0xff]
  %v307 = vld [vmem:[%s3 + $0xe0] sm:$0xff]
  %v308 = vld [vmem:[%s3 + $0xe8] sm:$0xff]
  %v309 = vld [vmem:[%s3 + $0xf0] sm:$0xff]
  %v310 = vld [vmem:[%s3 + $0xf8] sm:$0xff]
  %v311 = vld [vmem:[%s3 + $0x100] sm:$0xff]
  %v312 = vld [vmem:[%s3 + $0x108] sm:$0xff]
  %v313 = vld [vmem:[%s3 + $0x110] sm:$0xff]
  %v314 = vld [vmem:[%s3 + $0x118] sm:$0xff]
  %v315 = vld [vmem:[%s3 + $0x120] sm:$0xff]
  %v316 = vld [vmem:[%s3 + $0x128] sm:$0xff]
  %v317 = vld [vmem:[%s3 + $0x130] sm:$0xff]
  %v318 = vld [vmem:[%s3 + $0x138] sm:$0xff]
  %v319 = vld [vmem:[%s3 + $0x140] sm:$0xff]
  %v320 = vld [vmem:[%s3 + $0x148] sm:$0xff]
  %v321 = vld [vmem:[%s3 + $0x150] sm:$0xff]
  %v322 = vld [vmem:[%s3 + $0x158] sm:$0xff]
  %v323 = vld [vmem:[%s3 + $0x160] sm:$0xff]
  %v324 = vld [vmem:[%s3 + $0x168] sm:$0xff]
  %v325 = vld [vmem:[%s3 + $0x170] sm:$0xff]
  %v326 = vld [vmem:[%s3 + $0x178] sm:$0xff]
  %v327 = vld [vmem:[%s3 + $0x180] sm:$0xff]
  %v328 = vld [vmem:[%s3 + $0x188] sm:$0xff]
  %v329 = vld [vmem:[%s3 + $0x190] sm:$0xff]
  %v330 = vld [vmem:[%s3 + $0x198] sm:$0xff]
  %v331 = vld [vmem:[%s3 + $0x1a0] sm:$0xff]
  %v332 = vld [vmem:[%s3 + $0x1a8] sm:$0xff]
  %v333 = vld [vmem:[%s3 + $0x1b0] sm:$0xff]
  %v334 = vld [vmem:[%s3 + $0x1b8] sm:$0xff]
  %v335 = vld [vmem:[%s3 + $0x1c0] sm:$0xff]
  %v336 = vld [vmem:[%s3 + $0x1c8] sm:$0xff]
  %v337 = vld [vmem:[%s3 + $0x1d0] sm:$0xff]
  %v338 = vld [vmem:[%s3 + $0x1d8] sm:$0xff]
  %v339 = vld [vmem:[%s3 + $0x1e0] sm:$0xff]
  %v340 = vld [vmem:[%s3 + $0x1e8] sm:$0xff]
  %v341 = vld [vmem:[%s3 + $0x1f0] sm:$0xff]
  %v342 = vld [vmem:[%s3 + $0x1f8] sm:$0xff]
  %v343 = vmax.f32 %v215, %v279
  %v344 = vmax.f32 %v216, %v280
  %v345 = vmax.f32 %v217, %v281
  %v346 = vmax.f32 %v218, %v282
  %v347 = vmax.f32 %v219, %v283
  %v348 = vmax.f32 %v220, %v284
  %v349 = vmax.f32 %v221, %v285
  %v350 = vmax.f32 %v222, %v286
  %v351 = vmax.f32 %v223, %v287
  %v352 = vmax.f32 %v224, %v288
  %v353 = vmax.f32 %v225, %v289
  %v354 = vmax.f32 %v226, %v290
  %v355 = vmax.f32 %v227, %v291
  %v356 = vmax.f32 %v228, %v292
  %v357 = vmax.f32 %v229, %v293
  %v358 = vmax.f32 %v230, %v294
  %v359 = vmax.f32 %v231, %v295
  %v360 = vmax.f32 %v232, %v296
  %v361 = vmax.f32 %v233, %v297
  %v362 = vmax.f32 %v234, %v298
  %v363 = vmax.f32 %v235, %v299
  %v364 = vmax.f32 %v236, %v300
  %v365 = vmax.f32 %v237, %v301
  %v366 = vmax.f32 %v238, %v302
  %v367 = vmax.f32 %v239, %v303
  %v368 = vmax.f32 %v240, %v304
  %v369 = vmax.f32 %v241, %v305
  %v370 = vmax.f32 %v242, %v306
  %v371 = vmax.f32 %v243, %v307
  %v372 = vmax.f32 %v244, %v308
  %v373 = vmax.f32 %v245, %v309
  %v374 = vmax.f32 %v246, %v310
  %v375 = vmax.f32 %v247, %v311
  %v376 = vmax.f32 %v248, %v312
  %v377 = vmax.f32 %v249, %v313
  %v378 = vmax.f32 %v250, %v314
  %v379 = vmax.f32 %v251, %v315
  %v380 = vmax.f32 %v252, %v316
  %v381 = vmax.f32 %v253, %v317
  %v382 = vmax.f32 %v254, %v318
  %v383 = vmax.f32 %v255, %v319
  %v384 = vmax.f32 %v256, %v320
  %v385 = vmax.f32 %v257, %v321
  %v386 = vmax.f32 %v258, %v322
  %v387 = vmax.f32 %v259, %v323
  %v388 = vmax.f32 %v260, %v324
  %v389 = vmax.f32 %v261, %v325
  %v390 = vmax.f32 %v262, %v326
  %v391 = vmax.f32 %v263, %v327
  %v392 = vmax.f32 %v264, %v328
  %v393 = vmax.f32 %v265, %v329
  %v394 = vmax.f32 %v266, %v330
  %v395 = vmax.f32 %v267, %v331
  %v396 = vmax.f32 %v268, %v332
  %v397 = vmax.f32 %v269, %v333
  %v398 = vmax.f32 %v270, %v334
  %v399 = vmax.f32 %v271, %v335
  %v400 = vmax.f32 %v272, %v336
  %v401 = vmax.f32 %v273, %v337
  %v402 = vmax.f32 %v274, %v338
  %v403 = vmax.f32 %v275, %v339
  %v404 = vmax.f32 %v276, %v340
  %v405 = vmax.f32 %v277, %v341
  %v406 = vmax.f32 %v278, %v342
  %v407 = vmax.f32 %v151, %v343
  %v408 = vmax.f32 %v152, %v344
  %v409 = vmax.f32 %v153, %v345
  %v410 = vmax.f32 %v154, %v346
  %v411 = vmax.f32 %v155, %v347
  %v412 = vmax.f32 %v156, %v348
  %v413 = vmax.f32 %v157, %v349
  %v414 = vmax.f32 %v158, %v350
  %v415 = vmax.f32 %v159, %v351
  %v416 = vmax.f32 %v160, %v352
  %v417 = vmax.f32 %v161, %v353
  %v418 = vmax.f32 %v162, %v354
  %v419 = vmax.f32 %v163, %v355
  %v420 = vmax.f32 %v164, %v356
  %v421 = vmax.f32 %v165, %v357
  %v422 = vmax.f32 %v166, %v358
  %v423 = vmax.f32 %v167, %v359
  %v424 = vmax.f32 %v168, %v360
  %v425 = vmax.f32 %v169, %v361
  %v426 = vmax.f32 %v170, %v362
  %v427 = vmax.f32 %v171, %v363
  %v428 = vmax.f32 %v172, %v364
  %v429 = vmax.f32 %v173, %v365
  %v430 = vmax.f32 %v174, %v366
  %v431 = vmax.f32 %v175, %v367
  %v432 = vmax.f32 %v176, %v368
  %v433 = vmax.f32 %v177, %v369
  %v434 = vmax.f32 %v178, %v370
  %v435 = vmax.f32 %v179, %v371
  %v436 = vmax.f32 %v180, %v372
  %v437 = vmax.f32 %v181, %v373
  %v438 = vmax.f32 %v182, %v374
  %v439 = vmax.f32 %v183, %v375
  %v440 = vmax.f32 %v184, %v376
  %v441 = vmax.f32 %v185, %v377
  %v442 = vmax.f32 %v186, %v378
  %v443 = vmax.f32 %v187, %v379
  %v444 = vmax.f32 %v188, %v380
  %v445 = vmax.f32 %v189, %v381
  %v446 = vmax.f32 %v190, %v382
  %v447 = vmax.f32 %v191, %v383
  %v448 = vmax.f32 %v192, %v384
  %v449 = vmax.f32 %v193, %v385
  %v450 = vmax.f32 %v194, %v386
  %v451 = vmax.f32 %v195, %v387
  %v452 = vmax.f32 %v196, %v388
  %v453 = vmax.f32 %v197, %v389
  %v454 = vmax.f32 %v198, %v390
  %v455 = vmax.f32 %v199, %v391
  %v456 = vmax.f32 %v200, %v392
  %v457 = vmax.f32 %v201, %v393
  %v458 = vmax.f32 %v202, %v394
  %v459 = vmax.f32 %v203, %v395
  %v460 = vmax.f32 %v204, %v396
  %v461 = vmax.f32 %v205, %v397
  %v462 = vmax.f32 %v206, %v398
  %v463 = vmax.f32 %v207, %v399
  %v464 = vmax.f32 %v208, %v400
  %v465 = vmax.f32 %v209, %v401
  %v466 = vmax.f32 %v210, %v402
  %v467 = vmax.f32 %v211, %v403
  %v468 = vmax.f32 %v212, %v404
  %v469 = vmax.f32 %v213, %v405
  %v470 = vmax.f32 %v214, %v406
  %v471 = vld [vmem:[%s4] sm:$0x1]
  %v473 = vlaneseq
  %v474 = vshrl.u32 %v473, 7
  %v475 = vsub.s32 0, %v474
  %v476 = vrot.slane %v471, %v475
  %v478 = vmul.f32 %v407, %v476
  %v479 = vmul.f32 %v408, %v476
  %v480 = vmul.f32 %v409, %v476
  %v481 = vmul.f32 %v410, %v476
  %v482 = vmul.f32 %v411, %v476
  %v483 = vmul.f32 %v412, %v476
  %v484 = vmul.f32 %v413, %v476
  %v485 = vmul.f32 %v414, %v476
  %v486 = vmul.f32 %v415, %v476
  %v487 = vmul.f32 %v416, %v476
  %v488 = vmul.f32 %v417, %v476
  %v489 = vmul.f32 %v418, %v476
  %v490 = vmul.f32 %v419, %v476
  %v491 = vmul.f32 %v420, %v476
  %v492 = vmul.f32 %v421, %v476
  %v493 = vmul.f32 %v422, %v476
  %v494 = vmul.f32 %v423, %v476
  %v495 = vmul.f32 %v424, %v476
  %v496 = vmul.f32 %v425, %v476
  %v497 = vmul.f32 %v426, %v476
  %v498 = vmul.f32 %v427, %v476
  %v499 = vmul.f32 %v428, %v476
  %v500 = vmul.f32 %v429, %v476
  %v501 = vmul.f32 %v430, %v476
  %v502 = vmul.f32 %v431, %v476
  %v503 = vmul.f32 %v432, %v476
  %v504 = vmul.f32 %v433, %v476
  %v505 = vmul.f32 %v434, %v476
  %v506 = vmul.f32 %v435, %v476
  %v507 = vmul.f32 %v436, %v476
  %v508 = vmul.f32 %v437, %v476
  %v509 = vmul.f32 %v438, %v476
  %v510 = vmul.f32 %v439, %v476
  %v511 = vmul.f32 %v440, %v476
  %v512 = vmul.f32 %v441, %v476
  %v513 = vmul.f32 %v442, %v476
  %v514 = vmul.f32 %v443, %v476
  %v515 = vmul.f32 %v444, %v476
  %v516 = vmul.f32 %v445, %v476
  %v517 = vmul.f32 %v446, %v476
  %v518 = vmul.f32 %v447, %v476
  %v519 = vmul.f32 %v448, %v476
  %v520 = vmul.f32 %v449, %v476
  %v521 = vmul.f32 %v450, %v476
  %v522 = vmul.f32 %v451, %v476
  %v523 = vmul.f32 %v452, %v476
  %v524 = vmul.f32 %v453, %v476
  %v525 = vmul.f32 %v454, %v476
  %v526 = vmul.f32 %v455, %v476
  %v527 = vmul.f32 %v456, %v476
  %v528 = vmul.f32 %v457, %v476
  %v529 = vmul.f32 %v458, %v476
  %v530 = vmul.f32 %v459, %v476
  %v531 = vmul.f32 %v460, %v476
  %v532 = vmul.f32 %v461, %v476
  %v533 = vmul.f32 %v462, %v476
  %v534 = vmul.f32 %v463, %v476
  %v535 = vmul.f32 %v464, %v476
  %v536 = vmul.f32 %v465, %v476
  %v537 = vmul.f32 %v466, %v476
  %v538 = vmul.f32 %v467, %v476
  %v539 = vmul.f32 %v468, %v476
  %v540 = vmul.f32 %v469, %v476
  %v541 = vmul.f32 %v470, %v476
  %v542 = vld [vmem:[%s5] sm:$0x1]
  %v544 = vlaneseq
  %v545 = vshrl.u32 %v544, 7
  %v546 = vsub.s32 0, %v545
  %v547 = vrot.slane %v542, %v546
  %v549 = vadd.f32 %v478, %v547
  %v550 = vadd.f32 %v479, %v547
  %v551 = vadd.f32 %v480, %v547
  %v552 = vadd.f32 %v481, %v547
  %v553 = vadd.f32 %v482, %v547
  %v554 = vadd.f32 %v483, %v547
  %v555 = vadd.f32 %v484, %v547
  %v556 = vadd.f32 %v485, %v547
  %v557 = vadd.f32 %v486, %v547
  %v558 = vadd.f32 %v487, %v547
  %v559 = vadd.f32 %v488, %v547
  %v560 = vadd.f32 %v489, %v547
  %v561 = vadd.f32 %v490, %v547
  %v562 = vadd.f32 %v491, %v547
  %v563 = vadd.f32 %v492, %v547
  %v564 = vadd.f32 %v493, %v547
  %v565 = vadd.f32 %v494, %v547
  %v566 = vadd.f32 %v495, %v547
  %v567 = vadd.f32 %v496, %v547
  %v568 = vadd.f32 %v497, %v547
  %v569 = vadd.f32 %v498, %v547
  %v570 = vadd.f32 %v499, %v547
  %v571 = vadd.f32 %v500, %v547
  %v572 = vadd.f32 %v501, %v547
  %v573 = vadd.f32 %v502, %v547
  %v574 = vadd.f32 %v503, %v547
  %v575 = vadd.f32 %v504, %v547
  %v576 = vadd.f32 %v505, %v547
  %v577 = vadd.f32 %v506, %v547
  %v578 = vadd.f32 %v507, %v547
  %v579 = vadd.f32 %v508, %v547
  %v580 = vadd.f32 %v509, %v547
  %v581 = vadd.f32 %v510, %v547
  %v582 = vadd.f32 %v511, %v547
  %v583 = vadd.f32 %v512, %v547
  %v584 = vadd.f32 %v513, %v547
  %v585 = vadd.f32 %v514, %v547
  %v586 = vadd.f32 %v515, %v547
  %v587 = vadd.f32 %v516, %v547
  %v588 = vadd.f32 %v517, %v547
  %v589 = vadd.f32 %v518, %v547
  %v590 = vadd.f32 %v519, %v547
  %v591 = vadd.f32 %v520, %v547
  %v592 = vadd.f32 %v521, %v547
  %v593 = vadd.f32 %v522, %v547
  %v594 = vadd.f32 %v523, %v547
  %v595 = vadd.f32 %v524, %v547
  %v596 = vadd.f32 %v525, %v547
  %v597 = vadd.f32 %v526, %v547
  %v598 = vadd.f32 %v527, %v547
  %v599 = vadd.f32 %v528, %v547
  %v600 = vadd.f32 %v529, %v547
  %v601 = vadd.f32 %v530, %v547
  %v602 = vadd.f32 %v531, %v547
  %v603 = vadd.f32 %v532, %v547
  %v604 = vadd.f32 %v533, %v547
  %v605 = vadd.f32 %v534, %v547
  %v606 = vadd.f32 %v535, %v547
  %v607 = vadd.f32 %v536, %v547
  %v608 = vadd.f32 %v537, %v547
  %v609 = vadd.f32 %v538, %v547
  %v610 = vadd.f32 %v539, %v547
  %v611 = vadd.f32 %v540, %v547
  %v612 = vadd.f32 %v541, %v547
  %vm613 = vcmp.ge.f32.partialorder %v549, 0.0
  %vm614 = vcmp.ge.f32.partialorder %v550, 0.0
  %vm615 = vcmp.ge.f32.partialorder %v551, 0.0
  %vm616 = vcmp.ge.f32.partialorder %v552, 0.0
  %vm617 = vcmp.ge.f32.partialorder %v553, 0.0
  %vm618 = vcmp.ge.f32.partialorder %v554, 0.0
  %vm619 = vcmp.ge.f32.partialorder %v555, 0.0
  %vm620 = vcmp.ge.f32.partialorder %v556, 0.0
  %vm621 = vcmp.ge.f32.partialorder %v557, 0.0
  %vm622 = vcmp.ge.f32.partialorder %v558, 0.0
  %vm623 = vcmp.ge.f32.partialorder %v559, 0.0
  %vm624 = vcmp.ge.f32.partialorder %v560, 0.0
  %vm625 = vcmp.ge.f32.partialorder %v561, 0.0
  %vm626 = vcmp.ge.f32.partialorder %v562, 0.0
  %vm627 = vcmp.ge.f32.partialorder %v563, 0.0
  %vm628 = vcmp.ge.f32.partialorder %v564, 0.0
  %vm629 = vcmp.ge.f32.partialorder %v565, 0.0
  %vm630 = vcmp.ge.f32.partialorder %v566, 0.0
  %vm631 = vcmp.ge.f32.partialorder %v567, 0.0
  %vm632 = vcmp.ge.f32.partialorder %v568, 0.0
  %vm633 = vcmp.ge.f32.partialorder %v569, 0.0
  %vm634 = vcmp.ge.f32.partialorder %v570, 0.0
  %vm635 = vcmp.ge.f32.partialorder %v571, 0.0
  %vm636 = vcmp.ge.f32.partialorder %v572, 0.0
  %vm637 = vcmp.ge.f32.partialorder %v573, 0.0
  %vm638 = vcmp.ge.f32.partialorder %v574, 0.0
  %vm639 = vcmp.ge.f32.partialorder %v575, 0.0
  %vm640 = vcmp.ge.f32.partialorder %v576, 0.0
  %vm641 = vcmp.ge.f32.partialorder %v577, 0.0
  %vm642 = vcmp.ge.f32.partialorder %v578, 0.0
  %vm643 = vcmp.ge.f32.partialorder %v579, 0.0
  %vm644 = vcmp.ge.f32.partialorder %v580, 0.0
  %vm645 = vcmp.ge.f32.partialorder %v581, 0.0
  %vm646 = vcmp.ge.f32.partialorder %v582, 0.0
  %vm647 = vcmp.ge.f32.partialorder %v583, 0.0
  %vm648 = vcmp.ge.f32.partialorder %v584, 0.0
  %vm649 = vcmp.ge.f32.partialorder %v585, 0.0
  %vm650 = vcmp.ge.f32.partialorder %v586, 0.0
  %vm651 = vcmp.ge.f32.partialorder %v587, 0.0
  %vm652 = vcmp.ge.f32.partialorder %v588, 0.0
  %vm653 = vcmp.ge.f32.partialorder %v589, 0.0
  %vm654 = vcmp.ge.f32.partialorder %v590, 0.0
  %vm655 = vcmp.ge.f32.partialorder %v591, 0.0
  %vm656 = vcmp.ge.f32.partialorder %v592, 0.0
  %vm657 = vcmp.ge.f32.partialorder %v593, 0.0
  %vm658 = vcmp.ge.f32.partialorder %v594, 0.0
  %vm659 = vcmp.ge.f32.partialorder %v595, 0.0
  %vm660 = vcmp.ge.f32.partialorder %v596, 0.0
  %vm661 = vcmp.ge.f32.partialorder %v597, 0.0
  %vm662 = vcmp.ge.f32.partialorder %v598, 0.0
  %vm663 = vcmp.ge.f32.partialorder %v599, 0.0
  %vm664 = vcmp.ge.f32.partialorder %v600, 0.0
  %vm665 = vcmp.ge.f32.partialorder %v601, 0.0
  %vm666 = vcmp.ge.f32.partialorder %v602, 0.0
  %vm667 = vcmp.ge.f32.partialorder %v603, 0.0
  %vm668 = vcmp.ge.f32.partialorder %v604, 0.0
  %vm669 = vcmp.ge.f32.partialorder %v605, 0.0
  %vm670 = vcmp.ge.f32.partialorder %v606, 0.0
  %vm671 = vcmp.ge.f32.partialorder %v607, 0.0
  %vm672 = vcmp.ge.f32.partialorder %v608, 0.0
  %vm673 = vcmp.ge.f32.partialorder %v609, 0.0
  %vm674 = vcmp.ge.f32.partialorder %v610, 0.0
  %vm675 = vcmp.ge.f32.partialorder %v611, 0.0
  %vm676 = vcmp.ge.f32.partialorder %v612, 0.0
  %v677 = vmul.f32 %v549, 0.25
  %v678 = vmul.f32 %v550, 0.25
  %v679 = vmul.f32 %v551, 0.25
  %v680 = vmul.f32 %v552, 0.25
  %v681 = vmul.f32 %v553, 0.25
  %v682 = vmul.f32 %v554, 0.25
  %v683 = vmul.f32 %v555, 0.25
  %v684 = vmul.f32 %v556, 0.25
  %v685 = vmul.f32 %v557, 0.25
  %v686 = vmul.f32 %v558, 0.25
  %v687 = vmul.f32 %v559, 0.25
  %v688 = vmul.f32 %v560, 0.25
  %v689 = vmul.f32 %v561, 0.25
  %v690 = vmul.f32 %v562, 0.25
  %v691 = vmul.f32 %v563, 0.25
  %v692 = vmul.f32 %v564, 0.25
  %v693 = vmul.f32 %v565, 0.25
  %v694 = vmul.f32 %v566, 0.25
  %v695 = vmul.f32 %v567, 0.25
  %v696 = vmul.f32 %v568, 0.25
  %v697 = vmul.f32 %v569, 0.25
  %v698 = vmul.f32 %v570, 0.25
  %v699 = vmul.f32 %v571, 0.25
  %v700 = vmul.f32 %v572, 0.25
  %v701 = vmul.f32 %v573, 0.25
  %v702 = vmul.f32 %v574, 0.25
  %v703 = vmul.f32 %v575, 0.25
  %v704 = vmul.f32 %v576, 0.25
  %v705 = vmul.f32 %v577, 0.25
  %v706 = vmul.f32 %v578, 0.25
  %v707 = vmul.f32 %v579, 0.25
  %v708 = vmul.f32 %v580, 0.25
  %v709 = vmul.f32 %v581, 0.25
  %v710 = vmul.f32 %v582, 0.25
  %v711 = vmul.f32 %v583, 0.25
  %v712 = vmul.f32 %v584, 0.25
  %v713 = vmul.f32 %v585, 0.25
  %v714 = vmul.f32 %v586, 0.25
  %v715 = vmul.f32 %v587, 0.25
  %v716 = vmul.f32 %v588, 0.25
  %v717 = vmul.f32 %v589, 0.25
  %v718 = vmul.f32 %v590, 0.25
  %v719 = vmul.f32 %v591, 0.25
  %v720 = vmul.f32 %v592, 0.25
  %v721 = vmul.f32 %v593, 0.25
  %v722 = vmul.f32 %v594, 0.25
  %v723 = vmul.f32 %v595, 0.25
  %v724 = vmul.f32 %v596, 0.25
  %v725 = vmul.f32 %v597, 0.25
  %v726 = vmul.f32 %v598, 0.25
  %v727 = vmul.f32 %v599, 0.25
  %v728 = vmul.f32 %v600, 0.25
  %v729 = vmul.f32 %v601, 0.25
  %v730 = vmul.f32 %v602, 0.25
  %v731 = vmul.f32 %v603, 0.25
  %v732 = vmul.f32 %v604, 0.25
  %v733 = vmul.f32 %v605, 0.25
  %v734 = vmul.f32 %v606, 0.25
  %v735 = vmul.f32 %v607, 0.25
  %v736 = vmul.f32 %v608, 0.25
  %v737 = vmul.f32 %v609, 0.25
  %v738 = vmul.f32 %v610, 0.25
  %v739 = vmul.f32 %v611, 0.25
  %v740 = vmul.f32 %v612, 0.25
  %v741 = vsel %vm613, %v549, %v677
  %v742 = vsel %vm614, %v550, %v678
  %v743 = vsel %vm615, %v551, %v679
  %v744 = vsel %vm616, %v552, %v680
  %v745 = vsel %vm617, %v553, %v681
  %v746 = vsel %vm618, %v554, %v682
  %v747 = vsel %vm619, %v555, %v683
  %v748 = vsel %vm620, %v556, %v684
  %v749 = vsel %vm621, %v557, %v685
  %v750 = vsel %vm622, %v558, %v686
  %v751 = vsel %vm623, %v559, %v687
  %v752 = vsel %vm624, %v560, %v688
  %v753 = vsel %vm625, %v561, %v689
  %v754 = vsel %vm626, %v562, %v690
  %v755 = vsel %vm627, %v563, %v691
  %v756 = vsel %vm628, %v564, %v692
  %v757 = vsel %vm629, %v565, %v693
  %v758 = vsel %vm630, %v566, %v694
  %v759 = vsel %vm631, %v567, %v695
  %v760 = vsel %vm632, %v568, %v696
  %v761 = vsel %vm633, %v569, %v697
  %v762 = vsel %vm634, %v570, %v698
  %v763 = vsel %vm635, %v571, %v699
  %v764 = vsel %vm636, %v572, %v700
  %v765 = vsel %vm637, %v573, %v701
  %v766 = vsel %vm638, %v574, %v702
  %v767 = vsel %vm639, %v575, %v703
  %v768 = vsel %vm640, %v576, %v704
  %v769 = vsel %vm641, %v577, %v705
  %v770 = vsel %vm642, %v578, %v706
  %v771 = vsel %vm643, %v579, %v707
  %v772 = vsel %vm644, %v580, %v708
  %v773 = vsel %vm645, %v581, %v709
  %v774 = vsel %vm646, %v582, %v710
  %v775 = vsel %vm647, %v583, %v711
  %v776 = vsel %vm648, %v584, %v712
  %v777 = vsel %vm649, %v585, %v713
  %v778 = vsel %vm650, %v586, %v714
  %v779 = vsel %vm651, %v587, %v715
  %v780 = vsel %vm652, %v588, %v716
  %v781 = vsel %vm653, %v589, %v717
  %v782 = vsel %vm654, %v590, %v718
  %v783 = vsel %vm655, %v591, %v719
  %v784 = vsel %vm656, %v592, %v720
  %v785 = vsel %vm657, %v593, %v721
  %v786 = vsel %vm658, %v594, %v722
  %v787 = vsel %vm659, %v595, %v723
  %v788 = vsel %vm660, %v596, %v724
  %v789 = vsel %vm661, %v597, %v725
  %v790 = vsel %vm662, %v598, %v726
  %v791 = vsel %vm663, %v599, %v727
  %v792 = vsel %vm664, %v600, %v728
  %v793 = vsel %vm665, %v601, %v729
  %v794 = vsel %vm666, %v602, %v730
  %v795 = vsel %vm667, %v603, %v731
  %v796 = vsel %vm668, %v604, %v732
  %v797 = vsel %vm669, %v605, %v733
  %v798 = vsel %vm670, %v606, %v734
  %v799 = vsel %vm671, %v607, %v735
  %v800 = vsel %vm672, %v608, %v736
  %v801 = vsel %vm673, %v609, %v737
  %v802 = vsel %vm674, %v610, %v738
  %v803 = vsel %vm675, %v611, %v739
  %v804 = vsel %vm676, %v612, %v740
  %v805 = vpack.c.bf16 %v742, %v741
  %v806 = vpack.c.bf16 %v744, %v743
  %v807 = vpack.c.bf16 %v746, %v745
  %v808 = vpack.c.bf16 %v748, %v747
  %v809 = vpack.c.bf16 %v750, %v749
  %v810 = vpack.c.bf16 %v752, %v751
  %v811 = vpack.c.bf16 %v754, %v753
  %v812 = vpack.c.bf16 %v756, %v755
  %v813 = vpack.c.bf16 %v758, %v757
  %v814 = vpack.c.bf16 %v760, %v759
  %v815 = vpack.c.bf16 %v762, %v761
  %v816 = vpack.c.bf16 %v764, %v763
  %v817 = vpack.c.bf16 %v766, %v765
  %v818 = vpack.c.bf16 %v768, %v767
  %v819 = vpack.c.bf16 %v770, %v769
  %v820 = vpack.c.bf16 %v772, %v771
  %v821 = vpack.c.bf16 %v774, %v773
  %v822 = vpack.c.bf16 %v776, %v775
  %v823 = vpack.c.bf16 %v778, %v777
  %v824 = vpack.c.bf16 %v780, %v779
  %v825 = vpack.c.bf16 %v782, %v781
  %v826 = vpack.c.bf16 %v784, %v783
  %v827 = vpack.c.bf16 %v786, %v785
  %v828 = vpack.c.bf16 %v788, %v787
  %v829 = vpack.c.bf16 %v790, %v789
  %v830 = vpack.c.bf16 %v792, %v791
  %v831 = vpack.c.bf16 %v794, %v793
  %v832 = vpack.c.bf16 %v796, %v795
  %v833 = vpack.c.bf16 %v798, %v797
  %v834 = vpack.c.bf16 %v800, %v799
  %v835 = vpack.c.bf16 %v802, %v801
  %v836 = vpack.c.bf16 %v804, %v803
  %v869 = vunpack.c.l.b16 %v805
  %v870 = vunpack.c.h.b16 %v805
  %v871 = vunpack.c.l.b16 %v806
  %v872 = vunpack.c.h.b16 %v806
  %v873 = vunpack.c.l.b16 %v807
  %v874 = vunpack.c.h.b16 %v807
  %v875 = vunpack.c.l.b16 %v808
  %v876 = vunpack.c.h.b16 %v808
  %v877 = vunpack.c.l.b16 %v809
  %v878 = vunpack.c.h.b16 %v809
  %v879 = vunpack.c.l.b16 %v810
  %v880 = vunpack.c.h.b16 %v810
  %v881 = vunpack.c.l.b16 %v811
  %v882 = vunpack.c.h.b16 %v811
  %v883 = vunpack.c.l.b16 %v812
  %v884 = vunpack.c.h.b16 %v812
  %v885 = vunpack.c.l.b16 %v813
  %v886 = vunpack.c.h.b16 %v813
  %v887 = vunpack.c.l.b16 %v814
  %v888 = vunpack.c.h.b16 %v814
  %v889 = vunpack.c.l.b16 %v815
  %v890 = vunpack.c.h.b16 %v815
  %v891 = vunpack.c.l.b16 %v816
  %v892 = vunpack.c.h.b16 %v816
  %v893 = vunpack.c.l.b16 %v817
  %v894 = vunpack.c.h.b16 %v817
  %v895 = vunpack.c.l.b16 %v818
  %v896 = vunpack.c.h.b16 %v818
  %v897 = vunpack.c.l.b16 %v819
  %v898 = vunpack.c.h.b16 %v819
  %v899 = vunpack.c.l.b16 %v820
  %v900 = vunpack.c.h.b16 %v820
  %v901 = vunpack.c.l.b16 %v821
  %v902 = vunpack.c.h.b16 %v821
  %v903 = vunpack.c.l.b16 %v822
  %v904 = vunpack.c.h.b16 %v822
  %v905 = vunpack.c.l.b16 %v823
  %v906 = vunpack.c.h.b16 %v823
  %v907 = vunpack.c.l.b16 %v824
  %v908 = vunpack.c.h.b16 %v824
  %v909 = vunpack.c.l.b16 %v825
  %v910 = vunpack.c.h.b16 %v825
  %v911 = vunpack.c.l.b16 %v826
  %v912 = vunpack.c.h.b16 %v826
  %v913 = vunpack.c.l.b16 %v827
  %v914 = vunpack.c.h.b16 %v827
  %v915 = vunpack.c.l.b16 %v828
  %v916 = vunpack.c.h.b16 %v828
  %v917 = vunpack.c.l.b16 %v829
  %v918 = vunpack.c.h.b16 %v829
  %v919 = vunpack.c.l.b16 %v830
  %v920 = vunpack.c.h.b16 %v830
  %v921 = vunpack.c.l.b16 %v831
  %v922 = vunpack.c.h.b16 %v831
  %v923 = vunpack.c.l.b16 %v832
  %v924 = vunpack.c.h.b16 %v832
  %v925 = vunpack.c.l.b16 %v833
  %v926 = vunpack.c.h.b16 %v833
  %v927 = vunpack.c.l.b16 %v834
  %v928 = vunpack.c.h.b16 %v834
  %v929 = vunpack.c.l.b16 %v835
  %v930 = vunpack.c.h.b16 %v835
  %v931 = vunpack.c.l.b16 %v836
  %v932 = vunpack.c.h.b16 %v836
  %v933 = vpack.c.b16 %v869, %v869
  %v934 = vpack.c.b16 %v870, %v870
  %v935 = vpack.c.b16 %v871, %v871
  %v936 = vpack.c.b16 %v872, %v872
  %v937 = vpack.c.b16 %v873, %v873
  %v938 = vpack.c.b16 %v874, %v874
  %v939 = vpack.c.b16 %v875, %v875
  %v940 = vpack.c.b16 %v876, %v876
  %v941 = vpack.c.b16 %v877, %v877
  %v942 = vpack.c.b16 %v878, %v878
  %v943 = vpack.c.b16 %v879, %v879
  %v944 = vpack.c.b16 %v880, %v880
  %v945 = vpack.c.b16 %v881, %v881
  %v946 = vpack.c.b16 %v882, %v882
  %v947 = vpack.c.b16 %v883, %v883
  %v948 = vpack.c.b16 %v884, %v884
  %v949 = vpack.c.b16 %v885, %v885
  %v950 = vpack.c.b16 %v886, %v886
  %v951 = vpack.c.b16 %v887, %v887
  %v952 = vpack.c.b16 %v888, %v888
  %v953 = vpack.c.b16 %v889, %v889
  %v954 = vpack.c.b16 %v890, %v890
  %v955 = vpack.c.b16 %v891, %v891
  %v956 = vpack.c.b16 %v892, %v892
  %v957 = vpack.c.b16 %v893, %v893
  %v958 = vpack.c.b16 %v894, %v894
  %v959 = vpack.c.b16 %v895, %v895
  %v960 = vpack.c.b16 %v896, %v896
  %v961 = vpack.c.b16 %v897, %v897
  %v962 = vpack.c.b16 %v898, %v898
  %v963 = vpack.c.b16 %v899, %v899
  %v964 = vpack.c.b16 %v900, %v900
  %v965 = vpack.c.b16 %v901, %v901
  %v966 = vpack.c.b16 %v902, %v902
  %v967 = vpack.c.b16 %v903, %v903
  %v968 = vpack.c.b16 %v904, %v904
  %v969 = vpack.c.b16 %v905, %v905
  %v970 = vpack.c.b16 %v906, %v906
  %v971 = vpack.c.b16 %v907, %v907
  %v972 = vpack.c.b16 %v908, %v908
  %v973 = vpack.c.b16 %v909, %v909
  %v974 = vpack.c.b16 %v910, %v910
  %v975 = vpack.c.b16 %v911, %v911
  %v976 = vpack.c.b16 %v912, %v912
  %v977 = vpack.c.b16 %v913, %v913
  %v978 = vpack.c.b16 %v914, %v914
  %v979 = vpack.c.b16 %v915, %v915
  %v980 = vpack.c.b16 %v916, %v916
  %v981 = vpack.c.b16 %v917, %v917
  %v982 = vpack.c.b16 %v918, %v918
  %v983 = vpack.c.b16 %v919, %v919
  %v984 = vpack.c.b16 %v920, %v920
  %v985 = vpack.c.b16 %v921, %v921
  %v986 = vpack.c.b16 %v922, %v922
  %v987 = vpack.c.b16 %v923, %v923
  %v988 = vpack.c.b16 %v924, %v924
  %v989 = vpack.c.b16 %v925, %v925
  %v990 = vpack.c.b16 %v926, %v926
  %v991 = vpack.c.b16 %v927, %v927
  %v992 = vpack.c.b16 %v928, %v928
  %v993 = vpack.c.b16 %v929, %v929
  %v994 = vpack.c.b16 %v930, %v930
  %v995 = vpack.c.b16 %v931, %v931
  %v996 = vpack.c.b16 %v932, %v932
  %1061 = vst [vmem:[%s6] sm:$0xf] %v933
  %1062 = vst [vmem:[%s6 + $0x4] sm:$0xf] %v934
  %1063 = vst [vmem:[%s6 + $0x8] sm:$0xf] %v935
  %1064 = vst [vmem:[%s6 + $0xc] sm:$0xf] %v936
  %1065 = vst [vmem:[%s6 + $0x10] sm:$0xf] %v937
  %1066 = vst [vmem:[%s6 + $0x14] sm:$0xf] %v938
  %1067 = vst [vmem:[%s6 + $0x18] sm:$0xf] %v939
  %1068 = vst [vmem:[%s6 + $0x1c] sm:$0xf] %v940
  %1069 = vst [vmem:[%s6 + $0x20] sm:$0xf] %v941
  %1070 = vst [vmem:[%s6 + $0x24] sm:$0xf] %v942
  %1071 = vst [vmem:[%s6 + $0x28] sm:$0xf] %v943
  %1072 = vst [vmem:[%s6 + $0x2c] sm:$0xf] %v944
  %1073 = vst [vmem:[%s6 + $0x30] sm:$0xf] %v945
  %1074 = vst [vmem:[%s6 + $0x34] sm:$0xf] %v946
  %1075 = vst [vmem:[%s6 + $0x38] sm:$0xf] %v947
  %1076 = vst [vmem:[%s6 + $0x3c] sm:$0xf] %v948
  %1077 = vst [vmem:[%s6 + $0x40] sm:$0xf] %v949
  %1078 = vst [vmem:[%s6 + $0x44] sm:$0xf] %v950
  %1079 = vst [vmem:[%s6 + $0x48] sm:$0xf] %v951
  %1080 = vst [vmem:[%s6 + $0x4c] sm:$0xf] %v952
  %1081 = vst [vmem:[%s6 + $0x50] sm:$0xf] %v953
  %1082 = vst [vmem:[%s6 + $0x54] sm:$0xf] %v954
  %1083 = vst [vmem:[%s6 + $0x58] sm:$0xf] %v955
  %1084 = vst [vmem:[%s6 + $0x5c] sm:$0xf] %v956
  %1085 = vst [vmem:[%s6 + $0x60] sm:$0xf] %v957
  %1086 = vst [vmem:[%s6 + $0x64] sm:$0xf] %v958
  %1087 = vst [vmem:[%s6 + $0x68] sm:$0xf] %v959
  %1088 = vst [vmem:[%s6 + $0x6c] sm:$0xf] %v960
  %1089 = vst [vmem:[%s6 + $0x70] sm:$0xf] %v961
  %1090 = vst [vmem:[%s6 + $0x74] sm:$0xf] %v962
  %1091 = vst [vmem:[%s6 + $0x78] sm:$0xf] %v963
  %1092 = vst [vmem:[%s6 + $0x7c] sm:$0xf] %v964
  %1093 = vst [vmem:[%s6 + $0x80] sm:$0xf] %v965
  %1094 = vst [vmem:[%s6 + $0x84] sm:$0xf] %v966
  %1095 = vst [vmem:[%s6 + $0x88] sm:$0xf] %v967
  %1096 = vst [vmem:[%s6 + $0x8c] sm:$0xf] %v968
  %1097 = vst [vmem:[%s6 + $0x90] sm:$0xf] %v969
  %1098 = vst [vmem:[%s6 + $0x94] sm:$0xf] %v970
  %1099 = vst [vmem:[%s6 + $0x98] sm:$0xf] %v971
  %1100 = vst [vmem:[%s6 + $0x9c] sm:$0xf] %v972
  %1101 = vst [vmem:[%s6 + $0xa0] sm:$0xf] %v973
  %1102 = vst [vmem:[%s6 + $0xa4] sm:$0xf] %v974
  %1103 = vst [vmem:[%s6 + $0xa8] sm:$0xf] %v975
  %1104 = vst [vmem:[%s6 + $0xac] sm:$0xf] %v976
  %1105 = vst [vmem:[%s6 + $0xb0] sm:$0xf] %v977
  %1106 = vst [vmem:[%s6 + $0xb4] sm:$0xf] %v978
  %1107 = vst [vmem:[%s6 + $0xb8] sm:$0xf] %v979
  %1108 = vst [vmem:[%s6 + $0xbc] sm:$0xf] %v980
  %1109 = vst [vmem:[%s6 + $0xc0] sm:$0xf] %v981
  %1110 = vst [vmem:[%s6 + $0xc4] sm:$0xf] %v982
  %1111 = vst [vmem:[%s6 + $0xc8] sm:$0xf] %v983
  %1112 = vst [vmem:[%s6 + $0xcc] sm:$0xf] %v984
  %1113 = vst [vmem:[%s6 + $0xd0] sm:$0xf] %v985
  %1114 = vst [vmem:[%s6 + $0xd4] sm:$0xf] %v986
  %1115 = vst [vmem:[%s6 + $0xd8] sm:$0xf] %v987
  %1116 = vst [vmem:[%s6 + $0xdc] sm:$0xf] %v988
  %1117 = vst [vmem:[%s6 + $0xe0] sm:$0xf] %v989
  %1118 = vst [vmem:[%s6 + $0xe4] sm:$0xf] %v990
  %1119 = vst [vmem:[%s6 + $0xe8] sm:$0xf] %v991
  %1120 = vst [vmem:[%s6 + $0xec] sm:$0xf] %v992
  %1121 = vst [vmem:[%s6 + $0xf0] sm:$0xf] %v993
  %1122 = vst [vmem:[%s6 + $0xf4] sm:$0xf] %v994
  %1123 = vst [vmem:[%s6 + $0xf8] sm:$0xf] %v995
  %1124 = vst [vmem:[%s6 + $0xfc] sm:$0xf] %v996
  // Predicated region
  $region26: #{lednet_forward.67} parent=0 // pred_check
    _
  $region27: #{lednet_forward.67} parent=0 // pred_check_branch
    %1126 = sbr.rel (0) target = $region29
  $region28: #{lednet_forward.67} parent=0 // pred_region
    _
  $region29: #{lednet_forward.67} parent=0 // pred_fallthru
    _
  // Predicated region
  $region30: #{lednet_forward.67} parent=0 // pred_check
    _
  $region31: #{lednet_forward.67} parent=0 // pred_check_branch
    %1128 = sbr.rel (0) target = $region33
  $region32: #{lednet_forward.67} parent=0 // pred_region
    _
  $region33: #{lednet_forward.67} parent=0 // pred_fallthru
    _

// kernel: lednet_forward.71
$region0: #{lednet_forward.71}
  #allocation0 [shape = 'u32[]', space=smem, size = 0x4, offset = 0x4, fixed_abs, tag = 'smem constant byte address 0x4 - core index']
  #allocation1 [shape = 'u32[144,128]{1,0:T(1,128)}', space=vmem, size = 0x12000, scoped, tag = 'internal scratch']
  #allocation2 [shape = 'f32[256,128]{1,0:T(8,128)}', space=vmem, size = 0x20000, scoped, tag = 'scratch operand']
  %s0 = inlined_call_operand.vmem [shape: bf16[512,128], index: 0, kind: input, shape index: {}]
  %s1 = inlined_call_operand.vmem [shape: bf16[128,128], index: 1, kind: input, shape index: {}]
  %s2 = inlined_call_operand.vmem [shape: f32[1,128], index: 2, kind: input, shape index: {}]
  %s3 = inlined_call_operand.vmem [shape: bf16[512,128], index: 3, kind: input, shape index: {}]
  %s4 = inlined_call_operand.vmem [shape: bf16[512,128], index: 4, kind: output, shape index: {}]
  %s5 = sld [smem:[#allocation0]]
  $region57: #{lednet_forward.71} parent=0
    _
  %s7 = ssub.s32 1, %s5
  %s8 = scalar_select 0, %s7, %s5
  loop: start=0, step=1, limit=4
  $region2: #{lednet_forward.71} parent=0 // loop_pre_header
    _
  $region3: #{lednet_forward.71} parent=0 // loop_header
    %s10 = sphi 0, %s14
    %p11 = scmp.ge.s32.totalorder %s10, 4
    %s17 = sphi 0, %s36
    %s18 = sphi 0, %s32
    %s19 = sphi 0, %s28
    %s20 = sphi 0, %s17
    %s21 = sphi 0, %s18
    %s22 = sphi 0, %s19
    %s23 = sphi 0, %s20
    %s24 = sphi 0, %s21
    %s25 = sphi 0, %s22
    %s41 = sphi 0, %s43
    %s44 = sphi 0, %s41
    %s45 = sphi 0, %s44
    %s61 = sphi 0, %s45
    %s69 = sphi 0, %s71
    %s72 = sphi 0, %s69
    %s73 = sphi 0, %s72
    %s89 = sphi 0, %s73
    %s95 = sphi 0, %s97
    %s98 = sphi 0, %s95
    %s99 = sphi 0, %s98
    %s115 = sphi 0, %s99
    %s123 = sphi 0, %s125
    %s126 = sphi 0, %s123
    %s127 = sphi 0, %s126
    %s143 = sphi 0, %s127
    %s151 = sphi 0, %s153
    %s154 = sphi 0, %s151
    %s155 = sphi 0, %s154
    %s171 = sphi 0, %s155
  $region4: #{lednet_forward.71} parent=0 // loop_header_branch
    %13 = sbr.rel (%p11) target = $region8
  $region5: #{lednet_forward.71} parent=0 // loop_body
    %s15 = ssub.s32 %s10, 1
    %s16 = ssub.s32 %s10, 2
    %s26 = sadd.s32 1, %s19
    %p27 = scmp.ge.s32.totalorder %s26, 1
    %s28 = scalar_select %p27, 0, %s26
    %s29 = sadd.s32 1, %s18
    %s30 = scalar_select %p27, %s29, %s18
    %p31 = scmp.ge.s32.totalorder %s30, 1
    %s32 = scalar_select %p31, 0, %s30
    %s33 = sadd.s32 1, %s17
    %s34 = scalar_select %p31, %s33, %s17
    %p35 = scmp.ge.s32.totalorder %s34, 2
    %s36 = scalar_select %p35, 0, %s34
    %s37 = ssub.s32 %s17, %s36
    %s38 = ssub.s32 %s19, %s28
    %s39 = sor.u32 %s37, %s38
    %p40 = scmp.eq.s32.totalorder %s39, 0
    %s42 = sadd.s32 %s41, 1
    %s43 = scalar_select %p40, %s41, %s42
    %p46 = pneg %p40
    %p47 = scmp.eq.s32.totalorder %s10, 1
    %p48 = por %p46, %p47
    %p49 = scmp.ne.s32.totalorder %s41, %s44
    %p50 = scmp.eq.s32.totalorder %s10, 0
    %p51 = por %p49, %p50
    %p52 = scmp.ne.s32.totalorder %s41, %s44
    %p53 = scmp.eq.s32.totalorder %s15, 1
    %p54 = por %p52, %p53
    %p55 = scmp.ne.s32.totalorder %s44, %s45
    %p56 = scmp.eq.s32.totalorder %s15, 0
    %p57 = por %p55, %p56
    %p58 = scmp.ne.s32.totalorder %s44, %s45
    %p59 = scmp.eq.s32.totalorder %s16, 1
    %p60 = por %p58, %p59
    %p62 = scmp.ne.s32.totalorder %s45, %s61
    %p63 = scmp.eq.s32.totalorder %s16, 0
    %p64 = por %p62, %p63
    %s65 = ssub.s32 %s19, %s28
    %s66 = ssub.s32 %s18, %s32
    %s67 = sor.u32 %s65, %s66
    %p68 = scmp.eq.s32.totalorder %s67, 0
    %s70 = sadd.s32 %s69, 1
    %s71 = scalar_select %p68, %s69, %s70
    %p74 = pneg %p68
    %p75 = scmp.eq.s32.totalorder %s10, 1
    %p76 = por %p74, %p75
    %p77 = scmp.ne.s32.totalorder %s69, %s72
    %p78 = scmp.eq.s32.totalorder %s10, 0
    %p79 = por %p77, %p78
    %p80 = scmp.ne.s32.totalorder %s69, %s72
    %p81 = scmp.eq.s32.totalorder %s15, 1
    %p82 = por %p80, %p81
    %p83 = scmp.ne.s32.totalorder %s72, %s73
    %p84 = scmp.eq.s32.totalorder %s15, 0
    %p85 = por %p83, %p84
    %p86 = scmp.ne.s32.totalorder %s72, %s73
    %p87 = scmp.eq.s32.totalorder %s16, 1
    %p88 = por %p86, %p87
    %p90 = scmp.ne.s32.totalorder %s73, %s89
    %p91 = scmp.eq.s32.totalorder %s16, 0
    %p92 = por %p90, %p91
    %s93 = ssub.s32 %s18, %s32
    %p94 = scmp.eq.s32.totalorder %s93, 0
    %s96 = sadd.s32 %s95, 1
    %s97 = scalar_select %p94, %s95, %s96
    %p100 = pneg %p94
    %p101 = scmp.eq.s32.totalorder %s10, 1
    %p102 = por %p100, %p101
    %p103 = scmp.ne.s32.totalorder %s95, %s98
    %p104 = scmp.eq.s32.totalorder %s10, 0
    %p105 = por %p103, %p104
    %p106 = scmp.ne.s32.totalorder %s95, %s98
    %p107 = scmp.eq.s32.totalorder %s15, 1
    %p108 = por %p106, %p107
    %p109 = scmp.ne.s32.totalorder %s98, %s99
    %p110 = scmp.eq.s32.totalorder %s15, 0
    %p111 = por %p109, %p110
    %p112 = scmp.ne.s32.totalorder %s98, %s99
    %p113 = scmp.eq.s32.totalorder %s16, 1
    %p114 = por %p112, %p113
    %p116 = scmp.ne.s32.totalorder %s99, %s115
    %p117 = scmp.eq.s32.totalorder %s16, 0
    %p118 = por %p116, %p117
    %s119 = ssub.s32 %s17, %s36
    %s120 = ssub.s32 %s18, %s32
    %s121 = sor.u32 %s119, %s120
    %p122 = scmp.eq.s32.totalorder %s121, 0
    %s124 = sadd.s32 %s123, 1
    %s125 = scalar_select %p122, %s123, %s124
    %p128 = pneg %p122
    %p129 = scmp.eq.s32.totalorder %s10, 1
    %p130 = por %p128, %p129
    %p131 = scmp.ne.s32.totalorder %s123, %s126
    %p132 = scmp.eq.s32.totalorder %s10, 0
    %p133 = por %p131, %p132
    %p134 = scmp.ne.s32.totalorder %s123, %s126
    %p135 = scmp.eq.s32.totalorder %s15, 1
    %p136 = por %p134, %p135
    %p137 = scmp.ne.s32.totalorder %s126, %s127
    %p138 = scmp.eq.s32.totalorder %s15, 0
    %p139 = por %p137, %p138
    %p140 = scmp.ne.s32.totalorder %s126, %s127
    %p141 = scmp.eq.s32.totalorder %s16, 1
    %p142 = por %p140, %p141
    %p144 = scmp.ne.s32.totalorder %s127, %s143
    %p145 = scmp.eq.s32.totalorder %s16, 0
    %p146 = por %p144, %p145
    %s147 = ssub.s32 %s17, %s36
    %s148 = ssub.s32 %s18, %s32
    %s149 = sor.u32 %s147, %s148
    %p150 = scmp.eq.s32.totalorder %s149, 0
    %s152 = sadd.s32 %s151, 1
    %s153 = scalar_select %p150, %s151, %s152
    %p156 = pneg %p150
    %p157 = scmp.eq.s32.totalorder %s10, 1
    %p158 = por %p156, %p157
    %p159 = scmp.ne.s32.totalorder %s151, %s154
    %p160 = scmp.eq.s32.totalorder %s10, 0
    %p161 = por %p159, %p160
    %p162 = scmp.ne.s32.totalorder %s151, %s154
    %p163 = scmp.eq.s32.totalorder %s15, 1
    %p164 = por %p162, %p163
    %p165 = scmp.ne.s32.totalorder %s154, %s155
    %p166 = scmp.eq.s32.totalorder %s15, 0
    %p167 = por %p165, %p166
    %p168 = scmp.ne.s32.totalorder %s154, %s155
    %p169 = scmp.eq.s32.totalorder %s16, 1
    %p170 = por %p168, %p169
    %p172 = scmp.ne.s32.totalorder %s155, %s171
    %p173 = scmp.eq.s32.totalorder %s16, 0
    %p174 = por %p172, %p173
    %p175 = scmp.le.s32.totalorder 1, %s10
    %p176 = scmp.lt.s32.totalorder %s10, 3
    %p177 = pnand %p175, %p176
    %p178 = pneg %p177
    // Predicated region
    $region9: #{lednet_forward.71} parent=5 // pred_check
      _
    $region10: #{lednet_forward.71} parent=5 // pred_check_branch
      %180 = sbr.rel (%p177) target = $region12
    $region11: #{lednet_forward.71} parent=5 // pred_region
      %s181 = ssub.s32 %s10, 1
      // Predicated region
      $region13: #{lednet_forward.71} parent=11 // pred_check
        %p182 = pneg %p85
      $region14: #{lednet_forward.71} parent=11 // pred_check_branch
        %184 = sbr.rel (%p182) target = $region16
      $region15: #{lednet_forward.71} parent=11 // pred_region
        %s185 = smul.u32 16, %s22
        %p186 = scmp.lt.s32.totalorder %s185, 15
        %s187 = scalar_select %p186, %s185, 15
        %p188 = scmp.lt.s32.totalorder %s21, 0
        %s189 = scalar_select %p188, %s21, 0
        %s190 = sadd.s32 %s189, %s187
        %s191 = smul.addr %s190, 4
        %s192 = scalar_lea.vmem %s1, %s191
        %s193 = smul.u32 16, %s22
      $region16: #{lednet_forward.71} parent=11 // pred_fallthru
        _
      // Predicated region
      $region17: #{lednet_forward.71} parent=11 // pred_check
        %p194 = pneg %p111
      $region18: #{lednet_forward.71} parent=11 // pred_check_branch
        %196 = sbr.rel (%p194) target = $region20
      $region19: #{lednet_forward.71} parent=11 // pred_region
        %p197 = scmp.lt.s32.totalorder %s21, 0
        %s198 = scalar_select %p197, %s21, 0
        %s199 = scalar_lea.vmem %s2, %s198
      $region20: #{lednet_forward.71} parent=11 // pred_fallthru
        _
    $region12: #{lednet_forward.71} parent=5 // pred_fallthru
      _
    %p200 = scmp.lt.s32.totalorder %s10, 2
    // Predicated region
    $region21: #{lednet_forward.71} parent=5 // pred_check
      %p201 = pneg %p200
    $region22: #{lednet_forward.71} parent=5 // pred_check_branch
      %203 = sbr.rel (%p201) target = $region24
    $region23: #{lednet_forward.71} parent=5 // pred_region
      // Predicated region
      $region25: #{lednet_forward.71} parent=23 // pred_check
        %p204 = pneg %p51
      $region26: #{lednet_forward.71} parent=23 // pred_check_branch
        %206 = sbr.rel (%p204) target = $region28
      $region27: #{lednet_forward.71} parent=23 // pred_region
        %s207 = smul.u32 32, %s17
        %p208 = scmp.lt.s32.totalorder %s207, 63
        %s209 = scalar_select %p208, %s207, 63
        %p210 = scmp.lt.s32.totalorder %s19, 0
        %s211 = scalar_select %p210, %s19, 0
        %s212 = sadd.s32 %s211, %s209
        %s213 = smul.addr %s212, 4
        %s214 = scalar_lea.vmem %s0, %s213
        %s215 = smul.u32 32, %s17
      $region28: #{lednet_forward.71} parent=23 // pred_fallthru
        _
      // Predicated region
      $region29: #{lednet_forward.71} parent=23 // pred_check
        %p216 = pneg %p133
      $region30: #{lednet_forward.71} parent=23 // pred_check_branch
        %218 = sbr.rel (%p216) target = $region32
      $region31: #{lednet_forward.71} parent=23 // pred_region
        %s219 = smul.u32 32, %s17
        %p220 = scmp.lt.s32.totalorder %s219, 63
        %s221 = scalar_select %p220, %s219, 63
        %p222 = scmp.lt.s32.totalorder %s18, 0
        %s223 = scalar_select %p222, %s18, 0
        %s224 = sadd.s32 %s223, %s221
        %s225 = smul.addr %s224, 4
        %s226 = scalar_lea.vmem %s3, %s225
        %s227 = smul.u32 32, %s17
      $region32: #{lednet_forward.71} parent=23 // pred_fallthru
        _
    $region24: #{lednet_forward.71} parent=5 // pred_fallthru
      _
    %p228 = scmp.le.s32.totalorder 1, %s10
    %p229 = scmp.lt.s32.totalorder %s10, 3
    %p230 = pnand %p228, %p229
    %p231 = pneg %p230
    // Predicated region
    $region33: #{lednet_forward.71} parent=5 // pred_check
      _
    $region34: #{lednet_forward.71} parent=5 // pred_check_branch
      %233 = sbr.rel (%p230) target = $region36
    $region35: #{lednet_forward.71} parent=5 // pred_region
      %s234 = ssub.s32 %s10, 1
      %s235 = smul.u32 32, %s20
      %p236 = scmp.lt.s32.totalorder %s235, 63
      %s237 = scalar_select %p236, %s235, 63
      %p238 = scmp.lt.s32.totalorder %s22, 0
      %s239 = scalar_select %p238, %s22, 0
      %s240 = sadd.s32 %s239, %s237
      %s241 = smul.addr %s240, 4
      %s242 = scalar_lea.vmem %s0, %s241
      %p243 = pneg %p57
      %p244 = pneg %p54
      %s245 = smul.u32 16, %s22
      %p246 = scmp.lt.s32.totalorder %s245, 15
      %s247 = scalar_select %p246, %s245, 15
      %p248 = scmp.lt.s32.totalorder %s21, 0
      %s249 = scalar_select %p248, %s21, 0
      %s250 = sadd.s32 %s249, %s247
      %s251 = smul.addr %s250, 4
      %s252 = scalar_lea.vmem %s1, %s251
      %p253 = pneg %p85
      %p254 = pneg %p82
      %p255 = scmp.lt.s32.totalorder %s21, 0
      %s256 = scalar_select %p255, %s21, 0
      %s257 = scalar_lea.vmem %s2, %s256
      %p258 = pneg %p111
      %p259 = pneg %p108
      %s260 = smul.u32 32, %s20
      %p261 = scmp.lt.s32.totalorder %s260, 63
      %s262 = scalar_select %p261, %s260, 63
      %p263 = scmp.lt.s32.totalorder %s21, 0
      %s264 = scalar_select %p263, %s21, 0
      %s265 = sadd.s32 %s264, %s262
      %s266 = smul.addr %s265, 4
      %s267 = scalar_lea.vmem %s3, %s266
      %p268 = pneg %p139
      %p269 = pneg %p136
      %p270 = pneg %p167
      %p271 = pneg %p164
      %s272 = smul.u32 32, %s20
      %p273 = scmp.lt.s32.totalorder %s272, 63
      %s274 = scalar_select %p273, %s272, 63
      %p275 = scmp.lt.s32.totalorder %s21, 0
      %s276 = scalar_select %p275, %s21, 0
      %s277 = sadd.s32 %s276, %s274
      %s278 = smul.addr %s277, 4
      %s279 = scalar_lea.vmem %s4, %s278
      %s280 = smul.u32 32, %s20
      %p281 = scmp.lt.s32.totalorder %s280, 63
      %s282 = scalar_select %p281, %s280, 63
      %p283 = scmp.lt.s32.totalorder %s22, 0
      %s284 = scalar_select %p283, %s22, 0
      %s285 = sadd.s32 %s284, %s282
      %s286 = smul.addr %s285, 4
      %s287 = scalar_lea.vmem %s0, %s286
      %s288 = smul.u32 32, %s20
      %s289 = smul.u32 16, %s22
      %p290 = scmp.lt.s32.totalorder %s289, 15
      %s291 = scalar_select %p290, %s289, 15
      %p292 = scmp.lt.s32.totalorder %s21, 0
      %s293 = scalar_select %p292, %s21, 0
      %s294 = sadd.s32 %s293, %s291
      %s295 = smul.addr %s294, 4
      %s296 = scalar_lea.vmem %s1, %s295
      %s297 = smul.u32 16, %s22
      %p298 = scmp.lt.s32.totalorder %s21, 0
      %s299 = scalar_select %p298, %s21, 0
      %s300 = scalar_lea.vmem %s2, %s299
      %s301 = smul.u32 32, %s20
      %p302 = scmp.lt.s32.totalorder %s301, 63
      %s303 = scalar_select %p302, %s301, 63
      %p304 = scmp.lt.s32.totalorder %s21, 0
      %s305 = scalar_select %p304, %s21, 0
      %s306 = sadd.s32 %s305, %s303
      %s307 = smul.addr %s306, 4
      %s308 = scalar_lea.vmem %s3, %s307
      %s309 = smul.u32 32, %s20
      %s310 = smul.u32 32, %s20
      %p311 = scmp.lt.s32.totalorder %s310, 63
      %s312 = scalar_select %p311, %s310, 63
      %p313 = scmp.lt.s32.totalorder %s21, 0
      %s314 = scalar_select %p313, %s21, 0
      %s315 = sadd.s32 %s314, %s312
      %s316 = smul.addr %s315, 4
      %s317 = scalar_lea.vmem %s4, %s316
      %s318 = smul.u32 32, %s20
      %p320 = scmp.eq.s32.totalorder %s22, 0
      // Predicated region
      $region37: #{lednet_forward.71} parent=35 // pred_check
        %p321 = pneg %p320
      $region38: #{lednet_forward.71} parent=35 // pred_check_branch
        %323 = sbr.rel (%p321) target = $region40
      $region39: #{lednet_forward.71} parent=35 // pred_region
        %324 = vst [vmem:[#allocation2] sm:$0xff] 0.0
        %325 = vst [vmem:[#allocation2 + $0x8] sm:$0xff] 0.0
        %326 = vst [vmem:[#allocation2 + $0x10] sm:$0xff] 0.0
        %327 = vst [vmem:[#allocation2 + $0x18] sm:$0xff] 0.0
        %328 = vst [vmem:[#allocation2 + $0x20] sm:$0xff] 0.0
        %329 = vst [vmem:[#allocation2 + $0x28] sm:$0xff] 0.0
        %330 = vst [vmem:[#allocation2 + $0x30] sm:$0xff] 0.0
        %331 = vst [vmem:[#allocation2 + $0x38] sm:$0xff] 0.0
        %332 = vst [vmem:[#allocation2 + $0x40] sm:$0xff] 0.0
        %333 = vst [vmem:[#allocation2 + $0x48] sm:$0xff] 0.0
        %334 = vst [vmem:[#allocation2 + $0x50] sm:$0xff] 0.0
        %335 = vst [vmem:[#allocation2 + $0x58] sm:$0xff] 0.0
        %336 = vst [vmem:[#allocation2 + $0x60] sm:$0xff] 0.0
        %337 = vst [vmem:[#allocation2 + $0x68] sm:$0xff] 0.0
        %338 = vst [vmem:[#allocation2 + $0x70] sm:$0xff] 0.0
        %339 = vst [vmem:[#allocation2 + $0x78] sm:$0xff] 0.0
        %340 = vst [vmem:[#allocation2 + $0x80] sm:$0xff] 0.0
        %341 = vst [vmem:[#allocation2 + $0x88] sm:$0xff] 0.0
        %342 = vst [vmem:[#allocation2 + $0x90] sm:$0xff] 0.0
        %343 = vst [vmem:[#allocation2 + $0x98] sm:$0xff] 0.0
        %344 = vst [vmem:[#allocation2 + $0xa0] sm:$0xff] 0.0
        %345 = vst [vmem:[#allocation2 + $0xa8] sm:$0xff] 0.0
        %346 = vst [vmem:[#allocation2 + $0xb0] sm:$0xff] 0.0
        %347 = vst [vmem:[#allocation2 + $0xb8] sm:$0xff] 0.0
        %348 = vst [vmem:[#allocation2 + $0xc0] sm:$0xff] 0.0
        %349 = vst [vmem:[#allocation2 + $0xc8] sm:$0xff] 0.0
        %350 = vst [vmem:[#allocation2 + $0xd0] sm:$0xff] 0.0
        %351 = vst [vmem:[#allocation2 + $0xd8] sm:$0xff] 0.0
        %352 = vst [vmem:[#allocation2 + $0xe0] sm:$0xff] 0.0
        %353 = vst [vmem:[#allocation2 + $0xe8] sm:$0xff] 0.0
        %354 = vst [vmem:[#allocation2 + $0xf0] sm:$0xff] 0.0
        %355 = vst [vmem:[#allocation2 + $0xf8] sm:$0xff] 0.0
      $region40: #{lednet_forward.71} parent=35 // pred_fallthru
        _
      %v356 = vld [vmem:[#allocation2] sm:$0xff]
      %v357 = vld [vmem:[#allocation2 + $0x8] sm:$0xff]
      %v358 = vld [vmem:[#allocation2 + $0x10] sm:$0xff]
      %v359 = vld [vmem:[#allocation2 + $0x18] sm:$0xff]
      %v360 = vld [vmem:[#allocation2 + $0x20] sm:$0xff]
      %v361 = vld [vmem:[#allocation2 + $0x28] sm:$0xff]
      %v362 = vld [vmem:[#allocation2 + $0x30] sm:$0xff]
      %v363 = vld [vmem:[#allocation2 + $0x38] sm:$0xff]
      %v364 = vld [vmem:[#allocation2 + $0x40] sm:$0xff]
      %v365 = vld [vmem:[#allocation2 + $0x48] sm:$0xff]
      %v366 = vld [vmem:[#allocation2 + $0x50] sm:$0xff]
      %v367 = vld [vmem:[#allocation2 + $0x58] sm:$0xff]
      %v368 = vld [vmem:[#allocation2 + $0x60] sm:$0xff]
      %v369 = vld [vmem:[#allocation2 + $0x68] sm:$0xff]
      %v370 = vld [vmem:[#allocation2 + $0x70] sm:$0xff]
      %v371 = vld [vmem:[#allocation2 + $0x78] sm:$0xff]
      %v372 = vld [vmem:[#allocation2 + $0x80] sm:$0xff]
      %v373 = vld [vmem:[#allocation2 + $0x88] sm:$0xff]
      %v374 = vld [vmem:[#allocation2 + $0x90] sm:$0xff]
      %v375 = vld [vmem:[#allocation2 + $0x98] sm:$0xff]
      %v376 = vld [vmem:[#allocation2 + $0xa0] sm:$0xff]
      %v377 = vld [vmem:[#allocation2 + $0xa8] sm:$0xff]
      %v378 = vld [vmem:[#allocation2 + $0xb0] sm:$0xff]
      %v379 = vld [vmem:[#allocation2 + $0xb8] sm:$0xff]
      %v380 = vld [vmem:[#allocation2 + $0xc0] sm:$0xff]
      %v381 = vld [vmem:[#allocation2 + $0xc8] sm:$0xff]
      %v382 = vld [vmem:[#allocation2 + $0xd0] sm:$0xff]
      %v383 = vld [vmem:[#allocation2 + $0xd8] sm:$0xff]
      %v384 = vld [vmem:[#allocation2 + $0xe0] sm:$0xff]
      %v385 = vld [vmem:[#allocation2 + $0xe8] sm:$0xff]
      %v386 = vld [vmem:[#allocation2 + $0xf0] sm:$0xff]
      %v387 = vld [vmem:[#allocation2 + $0xf8] sm:$0xff]
      %v388 = vld [vmem:[%s287] sm:$0xf]
      %v389 = vld [vmem:[%s287 + $0x4] sm:$0xf]
      %v390 = vld [vmem:[%s287 + $0x8] sm:$0xf]
      %v391 = vld [vmem:[%s287 + $0xc] sm:$0xf]
      %v392 = vld [vmem:[%s287 + $0x10] sm:$0xf]
      %v393 = vld [vmem:[%s287 + $0x14] sm:$0xf]
      %v394 = vld [vmem:[%s287 + $0x18] sm:$0xf]
      %v395 = vld [vmem:[%s287 + $0x1c] sm:$0xf]
      %v396 = vld [vmem:[%s287 + $0x20] sm:$0xf]
      %v397 = vld [vmem:[%s287 + $0x24] sm:$0xf]
      %v398 = vld [vmem:[%s287 + $0x28] sm:$0xf]
      %v399 = vld [vmem:[%s287 + $0x2c] sm:$0xf]
      %v400 = vld [vmem:[%s287 + $0x30] sm:$0xf]
      %v401 = vld [vmem:[%s287 + $0x34] sm:$0xf]
      %v402 = vld [vmem:[%s287 + $0x38] sm:$0xf]
      %v403 = vld [vmem:[%s287 + $0x3c] sm:$0xf]
      %v404 = vld [vmem:[%s287 + $0x40] sm:$0xf]
      %v405 = vld [vmem:[%s287 + $0x44] sm:$0xf]
      %v406 = vld [vmem:[%s287 + $0x48] sm:$0xf]
      %v407 = vld [vmem:[%s287 + $0x4c] sm:$0xf]
      %v408 = vld [vmem:[%s287 + $0x50] sm:$0xf]
      %v409 = vld [vmem:[%s287 + $0x54] sm:$0xf]
      %v410 = vld [vmem:[%s287 + $0x58] sm:$0xf]
      %v411 = vld [vmem:[%s287 + $0x5c] sm:$0xf]
      %v412 = vld [vmem:[%s287 + $0x60] sm:$0xf]
      %v413 = vld [vmem:[%s287 + $0x64] sm:$0xf]
      %v414 = vld [vmem:[%s287 + $0x68] sm:$0xf]
      %v415 = vld [vmem:[%s287 + $0x6c] sm:$0xf]
      %v416 = vld [vmem:[%s287 + $0x70] sm:$0xf]
      %v417 = vld [vmem:[%s287 + $0x74] sm:$0xf]
      %v418 = vld [vmem:[%s287 + $0x78] sm:$0xf]
      %v419 = vld [vmem:[%s287 + $0x7c] sm:$0xf]
      %v420 = vld [vmem:[%s296] sm:$0xf]
      %v421 = vld [vmem:[%s296 + $0x4] sm:$0xf]
      %v422 = vld [vmem:[%s296 + $0x8] sm:$0xf]
      %v423 = vld [vmem:[%s296 + $0xc] sm:$0xf]
      %v424 = vld [vmem:[%s296 + $0x10] sm:$0xf]
      %v425 = vld [vmem:[%s296 + $0x14] sm:$0xf]
      %v426 = vld [vmem:[%s296 + $0x18] sm:$0xf]
      %v427 = vld [vmem:[%s296 + $0x1c] sm:$0xf]
      %v428 = vld [vmem:[%s296 + $0x20] sm:$0xf]
      %v429 = vld [vmem:[%s296 + $0x24] sm:$0xf]
      %v430 = vld [vmem:[%s296 + $0x28] sm:$0xf]
      %v431 = vld [vmem:[%s296 + $0x2c] sm:$0xf]
      %v432 = vld [vmem:[%s296 + $0x30] sm:$0xf]
      %v433 = vld [vmem:[%s296 + $0x34] sm:$0xf]
      %v434 = vld [vmem:[%s296 + $0x38] sm:$0xf]
      %v435 = vld [vmem:[%s296 + $0x3c] sm:$0xf]
      %v468 = vunpack.c.l.b16 %v388
      %v469 = vunpack.c.l.b16 %v389
      %v470 = vunpack.c.l.b16 %v390
      %v471 = vunpack.c.l.b16 %v391
      %v472 = vunpack.c.l.b16 %v392
      %v473 = vunpack.c.l.b16 %v393
      %v474 = vunpack.c.l.b16 %v394
      %v475 = vunpack.c.l.b16 %v395
      %v476 = vunpack.c.l.b16 %v396
      %v477 = vunpack.c.l.b16 %v397
      %v478 = vunpack.c.l.b16 %v398
      %v479 = vunpack.c.l.b16 %v399
      %v480 = vunpack.c.l.b16 %v400
      %v481 = vunpack.c.l.b16 %v401
      %v482 = vunpack.c.l.b16 %v402
      %v483 = vunpack.c.l.b16 %v403
      %v484 = vunpack.c.l.b16 %v404
      %v485 = vunpack.c.l.b16 %v405
      %v486 = vunpack.c.l.b16 %v406
      %v487 = vunpack.c.l.b16 %v407
      %v488 = vunpack.c.l.b16 %v408
      %v489 = vunpack.c.l.b16 %v409
      %v490 = vunpack.c.l.b16 %v410
      %v491 = vunpack.c.l.b16 %v411
      %v492 = vunpack.c.l.b16 %v412
      %v493 = vunpack.c.l.b16 %v413
      %v494 = vunpack.c.l.b16 %v414
      %v495 = vunpack.c.l.b16 %v415
      %v496 = vunpack.c.l.b16 %v416
      %v497 = vunpack.c.l.b16 %v417
      %v498 = vunpack.c.l.b16 %v418
      %v499 = vunpack.c.l.b16 %v419
      %v500 = vpack.c.b16 %v469, %v468
      %v501 = vpack.c.b16 %v471, %v470
      %v502 = vpack.c.b16 %v473, %v472
      %v503 = vpack.c.b16 %v475, %v474
      %v504 = vpack.c.b16 %v477, %v476
      %v505 = vpack.c.b16 %v479, %v478
      %v506 = vpack.c.b16 %v481, %v480
      %v507 = vpack.c.b16 %v483, %v482
      %v508 = vpack.c.b16 %v485, %v484
      %v509 = vpack.c.b16 %v487, %v486
      %v510 = vpack.c.b16 %v489, %v488
      %v511 = vpack.c.b16 %v491, %v490
      %v512 = vpack.c.b16 %v493, %v492
      %v513 = vpack.c.b16 %v495, %v494
      %v514 = vpack.c.b16 %v497, %v496
      %v515 = vpack.c.b16 %v499, %v498
      %v548 = vunpack.c.l.b16 %v420
      %v549 = vunpack.c.l.b16 %v421
      %v550 = vunpack.c.l.b16 %v422
      %v551 = vunpack.c.l.b16 %v423
      %v552 = vunpack.c.l.b16 %v424
      %v553 = vunpack.c.l.b16 %v425
      %v554 = vunpack.c.l.b16 %v426
      %v555 = vunpack.c.l.b16 %v427
      %v556 = vunpack.c.l.b16 %v428
      %v557 = vunpack.c.l.b16 %v429
      %v558 = vunpack.c.l.b16 %v430
      %v559 = vunpack.c.l.b16 %v431
      %v560 = vunpack.c.l.b16 %v432
      %v561 = vunpack.c.l.b16 %v433
      %v562 = vunpack.c.l.b16 %v434
      %v563 = vunpack.c.l.b16 %v435
      %v564 = vpack.c.b16 %v549, %v548
      %v565 = vpack.c.b16 %v551, %v550
      %v566 = vpack.c.b16 %v553, %v552
      %v567 = vpack.c.b16 %v555, %v554
      %v568 = vpack.c.b16 %v557, %v556
      %v569 = vpack.c.b16 %v559, %v558
      %v570 = vpack.c.b16 %v561, %v560
      %v571 = vpack.c.b16 %v563, %v562
      %580 = vmatprep.subr.bf16.mxu0 0
      %581 = vmatpush1.bf16.msra.mxu0 %v571
      %582 = vmatprep.subr.bf16.mxu0 0
      %583 = vmatpush1.bf16.msra.mxu0 %v570
      %584 = vmatprep.subr.bf16.mxu0 0
      %585 = vmatpush1.bf16.msra.mxu0 %v569
      %586 = vmatprep.subr.bf16.mxu0 0
      %587 = vmatpush1.bf16.msra.mxu0 %v568
      %588 = vmatprep.subr.bf16.mxu0 0
      %589 = vmatpush1.bf16.msra.mxu0 %v567
      %590 = vmatprep.subr.bf16.mxu0 0
      %591 = vmatpush1.bf16.msra.mxu0 %v566
      %592 = vmatprep.subr.bf16.mxu0 0
      %593 = vmatpush1.bf16.msra.mxu0 %v565
      %594 = vmatprep.subr.bf16.mxu0 0
      %595 = vmatpush1.bf16.msra.mxu0 %v564
      %596 = vmatprep.subr.bf16.mxu0 0
      %597 = vmatpush2.bf16.msra.mxu0 0
      %598 = vmatprep.subr.bf16.mxu0 0
      %599 = vmatpush2.bf16.msra.mxu0 0
      %600 = vmatprep.subr.bf16.mxu0 0
      %601 = vmatpush2.bf16.msra.mxu0 0
      %602 = vmatprep.subr.bf16.mxu0 0
      %603 = vmatpush2.bf16.msra.mxu0 0
      %604 = vmatprep.subr.bf16.mxu0 0
      %605 = vmatpush2.bf16.msra.mxu0 0
      %606 = vmatprep.subr.bf16.mxu0 0
      %607 = vmatpush2.bf16.msra.mxu0 0
      %608 = vmatprep.subr.bf16.mxu0 0
      %609 = vmatpush2.bf16.msra.mxu0 0
      %610 = vmatprep.subr.bf16.mxu0 0
      %611 = vmatpush2.bf16.msra.mxu0 0
      %612 = vmatprep.mubr.bf16.mxu0 0
      %613 = vmatmul.mubr.bf16.gmra.mxu0 %v500
      %v614 = vpop.f32.mrf.mxu0
      %v615 = vadd.f32 0.0, %v614
      %v616 = vpop.f32.mrf.mxu0
      %v617 = vpop.f32.mrf.mxu0
      %v618 = vadd.f32 0.0, %v617
      %v619 = vpop.f32.mrf.mxu0
      %620 = vmatprep.mubr.bf16.mxu0 0
      %621 = vmatmul.mubr.bf16.gmra.mxu0 %v501
      %v622 = vpop.f32.mrf.mxu0
      %v623 = vadd.f32 0.0, %v622
      %v624 = vpop.f32.mrf.mxu0
      %v625 = vpop.f32.mrf.mxu0
      %v626 = vadd.f32 0.0, %v625
      %v627 = vpop.f32.mrf.mxu0
      %628 = vmatprep.mubr.bf16.mxu0 0
      %629 = vmatmul.mubr.bf16.gmra.mxu0 %v502
      %v630 = vpop.f32.mrf.mxu0
      %v631 = vadd.f32 0.0, %v630
      %v632 = vpop.f32.mrf.mxu0
      %v633 = vpop.f32.mrf.mxu0
      %v634 = vadd.f32 0.0, %v633
      %v635 = vpop.f32.mrf.mxu0
      %636 = vmatprep.mubr.bf16.mxu0 0
      %637 = vmatmul.mubr.bf16.gmra.mxu0 %v503
      %v638 = vpop.f32.mrf.mxu0
      %v639 = vadd.f32 0.0, %v638
      %v640 = vpop.f32.mrf.mxu0
      %v641 = vpop.f32.mrf.mxu0
      %v642 = vadd.f32 0.0, %v641
      %v643 = vpop.f32.mrf.mxu0
      %644 = vmatprep.mubr.bf16.mxu0 0
      %645 = vmatmul.mubr.bf16.gmra.mxu0 %v504
      %v646 = vpop.f32.mrf.mxu0
      %v647 = vadd.f32 0.0, %v646
      %v648 = vpop.f32.mrf.mxu0
      %v649 = vpop.f32.mrf.mxu0
      %v650 = vadd.f32 0.0, %v649
      %v651 = vpop.f32.mrf.mxu0
      %652 = vmatprep.mubr.bf16.mxu0 0
      %653 = vmatmul.mubr.bf16.gmra.mxu0 %v505
      %v654 = vpop.f32.mrf.mxu0
      %v655 = vadd.f32 0.0, %v654
      %v656 = vpop.f32.mrf.mxu0
      %v657 = vpop.f32.mrf.mxu0
      %v658 = vadd.f32 0.0, %v657
      %v659 = vpop.f32.mrf.mxu0
      %660 = vmatprep.mubr.bf16.mxu0 0
      %661 = vmatmul.mubr.bf16.gmra.mxu0 %v506
      %v662 = vpop.f32.mrf.mxu0
      %v663 = vadd.f32 0.0, %v662
      %v664 = vpop.f32.mrf.mxu0
      %v665 = vpop.f32.mrf.mxu0
      %v666 = vadd.f32 0.0, %v665
      %v667 = vpop.f32.mrf.mxu0
      %668 = vmatprep.mubr.bf16.mxu0 0
      %669 = vmatmul.mubr.bf16.gmra.mxu0 %v507
      %v670 = vpop.f32.mrf.mxu0
      %v671 = vadd.f32 0.0, %v670
      %v672 = vpop.f32.mrf.mxu0
      %v673 = vpop.f32.mrf.mxu0
      %v674 = vadd.f32 0.0, %v673
      %v675 = vpop.f32.mrf.mxu0
      %676 = vmatprep.mubr.bf16.mxu0 0
      %677 = vmatmul.mubr.bf16.gmra.mxu0 %v508
      %v678 = vpop.f32.mrf.mxu0
      %v679 = vadd.f32 0.0, %v678
      %v680 = vpop.f32.mrf.mxu0
      %v681 = vpop.f32.mrf.mxu0
      %v682 = vadd.f32 0.0, %v681
      %v683 = vpop.f32.mrf.mxu0
      %684 = vmatprep.mubr.bf16.mxu0 0
      %685 = vmatmul.mubr.bf16.gmra.mxu0 %v509
      %v686 = vpop.f32.mrf.mxu0
      %v687 = vadd.f32 0.0, %v686
      %v688 = vpop.f32.mrf.mxu0
      %v689 = vpop.f32.mrf.mxu0
      %v690 = vadd.f32 0.0, %v689
      %v691 = vpop.f32.mrf.mxu0
      %692 = vmatprep.mubr.bf16.mxu0 0
      %693 = vmatmul.mubr.bf16.gmra.mxu0 %v510
      %v694 = vpop.f32.mrf.mxu0
      %v695 = vadd.f32 0.0, %v694
      %v696 = vpop.f32.mrf.mxu0
      %v697 = vpop.f32.mrf.mxu0
      %v698 = vadd.f32 0.0, %v697
      %v699 = vpop.f32.mrf.mxu0
      %700 = vmatprep.mubr.bf16.mxu0 0
      %701 = vmatmul.mubr.bf16.gmra.mxu0 %v511
      %v702 = vpop.f32.mrf.mxu0
      %v703 = vadd.f32 0.0, %v702
      %v704 = vpop.f32.mrf.mxu0
      %v705 = vpop.f32.mrf.mxu0
      %v706 = vadd.f32 0.0, %v705
      %v707 = vpop.f32.mrf.mxu0
      %708 = vmatprep.mubr.bf16.mxu0 0
      %709 = vmatmul.mubr.bf16.gmra.mxu0 %v512
      %v710 = vpop.f32.mrf.mxu0
      %v711 = vadd.f32 0.0, %v710
      %v712 = vpop.f32.mrf.mxu0
      %v713 = vpop.f32.mrf.mxu0
      %v714 = vadd.f32 0.0, %v713
      %v715 = vpop.f32.mrf.mxu0
      %716 = vmatprep.mubr.bf16.mxu0 0
      %717 = vmatmul.mubr.bf16.gmra.mxu0 %v513
      %v718 = vpop.f32.mrf.mxu0
      %v719 = vadd.f32 0.0, %v718
      %v720 = vpop.f32.mrf.mxu0
      %v721 = vpop.f32.mrf.mxu0
      %v722 = vadd.f32 0.0, %v721
      %v723 = vpop.f32.mrf.mxu0
      %724 = vmatprep.mubr.bf16.mxu0 0
      %725 = vmatmul.mubr.bf16.gmra.mxu0 %v514
      %v726 = vpop.f32.mrf.mxu0
      %v727 = vadd.f32 0.0, %v726
      %v728 = vpop.f32.mrf.mxu0
      %v729 = vpop.f32.mrf.mxu0
      %v730 = vadd.f32 0.0, %v729
      %v731 = vpop.f32.mrf.mxu0
      %732 = vmatprep.mubr.bf16.mxu0 0
      %733 = vmatmul.mubr.bf16.gmra.mxu0 %v515
      %v734 = vpop.f32.mrf.mxu0
      %v735 = vadd.f32 0.0, %v734
      %v736 = vpop.f32.mrf.mxu0
      %v737 = vpop.f32.mrf.mxu0
      %v738 = vadd.f32 0.0, %v737
      %v739 = vpop.f32.mrf.mxu0
      %740 = vdwg.mxu0
      %v741 = vadd.f32 %v356, %v615
      %v742 = vadd.f32 %v357, %v618
      %v743 = vadd.f32 %v358, %v623
      %v744 = vadd.f32 %v359, %v626
      %v745 = vadd.f32 %v360, %v631
      %v746 = vadd.f32 %v361, %v634
      %v747 = vadd.f32 %v362, %v639
      %v748 = vadd.f32 %v363, %v642
      %v749 = vadd.f32 %v364, %v647
      %v750 = vadd.f32 %v365, %v650
      %v751 = vadd.f32 %v366, %v655
      %v752 = vadd.f32 %v367, %v658
      %v753 = vadd.f32 %v368, %v663
      %v754 = vadd.f32 %v369, %v666
      %v755 = vadd.f32 %v370, %v671
      %v756 = vadd.f32 %v371, %v674
      %v757 = vadd.f32 %v372, %v679
      %v758 = vadd.f32 %v373, %v682
      %v759 = vadd.f32 %v374, %v687
      %v760 = vadd.f32 %v375, %v690
      %v761 = vadd.f32 %v376, %v695
      %v762 = vadd.f32 %v377, %v698
      %v763 = vadd.f32 %v378, %v703
      %v764 = vadd.f32 %v379, %v706
      %v765 = vadd.f32 %v380, %v711
      %v766 = vadd.f32 %v381, %v714
      %v767 = vadd.f32 %v382, %v719
      %v768 = vadd.f32 %v383, %v722
      %v769 = vadd.f32 %v384, %v727
      %v770 = vadd.f32 %v385, %v730
      %v771 = vadd.f32 %v386, %v735
      %v772 = vadd.f32 %v387, %v738
      %773 = vst [vmem:[#allocation2] sm:$0xff] %v741
      %774 = vst [vmem:[#allocation2 + $0x8] sm:$0xff] %v742
      %775 = vst [vmem:[#allocation2 + $0x10] sm:$0xff] %v743
      %776 = vst [vmem:[#allocation2 + $0x18] sm:$0xff] %v744
      %777 = vst [vmem:[#allocation2 + $0x20] sm:$0xff] %v745
      %778 = vst [vmem:[#allocation2 + $0x28] sm:$0xff] %v746
      %779 = vst [vmem:[#allocation2 + $0x30] sm:$0xff] %v747
      %780 = vst [vmem:[#allocation2 + $0x38] sm:$0xff] %v748
      %781 = vst [vmem:[#allocation2 + $0x40] sm:$0xff] %v749
      %782 = vst [vmem:[#allocation2 + $0x48] sm:$0xff] %v750
      %783 = vst [vmem:[#allocation2 + $0x50] sm:$0xff] %v751
      %784 = vst [vmem:[#allocation2 + $0x58] sm:$0xff] %v752
      %785 = vst [vmem:[#allocation2 + $0x60] sm:$0xff] %v753
      %786 = vst [vmem:[#allocation2 + $0x68] sm:$0xff] %v754
      %787 = vst [vmem:[#allocation2 + $0x70] sm:$0xff] %v755
      %788 = vst [vmem:[#allocation2 + $0x78] sm:$0xff] %v756
      %789 = vst [vmem:[#allocation2 + $0x80] sm:$0xff] %v757
      %790 = vst [vmem:[#allocation2 + $0x88] sm:$0xff] %v758
      %791 = vst [vmem:[#allocation2 + $0x90] sm:$0xff] %v759
      %792 = vst [vmem:[#allocation2 + $0x98] sm:$0xff] %v760
      %793 = vst [vmem:[#allocation2 + $0xa0] sm:$0xff] %v761
      %794 = vst [vmem:[#allocation2 + $0xa8] sm:$0xff] %v762
      %795 = vst [vmem:[#allocation2 + $0xb0] sm:$0xff] %v763
      %796 = vst [vmem:[#allocation2 + $0xb8] sm:$0xff] %v764
      %797 = vst [vmem:[#allocation2 + $0xc0] sm:$0xff] %v765
      %798 = vst [vmem:[#allocation2 + $0xc8] sm:$0xff] %v766
      %799 = vst [vmem:[#allocation2 + $0xd0] sm:$0xff] %v767
      %800 = vst [vmem:[#allocation2 + $0xd8] sm:$0xff] %v768
      %801 = vst [vmem:[#allocation2 + $0xe0] sm:$0xff] %v769
      %802 = vst [vmem:[#allocation2 + $0xe8] sm:$0xff] %v770
      %803 = vst [vmem:[#allocation2 + $0xf0] sm:$0xff] %v771
      %804 = vst [vmem:[#allocation2 + $0xf8] sm:$0xff] %v772
      // Predicated region
      $region41: #{lednet_forward.71} parent=35 // pred_check
        %p805 = pneg %p320
      $region42: #{lednet_forward.71} parent=35 // pred_check_branch
        %807 = sbr.rel (%p805) target = $region44
      $region43: #{lednet_forward.71} parent=35 // pred_region
        %v808 = vld [vmem:[#allocation2] sm:$0xff]
        %v809 = vld [vmem:[#allocation2 + $0x8] sm:$0xff]
        %v810 = vld [vmem:[#allocation2 + $0x10] sm:$0xff]
        %v811 = vld [vmem:[#allocation2 + $0x18] sm:$0xff]
        %v812 = vld [vmem:[#allocation2 + $0x20] sm:$0xff]
        %v813 = vld [vmem:[#allocation2 + $0x28] sm:$0xff]
        %v814 = vld [vmem:[#allocation2 + $0x30] sm:$0xff]
        %v815 = vld [vmem:[#allocation2 + $0x38] sm:$0xff]
        %v816 = vld [vmem:[#allocation2 + $0x40] sm:$0xff]
        %v817 = vld [vmem:[#allocation2 + $0x48] sm:$0xff]
        %v818 = vld [vmem:[#allocation2 + $0x50] sm:$0xff]
        %v819 = vld [vmem:[#allocation2 + $0x58] sm:$0xff]
        %v820 = vld [vmem:[#allocation2 + $0x60] sm:$0xff]
        %v821 = vld [vmem:[#allocation2 + $0x68] sm:$0xff]
        %v822 = vld [vmem:[#allocation2 + $0x70] sm:$0xff]
        %v823 = vld [vmem:[#allocation2 + $0x78] sm:$0xff]
        %v824 = vld [vmem:[#allocation2 + $0x80] sm:$0xff]
        %v825 = vld [vmem:[#allocation2 + $0x88] sm:$0xff]
        %v826 = vld [vmem:[#allocation2 + $0x90] sm:$0xff]
        %v827 = vld [vmem:[#allocation2 + $0x98] sm:$0xff]
        %v828 = vld [vmem:[#allocation2 + $0xa0] sm:$0xff]
        %v829 = vld [vmem:[#allocation2 + $0xa8] sm:$0xff]
        %v830 = vld [vmem:[#allocation2 + $0xb0] sm:$0xff]
        %v831 = vld [vmem:[#allocation2 + $0xb8] sm:$0xff]
        %v832 = vld [vmem:[#allocation2 + $0xc0] sm:$0xff]
        %v833 = vld [vmem:[#allocation2 + $0xc8] sm:$0xff]
        %v834 = vld [vmem:[#allocation2 + $0xd0] sm:$0xff]
        %v835 = vld [vmem:[#allocation2 + $0xd8] sm:$0xff]
        %v836 = vld [vmem:[#allocation2 + $0xe0] sm:$0xff]
        %v837 = vld [vmem:[#allocation2 + $0xe8] sm:$0xff]
        %v838 = vld [vmem:[#allocation2 + $0xf0] sm:$0xff]
        %v839 = vld [vmem:[#allocation2 + $0xf8] sm:$0xff]
        %v840 = vld [vmem:[%s300] sm:$0x1]
        %v842 = vlaneseq
        %v843 = vshrl.u32 %v842, 7
        %v844 = vsub.s32 0, %v843
        %v845 = vrot.slane %v840, %v844
        %v847 = vadd.f32 %v808, %v845
        %v848 = vadd.f32 %v809, %v845
        %v849 = vadd.f32 %v810, %v845
        %v850 = vadd.f32 %v811, %v845
        %v851 = vadd.f32 %v812, %v845
        %v852 = vadd.f32 %v813, %v845
        %v853 = vadd.f32 %v814, %v845
        %v854 = vadd.f32 %v815, %v845
        %v855 = vadd.f32 %v816, %v845
        %v856 = vadd.f32 %v817, %v845
        %v857 = vadd.f32 %v818, %v845
        %v858 = vadd.f32 %v819, %v845
        %v859 = vadd.f32 %v820, %v845
        %v860 = vadd.f32 %v821, %v845
        %v861 = vadd.f32 %v822, %v845
        %v862 = vadd.f32 %v823, %v845
        %v863 = vadd.f32 %v824, %v845
        %v864 = vadd.f32 %v825, %v845
        %v865 = vadd.f32 %v826, %v845
        %v866 = vadd.f32 %v827, %v845
        %v867 = vadd.f32 %v828, %v845
        %v868 = vadd.f32 %v829, %v845
        %v869 = vadd.f32 %v830, %v845
        %v870 = vadd.f32 %v831, %v845
        %v871 = vadd.f32 %v832, %v845
        %v872 = vadd.f32 %v833, %v845
        %v873 = vadd.f32 %v834, %v845
        %v874 = vadd.f32 %v835, %v845
        %v875 = vadd.f32 %v836, %v845
        %v876 = vadd.f32 %v837, %v845
        %v877 = vadd.f32 %v838, %v845
        %v878 = vadd.f32 %v839, %v845
        %v879 = vld [vmem:[%s308] sm:$0xf]
        %v880 = vld [vmem:[%s308 + $0x4] sm:$0xf]
        %v881 = vld [vmem:[%s308 + $0x8] sm:$0xf]
        %v882 = vld [vmem:[%s308 + $0xc] sm:$0xf]
        %v883 = vld [vmem:[%s308 + $0x10] sm:$0xf]
        %v884 = vld [vmem:[%s308 + $0x14] sm:$0xf]
        %v885 = vld [vmem:[%s308 + $0x18] sm:$0xf]
        %v886 = vld [vmem:[%s308 + $0x1c] sm:$0xf]
        %v887 = vld [vmem:[%s308 + $0x20] sm:$0xf]
        %v888 = vld [vmem:[%s308 + $0x24] sm:$0xf]
        %v889 = vld [vmem:[%s308 + $0x28] sm:$0xf]
        %v890 = vld [vmem:[%s308 + $0x2c] sm:$0xf]
        %v891 = vld [vmem:[%s308 + $0x30] sm:$0xf]
        %v892 = vld [vmem:[%s308 + $0x34] sm:$0xf]
        %v893 = vld [vmem:[%s308 + $0x38] sm:$0xf]
        %v894 = vld [vmem:[%s308 + $0x3c] sm:$0xf]
        %v895 = vld [vmem:[%s308 + $0x40] sm:$0xf]
        %v896 = vld [vmem:[%s308 + $0x44] sm:$0xf]
        %v897 = vld [vmem:[%s308 + $0x48] sm:$0xf]
        %v898 = vld [vmem:[%s308 + $0x4c] sm:$0xf]
        %v899 = vld [vmem:[%s308 + $0x50] sm:$0xf]
        %v900 = vld [vmem:[%s308 + $0x54] sm:$0xf]
        %v901 = vld [vmem:[%s308 + $0x58] sm:$0xf]
        %v902 = vld [vmem:[%s308 + $0x5c] sm:$0xf]
        %v903 = vld [vmem:[%s308 + $0x60] sm:$0xf]
        %v904 = vld [vmem:[%s308 + $0x64] sm:$0xf]
        %v905 = vld [vmem:[%s308 + $0x68] sm:$0xf]
        %v906 = vld [vmem:[%s308 + $0x6c] sm:$0xf]
        %v907 = vld [vmem:[%s308 + $0x70] sm:$0xf]
        %v908 = vld [vmem:[%s308 + $0x74] sm:$0xf]
        %v909 = vld [vmem:[%s308 + $0x78] sm:$0xf]
        %v910 = vld [vmem:[%s308 + $0x7c] sm:$0xf]
        %v911 = vunpack.c.l.bf16 %v879
        %v912 = vunpack.c.l.bf16 %v880
        %v913 = vunpack.c.l.bf16 %v881
        %v914 = vunpack.c.l.bf16 %v882
        %v915 = vunpack.c.l.bf16 %v883
        %v916 = vunpack.c.l.bf16 %v884
        %v917 = vunpack.c.l.bf16 %v885
        %v918 = vunpack.c.l.bf16 %v886
        %v919 = vunpack.c.l.bf16 %v887
        %v920 = vunpack.c.l.bf16 %v888
        %v921 = vunpack.c.l.bf16 %v889
        %v922 = vunpack.c.l.bf16 %v890
        %v923 = vunpack.c.l.bf16 %v891
        %v924 = vunpack.c.l.bf16 %v892
        %v925 = vunpack.c.l.bf16 %v893
        %v926 = vunpack.c.l.bf16 %v894
        %v927 = vunpack.c.l.bf16 %v895
        %v928 = vunpack.c.l.bf16 %v896
        %v929 = vunpack.c.l.bf16 %v897
        %v930 = vunpack.c.l.bf16 %v898
        %v931 = vunpack.c.l.bf16 %v899
        %v932 = vunpack.c.l.bf16 %v900
        %v933 = vunpack.c.l.bf16 %v901
        %v934 = vunpack.c.l.bf16 %v902
        %v935 = vunpack.c.l.bf16 %v903
        %v936 = vunpack.c.l.bf16 %v904
        %v937 = vunpack.c.l.bf16 %v905
        %v938 = vunpack.c.l.bf16 %v906
        %v939 = vunpack.c.l.bf16 %v907
        %v940 = vunpack.c.l.bf16 %v908
        %v941 = vunpack.c.l.bf16 %v909
        %v942 = vunpack.c.l.bf16 %v910
        %v943 = vadd.f32 %v847, %v911
        %v944 = vadd.f32 %v848, %v912
        %v945 = vadd.f32 %v849, %v913
        %v946 = vadd.f32 %v850, %v914
        %v947 = vadd.f32 %v851, %v915
        %v948 = vadd.f32 %v852, %v916
        %v949 = vadd.f32 %v853, %v917
        %v950 = vadd.f32 %v854, %v918
        %v951 = vadd.f32 %v855, %v919
        %v952 = vadd.f32 %v856, %v920
        %v953 = vadd.f32 %v857, %v921
        %v954 = vadd.f32 %v858, %v922
        %v955 = vadd.f32 %v859, %v923
        %v956 = vadd.f32 %v860, %v924
        %v957 = vadd.f32 %v861, %v925
        %v958 = vadd.f32 %v862, %v926
        %v959 = vadd.f32 %v863, %v927
        %v960 = vadd.f32 %v864, %v928
        %v961 = vadd.f32 %v865, %v929
        %v962 = vadd.f32 %v866, %v930
        %v963 = vadd.f32 %v867, %v931
        %v964 = vadd.f32 %v868, %v932
        %v965 = vadd.f32 %v869, %v933
        %v966 = vadd.f32 %v870, %v934
        %v967 = vadd.f32 %v871, %v935
        %v968 = vadd.f32 %v872, %v936
        %v969 = vadd.f32 %v873, %v937
        %v970 = vadd.f32 %v874, %v938
        %v971 = vadd.f32 %v875, %v939
        %v972 = vadd.f32 %v876, %v940
        %v973 = vadd.f32 %v877, %v941
        %v974 = vadd.f32 %v878, %v942
        %vm975 = vcmp.ge.f32.partialorder %v943, 0.0
        %vm976 = vcmp.ge.f32.partialorder %v944, 0.0
        %vm977 = vcmp.ge.f32.partialorder %v945, 0.0
        %vm978 = vcmp.ge.f32.partialorder %v946, 0.0
        %vm979 = vcmp.ge.f32.partialorder %v947, 0.0
        %vm980 = vcmp.ge.f32.partialorder %v948, 0.0
        %vm981 = vcmp.ge.f32.partialorder %v949, 0.0
        %vm982 = vcmp.ge.f32.partialorder %v950, 0.0
        %vm983 = vcmp.ge.f32.partialorder %v951, 0.0
        %vm984 = vcmp.ge.f32.partialorder %v952, 0.0
        %vm985 = vcmp.ge.f32.partialorder %v953, 0.0
        %vm986 = vcmp.ge.f32.partialorder %v954, 0.0
        %vm987 = vcmp.ge.f32.partialorder %v955, 0.0
        %vm988 = vcmp.ge.f32.partialorder %v956, 0.0
        %vm989 = vcmp.ge.f32.partialorder %v957, 0.0
        %vm990 = vcmp.ge.f32.partialorder %v958, 0.0
        %vm991 = vcmp.ge.f32.partialorder %v959, 0.0
        %vm992 = vcmp.ge.f32.partialorder %v960, 0.0
        %vm993 = vcmp.ge.f32.partialorder %v961, 0.0
        %vm994 = vcmp.ge.f32.partialorder %v962, 0.0
        %vm995 = vcmp.ge.f32.partialorder %v963, 0.0
        %vm996 = vcmp.ge.f32.partialorder %v964, 0.0
        %vm997 = vcmp.ge.f32.partialorder %v965, 0.0
        %vm998 = vcmp.ge.f32.partialorder %v966, 0.0
        %vm999 = vcmp.ge.f32.partialorder %v967, 0.0
        %vm1000 = vcmp.ge.f32.partialorder %v968, 0.0
        %vm1001 = vcmp.ge.f32.partialorder %v969, 0.0
        %vm1002 = vcmp.ge.f32.partialorder %v970, 0.0
        %vm1003 = vcmp.ge.f32.partialorder %v971, 0.0
        %vm1004 = vcmp.ge.f32.partialorder %v972, 0.0
        %vm1005 = vcmp.ge.f32.partialorder %v973, 0.0
        %vm1006 = vcmp.ge.f32.partialorder %v974, 0.0
        %v1007 = vmul.f32 %v943, 0.25
        %v1008 = vmul.f32 %v944, 0.25
        %v1009 = vmul.f32 %v945, 0.25
        %v1010 = vmul.f32 %v946, 0.25
        %v1011 = vmul.f32 %v947, 0.25
        %v1012 = vmul.f32 %v948, 0.25
        %v1013 = vmul.f32 %v949, 0.25
        %v1014 = vmul.f32 %v950, 0.25
        %v1015 = vmul.f32 %v951, 0.25
        %v1016 = vmul.f32 %v952, 0.25
        %v1017 = vmul.f32 %v953, 0.25
        %v1018 = vmul.f32 %v954, 0.25
        %v1019 = vmul.f32 %v955, 0.25
        %v1020 = vmul.f32 %v956, 0.25
        %v1021 = vmul.f32 %v957, 0.25
        %v1022 = vmul.f32 %v958, 0.25
        %v1023 = vmul.f32 %v959, 0.25
        %v1024 = vmul.f32 %v960, 0.25
        %v1025 = vmul.f32 %v961, 0.25
        %v1026 = vmul.f32 %v962, 0.25
        %v1027 = vmul.f32 %v963, 0.25
        %v1028 = vmul.f32 %v964, 0.25
        %v1029 = vmul.f32 %v965, 0.25
        %v1030 = vmul.f32 %v966, 0.25
        %v1031 = vmul.f32 %v967, 0.25
        %v1032 = vmul.f32 %v968, 0.25
        %v1033 = vmul.f32 %v969, 0.25
        %v1034 = vmul.f32 %v970, 0.25
        %v1035 = vmul.f32 %v971, 0.25
        %v1036 = vmul.f32 %v972, 0.25
        %v1037 = vmul.f32 %v973, 0.25
        %v1038 = vmul.f32 %v974, 0.25
        %v1039 = vsel %vm975, %v943, %v1007
        %v1040 = vsel %vm976, %v944, %v1008
        %v1041 = vsel %vm977, %v945, %v1009
        %v1042 = vsel %vm978, %v946, %v1010
        %v1043 = vsel %vm979, %v947, %v1011
        %v1044 = vsel %vm980, %v948, %v1012
        %v1045 = vsel %vm981, %v949, %v1013
        %v1046 = vsel %vm982, %v950, %v1014
        %v1047 = vsel %vm983, %v951, %v1015
        %v1048 = vsel %vm984, %v952, %v1016
        %v1049 = vsel %vm985, %v953, %v1017
        %v1050 = vsel %vm986, %v954, %v1018
        %v1051 = vsel %vm987, %v955, %v1019
        %v1052 = vsel %vm988, %v956, %v1020
        %v1053 = vsel %vm989, %v957, %v1021
        %v1054 = vsel %vm990, %v958, %v1022
        %v1055 = vsel %vm991, %v959, %v1023
        %v1056 = vsel %vm992, %v960, %v1024
        %v1057 = vsel %vm993, %v961, %v1025
        %v1058 = vsel %vm994, %v962, %v1026
        %v1059 = vsel %vm995, %v963, %v1027
        %v1060 = vsel %vm996, %v964, %v1028
        %v1061 = vsel %vm997, %v965, %v1029
        %v1062 = vsel %vm998, %v966, %v1030
        %v1063 = vsel %vm999, %v967, %v1031
        %v1064 = vsel %vm1000, %v968, %v1032
        %v1065 = vsel %vm1001, %v969, %v1033
        %v1066 = vsel %vm1002, %v970, %v1034
        %v1067 = vsel %vm1003, %v971, %v1035
        %v1068 = vsel %vm1004, %v972, %v1036
        %v1069 = vsel %vm1005, %v973, %v1037
        %v1070 = vsel %vm1006, %v974, %v1038
        %v1071 = vpack.c.bf16 %v1040, %v1039
        %v1072 = vpack.c.bf16 %v1042, %v1041
        %v1073 = vpack.c.bf16 %v1044, %v1043
        %v1074 = vpack.c.bf16 %v1046, %v1045
        %v1075 = vpack.c.bf16 %v1048, %v1047
        %v1076 = vpack.c.bf16 %v1050, %v1049
        %v1077 = vpack.c.bf16 %v1052, %v1051
        %v1078 = vpack.c.bf16 %v1054, %v1053
        %v1079 = vpack.c.bf16 %v1056, %v1055
        %v1080 = vpack.c.bf16 %v1058, %v1057
        %v1081 = vpack.c.bf16 %v1060, %v1059
        %v1082 = vpack.c.bf16 %v1062, %v1061
        %v1083 = vpack.c.bf16 %v1064, %v1063
        %v1084 = vpack.c.bf16 %v1066, %v1065
        %v1085 = vpack.c.bf16 %v1068, %v1067
        %v1086 = vpack.c.bf16 %v1070, %v1069
        %v1103 = vunpack.c.l.b16 %v1071
        %v1104 = vunpack.c.h.b16 %v1071
        %v1105 = vunpack.c.l.b16 %v1072
        %v1106 = vunpack.c.h.b16 %v1072
        %v1107 = vunpack.c.l.b16 %v1073
        %v1108 = vunpack.c.h.b16 %v1073
        %v1109 = vunpack.c.l.b16 %v1074
        %v1110 = vunpack.c.h.b16 %v1074
        %v1111 = vunpack.c.l.b16 %v1075
        %v1112 = vunpack.c.h.b16 %v1075
        %v1113 = vunpack.c.l.b16 %v1076
        %v1114 = vunpack.c.h.b16 %v1076
        %v1115 = vunpack.c.l.b16 %v1077
        %v1116 = vunpack.c.h.b16 %v1077
        %v1117 = vunpack.c.l.b16 %v1078
        %v1118 = vunpack.c.h.b16 %v1078
        %v1119 = vunpack.c.l.b16 %v1079
        %v1120 = vunpack.c.h.b16 %v1079
        %v1121 = vunpack.c.l.b16 %v1080
        %v1122 = vunpack.c.h.b16 %v1080
        %v1123 = vunpack.c.l.b16 %v1081
        %v1124 = vunpack.c.h.b16 %v1081
        %v1125 = vunpack.c.l.b16 %v1082
        %v1126 = vunpack.c.h.b16 %v1082
        %v1127 = vunpack.c.l.b16 %v1083
        %v1128 = vunpack.c.h.b16 %v1083
        %v1129 = vunpack.c.l.b16 %v1084
        %v1130 = vunpack.c.h.b16 %v1084
        %v1131 = vunpack.c.l.b16 %v1085
        %v1132 = vunpack.c.h.b16 %v1085
        %v1133 = vunpack.c.l.b16 %v1086
        %v1134 = vunpack.c.h.b16 %v1086
        %v1135 = vpack.c.b16 %v1103, %v1103
        %v1136 = vpack.c.b16 %v1104, %v1104
        %v1137 = vpack.c.b16 %v1105, %v1105
        %v1138 = vpack.c.b16 %v1106, %v1106
        %v1139 = vpack.c.b16 %v1107, %v1107
        %v1140 = vpack.c.b16 %v1108, %v1108
        %v1141 = vpack.c.b16 %v1109, %v1109
        %v1142 = vpack.c.b16 %v1110, %v1110
        %v1143 = vpack.c.b16 %v1111, %v1111
        %v1144 = vpack.c.b16 %v1112, %v1112
        %v1145 = vpack.c.b16 %v1113, %v1113
        %v1146 = vpack.c.b16 %v1114, %v1114
        %v1147 = vpack.c.b16 %v1115, %v1115
        %v1148 = vpack.c.b16 %v1116, %v1116
        %v1149 = vpack.c.b16 %v1117, %v1117
        %v1150 = vpack.c.b16 %v1118, %v1118
        %v1151 = vpack.c.b16 %v1119, %v1119
        %v1152 = vpack.c.b16 %v1120, %v1120
        %v1153 = vpack.c.b16 %v1121, %v1121
        %v1154 = vpack.c.b16 %v1122, %v1122
        %v1155 = vpack.c.b16 %v1123, %v1123
        %v1156 = vpack.c.b16 %v1124, %v1124
        %v1157 = vpack.c.b16 %v1125, %v1125
        %v1158 = vpack.c.b16 %v1126, %v1126
        %v1159 = vpack.c.b16 %v1127, %v1127
        %v1160 = vpack.c.b16 %v1128, %v1128
        %v1161 = vpack.c.b16 %v1129, %v1129
        %v1162 = vpack.c.b16 %v1130, %v1130
        %v1163 = vpack.c.b16 %v1131, %v1131
        %v1164 = vpack.c.b16 %v1132, %v1132
        %v1165 = vpack.c.b16 %v1133, %v1133
        %v1166 = vpack.c.b16 %v1134, %v1134
        %1199 = vst [vmem:[%s317] sm:$0xf] %v1135
        %1200 = vst [vmem:[%s317 + $0x4] sm:$0xf] %v1136
        %1201 = vst [vmem:[%s317 + $0x8] sm:$0xf] %v1137
        %1202 = vst [vmem:[%s317 + $0xc] sm:$0xf] %v1138
        %1203 = vst [vmem:[%s317 + $0x10] sm:$0xf] %v1139
        %1204 = vst [vmem:[%s317 + $0x14] sm:$0xf] %v1140
        %1205 = vst [vmem:[%s317 + $0x18] sm:$0xf] %v1141
        %1206 = vst [vmem:[%s317 + $0x1c] sm:$0xf] %v1142
        %1207 = vst [vmem:[%s317 + $0x20] sm:$0xf] %v1143
        %1208 = vst [vmem:[%s317 + $0x24] sm:$0xf] %v1144
        %1209 = vst [vmem:[%s317 + $0x28] sm:$0xf] %v1145
        %1210 = vst [vmem:[%s317 + $0x2c] sm:$0xf] %v1146
        %1211 = vst [vmem:[%s317 + $0x30] sm:$0xf] %v1147
        %1212 = vst [vmem:[%s317 + $0x34] sm:$0xf] %v1148
        %1213 = vst [vmem:[%s317 + $0x38] sm:$0xf] %v1149
        %1214 = vst [vmem:[%s317 + $0x3c] sm:$0xf] %v1150
        %1215 = vst [vmem:[%s317 + $0x40] sm:$0xf] %v1151
        %1216 = vst [vmem:[%s317 + $0x44] sm:$0xf] %v1152
        %1217 = vst [vmem:[%s317 + $0x48] sm:$0xf] %v1153
        %1218 = vst [vmem:[%s317 + $0x4c] sm:$0xf] %v1154
        %1219 = vst [vmem:[%s317 + $0x50] sm:$0xf] %v1155
        %1220 = vst [vmem:[%s317 + $0x54] sm:$0xf] %v1156
        %1221 = vst [vmem:[%s317 + $0x58] sm:$0xf] %v1157
        %1222 = vst [vmem:[%s317 + $0x5c] sm:$0xf] %v1158
        %1223 = vst [vmem:[%s317 + $0x60] sm:$0xf] %v1159
        %1224 = vst [vmem:[%s317 + $0x64] sm:$0xf] %v1160
        %1225 = vst [vmem:[%s317 + $0x68] sm:$0xf] %v1161
        %1226 = vst [vmem:[%s317 + $0x6c] sm:$0xf] %v1162
        %1227 = vst [vmem:[%s317 + $0x70] sm:$0xf] %v1163
        %1228 = vst [vmem:[%s317 + $0x74] sm:$0xf] %v1164
        %1229 = vst [vmem:[%s317 + $0x78] sm:$0xf] %v1165
        %1230 = vst [vmem:[%s317 + $0x7c] sm:$0xf] %v1166
      $region44: #{lednet_forward.71} parent=35 // pred_fallthru
        _
      %s1231 = smul.u32 32, %s20
      %p1232 = scmp.lt.s32.totalorder %s1231, 63
      %s1233 = scalar_select %p1232, %s1231, 63
      %p1234 = scmp.lt.s32.totalorder %s21, 0
      %s1235 = scalar_select %p1234, %s21, 0
      %s1236 = sadd.s32 %s1235, %s1233
      %s1237 = smul.addr %s1236, 4
      %s1238 = scalar_lea.vmem %s4, %s1237
      // Predicated region
      $region45: #{lednet_forward.71} parent=35 // pred_check
        %p1239 = pneg %p164
      $region46: #{lednet_forward.71} parent=35 // pred_check_branch
        %1241 = sbr.rel (%p1239) target = $region48
      $region47: #{lednet_forward.71} parent=35 // pred_region
        %s1242 = smul.u32 32, %s20
      $region48: #{lednet_forward.71} parent=35 // pred_fallthru
        _
    $region36: #{lednet_forward.71} parent=5 // pred_fallthru
      _
    %p1243 = scmp.le.s32.totalorder 2, %s10
    // Predicated region
    $region49: #{lednet_forward.71} parent=5 // pred_check
      %p1244 = pneg %p1243
    $region50: #{lednet_forward.71} parent=5 // pred_check_branch
      %1246 = sbr.rel (%p1244) target = $region52
    $region51: #{lednet_forward.71} parent=5 // pred_region
      %s1247 = ssub.s32 %s10, 2
      // Predicated region
      $region53: #{lednet_forward.71} parent=51 // pred_check
        %p1248 = pneg %p170
      $region54: #{lednet_forward.71} parent=51 // pred_check_branch
        %1250 = sbr.rel (%p1248) target = $region56
      $region55: #{lednet_forward.71} parent=51 // pred_region
        %s1251 = smul.u32 32, %s23
        %p1252 = scmp.lt.s32.totalorder %s1251, 63
        %s1253 = scalar_select %p1252, %s1251, 63
        %p1254 = scmp.lt.s32.totalorder %s24, 0
        %s1255 = scalar_select %p1254, %s24, 0
        %s1256 = sadd.s32 %s1255, %s1253
        %s1257 = smul.addr %s1256, 4
        %s1258 = scalar_lea.vmem %s4, %s1257
      $region56: #{lednet_forward.71} parent=51 // pred_fallthru
        _
    $region52: #{lednet_forward.71} parent=5 // pred_fallthru
      _
  $region6: #{lednet_forward.71} parent=0 // loop_footer
    %s14 = sadd.s32 1, %s10
  $region7: #{lednet_forward.71} parent=0 // loop_footer_branch
    %9 = sbr.rel target = $region3
  $region8: #{lednet_forward.71} parent=0 // loop_exit
    _

// kernel: lednet_forward.81
$region0: #{lednet_forward.81}
  #allocation0 [shape = 'u32[]', space=smem, size = 0x4, offset = 0x4, fixed_abs, tag = 'smem constant byte address 0x4 - core index']
  #allocation1 [shape = 'u32[144,128]{1,0:T(1,128)}', space=vmem, size = 0x12000, scoped, tag = 'internal scratch']
  %s0 = inlined_call_operand.vmem [shape: bf16[128,128], index: 0, kind: input, shape index: {}]
  %s1 = inlined_call_operand.vmem [shape: bf16[128,128], index: 1, kind: input, shape index: {}]
  %s2 = inlined_call_operand.vmem [shape: bf16[128,128], index: 2, kind: input, shape index: {}]
  %s3 = inlined_call_operand.vmem [shape: bf16[128,128], index: 3, kind: input, shape index: {}]
  %s4 = inlined_call_operand.vmem [shape: f32[1,128], index: 4, kind: input, shape index: {}]
  %s5 = inlined_call_operand.vmem [shape: f32[1,128], index: 5, kind: input, shape index: {}]
  %s6 = inlined_call_operand.vmem [shape: bf16[128,128], index: 6, kind: output, shape index: {}]
  %s7 = sld [smem:[#allocation0]]
  $region34: #{lednet_forward.81} parent=0
    _
  %s9 = ssub.s32 1, %s7
  %s10 = scalar_select 0, %s9, %s7
  // Predicated region
  $region2: #{lednet_forward.81} parent=0 // pred_check
    _
  $region3: #{lednet_forward.81} parent=0 // pred_check_branch
    %12 = sbr.rel (0) target = $region5
  $region4: #{lednet_forward.81} parent=0 // pred_region
    _
  $region5: #{lednet_forward.81} parent=0 // pred_fallthru
    _
  // Predicated region
  $region6: #{lednet_forward.81} parent=0 // pred_check
    _
  $region7: #{lednet_forward.81} parent=0 // pred_check_branch
    %14 = sbr.rel (0) target = $region9
  $region8: #{lednet_forward.81} parent=0 // pred_region
    _
  $region9: #{lednet_forward.81} parent=0 // pred_fallthru
    _
  // Predicated region
  $region10: #{lednet_forward.81} parent=0 // pred_check
    _
  $region11: #{lednet_forward.81} parent=0 // pred_check_branch
    %16 = sbr.rel (0) target = $region13
  $region12: #{lednet_forward.81} parent=0 // pred_region
    _
  $region13: #{lednet_forward.81} parent=0 // pred_fallthru
    _
  // Predicated region
  $region14: #{lednet_forward.81} parent=0 // pred_check
    _
  $region15: #{lednet_forward.81} parent=0 // pred_check_branch
    %18 = sbr.rel (0) target = $region17
  $region16: #{lednet_forward.81} parent=0 // pred_region
    _
  $region17: #{lednet_forward.81} parent=0 // pred_fallthru
    _
  // Predicated region
  $region18: #{lednet_forward.81} parent=0 // pred_check
    _
  $region19: #{lednet_forward.81} parent=0 // pred_check_branch
    %20 = sbr.rel (0) target = $region21
  $region20: #{lednet_forward.81} parent=0 // pred_region
    _
  $region21: #{lednet_forward.81} parent=0 // pred_fallthru
    _
  // Predicated region
  $region22: #{lednet_forward.81} parent=0 // pred_check
    _
  $region23: #{lednet_forward.81} parent=0 // pred_check_branch
    %22 = sbr.rel (0) target = $region25
  $region24: #{lednet_forward.81} parent=0 // pred_region
    _
  $region25: #{lednet_forward.81} parent=0 // pred_fallthru
    _
  %v23 = vld [vmem:[%s0] sm:$0xf]
  %v24 = vld [vmem:[%s0 + $0x4] sm:$0xf]
  %v25 = vld [vmem:[%s0 + $0x8] sm:$0xf]
  %v26 = vld [vmem:[%s0 + $0xc] sm:$0xf]
  %v27 = vld [vmem:[%s0 + $0x10] sm:$0xf]
  %v28 = vld [vmem:[%s0 + $0x14] sm:$0xf]
  %v29 = vld [vmem:[%s0 + $0x18] sm:$0xf]
  %v30 = vld [vmem:[%s0 + $0x1c] sm:$0xf]
  %v31 = vld [vmem:[%s0 + $0x20] sm:$0xf]
  %v32 = vld [vmem:[%s0 + $0x24] sm:$0xf]
  %v33 = vld [vmem:[%s0 + $0x28] sm:$0xf]
  %v34 = vld [vmem:[%s0 + $0x2c] sm:$0xf]
  %v35 = vld [vmem:[%s0 + $0x30] sm:$0xf]
  %v36 = vld [vmem:[%s0 + $0x34] sm:$0xf]
  %v37 = vld [vmem:[%s0 + $0x38] sm:$0xf]
  %v38 = vld [vmem:[%s0 + $0x3c] sm:$0xf]
  %v39 = vld [vmem:[%s1] sm:$0xf]
  %v40 = vld [vmem:[%s1 + $0x4] sm:$0xf]
  %v41 = vld [vmem:[%s1 + $0x8] sm:$0xf]
  %v42 = vld [vmem:[%s1 + $0xc] sm:$0xf]
  %v43 = vld [vmem:[%s1 + $0x10] sm:$0xf]
  %v44 = vld [vmem:[%s1 + $0x14] sm:$0xf]
  %v45 = vld [vmem:[%s1 + $0x18] sm:$0xf]
  %v46 = vld [vmem:[%s1 + $0x1c] sm:$0xf]
  %v47 = vld [vmem:[%s1 + $0x20] sm:$0xf]
  %v48 = vld [vmem:[%s1 + $0x24] sm:$0xf]
  %v49 = vld [vmem:[%s1 + $0x28] sm:$0xf]
  %v50 = vld [vmem:[%s1 + $0x2c] sm:$0xf]
  %v51 = vld [vmem:[%s1 + $0x30] sm:$0xf]
  %v52 = vld [vmem:[%s1 + $0x34] sm:$0xf]
  %v53 = vld [vmem:[%s1 + $0x38] sm:$0xf]
  %v54 = vld [vmem:[%s1 + $0x3c] sm:$0xf]
  %v55 = vmax.bf16 %v23, %v39
  %v56 = vmax.bf16 %v24, %v40
  %v57 = vmax.bf16 %v25, %v41
  %v58 = vmax.bf16 %v26, %v42
  %v59 = vmax.bf16 %v27, %v43
  %v60 = vmax.bf16 %v28, %v44
  %v61 = vmax.bf16 %v29, %v45
  %v62 = vmax.bf16 %v30, %v46
  %v63 = vmax.bf16 %v31, %v47
  %v64 = vmax.bf16 %v32, %v48
  %v65 = vmax.bf16 %v33, %v49
  %v66 = vmax.bf16 %v34, %v50
  %v67 = vmax.bf16 %v35, %v51
  %v68 = vmax.bf16 %v36, %v52
  %v69 = vmax.bf16 %v37, %v53
  %v70 = vmax.bf16 %v38, %v54
  %v71 = vld [vmem:[%s2] sm:$0xf]
  %v72 = vld [vmem:[%s2 + $0x4] sm:$0xf]
  %v73 = vld [vmem:[%s2 + $0x8] sm:$0xf]
  %v74 = vld [vmem:[%s2 + $0xc] sm:$0xf]
  %v75 = vld [vmem:[%s2 + $0x10] sm:$0xf]
  %v76 = vld [vmem:[%s2 + $0x14] sm:$0xf]
  %v77 = vld [vmem:[%s2 + $0x18] sm:$0xf]
  %v78 = vld [vmem:[%s2 + $0x1c] sm:$0xf]
  %v79 = vld [vmem:[%s2 + $0x20] sm:$0xf]
  %v80 = vld [vmem:[%s2 + $0x24] sm:$0xf]
  %v81 = vld [vmem:[%s2 + $0x28] sm:$0xf]
  %v82 = vld [vmem:[%s2 + $0x2c] sm:$0xf]
  %v83 = vld [vmem:[%s2 + $0x30] sm:$0xf]
  %v84 = vld [vmem:[%s2 + $0x34] sm:$0xf]
  %v85 = vld [vmem:[%s2 + $0x38] sm:$0xf]
  %v86 = vld [vmem:[%s2 + $0x3c] sm:$0xf]
  %v87 = vld [vmem:[%s3] sm:$0xf]
  %v88 = vld [vmem:[%s3 + $0x4] sm:$0xf]
  %v89 = vld [vmem:[%s3 + $0x8] sm:$0xf]
  %v90 = vld [vmem:[%s3 + $0xc] sm:$0xf]
  %v91 = vld [vmem:[%s3 + $0x10] sm:$0xf]
  %v92 = vld [vmem:[%s3 + $0x14] sm:$0xf]
  %v93 = vld [vmem:[%s3 + $0x18] sm:$0xf]
  %v94 = vld [vmem:[%s3 + $0x1c] sm:$0xf]
  %v95 = vld [vmem:[%s3 + $0x20] sm:$0xf]
  %v96 = vld [vmem:[%s3 + $0x24] sm:$0xf]
  %v97 = vld [vmem:[%s3 + $0x28] sm:$0xf]
  %v98 = vld [vmem:[%s3 + $0x2c] sm:$0xf]
  %v99 = vld [vmem:[%s3 + $0x30] sm:$0xf]
  %v100 = vld [vmem:[%s3 + $0x34] sm:$0xf]
  %v101 = vld [vmem:[%s3 + $0x38] sm:$0xf]
  %v102 = vld [vmem:[%s3 + $0x3c] sm:$0xf]
  %v103 = vmax.bf16 %v71, %v87
  %v104 = vmax.bf16 %v72, %v88
  %v105 = vmax.bf16 %v73, %v89
  %v106 = vmax.bf16 %v74, %v90
  %v107 = vmax.bf16 %v75, %v91
  %v108 = vmax.bf16 %v76, %v92
  %v109 = vmax.bf16 %v77, %v93
  %v110 = vmax.bf16 %v78, %v94
  %v111 = vmax.bf16 %v79, %v95
  %v112 = vmax.bf16 %v80, %v96
  %v113 = vmax.bf16 %v81, %v97
  %v114 = vmax.bf16 %v82, %v98
  %v115 = vmax.bf16 %v83, %v99
  %v116 = vmax.bf16 %v84, %v100
  %v117 = vmax.bf16 %v85, %v101
  %v118 = vmax.bf16 %v86, %v102
  %v119 = vmax.bf16 %v55, %v103
  %v120 = vmax.bf16 %v56, %v104
  %v121 = vmax.bf16 %v57, %v105
  %v122 = vmax.bf16 %v58, %v106
  %v123 = vmax.bf16 %v59, %v107
  %v124 = vmax.bf16 %v60, %v108
  %v125 = vmax.bf16 %v61, %v109
  %v126 = vmax.bf16 %v62, %v110
  %v127 = vmax.bf16 %v63, %v111
  %v128 = vmax.bf16 %v64, %v112
  %v129 = vmax.bf16 %v65, %v113
  %v130 = vmax.bf16 %v66, %v114
  %v131 = vmax.bf16 %v67, %v115
  %v132 = vmax.bf16 %v68, %v116
  %v133 = vmax.bf16 %v69, %v117
  %v134 = vmax.bf16 %v70, %v118
  %v135 = vunpack.c.l.bf16 %v119
  %v136 = vunpack.c.l.bf16 %v120
  %v137 = vunpack.c.l.bf16 %v121
  %v138 = vunpack.c.l.bf16 %v122
  %v139 = vunpack.c.l.bf16 %v123
  %v140 = vunpack.c.l.bf16 %v124
  %v141 = vunpack.c.l.bf16 %v125
  %v142 = vunpack.c.l.bf16 %v126
  %v143 = vunpack.c.l.bf16 %v127
  %v144 = vunpack.c.l.bf16 %v128
  %v145 = vunpack.c.l.bf16 %v129
  %v146 = vunpack.c.l.bf16 %v130
  %v147 = vunpack.c.l.bf16 %v131
  %v148 = vunpack.c.l.bf16 %v132
  %v149 = vunpack.c.l.bf16 %v133
  %v150 = vunpack.c.l.bf16 %v134
  %v151 = vld [vmem:[%s4] sm:$0x1]
  %v153 = vlaneseq
  %v154 = vshrl.u32 %v153, 7
  %v155 = vsub.s32 0, %v154
  %v156 = vrot.slane %v151, %v155
  %v158 = vmul.f32 %v135, %v156
  %v159 = vmul.f32 %v136, %v156
  %v160 = vmul.f32 %v137, %v156
  %v161 = vmul.f32 %v138, %v156
  %v162 = vmul.f32 %v139, %v156
  %v163 = vmul.f32 %v140, %v156
  %v164 = vmul.f32 %v141, %v156
  %v165 = vmul.f32 %v142, %v156
  %v166 = vmul.f32 %v143, %v156
  %v167 = vmul.f32 %v144, %v156
  %v168 = vmul.f32 %v145, %v156
  %v169 = vmul.f32 %v146, %v156
  %v170 = vmul.f32 %v147, %v156
  %v171 = vmul.f32 %v148, %v156
  %v172 = vmul.f32 %v149, %v156
  %v173 = vmul.f32 %v150, %v156
  %v174 = vld [vmem:[%s5] sm:$0x1]
  %v176 = vlaneseq
  %v177 = vshrl.u32 %v176, 7
  %v178 = vsub.s32 0, %v177
  %v179 = vrot.slane %v174, %v178
  %v181 = vadd.f32 %v158, %v179
  %v182 = vadd.f32 %v159, %v179
  %v183 = vadd.f32 %v160, %v179
  %v184 = vadd.f32 %v161, %v179
  %v185 = vadd.f32 %v162, %v179
  %v186 = vadd.f32 %v163, %v179
  %v187 = vadd.f32 %v164, %v179
  %v188 = vadd.f32 %v165, %v179
  %v189 = vadd.f32 %v166, %v179
  %v190 = vadd.f32 %v167, %v179
  %v191 = vadd.f32 %v168, %v179
  %v192 = vadd.f32 %v169, %v179
  %v193 = vadd.f32 %v170, %v179
  %v194 = vadd.f32 %v171, %v179
  %v195 = vadd.f32 %v172, %v179
  %v196 = vadd.f32 %v173, %v179
  %vm197 = vcmp.ge.f32.partialorder %v181, 0.0
  %vm198 = vcmp.ge.f32.partialorder %v182, 0.0
  %vm199 = vcmp.ge.f32.partialorder %v183, 0.0
  %vm200 = vcmp.ge.f32.partialorder %v184, 0.0
  %vm201 = vcmp.ge.f32.partialorder %v185, 0.0
  %vm202 = vcmp.ge.f32.partialorder %v186, 0.0
  %vm203 = vcmp.ge.f32.partialorder %v187, 0.0
  %vm204 = vcmp.ge.f32.partialorder %v188, 0.0
  %vm205 = vcmp.ge.f32.partialorder %v189, 0.0
  %vm206 = vcmp.ge.f32.partialorder %v190, 0.0
  %vm207 = vcmp.ge.f32.partialorder %v191, 0.0
  %vm208 = vcmp.ge.f32.partialorder %v192, 0.0
  %vm209 = vcmp.ge.f32.partialorder %v193, 0.0
  %vm210 = vcmp.ge.f32.partialorder %v194, 0.0
  %vm211 = vcmp.ge.f32.partialorder %v195, 0.0
  %vm212 = vcmp.ge.f32.partialorder %v196, 0.0
  %v213 = vmul.f32 %v181, 0.25
  %v214 = vmul.f32 %v182, 0.25
  %v215 = vmul.f32 %v183, 0.25
  %v216 = vmul.f32 %v184, 0.25
  %v217 = vmul.f32 %v185, 0.25
  %v218 = vmul.f32 %v186, 0.25
  %v219 = vmul.f32 %v187, 0.25
  %v220 = vmul.f32 %v188, 0.25
  %v221 = vmul.f32 %v189, 0.25
  %v222 = vmul.f32 %v190, 0.25
  %v223 = vmul.f32 %v191, 0.25
  %v224 = vmul.f32 %v192, 0.25
  %v225 = vmul.f32 %v193, 0.25
  %v226 = vmul.f32 %v194, 0.25
  %v227 = vmul.f32 %v195, 0.25
  %v228 = vmul.f32 %v196, 0.25
  %v229 = vsel %vm197, %v181, %v213
  %v230 = vsel %vm198, %v182, %v214
  %v231 = vsel %vm199, %v183, %v215
  %v232 = vsel %vm200, %v184, %v216
  %v233 = vsel %vm201, %v185, %v217
  %v234 = vsel %vm202, %v186, %v218
  %v235 = vsel %vm203, %v187, %v219
  %v236 = vsel %vm204, %v188, %v220
  %v237 = vsel %vm205, %v189, %v221
  %v238 = vsel %vm206, %v190, %v222
  %v239 = vsel %vm207, %v191, %v223
  %v240 = vsel %vm208, %v192, %v224
  %v241 = vsel %vm209, %v193, %v225
  %v242 = vsel %vm210, %v194, %v226
  %v243 = vsel %vm211, %v195, %v227
  %v244 = vsel %vm212, %v196, %v228
  %v245 = vpack.c.bf16 %v230, %v229
  %v246 = vpack.c.bf16 %v232, %v231
  %v247 = vpack.c.bf16 %v234, %v233
  %v248 = vpack.c.bf16 %v236, %v235
  %v249 = vpack.c.bf16 %v238, %v237
  %v250 = vpack.c.bf16 %v240, %v239
  %v251 = vpack.c.bf16 %v242, %v241
  %v252 = vpack.c.bf16 %v244, %v243
  %v261 = vunpack.c.l.b16 %v245
  %v262 = vunpack.c.h.b16 %v245
  %v263 = vunpack.c.l.b16 %v246
  %v264 = vunpack.c.h.b16 %v246
  %v265 = vunpack.c.l.b16 %v247
  %v266 = vunpack.c.h.b16 %v247
  %v267 = vunpack.c.l.b16 %v248
  %v268 = vunpack.c.h.b16 %v248
  %v269 = vunpack.c.l.b16 %v249
  %v270 = vunpack.c.h.b16 %v249
  %v271 = vunpack.c.l.b16 %v250
  %v272 = vunpack.c.h.b16 %v250
  %v273 = vunpack.c.l.b16 %v251
  %v274 = vunpack.c.h.b16 %v251
  %v275 = vunpack.c.l.b16 %v252
  %v276 = vunpack.c.h.b16 %v252
  %v277 = vpack.c.b16 %v261, %v261
  %v278 = vpack.c.b16 %v262, %v262
  %v279 = vpack.c.b16 %v263, %v263
  %v280 = vpack.c.b16 %v264, %v264
  %v281 = vpack.c.b16 %v265, %v265
  %v282 = vpack.c.b16 %v266, %v266
  %v283 = vpack.c.b16 %v267, %v267
  %v284 = vpack.c.b16 %v268, %v268
  %v285 = vpack.c.b16 %v269, %v269
  %v286 = vpack.c.b16 %v270, %v270
  %v287 = vpack.c.b16 %v271, %v271
  %v288 = vpack.c.b16 %v272, %v272
  %v289 = vpack.c.b16 %v273, %v273
  %v290 = vpack.c.b16 %v274, %v274
  %v291 = vpack.c.b16 %v275, %v275
  %v292 = vpack.c.b16 %v276, %v276
  %309 = vst [vmem:[%s6] sm:$0xf] %v277
  %310 = vst [vmem:[%s6 + $0x4] sm:$0xf] %v278
  %311 = vst [vmem:[%s6 + $0x8] sm:$0xf] %v279
  %312 = vst [vmem:[%s6 + $0xc] sm:$0xf] %v280
  %313 = vst [vmem:[%s6 + $0x10] sm:$0xf] %v281
  %314 = vst [vmem:[%s6 + $0x14] sm:$0xf] %v282
  %315 = vst [vmem:[%s6 + $0x18] sm:$0xf] %v283
  %316 = vst [vmem:[%s6 + $0x1c] sm:$0xf] %v284
  %317 = vst [vmem:[%s6 + $0x20] sm:$0xf] %v285
  %318 = vst [vmem:[%s6 + $0x24] sm:$0xf] %v286
  %319 = vst [vmem:[%s6 + $0x28] sm:$0xf] %v287
  %320 = vst [vmem:[%s6 + $0x2c] sm:$0xf] %v288
  %321 = vst [vmem:[%s6 + $0x30] sm:$0xf] %v289
  %322 = vst [vmem:[%s6 + $0x34] sm:$0xf] %v290
  %323 = vst [vmem:[%s6 + $0x38] sm:$0xf] %v291
  %324 = vst [vmem:[%s6 + $0x3c] sm:$0xf] %v292
  // Predicated region
  $region26: #{lednet_forward.81} parent=0 // pred_check
    _
  $region27: #{lednet_forward.81} parent=0 // pred_check_branch
    %326 = sbr.rel (0) target = $region29
  $region28: #{lednet_forward.81} parent=0 // pred_region
    _
  $region29: #{lednet_forward.81} parent=0 // pred_fallthru
    _
  // Predicated region
  $region30: #{lednet_forward.81} parent=0 // pred_check
    _
  $region31: #{lednet_forward.81} parent=0 // pred_check_branch
    %328 = sbr.rel (0) target = $region33
  $region32: #{lednet_forward.81} parent=0 // pred_region
    _
  $region33: #{lednet_forward.81} parent=0 // pred_fallthru
    _

// kernel: lednet_forward.80
$region0: #{lednet_forward.80}
  #allocation0 [shape = 'u32[]', space=smem, size = 0x4, offset = 0x4, fixed_abs, tag = 'smem constant byte address 0x4 - core index']
  #allocation1 [shape = 'u32[144,128]{1,0:T(1,128)}', space=vmem, size = 0x12000, scoped, tag = 'internal scratch']
  #allocation2 [shape = 'f32[128,128]{1,0:T(8,128)}', space=vmem, size = 0x10000, scoped, tag = 'scratch operand']
  %s0 = inlined_call_operand.vmem [shape: bf16[128,384], index: 0, kind: input, shape index: {}]
  %s1 = inlined_call_operand.vmem [shape: bf16[384,128], index: 1, kind: input, shape index: {}]
  %s2 = inlined_call_operand.vmem [shape: f32[1,128], index: 2, kind: input, shape index: {}]
  %s3 = inlined_call_operand.vmem [shape: bf16[128,128], index: 3, kind: output, shape index: {}]
  %s4 = sld [smem:[#allocation0]]
  $region30: #{lednet_forward.80} parent=0
    _
  %s6 = ssub.s32 1, %s4
  %s7 = scalar_select 0, %s6, %s4
  // Predicated region
  $region2: #{lednet_forward.80} parent=0 // pred_check
    _
  $region3: #{lednet_forward.80} parent=0 // pred_check_branch
    %9 = sbr.rel (0) target = $region5
  $region4: #{lednet_forward.80} parent=0 // pred_region
    _
  $region5: #{lednet_forward.80} parent=0 // pred_fallthru
    _
  // Predicated region
  $region6: #{lednet_forward.80} parent=0 // pred_check
    _
  $region7: #{lednet_forward.80} parent=0 // pred_check_branch
    %11 = sbr.rel (0) target = $region9
  $region8: #{lednet_forward.80} parent=0 // pred_region
    _
  $region9: #{lednet_forward.80} parent=0 // pred_fallthru
    _
  // Predicated region
  $region10: #{lednet_forward.80} parent=0 // pred_check
    _
  $region11: #{lednet_forward.80} parent=0 // pred_check_branch
    %13 = sbr.rel (0) target = $region13
  $region12: #{lednet_forward.80} parent=0 // pred_region
    _
  $region13: #{lednet_forward.80} parent=0 // pred_fallthru
    _
  %p15 = scmp.eq.s32.totalorder 0, 0
  // Predicated region
  $region14: #{lednet_forward.80} parent=0 // pred_check
    %p16 = pneg %p15
  $region15: #{lednet_forward.80} parent=0 // pred_check_branch
    %18 = sbr.rel (%p16) target = $region17
  $region16: #{lednet_forward.80} parent=0 // pred_region
    %19 = vst [vmem:[#allocation2] sm:$0xff] 0.0
    %20 = vst [vmem:[#allocation2 + $0x8] sm:$0xff] 0.0
    %21 = vst [vmem:[#allocation2 + $0x10] sm:$0xff] 0.0
    %22 = vst [vmem:[#allocation2 + $0x18] sm:$0xff] 0.0
    %23 = vst [vmem:[#allocation2 + $0x20] sm:$0xff] 0.0
    %24 = vst [vmem:[#allocation2 + $0x28] sm:$0xff] 0.0
    %25 = vst [vmem:[#allocation2 + $0x30] sm:$0xff] 0.0
    %26 = vst [vmem:[#allocation2 + $0x38] sm:$0xff] 0.0
    %27 = vst [vmem:[#allocation2 + $0x40] sm:$0xff] 0.0
    %28 = vst [vmem:[#allocation2 + $0x48] sm:$0xff] 0.0
    %29 = vst [vmem:[#allocation2 + $0x50] sm:$0xff] 0.0
    %30 = vst [vmem:[#allocation2 + $0x58] sm:$0xff] 0.0
    %31 = vst [vmem:[#allocation2 + $0x60] sm:$0xff] 0.0
    %32 = vst [vmem:[#allocation2 + $0x68] sm:$0xff] 0.0
    %33 = vst [vmem:[#allocation2 + $0x70] sm:$0xff] 0.0
    %34 = vst [vmem:[#allocation2 + $0x78] sm:$0xff] 0.0
  $region17: #{lednet_forward.80} parent=0 // pred_fallthru
    _
  %v35 = vld [vmem:[#allocation2] sm:$0xff]
  %v36 = vld [vmem:[#allocation2 + $0x8] sm:$0xff]
  %v37 = vld [vmem:[#allocation2 + $0x10] sm:$0xff]
  %v38 = vld [vmem:[#allocation2 + $0x18] sm:$0xff]
  %v39 = vld [vmem:[#allocation2 + $0x20] sm:$0xff]
  %v40 = vld [vmem:[#allocation2 + $0x28] sm:$0xff]
  %v41 = vld [vmem:[#allocation2 + $0x30] sm:$0xff]
  %v42 = vld [vmem:[#allocation2 + $0x38] sm:$0xff]
  %v43 = vld [vmem:[#allocation2 + $0x40] sm:$0xff]
  %v44 = vld [vmem:[#allocation2 + $0x48] sm:$0xff]
  %v45 = vld [vmem:[#allocation2 + $0x50] sm:$0xff]
  %v46 = vld [vmem:[#allocation2 + $0x58] sm:$0xff]
  %v47 = vld [vmem:[#allocation2 + $0x60] sm:$0xff]
  %v48 = vld [vmem:[#allocation2 + $0x68] sm:$0xff]
  %v49 = vld [vmem:[#allocation2 + $0x70] sm:$0xff]
  %v50 = vld [vmem:[#allocation2 + $0x78] sm:$0xff]
  %v51 = vld [vmem:[%s0] sm:$0xff]
  %v52 = vld [vmem:[%s0 + $0x8] sm:$0xf]
  %v53 = vld [vmem:[%s0 + $0xc] sm:$0xff]
  %v54 = vld [vmem:[%s0 + $0x14] sm:$0xf]
  %v55 = vld [vmem:[%s0 + $0x18] sm:$0xff]
  %v56 = vld [vmem:[%s0 + $0x20] sm:$0xf]
  %v57 = vld [vmem:[%s0 + $0x24] sm:$0xff]
  %v58 = vld [vmem:[%s0 + $0x2c] sm:$0xf]
  %v59 = vld [vmem:[%s0 + $0x30] sm:$0xff]
  %v60 = vld [vmem:[%s0 + $0x38] sm:$0xf]
  %v61 = vld [vmem:[%s0 + $0x3c] sm:$0xff]
  %v62 = vld [vmem:[%s0 + $0x44] sm:$0xf]
  %v63 = vld [vmem:[%s0 + $0x48] sm:$0xff]
  %v64 = vld [vmem:[%s0 + $0x50] sm:$0xf]
  %v65 = vld [vmem:[%s0 + $0x54] sm:$0xff]
  %v66 = vld [vmem:[%s0 + $0x5c] sm:$0xf]
  %v67 = vld [vmem:[%s0 + $0x60] sm:$0xff]
  %v68 = vld [vmem:[%s0 + $0x68] sm:$0xf]
  %v69 = vld [vmem:[%s0 + $0x6c] sm:$0xff]
  %v70 = vld [vmem:[%s0 + $0x74] sm:$0xf]
  %v71 = vld [vmem:[%s0 + $0x78] sm:$0xff]
  %v72 = vld [vmem:[%s0 + $0x80] sm:$0xf]
  %v73 = vld [vmem:[%s0 + $0x84] sm:$0xff]
  %v74 = vld [vmem:[%s0 + $0x8c] sm:$0xf]
  %v75 = vld [vmem:[%s0 + $0x90] sm:$0xff]
  %v76 = vld [vmem:[%s0 + $0x98] sm:$0xf]
  %v77 = vld [vmem:[%s0 + $0x9c] sm:$0xff]
  %v78 = vld [vmem:[%s0 + $0xa4] sm:$0xf]
  %v79 = vld [vmem:[%s0 + $0xa8] sm:$0xff]
  %v80 = vld [vmem:[%s0 + $0xb0] sm:$0xf]
  %v81 = vld [vmem:[%s0 + $0xb4] sm:$0xff]
  %v82 = vld [vmem:[%s0 + $0xbc] sm:$0xf]
  %v83 = vld [vmem:[%s1] sm:$0xf]
  %v84 = vld [vmem:[%s1 + $0x4] sm:$0xf]
  %v85 = vld [vmem:[%s1 + $0x8] sm:$0xf]
  %v86 = vld [vmem:[%s1 + $0xc] sm:$0xf]
  %v87 = vld [vmem:[%s1 + $0x10] sm:$0xf]
  %v88 = vld [vmem:[%s1 + $0x14] sm:$0xf]
  %v89 = vld [vmem:[%s1 + $0x18] sm:$0xf]
  %v90 = vld [vmem:[%s1 + $0x1c] sm:$0xf]
  %v91 = vld [vmem:[%s1 + $0x20] sm:$0xf]
  %v92 = vld [vmem:[%s1 + $0x24] sm:$0xf]
  %v93 = vld [vmem:[%s1 + $0x28] sm:$0xf]
  %v94 = vld [vmem:[%s1 + $0x2c] sm:$0xf]
  %v95 = vld [vmem:[%s1 + $0x30] sm:$0xf]
  %v96 = vld [vmem:[%s1 + $0x34] sm:$0xf]
  %v97 = vld [vmem:[%s1 + $0x38] sm:$0xf]
  %v98 = vld [vmem:[%s1 + $0x3c] sm:$0xf]
  %v99 = vld [vmem:[%s1 + $0x40] sm:$0xf]
  %v100 = vld [vmem:[%s1 + $0x44] sm:$0xf]
  %v101 = vld [vmem:[%s1 + $0x48] sm:$0xf]
  %v102 = vld [vmem:[%s1 + $0x4c] sm:$0xf]
  %v103 = vld [vmem:[%s1 + $0x50] sm:$0xf]
  %v104 = vld [vmem:[%s1 + $0x54] sm:$0xf]
  %v105 = vld [vmem:[%s1 + $0x58] sm:$0xf]
  %v106 = vld [vmem:[%s1 + $0x5c] sm:$0xf]
  %v107 = vld [vmem:[%s1 + $0x60] sm:$0xf]
  %v108 = vld [vmem:[%s1 + $0x64] sm:$0xf]
  %v109 = vld [vmem:[%s1 + $0x68] sm:$0xf]
  %v110 = vld [vmem:[%s1 + $0x6c] sm:$0xf]
  %v111 = vld [vmem:[%s1 + $0x70] sm:$0xf]
  %v112 = vld [vmem:[%s1 + $0x74] sm:$0xf]
  %v113 = vld [vmem:[%s1 + $0x78] sm:$0xf]
  %v114 = vld [vmem:[%s1 + $0x7c] sm:$0xf]
  %v115 = vld [vmem:[%s1 + $0x80] sm:$0xf]
  %v116 = vld [vmem:[%s1 + $0x84] sm:$0xf]
  %v117 = vld [vmem:[%s1 + $0x88] sm:$0xf]
  %v118 = vld [vmem:[%s1 + $0x8c] sm:$0xf]
  %v119 = vld [vmem:[%s1 + $0x90] sm:$0xf]
  %v120 = vld [vmem:[%s1 + $0x94] sm:$0xf]
  %v121 = vld [vmem:[%s1 + $0x98] sm:$0xf]
  %v122 = vld [vmem:[%s1 + $0x9c] sm:$0xf]
  %v123 = vld [vmem:[%s1 + $0xa0] sm:$0xf]
  %v124 = vld [vmem:[%s1 + $0xa4] sm:$0xf]
  %v125 = vld [vmem:[%s1 + $0xa8] sm:$0xf]
  %v126 = vld [vmem:[%s1 + $0xac] sm:$0xf]
  %v127 = vld [vmem:[%s1 + $0xb0] sm:$0xf]
  %v128 = vld [vmem:[%s1 + $0xb4] sm:$0xf]
  %v129 = vld [vmem:[%s1 + $0xb8] sm:$0xf]
  %v130 = vld [vmem:[%s1 + $0xbc] sm:$0xf]
  %v163 = vunpack.c.l.b16 %v51
  %v164 = vunpack.c.h.b16 %v51
  %v165 = vunpack.c.l.b16 %v52
  %v166 = vunpack.c.l.b16 %v53
  %v167 = vunpack.c.h.b16 %v53
  %v168 = vunpack.c.l.b16 %v54
  %v169 = vunpack.c.l.b16 %v55
  %v170 = vunpack.c.h.b16 %v55
  %v171 = vunpack.c.l.b16 %v56
  %v172 = vunpack.c.l.b16 %v57
  %v173 = vunpack.c.h.b16 %v57
  %v174 = vunpack.c.l.b16 %v58
  %v175 = vunpack.c.l.b16 %v59
  %v176 = vunpack.c.h.b16 %v59
  %v177 = vunpack.c.l.b16 %v60
  %v178 = vunpack.c.l.b16 %v61
  %v179 = vunpack.c.h.b16 %v61
  %v180 = vunpack.c.l.b16 %v62
  %v181 = vunpack.c.l.b16 %v63
  %v182 = vunpack.c.h.b16 %v63
  %v183 = vunpack.c.l.b16 %v64
  %v184 = vunpack.c.l.b16 %v65
  %v185 = vunpack.c.h.b16 %v65
  %v186 = vunpack.c.l.b16 %v66
  %v187 = vunpack.c.l.b16 %v67
  %v188 = vunpack.c.h.b16 %v67
  %v189 = vunpack.c.l.b16 %v68
  %v190 = vunpack.c.l.b16 %v69
  %v191 = vunpack.c.h.b16 %v69
  %v192 = vunpack.c.l.b16 %v70
  %v193 = vunpack.c.l.b16 %v71
  %v194 = vunpack.c.h.b16 %v71
  %v195 = vunpack.c.l.b16 %v72
  %v196 = vunpack.c.l.b16 %v73
  %v197 = vunpack.c.h.b16 %v73
  %v198 = vunpack.c.l.b16 %v74
  %v199 = vunpack.c.l.b16 %v75
  %v200 = vunpack.c.h.b16 %v75
  %v201 = vunpack.c.l.b16 %v76
  %v202 = vunpack.c.l.b16 %v77
  %v203 = vunpack.c.h.b16 %v77
  %v204 = vunpack.c.l.b16 %v78
  %v205 = vunpack.c.l.b16 %v79
  %v206 = vunpack.c.h.b16 %v79
  %v207 = vunpack.c.l.b16 %v80
  %v208 = vunpack.c.l.b16 %v81
  %v209 = vunpack.c.h.b16 %v81
  %v210 = vunpack.c.l.b16 %v82
  %v211 = vpack.c.b16 %v166, %v163
  %v212 = vpack.c.b16 %v167, %v164
  %v213 = vpack.c.b16 %v168, %v165
  %v214 = vpack.c.b16 %v172, %v169
  %v215 = vpack.c.b16 %v173, %v170
  %v216 = vpack.c.b16 %v174, %v171
  %v217 = vpack.c.b16 %v178, %v175
  %v218 = vpack.c.b16 %v179, %v176
  %v219 = vpack.c.b16 %v180, %v177
  %v220 = vpack.c.b16 %v184, %v181
  %v221 = vpack.c.b16 %v185, %v182
  %v222 = vpack.c.b16 %v186, %v183
  %v223 = vpack.c.b16 %v190, %v187
  %v224 = vpack.c.b16 %v191, %v188
  %v225 = vpack.c.b16 %v192, %v189
  %v226 = vpack.c.b16 %v196, %v193
  %v227 = vpack.c.b16 %v197, %v194
  %v228 = vpack.c.b16 %v198, %v195
  %v229 = vpack.c.b16 %v202, %v199
  %v230 = vpack.c.b16 %v203, %v200
  %v231 = vpack.c.b16 %v204, %v201
  %v232 = vpack.c.b16 %v208, %v205
  %v233 = vpack.c.b16 %v209, %v206
  %v234 = vpack.c.b16 %v210, %v207
  %v307 = vunpack.c.l.b16 %v83
  %v308 = vunpack.c.l.b16 %v84
  %v309 = vunpack.c.l.b16 %v85
  %v310 = vunpack.c.l.b16 %v86
  %v311 = vunpack.c.l.b16 %v87
  %v312 = vunpack.c.l.b16 %v88
  %v313 = vunpack.c.l.b16 %v89
  %v314 = vunpack.c.l.b16 %v90
  %v315 = vunpack.c.l.b16 %v91
  %v316 = vunpack.c.l.b16 %v92
  %v317 = vunpack.c.l.b16 %v93
  %v318 = vunpack.c.l.b16 %v94
  %v319 = vunpack.c.l.b16 %v95
  %v320 = vunpack.c.l.b16 %v96
  %v321 = vunpack.c.l.b16 %v97
  %v322 = vunpack.c.l.b16 %v98
  %v323 = vunpack.c.l.b16 %v99
  %v324 = vunpack.c.l.b16 %v100
  %v325 = vunpack.c.l.b16 %v101
  %v326 = vunpack.c.l.b16 %v102
  %v327 = vunpack.c.l.b16 %v103
  %v328 = vunpack.c.l.b16 %v104
  %v329 = vunpack.c.l.b16 %v105
  %v330 = vunpack.c.l.b16 %v106
  %v331 = vunpack.c.l.b16 %v107
  %v332 = vunpack.c.l.b16 %v108
  %v333 = vunpack.c.l.b16 %v109
  %v334 = vunpack.c.l.b16 %v110
  %v335 = vunpack.c.l.b16 %v111
  %v336 = vunpack.c.l.b16 %v112
  %v337 = vunpack.c.l.b16 %v113
  %v338 = vunpack.c.l.b16 %v114
  %v339 = vunpack.c.l.b16 %v115
  %v340 = vunpack.c.l.b16 %v116
  %v341 = vunpack.c.l.b16 %v117
  %v342 = vunpack.c.l.b16 %v118
  %v343 = vunpack.c.l.b16 %v119
  %v344 = vunpack.c.l.b16 %v120
  %v345 = vunpack.c.l.b16 %v121
  %v346 = vunpack.c.l.b16 %v122
  %v347 = vunpack.c.l.b16 %v123
  %v348 = vunpack.c.l.b16 %v124
  %v349 = vunpack.c.l.b16 %v125
  %v350 = vunpack.c.l.b16 %v126
  %v351 = vunpack.c.l.b16 %v127
  %v352 = vunpack.c.l.b16 %v128
  %v353 = vunpack.c.l.b16 %v129
  %v354 = vunpack.c.l.b16 %v130
  %v355 = vpack.c.b16 %v308, %v307
  %v356 = vpack.c.b16 %v310, %v309
  %v357 = vpack.c.b16 %v312, %v311
  %v358 = vpack.c.b16 %v314, %v313
  %v359 = vpack.c.b16 %v316, %v315
  %v360 = vpack.c.b16 %v318, %v317
  %v361 = vpack.c.b16 %v320, %v319
  %v362 = vpack.c.b16 %v322, %v321
  %v363 = vpack.c.b16 %v324, %v323
  %v364 = vpack.c.b16 %v326, %v325
  %v365 = vpack.c.b16 %v328, %v327
  %v366 = vpack.c.b16 %v330, %v329
  %v367 = vpack.c.b16 %v332, %v331
  %v368 = vpack.c.b16 %v334, %v333
  %v369 = vpack.c.b16 %v336, %v335
  %v370 = vpack.c.b16 %v338, %v337
  %v371 = vpack.c.b16 %v340, %v339
  %v372 = vpack.c.b16 %v342, %v341
  %v373 = vpack.c.b16 %v344, %v343
  %v374 = vpack.c.b16 %v346, %v345
  %v375 = vpack.c.b16 %v348, %v347
  %v376 = vpack.c.b16 %v350, %v349
  %v377 = vpack.c.b16 %v352, %v351
  %v378 = vpack.c.b16 %v354, %v353
  %403 = vmatprep.subr.bf16.mxu0 0
  %404 = vmatpush1.bf16.msra.mxu0 %v362
  %405 = vmatprep.subr.bf16.mxu0 0
  %406 = vmatpush1.bf16.msra.mxu0 %v361
  %407 = vmatprep.subr.bf16.mxu0 0
  %408 = vmatpush1.bf16.msra.mxu0 %v360
  %409 = vmatprep.subr.bf16.mxu0 0
  %410 = vmatpush1.bf16.msra.mxu0 %v359
  %411 = vmatprep.subr.bf16.mxu0 0
  %412 = vmatpush1.bf16.msra.mxu0 %v358
  %413 = vmatprep.subr.bf16.mxu0 0
  %414 = vmatpush1.bf16.msra.mxu0 %v357
  %415 = vmatprep.subr.bf16.mxu0 0
  %416 = vmatpush1.bf16.msra.mxu0 %v356
  %417 = vmatprep.subr.bf16.mxu0 0
  %418 = vmatpush1.bf16.msra.mxu0 %v355
  %419 = vmatprep.subr.bf16.mxu0 0
  %420 = vmatpush2.bf16.msra.mxu0 %v370
  %421 = vmatprep.subr.bf16.mxu0 0
  %422 = vmatpush2.bf16.msra.mxu0 %v369
  %423 = vmatprep.subr.bf16.mxu0 0
  %424 = vmatpush2.bf16.msra.mxu0 %v368
  %425 = vmatprep.subr.bf16.mxu0 0
  %426 = vmatpush2.bf16.msra.mxu0 %v367
  %427 = vmatprep.subr.bf16.mxu0 0
  %428 = vmatpush2.bf16.msra.mxu0 %v366
  %429 = vmatprep.subr.bf16.mxu0 0
  %430 = vmatpush2.bf16.msra.mxu0 %v365
  %431 = vmatprep.subr.bf16.mxu0 0
  %432 = vmatpush2.bf16.msra.mxu0 %v364
  %433 = vmatprep.subr.bf16.mxu0 0
  %434 = vmatpush2.bf16.msra.mxu0 %v363
  %435 = vmatprep.mubr.bf16.mxu0 %v212
  %436 = vmatmul.mubr.bf16.gmra.mxu0 %v211
  %v437 = vpop.f32.mrf.mxu0
  %v438 = vadd.f32 0.0, %v437
  %v439 = vpop.f32.mrf.mxu0
  %v440 = vpop.f32.mrf.mxu0
  %v441 = vadd.f32 0.0, %v440
  %v442 = vpop.f32.mrf.mxu0
  %443 = vmatprep.mubr.bf16.mxu0 %v215
  %444 = vmatmul.mubr.bf16.gmra.mxu0 %v214
  %v445 = vpop.f32.mrf.mxu0
  %v446 = vadd.f32 0.0, %v445
  %v447 = vpop.f32.mrf.mxu0
  %v448 = vpop.f32.mrf.mxu0
  %v449 = vadd.f32 0.0, %v448
  %v450 = vpop.f32.mrf.mxu0
  %451 = vmatprep.mubr.bf16.mxu0 %v218
  %452 = vmatmul.mubr.bf16.gmra.mxu0 %v217
  %v453 = vpop.f32.mrf.mxu0
  %v454 = vadd.f32 0.0, %v453
  %v455 = vpop.f32.mrf.mxu0
  %v456 = vpop.f32.mrf.mxu0
  %v457 = vadd.f32 0.0, %v456
  %v458 = vpop.f32.mrf.mxu0
  %459 = vmatprep.mubr.bf16.mxu0 %v221
  %460 = vmatmul.mubr.bf16.gmra.mxu0 %v220
  %v461 = vpop.f32.mrf.mxu0
  %v462 = vadd.f32 0.0, %v461
  %v463 = vpop.f32.mrf.mxu0
  %v464 = vpop.f32.mrf.mxu0
  %v465 = vadd.f32 0.0, %v464
  %v466 = vpop.f32.mrf.mxu0
  %467 = vmatprep.mubr.bf16.mxu0 %v224
  %468 = vmatmul.mubr.bf16.gmra.mxu0 %v223
  %v469 = vpop.f32.mrf.mxu0
  %v470 = vadd.f32 0.0, %v469
  %v471 = vpop.f32.mrf.mxu0
  %v472 = vpop.f32.mrf.mxu0
  %v473 = vadd.f32 0.0, %v472
  %v474 = vpop.f32.mrf.mxu0
  %475 = vmatprep.mubr.bf16.mxu0 %v227
  %476 = vmatmul.mubr.bf16.gmra.mxu0 %v226
  %v477 = vpop.f32.mrf.mxu0
  %v478 = vadd.f32 0.0, %v477
  %v479 = vpop.f32.mrf.mxu0
  %v480 = vpop.f32.mrf.mxu0
  %v481 = vadd.f32 0.0, %v480
  %v482 = vpop.f32.mrf.mxu0
  %483 = vmatprep.mubr.bf16.mxu0 %v230
  %484 = vmatmul.mubr.bf16.gmra.mxu0 %v229
  %v485 = vpop.f32.mrf.mxu0
  %v486 = vadd.f32 0.0, %v485
  %v487 = vpop.f32.mrf.mxu0
  %v488 = vpop.f32.mrf.mxu0
  %v489 = vadd.f32 0.0, %v488
  %v490 = vpop.f32.mrf.mxu0
  %491 = vmatprep.mubr.bf16.mxu0 %v233
  %492 = vmatmul.mubr.bf16.gmra.mxu0 %v232
  %v493 = vpop.f32.mrf.mxu0
  %v494 = vadd.f32 0.0, %v493
  %v495 = vpop.f32.mrf.mxu0
  %v496 = vpop.f32.mrf.mxu0
  %v497 = vadd.f32 0.0, %v496
  %v498 = vpop.f32.mrf.mxu0
  %499 = vdwg.mxu0
  %500 = vmatprep.subr.bf16.mxu0 0
  %501 = vmatpush1.bf16.msra.mxu0 %v378
  %502 = vmatprep.subr.bf16.mxu0 0
  %503 = vmatpush1.bf16.msra.mxu0 %v377
  %504 = vmatprep.subr.bf16.mxu0 0
  %505 = vmatpush1.bf16.msra.mxu0 %v376
  %506 = vmatprep.subr.bf16.mxu0 0
  %507 = vmatpush1.bf16.msra.mxu0 %v375
  %508 = vmatprep.subr.bf16.mxu0 0
  %509 = vmatpush1.bf16.msra.mxu0 %v374
  %510 = vmatprep.subr.bf16.mxu0 0
  %511 = vmatpush1.bf16.msra.mxu0 %v373
  %512 = vmatprep.subr.bf16.mxu0 0
  %513 = vmatpush1.bf16.msra.mxu0 %v372
  %514 = vmatprep.subr.bf16.mxu0 0
  %515 = vmatpush1.bf16.msra.mxu0 %v371
  %516 = vmatprep.subr.bf16.mxu0 0
  %517 = vmatpush2.bf16.msra.mxu0 0
  %518 = vmatprep.subr.bf16.mxu0 0
  %519 = vmatpush2.bf16.msra.mxu0 0
  %520 = vmatprep.subr.bf16.mxu0 0
  %521 = vmatpush2.bf16.msra.mxu0 0
  %522 = vmatprep.subr.bf16.mxu0 0
  %523 = vmatpush2.bf16.msra.mxu0 0
  %524 = vmatprep.subr.bf16.mxu0 0
  %525 = vmatpush2.bf16.msra.mxu0 0
  %526 = vmatprep.subr.bf16.mxu0 0
  %527 = vmatpush2.bf16.msra.mxu0 0
  %528 = vmatprep.subr.bf16.mxu0 0
  %529 = vmatpush2.bf16.msra.mxu0 0
  %530 = vmatprep.subr.bf16.mxu0 0
  %531 = vmatpush2.bf16.msra.mxu0 0
  %532 = vmatprep.mubr.bf16.mxu0 0
  %533 = vmatmul.mubr.bf16.gmra.mxu0 %v213
  %v534 = vpop.f32.mrf.mxu0
  %v535 = vadd.f32 %v438, %v534
  %v536 = vpop.f32.mrf.mxu0
  %v537 = vpop.f32.mrf.mxu0
  %v538 = vadd.f32 %v441, %v537
  %v539 = vpop.f32.mrf.mxu0
  %540 = vmatprep.mubr.bf16.mxu0 0
  %541 = vmatmul.mubr.bf16.gmra.mxu0 %v216
  %v542 = vpop.f32.mrf.mxu0
  %v543 = vadd.f32 %v446, %v542
  %v544 = vpop.f32.mrf.mxu0
  %v545 = vpop.f32.mrf.mxu0
  %v546 = vadd.f32 %v449, %v545
  %v547 = vpop.f32.mrf.mxu0
  %548 = vmatprep.mubr.bf16.mxu0 0
  %549 = vmatmul.mubr.bf16.gmra.mxu0 %v219
  %v550 = vpop.f32.mrf.mxu0
  %v551 = vadd.f32 %v454, %v550
  %v552 = vpop.f32.mrf.mxu0
  %v553 = vpop.f32.mrf.mxu0
  %v554 = vadd.f32 %v457, %v553
  %v555 = vpop.f32.mrf.mxu0
  %556 = vmatprep.mubr.bf16.mxu0 0
  %557 = vmatmul.mubr.bf16.gmra.mxu0 %v222
  %v558 = vpop.f32.mrf.mxu0
  %v559 = vadd.f32 %v462, %v558
  %v560 = vpop.f32.mrf.mxu0
  %v561 = vpop.f32.mrf.mxu0
  %v562 = vadd.f32 %v465, %v561
  %v563 = vpop.f32.mrf.mxu0
  %564 = vmatprep.mubr.bf16.mxu0 0
  %565 = vmatmul.mubr.bf16.gmra.mxu0 %v225
  %v566 = vpop.f32.mrf.mxu0
  %v567 = vadd.f32 %v470, %v566
  %v568 = vpop.f32.mrf.mxu0
  %v569 = vpop.f32.mrf.mxu0
  %v570 = vadd.f32 %v473, %v569
  %v571 = vpop.f32.mrf.mxu0
  %572 = vmatprep.mubr.bf16.mxu0 0
  %573 = vmatmul.mubr.bf16.gmra.mxu0 %v228
  %v574 = vpop.f32.mrf.mxu0
  %v575 = vadd.f32 %v478, %v574
  %v576 = vpop.f32.mrf.mxu0
  %v577 = vpop.f32.mrf.mxu0
  %v578 = vadd.f32 %v481, %v577
  %v579 = vpop.f32.mrf.mxu0
  %580 = vmatprep.mubr.bf16.mxu0 0
  %581 = vmatmul.mubr.bf16.gmra.mxu0 %v231
  %v582 = vpop.f32.mrf.mxu0
  %v583 = vadd.f32 %v486, %v582
  %v584 = vpop.f32.mrf.mxu0
  %v585 = vpop.f32.mrf.mxu0
  %v586 = vadd.f32 %v489, %v585
  %v587 = vpop.f32.mrf.mxu0
  %588 = vmatprep.mubr.bf16.mxu0 0
  %589 = vmatmul.mubr.bf16.gmra.mxu0 %v234
  %v590 = vpop.f32.mrf.mxu0
  %v591 = vadd.f32 %v494, %v590
  %v592 = vpop.f32.mrf.mxu0
  %v593 = vpop.f32.mrf.mxu0
  %v594 = vadd.f32 %v497, %v593
  %v595 = vpop.f32.mrf.mxu0
  %596 = vdwg.mxu0
  %v597 = vadd.f32 %v35, %v535
  %v598 = vadd.f32 %v36, %v538
  %v599 = vadd.f32 %v37, %v543
  %v600 = vadd.f32 %v38, %v546
  %v601 = vadd.f32 %v39, %v551
  %v602 = vadd.f32 %v40, %v554
  %v603 = vadd.f32 %v41, %v559
  %v604 = vadd.f32 %v42, %v562
  %v605 = vadd.f32 %v43, %v567
  %v606 = vadd.f32 %v44, %v570
  %v607 = vadd.f32 %v45, %v575
  %v608 = vadd.f32 %v46, %v578
  %v609 = vadd.f32 %v47, %v583
  %v610 = vadd.f32 %v48, %v586
  %v611 = vadd.f32 %v49, %v591
  %v612 = vadd.f32 %v50, %v594
  %613 = vst [vmem:[#allocation2] sm:$0xff] %v597
  %614 = vst [vmem:[#allocation2 + $0x8] sm:$0xff] %v598
  %615 = vst [vmem:[#allocation2 + $0x10] sm:$0xff] %v599
  %616 = vst [vmem:[#allocation2 + $0x18] sm:$0xff] %v600
  %617 = vst [vmem:[#allocation2 + $0x20] sm:$0xff] %v601
  %618 = vst [vmem:[#allocation2 + $0x28] sm:$0xff] %v602
  %619 = vst [vmem:[#allocation2 + $0x30] sm:$0xff] %v603
  %620 = vst [vmem:[#allocation2 + $0x38] sm:$0xff] %v604
  %621 = vst [vmem:[#allocation2 + $0x40] sm:$0xff] %v605
  %622 = vst [vmem:[#allocation2 + $0x48] sm:$0xff] %v606
  %623 = vst [vmem:[#allocation2 + $0x50] sm:$0xff] %v607
  %624 = vst [vmem:[#allocation2 + $0x58] sm:$0xff] %v608
  %625 = vst [vmem:[#allocation2 + $0x60] sm:$0xff] %v609
  %626 = vst [vmem:[#allocation2 + $0x68] sm:$0xff] %v610
  %627 = vst [vmem:[#allocation2 + $0x70] sm:$0xff] %v611
  %628 = vst [vmem:[#allocation2 + $0x78] sm:$0xff] %v612
  // Predicated region
  $region18: #{lednet_forward.80} parent=0 // pred_check
    %p629 = pneg %p15
  $region19: #{lednet_forward.80} parent=0 // pred_check_branch
    %631 = sbr.rel (%p629) target = $region21
  $region20: #{lednet_forward.80} parent=0 // pred_region
    %v632 = vld [vmem:[#allocation2] sm:$0xff]
    %v633 = vld [vmem:[#allocation2 + $0x8] sm:$0xff]
    %v634 = vld [vmem:[#allocation2 + $0x10] sm:$0xff]
    %v635 = vld [vmem:[#allocation2 + $0x18] sm:$0xff]
    %v636 = vld [vmem:[#allocation2 + $0x20] sm:$0xff]
    %v637 = vld [vmem:[#allocation2 + $0x28] sm:$0xff]
    %v638 = vld [vmem:[#allocation2 + $0x30] sm:$0xff]
    %v639 = vld [vmem:[#allocation2 + $0x38] sm:$0xff]
    %v640 = vld [vmem:[#allocation2 + $0x40] sm:$0xff]
    %v641 = vld [vmem:[#allocation2 + $0x48] sm:$0xff]
    %v642 = vld [vmem:[#allocation2 + $0x50] sm:$0xff]
    %v643 = vld [vmem:[#allocation2 + $0x58] sm:$0xff]
    %v644 = vld [vmem:[#allocation2 + $0x60] sm:$0xff]
    %v645 = vld [vmem:[#allocation2 + $0x68] sm:$0xff]
    %v646 = vld [vmem:[#allocation2 + $0x70] sm:$0xff]
    %v647 = vld [vmem:[#allocation2 + $0x78] sm:$0xff]
    %v648 = vld [vmem:[%s2] sm:$0x1]
    %v650 = vlaneseq
    %v651 = vshrl.u32 %v650, 7
    %v652 = vsub.s32 0, %v651
    %v653 = vrot.slane %v648, %v652
    %v655 = vadd.f32 %v632, %v653
    %v656 = vadd.f32 %v633, %v653
    %v657 = vadd.f32 %v634, %v653
    %v658 = vadd.f32 %v635, %v653
    %v659 = vadd.f32 %v636, %v653
    %v660 = vadd.f32 %v637, %v653
    %v661 = vadd.f32 %v638, %v653
    %v662 = vadd.f32 %v639, %v653
    %v663 = vadd.f32 %v640, %v653
    %v664 = vadd.f32 %v641, %v653
    %v665 = vadd.f32 %v642, %v653
    %v666 = vadd.f32 %v643, %v653
    %v667 = vadd.f32 %v644, %v653
    %v668 = vadd.f32 %v645, %v653
    %v669 = vadd.f32 %v646, %v653
    %v670 = vadd.f32 %v647, %v653
    %vm671 = vcmp.ge.f32.partialorder %v655, 0.0
    %vm672 = vcmp.ge.f32.partialorder %v656, 0.0
    %vm673 = vcmp.ge.f32.partialorder %v657, 0.0
    %vm674 = vcmp.ge.f32.partialorder %v658, 0.0
    %vm675 = vcmp.ge.f32.partialorder %v659, 0.0
    %vm676 = vcmp.ge.f32.partialorder %v660, 0.0
    %vm677 = vcmp.ge.f32.partialorder %v661, 0.0
    %vm678 = vcmp.ge.f32.partialorder %v662, 0.0
    %vm679 = vcmp.ge.f32.partialorder %v663, 0.0
    %vm680 = vcmp.ge.f32.partialorder %v664, 0.0
    %vm681 = vcmp.ge.f32.partialorder %v665, 0.0
    %vm682 = vcmp.ge.f32.partialorder %v666, 0.0
    %vm683 = vcmp.ge.f32.partialorder %v667, 0.0
    %vm684 = vcmp.ge.f32.partialorder %v668, 0.0
    %vm685 = vcmp.ge.f32.partialorder %v669, 0.0
    %vm686 = vcmp.ge.f32.partialorder %v670, 0.0
    %v687 = vmul.f32 %v655, 0.25
    %v688 = vmul.f32 %v656, 0.25
    %v689 = vmul.f32 %v657, 0.25
    %v690 = vmul.f32 %v658, 0.25
    %v691 = vmul.f32 %v659, 0.25
    %v692 = vmul.f32 %v660, 0.25
    %v693 = vmul.f32 %v661, 0.25
    %v694 = vmul.f32 %v662, 0.25
    %v695 = vmul.f32 %v663, 0.25
    %v696 = vmul.f32 %v664, 0.25
    %v697 = vmul.f32 %v665, 0.25
    %v698 = vmul.f32 %v666, 0.25
    %v699 = vmul.f32 %v667, 0.25
    %v700 = vmul.f32 %v668, 0.25
    %v701 = vmul.f32 %v669, 0.25
    %v702 = vmul.f32 %v670, 0.25
    %v703 = vsel %vm671, %v655, %v687
    %v704 = vsel %vm672, %v656, %v688
    %v705 = vsel %vm673, %v657, %v689
    %v706 = vsel %vm674, %v658, %v690
    %v707 = vsel %vm675, %v659, %v691
    %v708 = vsel %vm676, %v660, %v692
    %v709 = vsel %vm677, %v661, %v693
    %v710 = vsel %vm678, %v662, %v694
    %v711 = vsel %vm679, %v663, %v695
    %v712 = vsel %vm680, %v664, %v696
    %v713 = vsel %vm681, %v665, %v697
    %v714 = vsel %vm682, %v666, %v698
    %v715 = vsel %vm683, %v667, %v699
    %v716 = vsel %vm684, %v668, %v700
    %v717 = vsel %vm685, %v669, %v701
    %v718 = vsel %vm686, %v670, %v702
    %v719 = vpack.c.bf16 %v704, %v703
    %v720 = vpack.c.bf16 %v706, %v705
    %v721 = vpack.c.bf16 %v708, %v707
    %v722 = vpack.c.bf16 %v710, %v709
    %v723 = vpack.c.bf16 %v712, %v711
    %v724 = vpack.c.bf16 %v714, %v713
    %v725 = vpack.c.bf16 %v716, %v715
    %v726 = vpack.c.bf16 %v718, %v717
    %v735 = vunpack.c.l.b16 %v719
    %v736 = vunpack.c.h.b16 %v719
    %v737 = vunpack.c.l.b16 %v720
    %v738 = vunpack.c.h.b16 %v720
    %v739 = vunpack.c.l.b16 %v721
    %v740 = vunpack.c.h.b16 %v721
    %v741 = vunpack.c.l.b16 %v722
    %v742 = vunpack.c.h.b16 %v722
    %v743 = vunpack.c.l.b16 %v723
    %v744 = vunpack.c.h.b16 %v723
    %v745 = vunpack.c.l.b16 %v724
    %v746 = vunpack.c.h.b16 %v724
    %v747 = vunpack.c.l.b16 %v725
    %v748 = vunpack.c.h.b16 %v725
    %v749 = vunpack.c.l.b16 %v726
    %v750 = vunpack.c.h.b16 %v726
    %v751 = vpack.c.b16 %v735, %v735
    %v752 = vpack.c.b16 %v736, %v736
    %v753 = vpack.c.b16 %v737, %v737
    %v754 = vpack.c.b16 %v738, %v738
    %v755 = vpack.c.b16 %v739, %v739
    %v756 = vpack.c.b16 %v740, %v740
    %v757 = vpack.c.b16 %v741, %v741
    %v758 = vpack.c.b16 %v742, %v742
    %v759 = vpack.c.b16 %v743, %v743
    %v760 = vpack.c.b16 %v744, %v744
    %v761 = vpack.c.b16 %v745, %v745
    %v762 = vpack.c.b16 %v746, %v746
    %v763 = vpack.c.b16 %v747, %v747
    %v764 = vpack.c.b16 %v748, %v748
    %v765 = vpack.c.b16 %v749, %v749
    %v766 = vpack.c.b16 %v750, %v750
    %783 = vst [vmem:[%s3] sm:$0xf] %v751
    %784 = vst [vmem:[%s3 + $0x4] sm:$0xf] %v752
    %785 = vst [vmem:[%s3 + $0x8] sm:$0xf] %v753
    %786 = vst [vmem:[%s3 + $0xc] sm:$0xf] %v754
    %787 = vst [vmem:[%s3 + $0x10] sm:$0xf] %v755
    %788 = vst [vmem:[%s3 + $0x14] sm:$0xf] %v756
    %789 = vst [vmem:[%s3 + $0x18] sm:$0xf] %v757
    %790 = vst [vmem:[%s3 + $0x1c] sm:$0xf] %v758
    %791 = vst [vmem:[%s3 + $0x20] sm:$0xf] %v759
    %792 = vst [vmem:[%s3 + $0x24] sm:$0xf] %v760
    %793 = vst [vmem:[%s3 + $0x28] sm:$0xf] %v761
    %794 = vst [vmem:[%s3 + $0x2c] sm:$0xf] %v762
    %795 = vst [vmem:[%s3 + $0x30] sm:$0xf] %v763
    %796 = vst [vmem:[%s3 + $0x34] sm:$0xf] %v764
    %797 = vst [vmem:[%s3 + $0x38] sm:$0xf] %v765
    %798 = vst [vmem:[%s3 + $0x3c] sm:$0xf] %v766
  $region21: #{lednet_forward.80} parent=0 // pred_fallthru
    _
  // Predicated region
  $region22: #{lednet_forward.80} parent=0 // pred_check
    _
  $region23: #{lednet_forward.80} parent=0 // pred_check_branch
    %800 = sbr.rel (0) target = $region25
  $region24: #{lednet_forward.80} parent=0 // pred_region
    _
  $region25: #{lednet_forward.80} parent=0 // pred_fallthru
    _
  // Predicated region
  $region26: #{lednet_forward.80} parent=0 // pred_check
    _
  $region27: #{lednet_forward.80} parent=0 // pred_check_branch
    %802 = sbr.rel (0) target = $region29
  $region28: #{lednet_forward.80} parent=0 // pred_region
    _
  $region29: #{lednet_forward.80} parent=0 // pred_fallthru
    _

// kernel: lednet_forward.82
$region0: #{lednet_forward.82}
  #allocation0 [shape = 'u32[]', space=smem, size = 0x4, offset = 0x4, fixed_abs, tag = 'smem constant byte address 0x4 - core index']
  #allocation1 [shape = 'u32[144,128]{1,0:T(1,128)}', space=vmem, size = 0x12000, scoped, tag = 'internal scratch']
  #allocation2 [shape = 'f32[128,128]{1,0:T(8,128)}', space=vmem, size = 0x10000, scoped, tag = 'scratch operand']
  %s0 = inlined_call_operand.vmem [shape: bf16[128,256], index: 0, kind: input, shape index: {}]
  %s1 = inlined_call_operand.vmem [shape: bf16[256,128], index: 1, kind: input, shape index: {}]
  %s2 = inlined_call_operand.vmem [shape: f32[1,128], index: 2, kind: input, shape index: {}]
  %s3 = inlined_call_operand.vmem [shape: bf16[128,128], index: 3, kind: output, shape index: {}]
  %s4 = sld [smem:[#allocation0]]
  $region30: #{lednet_forward.82} parent=0
    _
  %s6 = ssub.s32 1, %s4
  %s7 = scalar_select 0, %s6, %s4
  // Predicated region
  $region2: #{lednet_forward.82} parent=0 // pred_check
    _
  $region3: #{lednet_forward.82} parent=0 // pred_check_branch
    %9 = sbr.rel (0) target = $region5
  $region4: #{lednet_forward.82} parent=0 // pred_region
    _
  $region5: #{lednet_forward.82} parent=0 // pred_fallthru
    _
  // Predicated region
  $region6: #{lednet_forward.82} parent=0 // pred_check
    _
  $region7: #{lednet_forward.82} parent=0 // pred_check_branch
    %11 = sbr.rel (0) target = $region9
  $region8: #{lednet_forward.82} parent=0 // pred_region
    _
  $region9: #{lednet_forward.82} parent=0 // pred_fallthru
    _
  // Predicated region
  $region10: #{lednet_forward.82} parent=0 // pred_check
    _
  $region11: #{lednet_forward.82} parent=0 // pred_check_branch
    %13 = sbr.rel (0) target = $region13
  $region12: #{lednet_forward.82} parent=0 // pred_region
    _
  $region13: #{lednet_forward.82} parent=0 // pred_fallthru
    _
  %p15 = scmp.eq.s32.totalorder 0, 0
  // Predicated region
  $region14: #{lednet_forward.82} parent=0 // pred_check
    %p16 = pneg %p15
  $region15: #{lednet_forward.82} parent=0 // pred_check_branch
    %18 = sbr.rel (%p16) target = $region17
  $region16: #{lednet_forward.82} parent=0 // pred_region
    %19 = vst [vmem:[#allocation2] sm:$0xff] 0.0
    %20 = vst [vmem:[#allocation2 + $0x8] sm:$0xff] 0.0
    %21 = vst [vmem:[#allocation2 + $0x10] sm:$0xff] 0.0
    %22 = vst [vmem:[#allocation2 + $0x18] sm:$0xff] 0.0
    %23 = vst [vmem:[#allocation2 + $0x20] sm:$0xff] 0.0
    %24 = vst [vmem:[#allocation2 + $0x28] sm:$0xff] 0.0
    %25 = vst [vmem:[#allocation2 + $0x30] sm:$0xff] 0.0
    %26 = vst [vmem:[#allocation2 + $0x38] sm:$0xff] 0.0
    %27 = vst [vmem:[#allocation2 + $0x40] sm:$0xff] 0.0
    %28 = vst [vmem:[#allocation2 + $0x48] sm:$0xff] 0.0
    %29 = vst [vmem:[#allocation2 + $0x50] sm:$0xff] 0.0
    %30 = vst [vmem:[#allocation2 + $0x58] sm:$0xff] 0.0
    %31 = vst [vmem:[#allocation2 + $0x60] sm:$0xff] 0.0
    %32 = vst [vmem:[#allocation2 + $0x68] sm:$0xff] 0.0
    %33 = vst [vmem:[#allocation2 + $0x70] sm:$0xff] 0.0
    %34 = vst [vmem:[#allocation2 + $0x78] sm:$0xff] 0.0
  $region17: #{lednet_forward.82} parent=0 // pred_fallthru
    _
  %v35 = vld [vmem:[#allocation2] sm:$0xff]
  %v36 = vld [vmem:[#allocation2 + $0x8] sm:$0xff]
  %v37 = vld [vmem:[#allocation2 + $0x10] sm:$0xff]
  %v38 = vld [vmem:[#allocation2 + $0x18] sm:$0xff]
  %v39 = vld [vmem:[#allocation2 + $0x20] sm:$0xff]
  %v40 = vld [vmem:[#allocation2 + $0x28] sm:$0xff]
  %v41 = vld [vmem:[#allocation2 + $0x30] sm:$0xff]
  %v42 = vld [vmem:[#allocation2 + $0x38] sm:$0xff]
  %v43 = vld [vmem:[#allocation2 + $0x40] sm:$0xff]
  %v44 = vld [vmem:[#allocation2 + $0x48] sm:$0xff]
  %v45 = vld [vmem:[#allocation2 + $0x50] sm:$0xff]
  %v46 = vld [vmem:[#allocation2 + $0x58] sm:$0xff]
  %v47 = vld [vmem:[#allocation2 + $0x60] sm:$0xff]
  %v48 = vld [vmem:[#allocation2 + $0x68] sm:$0xff]
  %v49 = vld [vmem:[#allocation2 + $0x70] sm:$0xff]
  %v50 = vld [vmem:[#allocation2 + $0x78] sm:$0xff]
  %v51 = vld [vmem:[%s0] sm:$0xff]
  %v52 = vld [vmem:[%s0 + $0x8] sm:$0xff]
  %v53 = vld [vmem:[%s0 + $0x10] sm:$0xff]
  %v54 = vld [vmem:[%s0 + $0x18] sm:$0xff]
  %v55 = vld [vmem:[%s0 + $0x20] sm:$0xff]
  %v56 = vld [vmem:[%s0 + $0x28] sm:$0xff]
  %v57 = vld [vmem:[%s0 + $0x30] sm:$0xff]
  %v58 = vld [vmem:[%s0 + $0x38] sm:$0xff]
  %v59 = vld [vmem:[%s0 + $0x40] sm:$0xff]
  %v60 = vld [vmem:[%s0 + $0x48] sm:$0xff]
  %v61 = vld [vmem:[%s0 + $0x50] sm:$0xff]
  %v62 = vld [vmem:[%s0 + $0x58] sm:$0xff]
  %v63 = vld [vmem:[%s0 + $0x60] sm:$0xff]
  %v64 = vld [vmem:[%s0 + $0x68] sm:$0xff]
  %v65 = vld [vmem:[%s0 + $0x70] sm:$0xff]
  %v66 = vld [vmem:[%s0 + $0x78] sm:$0xff]
  %v67 = vld [vmem:[%s1] sm:$0xf]
  %v68 = vld [vmem:[%s1 + $0x4] sm:$0xf]
  %v69 = vld [vmem:[%s1 + $0x8] sm:$0xf]
  %v70 = vld [vmem:[%s1 + $0xc] sm:$0xf]
  %v71 = vld [vmem:[%s1 + $0x10] sm:$0xf]
  %v72 = vld [vmem:[%s1 + $0x14] sm:$0xf]
  %v73 = vld [vmem:[%s1 + $0x18] sm:$0xf]
  %v74 = vld [vmem:[%s1 + $0x1c] sm:$0xf]
  %v75 = vld [vmem:[%s1 + $0x20] sm:$0xf]
  %v76 = vld [vmem:[%s1 + $0x24] sm:$0xf]
  %v77 = vld [vmem:[%s1 + $0x28] sm:$0xf]
  %v78 = vld [vmem:[%s1 + $0x2c] sm:$0xf]
  %v79 = vld [vmem:[%s1 + $0x30] sm:$0xf]
  %v80 = vld [vmem:[%s1 + $0x34] sm:$0xf]
  %v81 = vld [vmem:[%s1 + $0x38] sm:$0xf]
  %v82 = vld [vmem:[%s1 + $0x3c] sm:$0xf]
  %v83 = vld [vmem:[%s1 + $0x40] sm:$0xf]
  %v84 = vld [vmem:[%s1 + $0x44] sm:$0xf]
  %v85 = vld [vmem:[%s1 + $0x48] sm:$0xf]
  %v86 = vld [vmem:[%s1 + $0x4c] sm:$0xf]
  %v87 = vld [vmem:[%s1 + $0x50] sm:$0xf]
  %v88 = vld [vmem:[%s1 + $0x54] sm:$0xf]
  %v89 = vld [vmem:[%s1 + $0x58] sm:$0xf]
  %v90 = vld [vmem:[%s1 + $0x5c] sm:$0xf]
  %v91 = vld [vmem:[%s1 + $0x60] sm:$0xf]
  %v92 = vld [vmem:[%s1 + $0x64] sm:$0xf]
  %v93 = vld [vmem:[%s1 + $0x68] sm:$0xf]
  %v94 = vld [vmem:[%s1 + $0x6c] sm:$0xf]
  %v95 = vld [vmem:[%s1 + $0x70] sm:$0xf]
  %v96 = vld [vmem:[%s1 + $0x74] sm:$0xf]
  %v97 = vld [vmem:[%s1 + $0x78] sm:$0xf]
  %v98 = vld [vmem:[%s1 + $0x7c] sm:$0xf]
  %v115 = vunpack.c.l.b16 %v51
  %v116 = vunpack.c.h.b16 %v51
  %v117 = vunpack.c.l.b16 %v52
  %v118 = vunpack.c.h.b16 %v52
  %v119 = vunpack.c.l.b16 %v53
  %v120 = vunpack.c.h.b16 %v53
  %v121 = vunpack.c.l.b16 %v54
  %v122 = vunpack.c.h.b16 %v54
  %v123 = vunpack.c.l.b16 %v55
  %v124 = vunpack.c.h.b16 %v55
  %v125 = vunpack.c.l.b16 %v56
  %v126 = vunpack.c.h.b16 %v56
  %v127 = vunpack.c.l.b16 %v57
  %v128 = vunpack.c.h.b16 %v57
  %v129 = vunpack.c.l.b16 %v58
  %v130 = vunpack.c.h.b16 %v58
  %v131 = vunpack.c.l.b16 %v59
  %v132 = vunpack.c.h.b16 %v59
  %v133 = vunpack.c.l.b16 %v60
  %v134 = vunpack.c.h.b16 %v60
  %v135 = vunpack.c.l.b16 %v61
  %v136 = vunpack.c.h.b16 %v61
  %v137 = vunpack.c.l.b16 %v62
  %v138 = vunpack.c.h.b16 %v62
  %v139 = vunpack.c.l.b16 %v63
  %v140 = vunpack.c.h.b16 %v63
  %v141 = vunpack.c.l.b16 %v64
  %v142 = vunpack.c.h.b16 %v64
  %v143 = vunpack.c.l.b16 %v65
  %v144 = vunpack.c.h.b16 %v65
  %v145 = vunpack.c.l.b16 %v66
  %v146 = vunpack.c.h.b16 %v66
  %v147 = vpack.c.b16 %v117, %v115
  %v148 = vpack.c.b16 %v118, %v116
  %v149 = vpack.c.b16 %v121, %v119
  %v150 = vpack.c.b16 %v122, %v120
  %v151 = vpack.c.b16 %v125, %v123
  %v152 = vpack.c.b16 %v126, %v124
  %v153 = vpack.c.b16 %v129, %v127
  %v154 = vpack.c.b16 %v130, %v128
  %v155 = vpack.c.b16 %v133, %v131
  %v156 = vpack.c.b16 %v134, %v132
  %v157 = vpack.c.b16 %v137, %v135
  %v158 = vpack.c.b16 %v138, %v136
  %v159 = vpack.c.b16 %v141, %v139
  %v160 = vpack.c.b16 %v142, %v140
  %v161 = vpack.c.b16 %v145, %v143
  %v162 = vpack.c.b16 %v146, %v144
  %v211 = vunpack.c.l.b16 %v67
  %v212 = vunpack.c.l.b16 %v68
  %v213 = vunpack.c.l.b16 %v69
  %v214 = vunpack.c.l.b16 %v70
  %v215 = vunpack.c.l.b16 %v71
  %v216 = vunpack.c.l.b16 %v72
  %v217 = vunpack.c.l.b16 %v73
  %v218 = vunpack.c.l.b16 %v74
  %v219 = vunpack.c.l.b16 %v75
  %v220 = vunpack.c.l.b16 %v76
  %v221 = vunpack.c.l.b16 %v77
  %v222 = vunpack.c.l.b16 %v78
  %v223 = vunpack.c.l.b16 %v79
  %v224 = vunpack.c.l.b16 %v80
  %v225 = vunpack.c.l.b16 %v81
  %v226 = vunpack.c.l.b16 %v82
  %v227 = vunpack.c.l.b16 %v83
  %v228 = vunpack.c.l.b16 %v84
  %v229 = vunpack.c.l.b16 %v85
  %v230 = vunpack.c.l.b16 %v86
  %v231 = vunpack.c.l.b16 %v87
  %v232 = vunpack.c.l.b16 %v88
  %v233 = vunpack.c.l.b16 %v89
  %v234 = vunpack.c.l.b16 %v90
  %v235 = vunpack.c.l.b16 %v91
  %v236 = vunpack.c.l.b16 %v92
  %v237 = vunpack.c.l.b16 %v93
  %v238 = vunpack.c.l.b16 %v94
  %v239 = vunpack.c.l.b16 %v95
  %v240 = vunpack.c.l.b16 %v96
  %v241 = vunpack.c.l.b16 %v97
  %v242 = vunpack.c.l.b16 %v98
  %v243 = vpack.c.b16 %v212, %v211
  %v244 = vpack.c.b16 %v214, %v213
  %v245 = vpack.c.b16 %v216, %v215
  %v246 = vpack.c.b16 %v218, %v217
  %v247 = vpack.c.b16 %v220, %v219
  %v248 = vpack.c.b16 %v222, %v221
  %v249 = vpack.c.b16 %v224, %v223
  %v250 = vpack.c.b16 %v226, %v225
  %v251 = vpack.c.b16 %v228, %v227
  %v252 = vpack.c.b16 %v230, %v229
  %v253 = vpack.c.b16 %v232, %v231
  %v254 = vpack.c.b16 %v234, %v233
  %v255 = vpack.c.b16 %v236, %v235
  %v256 = vpack.c.b16 %v238, %v237
  %v257 = vpack.c.b16 %v240, %v239
  %v258 = vpack.c.b16 %v242, %v241
  %275 = vmatprep.subr.bf16.mxu0 0
  %276 = vmatpush1.bf16.msra.mxu0 %v250
  %277 = vmatprep.subr.bf16.mxu0 0
  %278 = vmatpush1.bf16.msra.mxu0 %v249
  %279 = vmatprep.subr.bf16.mxu0 0
  %280 = vmatpush1.bf16.msra.mxu0 %v248
  %281 = vmatprep.subr.bf16.mxu0 0
  %282 = vmatpush1.bf16.msra.mxu0 %v247
  %283 = vmatprep.subr.bf16.mxu0 0
  %284 = vmatpush1.bf16.msra.mxu0 %v246
  %285 = vmatprep.subr.bf16.mxu0 0
  %286 = vmatpush1.bf16.msra.mxu0 %v245
  %287 = vmatprep.subr.bf16.mxu0 0
  %288 = vmatpush1.bf16.msra.mxu0 %v244
  %289 = vmatprep.subr.bf16.mxu0 0
  %290 = vmatpush1.bf16.msra.mxu0 %v243
  %291 = vmatprep.subr.bf16.mxu0 0
  %292 = vmatpush2.bf16.msra.mxu0 %v258
  %293 = vmatprep.subr.bf16.mxu0 0
  %294 = vmatpush2.bf16.msra.mxu0 %v257
  %295 = vmatprep.subr.bf16.mxu0 0
  %296 = vmatpush2.bf16.msra.mxu0 %v256
  %297 = vmatprep.subr.bf16.mxu0 0
  %298 = vmatpush2.bf16.msra.mxu0 %v255
  %299 = vmatprep.subr.bf16.mxu0 0
  %300 = vmatpush2.bf16.msra.mxu0 %v254
  %301 = vmatprep.subr.bf16.mxu0 0
  %302 = vmatpush2.bf16.msra.mxu0 %v253
  %303 = vmatprep.subr.bf16.mxu0 0
  %304 = vmatpush2.bf16.msra.mxu0 %v252
  %305 = vmatprep.subr.bf16.mxu0 0
  %306 = vmatpush2.bf16.msra.mxu0 %v251
  %307 = vmatprep.mubr.bf16.mxu0 %v148
  %308 = vmatmul.mubr.bf16.gmra.mxu0 %v147
  %v309 = vpop.f32.mrf.mxu0
  %v310 = vadd.f32 0.0, %v309
  %v311 = vpop.f32.mrf.mxu0
  %v312 = vpop.f32.mrf.mxu0
  %v313 = vadd.f32 0.0, %v312
  %v314 = vpop.f32.mrf.mxu0
  %315 = vmatprep.mubr.bf16.mxu0 %v150
  %316 = vmatmul.mubr.bf16.gmra.mxu0 %v149
  %v317 = vpop.f32.mrf.mxu0
  %v318 = vadd.f32 0.0, %v317
  %v319 = vpop.f32.mrf.mxu0
  %v320 = vpop.f32.mrf.mxu0
  %v321 = vadd.f32 0.0, %v320
  %v322 = vpop.f32.mrf.mxu0
  %323 = vmatprep.mubr.bf16.mxu0 %v152
  %324 = vmatmul.mubr.bf16.gmra.mxu0 %v151
  %v325 = vpop.f32.mrf.mxu0
  %v326 = vadd.f32 0.0, %v325
  %v327 = vpop.f32.mrf.mxu0
  %v328 = vpop.f32.mrf.mxu0
  %v329 = vadd.f32 0.0, %v328
  %v330 = vpop.f32.mrf.mxu0
  %331 = vmatprep.mubr.bf16.mxu0 %v154
  %332 = vmatmul.mubr.bf16.gmra.mxu0 %v153
  %v333 = vpop.f32.mrf.mxu0
  %v334 = vadd.f32 0.0, %v333
  %v335 = vpop.f32.mrf.mxu0
  %v336 = vpop.f32.mrf.mxu0
  %v337 = vadd.f32 0.0, %v336
  %v338 = vpop.f32.mrf.mxu0
  %339 = vmatprep.mubr.bf16.mxu0 %v156
  %340 = vmatmul.mubr.bf16.gmra.mxu0 %v155
  %v341 = vpop.f32.mrf.mxu0
  %v342 = vadd.f32 0.0, %v341
  %v343 = vpop.f32.mrf.mxu0
  %v344 = vpop.f32.mrf.mxu0
  %v345 = vadd.f32 0.0, %v344
  %v346 = vpop.f32.mrf.mxu0
  %347 = vmatprep.mubr.bf16.mxu0 %v158
  %348 = vmatmul.mubr.bf16.gmra.mxu0 %v157
  %v349 = vpop.f32.mrf.mxu0
  %v350 = vadd.f32 0.0, %v349
  %v351 = vpop.f32.mrf.mxu0
  %v352 = vpop.f32.mrf.mxu0
  %v353 = vadd.f32 0.0, %v352
  %v354 = vpop.f32.mrf.mxu0
  %355 = vmatprep.mubr.bf16.mxu0 %v160
  %356 = vmatmul.mubr.bf16.gmra.mxu0 %v159
  %v357 = vpop.f32.mrf.mxu0
  %v358 = vadd.f32 0.0, %v357
  %v359 = vpop.f32.mrf.mxu0
  %v360 = vpop.f32.mrf.mxu0
  %v361 = vadd.f32 0.0, %v360
  %v362 = vpop.f32.mrf.mxu0
  %363 = vmatprep.mubr.bf16.mxu0 %v162
  %364 = vmatmul.mubr.bf16.gmra.mxu0 %v161
  %v365 = vpop.f32.mrf.mxu0
  %v366 = vadd.f32 0.0, %v365
  %v367 = vpop.f32.mrf.mxu0
  %v368 = vpop.f32.mrf.mxu0
  %v369 = vadd.f32 0.0, %v368
  %v370 = vpop.f32.mrf.mxu0
  %371 = vdwg.mxu0
  %v372 = vadd.f32 %v35, %v310
  %v373 = vadd.f32 %v36, %v313
  %v374 = vadd.f32 %v37, %v318
  %v375 = vadd.f32 %v38, %v321
  %v376 = vadd.f32 %v39, %v326
  %v377 = vadd.f32 %v40, %v329
  %v378 = vadd.f32 %v41, %v334
  %v379 = vadd.f32 %v42, %v337
  %v380 = vadd.f32 %v43, %v342
  %v381 = vadd.f32 %v44, %v345
  %v382 = vadd.f32 %v45, %v350
  %v383 = vadd.f32 %v46, %v353
  %v384 = vadd.f32 %v47, %v358
  %v385 = vadd.f32 %v48, %v361
  %v386 = vadd.f32 %v49, %v366
  %v387 = vadd.f32 %v50, %v369
  %388 = vst [vmem:[#allocation2] sm:$0xff] %v372
  %389 = vst [vmem:[#allocation2 + $0x8] sm:$0xff] %v373
  %390 = vst [vmem:[#allocation2 + $0x10] sm:$0xff] %v374
  %391 = vst [vmem:[#allocation2 + $0x18] sm:$0xff] %v375
  %392 = vst [vmem:[#allocation2 + $0x20] sm:$0xff] %v376
  %393 = vst [vmem:[#allocation2 + $0x28] sm:$0xff] %v377
  %394 = vst [vmem:[#allocation2 + $0x30] sm:$0xff] %v378
  %395 = vst [vmem:[#allocation2 + $0x38] sm:$0xff] %v379
  %396 = vst [vmem:[#allocation2 + $0x40] sm:$0xff] %v380
  %397 = vst [vmem:[#allocation2 + $0x48] sm:$0xff] %v381
  %398 = vst [vmem:[#allocation2 + $0x50] sm:$0xff] %v382
  %399 = vst [vmem:[#allocation2 + $0x58] sm:$0xff] %v383
  %400 = vst [vmem:[#allocation2 + $0x60] sm:$0xff] %v384
  %401 = vst [vmem:[#allocation2 + $0x68] sm:$0xff] %v385
  %402 = vst [vmem:[#allocation2 + $0x70] sm:$0xff] %v386
  %403 = vst [vmem:[#allocation2 + $0x78] sm:$0xff] %v387
  // Predicated region
  $region18: #{lednet_forward.82} parent=0 // pred_check
    %p404 = pneg %p15
  $region19: #{lednet_forward.82} parent=0 // pred_check_branch
    %406 = sbr.rel (%p404) target = $region21
  $region20: #{lednet_forward.82} parent=0 // pred_region
    %v407 = vld [vmem:[#allocation2] sm:$0xff]
    %v408 = vld [vmem:[#allocation2 + $0x8] sm:$0xff]
    %v409 = vld [vmem:[#allocation2 + $0x10] sm:$0xff]
    %v410 = vld [vmem:[#allocation2 + $0x18] sm:$0xff]
    %v411 = vld [vmem:[#allocation2 + $0x20] sm:$0xff]
    %v412 = vld [vmem:[#allocation2 + $0x28] sm:$0xff]
    %v413 = vld [vmem:[#allocation2 + $0x30] sm:$0xff]
    %v414 = vld [vmem:[#allocation2 + $0x38] sm:$0xff]
    %v415 = vld [vmem:[#allocation2 + $0x40] sm:$0xff]
    %v416 = vld [vmem:[#allocation2 + $0x48] sm:$0xff]
    %v417 = vld [vmem:[#allocation2 + $0x50] sm:$0xff]
    %v418 = vld [vmem:[#allocation2 + $0x58] sm:$0xff]
    %v419 = vld [vmem:[#allocation2 + $0x60] sm:$0xff]
    %v420 = vld [vmem:[#allocation2 + $0x68] sm:$0xff]
    %v421 = vld [vmem:[#allocation2 + $0x70] sm:$0xff]
    %v422 = vld [vmem:[#allocation2 + $0x78] sm:$0xff]
    %v423 = vld [vmem:[%s2] sm:$0x1]
    %v425 = vlaneseq
    %v426 = vshrl.u32 %v425, 7
    %v427 = vsub.s32 0, %v426
    %v428 = vrot.slane %v423, %v427
    %v430 = vadd.f32 %v407, %v428
    %v431 = vadd.f32 %v408, %v428
    %v432 = vadd.f32 %v409, %v428
    %v433 = vadd.f32 %v410, %v428
    %v434 = vadd.f32 %v411, %v428
    %v435 = vadd.f32 %v412, %v428
    %v436 = vadd.f32 %v413, %v428
    %v437 = vadd.f32 %v414, %v428
    %v438 = vadd.f32 %v415, %v428
    %v439 = vadd.f32 %v416, %v428
    %v440 = vadd.f32 %v417, %v428
    %v441 = vadd.f32 %v418, %v428
    %v442 = vadd.f32 %v419, %v428
    %v443 = vadd.f32 %v420, %v428
    %v444 = vadd.f32 %v421, %v428
    %v445 = vadd.f32 %v422, %v428
    %vm446 = vcmp.ge.f32.partialorder %v430, 0.0
    %vm447 = vcmp.ge.f32.partialorder %v431, 0.0
    %vm448 = vcmp.ge.f32.partialorder %v432, 0.0
    %vm449 = vcmp.ge.f32.partialorder %v433, 0.0
    %vm450 = vcmp.ge.f32.partialorder %v434, 0.0
    %vm451 = vcmp.ge.f32.partialorder %v435, 0.0
    %vm452 = vcmp.ge.f32.partialorder %v436, 0.0
    %vm453 = vcmp.ge.f32.partialorder %v437, 0.0
    %vm454 = vcmp.ge.f32.partialorder %v438, 0.0
    %vm455 = vcmp.ge.f32.partialorder %v439, 0.0
    %vm456 = vcmp.ge.f32.partialorder %v440, 0.0
    %vm457 = vcmp.ge.f32.partialorder %v441, 0.0
    %vm458 = vcmp.ge.f32.partialorder %v442, 0.0
    %vm459 = vcmp.ge.f32.partialorder %v443, 0.0
    %vm460 = vcmp.ge.f32.partialorder %v444, 0.0
    %vm461 = vcmp.ge.f32.partialorder %v445, 0.0
    %v462 = vmul.f32 %v430, 0.25
    %v463 = vmul.f32 %v431, 0.25
    %v464 = vmul.f32 %v432, 0.25
    %v465 = vmul.f32 %v433, 0.25
    %v466 = vmul.f32 %v434, 0.25
    %v467 = vmul.f32 %v435, 0.25
    %v468 = vmul.f32 %v436, 0.25
    %v469 = vmul.f32 %v437, 0.25
    %v470 = vmul.f32 %v438, 0.25
    %v471 = vmul.f32 %v439, 0.25
    %v472 = vmul.f32 %v440, 0.25
    %v473 = vmul.f32 %v441, 0.25
    %v474 = vmul.f32 %v442, 0.25
    %v475 = vmul.f32 %v443, 0.25
    %v476 = vmul.f32 %v444, 0.25
    %v477 = vmul.f32 %v445, 0.25
    %v478 = vsel %vm446, %v430, %v462
    %v479 = vsel %vm447, %v431, %v463
    %v480 = vsel %vm448, %v432, %v464
    %v481 = vsel %vm449, %v433, %v465
    %v482 = vsel %vm450, %v434, %v466
    %v483 = vsel %vm451, %v435, %v467
    %v484 = vsel %vm452, %v436, %v468
    %v485 = vsel %vm453, %v437, %v469
    %v486 = vsel %vm454, %v438, %v470
    %v487 = vsel %vm455, %v439, %v471
    %v488 = vsel %vm456, %v440, %v472
    %v489 = vsel %vm457, %v441, %v473
    %v490 = vsel %vm458, %v442, %v474
    %v491 = vsel %vm459, %v443, %v475
    %v492 = vsel %vm460, %v444, %v476
    %v493 = vsel %vm461, %v445, %v477
    %v494 = vpack.c.bf16 %v479, %v478
    %v495 = vpack.c.bf16 %v481, %v480
    %v496 = vpack.c.bf16 %v483, %v482
    %v497 = vpack.c.bf16 %v485, %v484
    %v498 = vpack.c.bf16 %v487, %v486
    %v499 = vpack.c.bf16 %v489, %v488
    %v500 = vpack.c.bf16 %v491, %v490
    %v501 = vpack.c.bf16 %v493, %v492
    %v510 = vunpack.c.l.b16 %v494
    %v511 = vunpack.c.h.b16 %v494
    %v512 = vunpack.c.l.b16 %v495
    %v513 = vunpack.c.h.b16 %v495
    %v514 = vunpack.c.l.b16 %v496
    %v515 = vunpack.c.h.b16 %v496
    %v516 = vunpack.c.l.b16 %v497
    %v517 = vunpack.c.h.b16 %v497
    %v518 = vunpack.c.l.b16 %v498
    %v519 = vunpack.c.h.b16 %v498
    %v520 = vunpack.c.l.b16 %v499
    %v521 = vunpack.c.h.b16 %v499
    %v522 = vunpack.c.l.b16 %v500
    %v523 = vunpack.c.h.b16 %v500
    %v524 = vunpack.c.l.b16 %v501
    %v525 = vunpack.c.h.b16 %v501
    %v526 = vpack.c.b16 %v510, %v510
    %v527 = vpack.c.b16 %v511, %v511
    %v528 = vpack.c.b16 %v512, %v512
    %v529 = vpack.c.b16 %v513, %v513
    %v530 = vpack.c.b16 %v514, %v514
    %v531 = vpack.c.b16 %v515, %v515
    %v532 = vpack.c.b16 %v516, %v516
    %v533 = vpack.c.b16 %v517, %v517
    %v534 = vpack.c.b16 %v518, %v518
    %v535 = vpack.c.b16 %v519, %v519
    %v536 = vpack.c.b16 %v520, %v520
    %v537 = vpack.c.b16 %v521, %v521
    %v538 = vpack.c.b16 %v522, %v522
    %v539 = vpack.c.b16 %v523, %v523
    %v540 = vpack.c.b16 %v524, %v524
    %v541 = vpack.c.b16 %v525, %v525
    %558 = vst [vmem:[%s3] sm:$0xf] %v526
    %559 = vst [vmem:[%s3 + $0x4] sm:$0xf] %v527
    %560 = vst [vmem:[%s3 + $0x8] sm:$0xf] %v528
    %561 = vst [vmem:[%s3 + $0xc] sm:$0xf] %v529
    %562 = vst [vmem:[%s3 + $0x10] sm:$0xf] %v530
    %563 = vst [vmem:[%s3 + $0x14] sm:$0xf] %v531
    %564 = vst [vmem:[%s3 + $0x18] sm:$0xf] %v532
    %565 = vst [vmem:[%s3 + $0x1c] sm:$0xf] %v533
    %566 = vst [vmem:[%s3 + $0x20] sm:$0xf] %v534
    %567 = vst [vmem:[%s3 + $0x24] sm:$0xf] %v535
    %568 = vst [vmem:[%s3 + $0x28] sm:$0xf] %v536
    %569 = vst [vmem:[%s3 + $0x2c] sm:$0xf] %v537
    %570 = vst [vmem:[%s3 + $0x30] sm:$0xf] %v538
    %571 = vst [vmem:[%s3 + $0x34] sm:$0xf] %v539
    %572 = vst [vmem:[%s3 + $0x38] sm:$0xf] %v540
    %573 = vst [vmem:[%s3 + $0x3c] sm:$0xf] %v541
  $region21: #{lednet_forward.82} parent=0 // pred_fallthru
    _
  // Predicated region
  $region22: #{lednet_forward.82} parent=0 // pred_check
    _
  $region23: #{lednet_forward.82} parent=0 // pred_check_branch
    %575 = sbr.rel (0) target = $region25
  $region24: #{lednet_forward.82} parent=0 // pred_region
    _
  $region25: #{lednet_forward.82} parent=0 // pred_fallthru
    _
  // Predicated region
  $region26: #{lednet_forward.82} parent=0 // pred_check
    _
  $region27: #{lednet_forward.82} parent=0 // pred_check_branch
    %577 = sbr.rel (0) target = $region29
  $region28: #{lednet_forward.82} parent=0 // pred_region
    _
  $region29: #{lednet_forward.82} parent=0 // pred_fallthru
    _

// kernel: lednet_forward.85
$region0: #{lednet_forward.85}
  #allocation0 [shape = 'u32[]', space=smem, size = 0x4, offset = 0x4, fixed_abs, tag = 'smem constant byte address 0x4 - core index']
  #allocation1 [shape = 'u32[144,128]{1,0:T(1,128)}', space=vmem, size = 0x12000, scoped, tag = 'internal scratch']
  #allocation2 [shape = 'f32[128,128]{1,0:T(8,128)}', space=vmem, size = 0x10000, scoped, tag = 'scratch operand']
  %s0 = inlined_call_operand.vmem [shape: bf16[128,256], index: 0, kind: input, shape index: {}]
  %s1 = inlined_call_operand.vmem [shape: bf16[256,128], index: 1, kind: input, shape index: {}]
  %s2 = inlined_call_operand.vmem [shape: f32[1,128], index: 2, kind: input, shape index: {}]
  %s3 = inlined_call_operand.vmem [shape: bf16[128,128], index: 3, kind: input, shape index: {}]
  %s4 = inlined_call_operand.vmem [shape: bf16[128,128], index: 4, kind: output, shape index: {}]
  %s5 = sld [smem:[#allocation0]]
  $region34: #{lednet_forward.85} parent=0
    _
  %s7 = ssub.s32 1, %s5
  %s8 = scalar_select 0, %s7, %s5
  // Predicated region
  $region2: #{lednet_forward.85} parent=0 // pred_check
    _
  $region3: #{lednet_forward.85} parent=0 // pred_check_branch
    %10 = sbr.rel (0) target = $region5
  $region4: #{lednet_forward.85} parent=0 // pred_region
    _
  $region5: #{lednet_forward.85} parent=0 // pred_fallthru
    _
  // Predicated region
  $region6: #{lednet_forward.85} parent=0 // pred_check
    _
  $region7: #{lednet_forward.85} parent=0 // pred_check_branch
    %12 = sbr.rel (0) target = $region9
  $region8: #{lednet_forward.85} parent=0 // pred_region
    _
  $region9: #{lednet_forward.85} parent=0 // pred_fallthru
    _
  // Predicated region
  $region10: #{lednet_forward.85} parent=0 // pred_check
    _
  $region11: #{lednet_forward.85} parent=0 // pred_check_branch
    %14 = sbr.rel (0) target = $region13
  $region12: #{lednet_forward.85} parent=0 // pred_region
    _
  $region13: #{lednet_forward.85} parent=0 // pred_fallthru
    _
  // Predicated region
  $region14: #{lednet_forward.85} parent=0 // pred_check
    _
  $region15: #{lednet_forward.85} parent=0 // pred_check_branch
    %16 = sbr.rel (0) target = $region17
  $region16: #{lednet_forward.85} parent=0 // pred_region
    _
  $region17: #{lednet_forward.85} parent=0 // pred_fallthru
    _
  %p18 = scmp.eq.s32.totalorder 0, 0
  // Predicated region
  $region18: #{lednet_forward.85} parent=0 // pred_check
    %p19 = pneg %p18
  $region19: #{lednet_forward.85} parent=0 // pred_check_branch
    %21 = sbr.rel (%p19) target = $region21
  $region20: #{lednet_forward.85} parent=0 // pred_region
    %22 = vst [vmem:[#allocation2] sm:$0xff] 0.0
    %23 = vst [vmem:[#allocation2 + $0x8] sm:$0xff] 0.0
    %24 = vst [vmem:[#allocation2 + $0x10] sm:$0xff] 0.0
    %25 = vst [vmem:[#allocation2 + $0x18] sm:$0xff] 0.0
    %26 = vst [vmem:[#allocation2 + $0x20] sm:$0xff] 0.0
    %27 = vst [vmem:[#allocation2 + $0x28] sm:$0xff] 0.0
    %28 = vst [vmem:[#allocation2 + $0x30] sm:$0xff] 0.0
    %29 = vst [vmem:[#allocation2 + $0x38] sm:$0xff] 0.0
    %30 = vst [vmem:[#allocation2 + $0x40] sm:$0xff] 0.0
    %31 = vst [vmem:[#allocation2 + $0x48] sm:$0xff] 0.0
    %32 = vst [vmem:[#allocation2 + $0x50] sm:$0xff] 0.0
    %33 = vst [vmem:[#allocation2 + $0x58] sm:$0xff] 0.0
    %34 = vst [vmem:[#allocation2 + $0x60] sm:$0xff] 0.0
    %35 = vst [vmem:[#allocation2 + $0x68] sm:$0xff] 0.0
    %36 = vst [vmem:[#allocation2 + $0x70] sm:$0xff] 0.0
    %37 = vst [vmem:[#allocation2 + $0x78] sm:$0xff] 0.0
  $region21: #{lednet_forward.85} parent=0 // pred_fallthru
    _
  %v38 = vld [vmem:[#allocation2] sm:$0xff]
  %v39 = vld [vmem:[#allocation2 + $0x8] sm:$0xff]
  %v40 = vld [vmem:[#allocation2 + $0x10] sm:$0xff]
  %v41 = vld [vmem:[#allocation2 + $0x18] sm:$0xff]
  %v42 = vld [vmem:[#allocation2 + $0x20] sm:$0xff]
  %v43 = vld [vmem:[#allocation2 + $0x28] sm:$0xff]
  %v44 = vld [vmem:[#allocation2 + $0x30] sm:$0xff]
  %v45 = vld [vmem:[#allocation2 + $0x38] sm:$0xff]
  %v46 = vld [vmem:[#allocation2 + $0x40] sm:$0xff]
  %v47 = vld [vmem:[#allocation2 + $0x48] sm:$0xff]
  %v48 = vld [vmem:[#allocation2 + $0x50] sm:$0xff]
  %v49 = vld [vmem:[#allocation2 + $0x58] sm:$0xff]
  %v50 = vld [vmem:[#allocation2 + $0x60] sm:$0xff]
  %v51 = vld [vmem:[#allocation2 + $0x68] sm:$0xff]
  %v52 = vld [vmem:[#allocation2 + $0x70] sm:$0xff]
  %v53 = vld [vmem:[#allocation2 + $0x78] sm:$0xff]
  %v54 = vld [vmem:[%s0] sm:$0xff]
  %v55 = vld [vmem:[%s0 + $0x8] sm:$0xff]
  %v56 = vld [vmem:[%s0 + $0x10] sm:$0xff]
  %v57 = vld [vmem:[%s0 + $0x18] sm:$0xff]
  %v58 = vld [vmem:[%s0 + $0x20] sm:$0xff]
  %v59 = vld [vmem:[%s0 + $0x28] sm:$0xff]
  %v60 = vld [vmem:[%s0 + $0x30] sm:$0xff]
  %v61 = vld [vmem:[%s0 + $0x38] sm:$0xff]
  %v62 = vld [vmem:[%s0 + $0x40] sm:$0xff]
  %v63 = vld [vmem:[%s0 + $0x48] sm:$0xff]
  %v64 = vld [vmem:[%s0 + $0x50] sm:$0xff]
  %v65 = vld [vmem:[%s0 + $0x58] sm:$0xff]
  %v66 = vld [vmem:[%s0 + $0x60] sm:$0xff]
  %v67 = vld [vmem:[%s0 + $0x68] sm:$0xff]
  %v68 = vld [vmem:[%s0 + $0x70] sm:$0xff]
  %v69 = vld [vmem:[%s0 + $0x78] sm:$0xff]
  %v70 = vld [vmem:[%s1] sm:$0xf]
  %v71 = vld [vmem:[%s1 + $0x4] sm:$0xf]
  %v72 = vld [vmem:[%s1 + $0x8] sm:$0xf]
  %v73 = vld [vmem:[%s1 + $0xc] sm:$0xf]
  %v74 = vld [vmem:[%s1 + $0x10] sm:$0xf]
  %v75 = vld [vmem:[%s1 + $0x14] sm:$0xf]
  %v76 = vld [vmem:[%s1 + $0x18] sm:$0xf]
  %v77 = vld [vmem:[%s1 + $0x1c] sm:$0xf]
  %v78 = vld [vmem:[%s1 + $0x20] sm:$0xf]
  %v79 = vld [vmem:[%s1 + $0x24] sm:$0xf]
  %v80 = vld [vmem:[%s1 + $0x28] sm:$0xf]
  %v81 = vld [vmem:[%s1 + $0x2c] sm:$0xf]
  %v82 = vld [vmem:[%s1 + $0x30] sm:$0xf]
  %v83 = vld [vmem:[%s1 + $0x34] sm:$0xf]
  %v84 = vld [vmem:[%s1 + $0x38] sm:$0xf]
  %v85 = vld [vmem:[%s1 + $0x3c] sm:$0xf]
  %v86 = vld [vmem:[%s1 + $0x40] sm:$0xf]
  %v87 = vld [vmem:[%s1 + $0x44] sm:$0xf]
  %v88 = vld [vmem:[%s1 + $0x48] sm:$0xf]
  %v89 = vld [vmem:[%s1 + $0x4c] sm:$0xf]
  %v90 = vld [vmem:[%s1 + $0x50] sm:$0xf]
  %v91 = vld [vmem:[%s1 + $0x54] sm:$0xf]
  %v92 = vld [vmem:[%s1 + $0x58] sm:$0xf]
  %v93 = vld [vmem:[%s1 + $0x5c] sm:$0xf]
  %v94 = vld [vmem:[%s1 + $0x60] sm:$0xf]
  %v95 = vld [vmem:[%s1 + $0x64] sm:$0xf]
  %v96 = vld [vmem:[%s1 + $0x68] sm:$0xf]
  %v97 = vld [vmem:[%s1 + $0x6c] sm:$0xf]
  %v98 = vld [vmem:[%s1 + $0x70] sm:$0xf]
  %v99 = vld [vmem:[%s1 + $0x74] sm:$0xf]
  %v100 = vld [vmem:[%s1 + $0x78] sm:$0xf]
  %v101 = vld [vmem:[%s1 + $0x7c] sm:$0xf]
  %v118 = vunpack.c.l.b16 %v54
  %v119 = vunpack.c.h.b16 %v54
  %v120 = vunpack.c.l.b16 %v55
  %v121 = vunpack.c.h.b16 %v55
  %v122 = vunpack.c.l.b16 %v56
  %v123 = vunpack.c.h.b16 %v56
  %v124 = vunpack.c.l.b16 %v57
  %v125 = vunpack.c.h.b16 %v57
  %v126 = vunpack.c.l.b16 %v58
  %v127 = vunpack.c.h.b16 %v58
  %v128 = vunpack.c.l.b16 %v59
  %v129 = vunpack.c.h.b16 %v59
  %v130 = vunpack.c.l.b16 %v60
  %v131 = vunpack.c.h.b16 %v60
  %v132 = vunpack.c.l.b16 %v61
  %v133 = vunpack.c.h.b16 %v61
  %v134 = vunpack.c.l.b16 %v62
  %v135 = vunpack.c.h.b16 %v62
  %v136 = vunpack.c.l.b16 %v63
  %v137 = vunpack.c.h.b16 %v63
  %v138 = vunpack.c.l.b16 %v64
  %v139 = vunpack.c.h.b16 %v64
  %v140 = vunpack.c.l.b16 %v65
  %v141 = vunpack.c.h.b16 %v65
  %v142 = vunpack.c.l.b16 %v66
  %v143 = vunpack.c.h.b16 %v66
  %v144 = vunpack.c.l.b16 %v67
  %v145 = vunpack.c.h.b16 %v67
  %v146 = vunpack.c.l.b16 %v68
  %v147 = vunpack.c.h.b16 %v68
  %v148 = vunpack.c.l.b16 %v69
  %v149 = vunpack.c.h.b16 %v69
  %v150 = vpack.c.b16 %v120, %v118
  %v151 = vpack.c.b16 %v121, %v119
  %v152 = vpack.c.b16 %v124, %v122
  %v153 = vpack.c.b16 %v125, %v123
  %v154 = vpack.c.b16 %v128, %v126
  %v155 = vpack.c.b16 %v129, %v127
  %v156 = vpack.c.b16 %v132, %v130
  %v157 = vpack.c.b16 %v133, %v131
  %v158 = vpack.c.b16 %v136, %v134
  %v159 = vpack.c.b16 %v137, %v135
  %v160 = vpack.c.b16 %v140, %v138
  %v161 = vpack.c.b16 %v141, %v139
  %v162 = vpack.c.b16 %v144, %v142
  %v163 = vpack.c.b16 %v145, %v143
  %v164 = vpack.c.b16 %v148, %v146
  %v165 = vpack.c.b16 %v149, %v147
  %v214 = vunpack.c.l.b16 %v70
  %v215 = vunpack.c.l.b16 %v71
  %v216 = vunpack.c.l.b16 %v72
  %v217 = vunpack.c.l.b16 %v73
  %v218 = vunpack.c.l.b16 %v74
  %v219 = vunpack.c.l.b16 %v75
  %v220 = vunpack.c.l.b16 %v76
  %v221 = vunpack.c.l.b16 %v77
  %v222 = vunpack.c.l.b16 %v78
  %v223 = vunpack.c.l.b16 %v79
  %v224 = vunpack.c.l.b16 %v80
  %v225 = vunpack.c.l.b16 %v81
  %v226 = vunpack.c.l.b16 %v82
  %v227 = vunpack.c.l.b16 %v83
  %v228 = vunpack.c.l.b16 %v84
  %v229 = vunpack.c.l.b16 %v85
  %v230 = vunpack.c.l.b16 %v86
  %v231 = vunpack.c.l.b16 %v87
  %v232 = vunpack.c.l.b16 %v88
  %v233 = vunpack.c.l.b16 %v89
  %v234 = vunpack.c.l.b16 %v90
  %v235 = vunpack.c.l.b16 %v91
  %v236 = vunpack.c.l.b16 %v92
  %v237 = vunpack.c.l.b16 %v93
  %v238 = vunpack.c.l.b16 %v94
  %v239 = vunpack.c.l.b16 %v95
  %v240 = vunpack.c.l.b16 %v96
  %v241 = vunpack.c.l.b16 %v97
  %v242 = vunpack.c.l.b16 %v98
  %v243 = vunpack.c.l.b16 %v99
  %v244 = vunpack.c.l.b16 %v100
  %v245 = vunpack.c.l.b16 %v101
  %v246 = vpack.c.b16 %v215, %v214
  %v247 = vpack.c.b16 %v217, %v216
  %v248 = vpack.c.b16 %v219, %v218
  %v249 = vpack.c.b16 %v221, %v220
  %v250 = vpack.c.b16 %v223, %v222
  %v251 = vpack.c.b16 %v225, %v224
  %v252 = vpack.c.b16 %v227, %v226
  %v253 = vpack.c.b16 %v229, %v228
  %v254 = vpack.c.b16 %v231, %v230
  %v255 = vpack.c.b16 %v233, %v232
  %v256 = vpack.c.b16 %v235, %v234
  %v257 = vpack.c.b16 %v237, %v236
  %v258 = vpack.c.b16 %v239, %v238
  %v259 = vpack.c.b16 %v241, %v240
  %v260 = vpack.c.b16 %v243, %v242
  %v261 = vpack.c.b16 %v245, %v244
  %278 = vmatprep.subr.bf16.mxu0 0
  %279 = vmatpush1.bf16.msra.mxu0 %v253
  %280 = vmatprep.subr.bf16.mxu0 0
  %281 = vmatpush1.bf16.msra.mxu0 %v252
  %282 = vmatprep.subr.bf16.mxu0 0
  %283 = vmatpush1.bf16.msra.mxu0 %v251
  %284 = vmatprep.subr.bf16.mxu0 0
  %285 = vmatpush1.bf16.msra.mxu0 %v250
  %286 = vmatprep.subr.bf16.mxu0 0
  %287 = vmatpush1.bf16.msra.mxu0 %v249
  %288 = vmatprep.subr.bf16.mxu0 0
  %289 = vmatpush1.bf16.msra.mxu0 %v248
  %290 = vmatprep.subr.bf16.mxu0 0
  %291 = vmatpush1.bf16.msra.mxu0 %v247
  %292 = vmatprep.subr.bf16.mxu0 0
  %293 = vmatpush1.bf16.msra.mxu0 %v246
  %294 = vmatprep.subr.bf16.mxu0 0
  %295 = vmatpush2.bf16.msra.mxu0 %v261
  %296 = vmatprep.subr.bf16.mxu0 0
  %297 = vmatpush2.bf16.msra.mxu0 %v260
  %298 = vmatprep.subr.bf16.mxu0 0
  %299 = vmatpush2.bf16.msra.mxu0 %v259
  %300 = vmatprep.subr.bf16.mxu0 0
  %301 = vmatpush2.bf16.msra.mxu0 %v258
  %302 = vmatprep.subr.bf16.mxu0 0
  %303 = vmatpush2.bf16.msra.mxu0 %v257
  %304 = vmatprep.subr.bf16.mxu0 0
  %305 = vmatpush2.bf16.msra.mxu0 %v256
  %306 = vmatprep.subr.bf16.mxu0 0
  %307 = vmatpush2.bf16.msra.mxu0 %v255
  %308 = vmatprep.subr.bf16.mxu0 0
  %309 = vmatpush2.bf16.msra.mxu0 %v254
  %310 = vmatprep.mubr.bf16.mxu0 %v151
  %311 = vmatmul.mubr.bf16.gmra.mxu0 %v150
  %v312 = vpop.f32.mrf.mxu0
  %v313 = vadd.f32 0.0, %v312
  %v314 = vpop.f32.mrf.mxu0
  %v315 = vpop.f32.mrf.mxu0
  %v316 = vadd.f32 0.0, %v315
  %v317 = vpop.f32.mrf.mxu0
  %318 = vmatprep.mubr.bf16.mxu0 %v153
  %319 = vmatmul.mubr.bf16.gmra.mxu0 %v152
  %v320 = vpop.f32.mrf.mxu0
  %v321 = vadd.f32 0.0, %v320
  %v322 = vpop.f32.mrf.mxu0
  %v323 = vpop.f32.mrf.mxu0
  %v324 = vadd.f32 0.0, %v323
  %v325 = vpop.f32.mrf.mxu0
  %326 = vmatprep.mubr.bf16.mxu0 %v155
  %327 = vmatmul.mubr.bf16.gmra.mxu0 %v154
  %v328 = vpop.f32.mrf.mxu0
  %v329 = vadd.f32 0.0, %v328
  %v330 = vpop.f32.mrf.mxu0
  %v331 = vpop.f32.mrf.mxu0
  %v332 = vadd.f32 0.0, %v331
  %v333 = vpop.f32.mrf.mxu0
  %334 = vmatprep.mubr.bf16.mxu0 %v157
  %335 = vmatmul.mubr.bf16.gmra.mxu0 %v156
  %v336 = vpop.f32.mrf.mxu0
  %v337 = vadd.f32 0.0, %v336
  %v338 = vpop.f32.mrf.mxu0
  %v339 = vpop.f32.mrf.mxu0
  %v340 = vadd.f32 0.0, %v339
  %v341 = vpop.f32.mrf.mxu0
  %342 = vmatprep.mubr.bf16.mxu0 %v159
  %343 = vmatmul.mubr.bf16.gmra.mxu0 %v158
  %v344 = vpop.f32.mrf.mxu0
  %v345 = vadd.f32 0.0, %v344
  %v346 = vpop.f32.mrf.mxu0
  %v347 = vpop.f32.mrf.mxu0
  %v348 = vadd.f32 0.0, %v347
  %v349 = vpop.f32.mrf.mxu0
  %350 = vmatprep.mubr.bf16.mxu0 %v161
  %351 = vmatmul.mubr.bf16.gmra.mxu0 %v160
  %v352 = vpop.f32.mrf.mxu0
  %v353 = vadd.f32 0.0, %v352
  %v354 = vpop.f32.mrf.mxu0
  %v355 = vpop.f32.mrf.mxu0
  %v356 = vadd.f32 0.0, %v355
  %v357 = vpop.f32.mrf.mxu0
  %358 = vmatprep.mubr.bf16.mxu0 %v163
  %359 = vmatmul.mubr.bf16.gmra.mxu0 %v162
  %v360 = vpop.f32.mrf.mxu0
  %v361 = vadd.f32 0.0, %v360
  %v362 = vpop.f32.mrf.mxu0
  %v363 = vpop.f32.mrf.mxu0
  %v364 = vadd.f32 0.0, %v363
  %v365 = vpop.f32.mrf.mxu0
  %366 = vmatprep.mubr.bf16.mxu0 %v165
  %367 = vmatmul.mubr.bf16.gmra.mxu0 %v164
  %v368 = vpop.f32.mrf.mxu0
  %v369 = vadd.f32 0.0, %v368
  %v370 = vpop.f32.mrf.mxu0
  %v371 = vpop.f32.mrf.mxu0
  %v372 = vadd.f32 0.0, %v371
  %v373 = vpop.f32.mrf.mxu0
  %374 = vdwg.mxu0
  %v375 = vadd.f32 %v38, %v313
  %v376 = vadd.f32 %v39, %v316
  %v377 = vadd.f32 %v40, %v321
  %v378 = vadd.f32 %v41, %v324
  %v379 = vadd.f32 %v42, %v329
  %v380 = vadd.f32 %v43, %v332
  %v381 = vadd.f32 %v44, %v337
  %v382 = vadd.f32 %v45, %v340
  %v383 = vadd.f32 %v46, %v345
  %v384 = vadd.f32 %v47, %v348
  %v385 = vadd.f32 %v48, %v353
  %v386 = vadd.f32 %v49, %v356
  %v387 = vadd.f32 %v50, %v361
  %v388 = vadd.f32 %v51, %v364
  %v389 = vadd.f32 %v52, %v369
  %v390 = vadd.f32 %v53, %v372
  %391 = vst [vmem:[#allocation2] sm:$0xff] %v375
  %392 = vst [vmem:[#allocation2 + $0x8] sm:$0xff] %v376
  %393 = vst [vmem:[#allocation2 + $0x10] sm:$0xff] %v377
  %394 = vst [vmem:[#allocation2 + $0x18] sm:$0xff] %v378
  %395 = vst [vmem:[#allocation2 + $0x20] sm:$0xff] %v379
  %396 = vst [vmem:[#allocation2 + $0x28] sm:$0xff] %v380
  %397 = vst [vmem:[#allocation2 + $0x30] sm:$0xff] %v381
  %398 = vst [vmem:[#allocation2 + $0x38] sm:$0xff] %v382
  %399 = vst [vmem:[#allocation2 + $0x40] sm:$0xff] %v383
  %400 = vst [vmem:[#allocation2 + $0x48] sm:$0xff] %v384
  %401 = vst [vmem:[#allocation2 + $0x50] sm:$0xff] %v385
  %402 = vst [vmem:[#allocation2 + $0x58] sm:$0xff] %v386
  %403 = vst [vmem:[#allocation2 + $0x60] sm:$0xff] %v387
  %404 = vst [vmem:[#allocation2 + $0x68] sm:$0xff] %v388
  %405 = vst [vmem:[#allocation2 + $0x70] sm:$0xff] %v389
  %406 = vst [vmem:[#allocation2 + $0x78] sm:$0xff] %v390
  // Predicated region
  $region22: #{lednet_forward.85} parent=0 // pred_check
    %p407 = pneg %p18
  $region23: #{lednet_forward.85} parent=0 // pred_check_branch
    %409 = sbr.rel (%p407) target = $region25
  $region24: #{lednet_forward.85} parent=0 // pred_region
    %v410 = vld [vmem:[#allocation2] sm:$0xff]
    %v411 = vld [vmem:[#allocation2 + $0x8] sm:$0xff]
    %v412 = vld [vmem:[#allocation2 + $0x10] sm:$0xff]
    %v413 = vld [vmem:[#allocation2 + $0x18] sm:$0xff]
    %v414 = vld [vmem:[#allocation2 + $0x20] sm:$0xff]
    %v415 = vld [vmem:[#allocation2 + $0x28] sm:$0xff]
    %v416 = vld [vmem:[#allocation2 + $0x30] sm:$0xff]
    %v417 = vld [vmem:[#allocation2 + $0x38] sm:$0xff]
    %v418 = vld [vmem:[#allocation2 + $0x40] sm:$0xff]
    %v419 = vld [vmem:[#allocation2 + $0x48] sm:$0xff]
    %v420 = vld [vmem:[#allocation2 + $0x50] sm:$0xff]
    %v421 = vld [vmem:[#allocation2 + $0x58] sm:$0xff]
    %v422 = vld [vmem:[#allocation2 + $0x60] sm:$0xff]
    %v423 = vld [vmem:[#allocation2 + $0x68] sm:$0xff]
    %v424 = vld [vmem:[#allocation2 + $0x70] sm:$0xff]
    %v425 = vld [vmem:[#allocation2 + $0x78] sm:$0xff]
    %v426 = vld [vmem:[%s2] sm:$0x1]
    %v428 = vlaneseq
    %v429 = vshrl.u32 %v428, 7
    %v430 = vsub.s32 0, %v429
    %v431 = vrot.slane %v426, %v430
    %v433 = vadd.f32 %v410, %v431
    %v434 = vadd.f32 %v411, %v431
    %v435 = vadd.f32 %v412, %v431
    %v436 = vadd.f32 %v413, %v431
    %v437 = vadd.f32 %v414, %v431
    %v438 = vadd.f32 %v415, %v431
    %v439 = vadd.f32 %v416, %v431
    %v440 = vadd.f32 %v417, %v431
    %v441 = vadd.f32 %v418, %v431
    %v442 = vadd.f32 %v419, %v431
    %v443 = vadd.f32 %v420, %v431
    %v444 = vadd.f32 %v421, %v431
    %v445 = vadd.f32 %v422, %v431
    %v446 = vadd.f32 %v423, %v431
    %v447 = vadd.f32 %v424, %v431
    %v448 = vadd.f32 %v425, %v431
    %v449 = vld [vmem:[%s3] sm:$0xf]
    %v450 = vld [vmem:[%s3 + $0x4] sm:$0xf]
    %v451 = vld [vmem:[%s3 + $0x8] sm:$0xf]
    %v452 = vld [vmem:[%s3 + $0xc] sm:$0xf]
    %v453 = vld [vmem:[%s3 + $0x10] sm:$0xf]
    %v454 = vld [vmem:[%s3 + $0x14] sm:$0xf]
    %v455 = vld [vmem:[%s3 + $0x18] sm:$0xf]
    %v456 = vld [vmem:[%s3 + $0x1c] sm:$0xf]
    %v457 = vld [vmem:[%s3 + $0x20] sm:$0xf]
    %v458 = vld [vmem:[%s3 + $0x24] sm:$0xf]
    %v459 = vld [vmem:[%s3 + $0x28] sm:$0xf]
    %v460 = vld [vmem:[%s3 + $0x2c] sm:$0xf]
    %v461 = vld [vmem:[%s3 + $0x30] sm:$0xf]
    %v462 = vld [vmem:[%s3 + $0x34] sm:$0xf]
    %v463 = vld [vmem:[%s3 + $0x38] sm:$0xf]
    %v464 = vld [vmem:[%s3 + $0x3c] sm:$0xf]
    %v465 = vunpack.c.l.bf16 %v449
    %v466 = vunpack.c.l.bf16 %v450
    %v467 = vunpack.c.l.bf16 %v451
    %v468 = vunpack.c.l.bf16 %v452
    %v469 = vunpack.c.l.bf16 %v453
    %v470 = vunpack.c.l.bf16 %v454
    %v471 = vunpack.c.l.bf16 %v455
    %v472 = vunpack.c.l.bf16 %v456
    %v473 = vunpack.c.l.bf16 %v457
    %v474 = vunpack.c.l.bf16 %v458
    %v475 = vunpack.c.l.bf16 %v459
    %v476 = vunpack.c.l.bf16 %v460
    %v477 = vunpack.c.l.bf16 %v461
    %v478 = vunpack.c.l.bf16 %v462
    %v479 = vunpack.c.l.bf16 %v463
    %v480 = vunpack.c.l.bf16 %v464
    %v481 = vadd.f32 %v433, %v465
    %v482 = vadd.f32 %v434, %v466
    %v483 = vadd.f32 %v435, %v467
    %v484 = vadd.f32 %v436, %v468
    %v485 = vadd.f32 %v437, %v469
    %v486 = vadd.f32 %v438, %v470
    %v487 = vadd.f32 %v439, %v471
    %v488 = vadd.f32 %v440, %v472
    %v489 = vadd.f32 %v441, %v473
    %v490 = vadd.f32 %v442, %v474
    %v491 = vadd.f32 %v443, %v475
    %v492 = vadd.f32 %v444, %v476
    %v493 = vadd.f32 %v445, %v477
    %v494 = vadd.f32 %v446, %v478
    %v495 = vadd.f32 %v447, %v479
    %v496 = vadd.f32 %v448, %v480
    %vm497 = vcmp.ge.f32.partialorder %v481, 0.0
    %vm498 = vcmp.ge.f32.partialorder %v482, 0.0
    %vm499 = vcmp.ge.f32.partialorder %v483, 0.0
    %vm500 = vcmp.ge.f32.partialorder %v484, 0.0
    %vm501 = vcmp.ge.f32.partialorder %v485, 0.0
    %vm502 = vcmp.ge.f32.partialorder %v486, 0.0
    %vm503 = vcmp.ge.f32.partialorder %v487, 0.0
    %vm504 = vcmp.ge.f32.partialorder %v488, 0.0
    %vm505 = vcmp.ge.f32.partialorder %v489, 0.0
    %vm506 = vcmp.ge.f32.partialorder %v490, 0.0
    %vm507 = vcmp.ge.f32.partialorder %v491, 0.0
    %vm508 = vcmp.ge.f32.partialorder %v492, 0.0
    %vm509 = vcmp.ge.f32.partialorder %v493, 0.0
    %vm510 = vcmp.ge.f32.partialorder %v494, 0.0
    %vm511 = vcmp.ge.f32.partialorder %v495, 0.0
    %vm512 = vcmp.ge.f32.partialorder %v496, 0.0
    %v513 = vmul.f32 %v481, 0.25
    %v514 = vmul.f32 %v482, 0.25
    %v515 = vmul.f32 %v483, 0.25
    %v516 = vmul.f32 %v484, 0.25
    %v517 = vmul.f32 %v485, 0.25
    %v518 = vmul.f32 %v486, 0.25
    %v519 = vmul.f32 %v487, 0.25
    %v520 = vmul.f32 %v488, 0.25
    %v521 = vmul.f32 %v489, 0.25
    %v522 = vmul.f32 %v490, 0.25
    %v523 = vmul.f32 %v491, 0.25
    %v524 = vmul.f32 %v492, 0.25
    %v525 = vmul.f32 %v493, 0.25
    %v526 = vmul.f32 %v494, 0.25
    %v527 = vmul.f32 %v495, 0.25
    %v528 = vmul.f32 %v496, 0.25
    %v529 = vsel %vm497, %v481, %v513
    %v530 = vsel %vm498, %v482, %v514
    %v531 = vsel %vm499, %v483, %v515
    %v532 = vsel %vm500, %v484, %v516
    %v533 = vsel %vm501, %v485, %v517
    %v534 = vsel %vm502, %v486, %v518
    %v535 = vsel %vm503, %v487, %v519
    %v536 = vsel %vm504, %v488, %v520
    %v537 = vsel %vm505, %v489, %v521
    %v538 = vsel %vm506, %v490, %v522
    %v539 = vsel %vm507, %v491, %v523
    %v540 = vsel %vm508, %v492, %v524
    %v541 = vsel %vm509, %v493, %v525
    %v542 = vsel %vm510, %v494, %v526
    %v543 = vsel %vm511, %v495, %v527
    %v544 = vsel %vm512, %v496, %v528
    %v545 = vpack.c.bf16 %v530, %v529
    %v546 = vpack.c.bf16 %v532, %v531
    %v547 = vpack.c.bf16 %v534, %v533
    %v548 = vpack.c.bf16 %v536, %v535
    %v549 = vpack.c.bf16 %v538, %v537
    %v550 = vpack.c.bf16 %v540, %v539
    %v551 = vpack.c.bf16 %v542, %v541
    %v552 = vpack.c.bf16 %v544, %v543
    %v561 = vunpack.c.l.b16 %v545
    %v562 = vunpack.c.h.b16 %v545
    %v563 = vunpack.c.l.b16 %v546
    %v564 = vunpack.c.h.b16 %v546
    %v565 = vunpack.c.l.b16 %v547
    %v566 = vunpack.c.h.b16 %v547
    %v567 = vunpack.c.l.b16 %v548
    %v568 = vunpack.c.h.b16 %v548
    %v569 = vunpack.c.l.b16 %v549
    %v570 = vunpack.c.h.b16 %v549
    %v571 = vunpack.c.l.b16 %v550
    %v572 = vunpack.c.h.b16 %v550
    %v573 = vunpack.c.l.b16 %v551
    %v574 = vunpack.c.h.b16 %v551
    %v575 = vunpack.c.l.b16 %v552
    %v576 = vunpack.c.h.b16 %v552
    %v577 = vpack.c.b16 %v561, %v561
    %v578 = vpack.c.b16 %v562, %v562
    %v579 = vpack.c.b16 %v563, %v563
    %v580 = vpack.c.b16 %v564, %v564
    %v581 = vpack.c.b16 %v565, %v565
    %v582 = vpack.c.b16 %v566, %v566
    %v583 = vpack.c.b16 %v567, %v567
    %v584 = vpack.c.b16 %v568, %v568
    %v585 = vpack.c.b16 %v569, %v569
    %v586 = vpack.c.b16 %v570, %v570
    %v587 = vpack.c.b16 %v571, %v571
    %v588 = vpack.c.b16 %v572, %v572
    %v589 = vpack.c.b16 %v573, %v573
    %v590 = vpack.c.b16 %v574, %v574
    %v591 = vpack.c.b16 %v575, %v575
    %v592 = vpack.c.b16 %v576, %v576
    %609 = vst [vmem:[%s4] sm:$0xf] %v577
    %610 = vst [vmem:[%s4 + $0x4] sm:$0xf] %v578
    %611 = vst [vmem:[%s4 + $0x8] sm:$0xf] %v579
    %612 = vst [vmem:[%s4 + $0xc] sm:$0xf] %v580
    %613 = vst [vmem:[%s4 + $0x10] sm:$0xf] %v581
    %614 = vst [vmem:[%s4 + $0x14] sm:$0xf] %v582
    %615 = vst [vmem:[%s4 + $0x18] sm:$0xf] %v583
    %616 = vst [vmem:[%s4 + $0x1c] sm:$0xf] %v584
    %617 = vst [vmem:[%s4 + $0x20] sm:$0xf] %v585
    %618 = vst [vmem:[%s4 + $0x24] sm:$0xf] %v586
    %619 = vst [vmem:[%s4 + $0x28] sm:$0xf] %v587
    %620 = vst [vmem:[%s4 + $0x2c] sm:$0xf] %v588
    %621 = vst [vmem:[%s4 + $0x30] sm:$0xf] %v589
    %622 = vst [vmem:[%s4 + $0x34] sm:$0xf] %v590
    %623 = vst [vmem:[%s4 + $0x38] sm:$0xf] %v591
    %624 = vst [vmem:[%s4 + $0x3c] sm:$0xf] %v592
  $region25: #{lednet_forward.85} parent=0 // pred_fallthru
    _
  // Predicated region
  $region26: #{lednet_forward.85} parent=0 // pred_check
    _
  $region27: #{lednet_forward.85} parent=0 // pred_check_branch
    %626 = sbr.rel (0) target = $region29
  $region28: #{lednet_forward.85} parent=0 // pred_region
    _
  $region29: #{lednet_forward.85} parent=0 // pred_fallthru
    _
  // Predicated region
  $region30: #{lednet_forward.85} parent=0 // pred_check
    _
  $region31: #{lednet_forward.85} parent=0 // pred_check_branch
    %628 = sbr.rel (0) target = $region33
  $region32: #{lednet_forward.85} parent=0 // pred_region
    _
  $region33: #{lednet_forward.85} parent=0 // pred_fallthru
    _

// kernel: lednet_forward.91
$region0: #{lednet_forward.91}
  #allocation0 [shape = 'u32[]', space=smem, size = 0x4, offset = 0x4, fixed_abs, tag = 'smem constant byte address 0x4 - core index']
  #allocation1 [shape = 'u32[144,128]{1,0:T(1,128)}', space=vmem, size = 0x12000, scoped, tag = 'internal scratch']
  %s0 = inlined_call_operand.vmem [shape: bf16[32,128], index: 0, kind: input, shape index: {}]
  %s1 = inlined_call_operand.vmem [shape: bf16[32,128], index: 1, kind: input, shape index: {}]
  %s2 = inlined_call_operand.vmem [shape: bf16[32,128], index: 2, kind: input, shape index: {}]
  %s3 = inlined_call_operand.vmem [shape: bf16[32,128], index: 3, kind: input, shape index: {}]
  %s4 = inlined_call_operand.vmem [shape: f32[1,128], index: 4, kind: input, shape index: {}]
  %s5 = inlined_call_operand.vmem [shape: f32[1,128], index: 5, kind: input, shape index: {}]
  %s6 = inlined_call_operand.vmem [shape: bf16[32,128], index: 6, kind: output, shape index: {}]
  %s7 = sld [smem:[#allocation0]]
  $region34: #{lednet_forward.91} parent=0
    _
  %s9 = ssub.s32 1, %s7
  %s10 = scalar_select 0, %s9, %s7
  // Predicated region
  $region2: #{lednet_forward.91} parent=0 // pred_check
    _
  $region3: #{lednet_forward.91} parent=0 // pred_check_branch
    %12 = sbr.rel (0) target = $region5
  $region4: #{lednet_forward.91} parent=0 // pred_region
    _
  $region5: #{lednet_forward.91} parent=0 // pred_fallthru
    _
  // Predicated region
  $region6: #{lednet_forward.91} parent=0 // pred_check
    _
  $region7: #{lednet_forward.91} parent=0 // pred_check_branch
    %14 = sbr.rel (0) target = $region9
  $region8: #{lednet_forward.91} parent=0 // pred_region
    _
  $region9: #{lednet_forward.91} parent=0 // pred_fallthru
    _
  // Predicated region
  $region10: #{lednet_forward.91} parent=0 // pred_check
    _
  $region11: #{lednet_forward.91} parent=0 // pred_check_branch
    %16 = sbr.rel (0) target = $region13
  $region12: #{lednet_forward.91} parent=0 // pred_region
    _
  $region13: #{lednet_forward.91} parent=0 // pred_fallthru
    _
  // Predicated region
  $region14: #{lednet_forward.91} parent=0 // pred_check
    _
  $region15: #{lednet_forward.91} parent=0 // pred_check_branch
    %18 = sbr.rel (0) target = $region17
  $region16: #{lednet_forward.91} parent=0 // pred_region
    _
  $region17: #{lednet_forward.91} parent=0 // pred_fallthru
    _
  // Predicated region
  $region18: #{lednet_forward.91} parent=0 // pred_check
    _
  $region19: #{lednet_forward.91} parent=0 // pred_check_branch
    %20 = sbr.rel (0) target = $region21
  $region20: #{lednet_forward.91} parent=0 // pred_region
    _
  $region21: #{lednet_forward.91} parent=0 // pred_fallthru
    _
  // Predicated region
  $region22: #{lednet_forward.91} parent=0 // pred_check
    _
  $region23: #{lednet_forward.91} parent=0 // pred_check_branch
    %22 = sbr.rel (0) target = $region25
  $region24: #{lednet_forward.91} parent=0 // pred_region
    _
  $region25: #{lednet_forward.91} parent=0 // pred_fallthru
    _
  %v23 = vld [vmem:[%s0] sm:$0xf]
  %v24 = vld [vmem:[%s0 + $0x4] sm:$0xf]
  %v25 = vld [vmem:[%s0 + $0x8] sm:$0xf]
  %v26 = vld [vmem:[%s0 + $0xc] sm:$0xf]
  %v27 = vld [vmem:[%s1] sm:$0xf]
  %v28 = vld [vmem:[%s1 + $0x4] sm:$0xf]
  %v29 = vld [vmem:[%s1 + $0x8] sm:$0xf]
  %v30 = vld [vmem:[%s1 + $0xc] sm:$0xf]
  %v31 = vmax.bf16 %v23, %v27
  %v32 = vmax.bf16 %v24, %v28
  %v33 = vmax.bf16 %v25, %v29
  %v34 = vmax.bf16 %v26, %v30
  %v35 = vld [vmem:[%s2] sm:$0xf]
  %v36 = vld [vmem:[%s2 + $0x4] sm:$0xf]
  %v37 = vld [vmem:[%s2 + $0x8] sm:$0xf]
  %v38 = vld [vmem:[%s2 + $0xc] sm:$0xf]
  %v39 = vld [vmem:[%s3] sm:$0xf]
  %v40 = vld [vmem:[%s3 + $0x4] sm:$0xf]
  %v41 = vld [vmem:[%s3 + $0x8] sm:$0xf]
  %v42 = vld [vmem:[%s3 + $0xc] sm:$0xf]
  %v43 = vmax.bf16 %v35, %v39
  %v44 = vmax.bf16 %v36, %v40
  %v45 = vmax.bf16 %v37, %v41
  %v46 = vmax.bf16 %v38, %v42
  %v47 = vmax.bf16 %v31, %v43
  %v48 = vmax.bf16 %v32, %v44
  %v49 = vmax.bf16 %v33, %v45
  %v50 = vmax.bf16 %v34, %v46
  %v51 = vunpack.c.l.bf16 %v47
  %v52 = vunpack.c.l.bf16 %v48
  %v53 = vunpack.c.l.bf16 %v49
  %v54 = vunpack.c.l.bf16 %v50
  %v55 = vld [vmem:[%s4] sm:$0x1]
  %v57 = vlaneseq
  %v58 = vshrl.u32 %v57, 7
  %v59 = vsub.s32 0, %v58
  %v60 = vrot.slane %v55, %v59
  %v62 = vmul.f32 %v51, %v60
  %v63 = vmul.f32 %v52, %v60
  %v64 = vmul.f32 %v53, %v60
  %v65 = vmul.f32 %v54, %v60
  %v66 = vld [vmem:[%s5] sm:$0x1]
  %v68 = vlaneseq
  %v69 = vshrl.u32 %v68, 7
  %v70 = vsub.s32 0, %v69
  %v71 = vrot.slane %v66, %v70
  %v73 = vadd.f32 %v62, %v71
  %v74 = vadd.f32 %v63, %v71
  %v75 = vadd.f32 %v64, %v71
  %v76 = vadd.f32 %v65, %v71
  %vm77 = vcmp.ge.f32.partialorder %v73, 0.0
  %vm78 = vcmp.ge.f32.partialorder %v74, 0.0
  %vm79 = vcmp.ge.f32.partialorder %v75, 0.0
  %vm80 = vcmp.ge.f32.partialorder %v76, 0.0
  %v81 = vmul.f32 %v73, 0.25
  %v82 = vmul.f32 %v74, 0.25
  %v83 = vmul.f32 %v75, 0.25
  %v84 = vmul.f32 %v76, 0.25
  %v85 = vsel %vm77, %v73, %v81
  %v86 = vsel %vm78, %v74, %v82
  %v87 = vsel %vm79, %v75, %v83
  %v88 = vsel %vm80, %v76, %v84
  %v89 = vpack.c.bf16 %v86, %v85
  %v90 = vpack.c.bf16 %v88, %v87
  %v93 = vunpack.c.l.b16 %v89
  %v94 = vunpack.c.h.b16 %v89
  %v95 = vunpack.c.l.b16 %v90
  %v96 = vunpack.c.h.b16 %v90
  %v97 = vpack.c.b16 %v93, %v93
  %v98 = vpack.c.b16 %v94, %v94
  %v99 = vpack.c.b16 %v95, %v95
  %v100 = vpack.c.b16 %v96, %v96
  %105 = vst [vmem:[%s6] sm:$0xf] %v97
  %106 = vst [vmem:[%s6 + $0x4] sm:$0xf] %v98
  %107 = vst [vmem:[%s6 + $0x8] sm:$0xf] %v99
  %108 = vst [vmem:[%s6 + $0xc] sm:$0xf] %v100
  // Predicated region
  $region26: #{lednet_forward.91} parent=0 // pred_check
    _
  $region27: #{lednet_forward.91} parent=0 // pred_check_branch
    %110 = sbr.rel (0) target = $region29
  $region28: #{lednet_forward.91} parent=0 // pred_region
    _
  $region29: #{lednet_forward.91} parent=0 // pred_fallthru
    _
  // Predicated region
  $region30: #{lednet_forward.91} parent=0 // pred_check
    _
  $region31: #{lednet_forward.91} parent=0 // pred_check_branch
    %112 = sbr.rel (0) target = $region33
  $region32: #{lednet_forward.91} parent=0 // pred_region
    _
  $region33: #{lednet_forward.91} parent=0 // pred_fallthru
    _

// kernel: lednet_forward.90
$region0: #{lednet_forward.90}
  #allocation0 [shape = 'u32[]', space=smem, size = 0x4, offset = 0x4, fixed_abs, tag = 'smem constant byte address 0x4 - core index']
  #allocation1 [shape = 'u32[144,128]{1,0:T(1,128)}', space=vmem, size = 0x12000, scoped, tag = 'internal scratch']
  #allocation2 [shape = 'f32[32,128]{1,0:T(8,128)}', space=vmem, size = 0x4000, scoped, tag = 'scratch operand']
  %s0 = inlined_call_operand.vmem [shape: bf16[32,1024], index: 0, kind: input, shape index: {}]
  %s1 = inlined_call_operand.vmem [shape: bf16[1024,128], index: 1, kind: input, shape index: {}]
  %s2 = inlined_call_operand.vmem [shape: f32[1,128], index: 2, kind: input, shape index: {}]
  %s3 = inlined_call_operand.vmem [shape: bf16[32,128], index: 3, kind: output, shape index: {}]
  %s4 = sld [smem:[#allocation0]]
  $region76: #{lednet_forward.90} parent=0
    _
  %s6 = ssub.s32 1, %s4
  %s7 = scalar_select 0, %s6, %s4
  $region1: #{lednet_forward.90} parent=0
    #allocation3 [shape = 'u8[65536]{0}', space=vmem, size = 0x10000, scoped, tag = 'input window, operand 0']
    loop: start=0, step=1, limit=4
    $region2: #{lednet_forward.90} parent=1 // loop_pre_header
      _
    $region3: #{lednet_forward.90} parent=1 // loop_header
      %s9 = sphi 0, %s13
      %p10 = scmp.ge.s32.totalorder %s9, 4
      %s16 = sphi 0, %s35
      %s17 = sphi 0, %s31
      %s18 = sphi 0, %s27
      %s19 = sphi 0, %s16
      %s20 = sphi 0, %s17
      %s21 = sphi 0, %s18
      %s22 = sphi 0, %s19
      %s23 = sphi 0, %s20
      %s24 = sphi 0, %s21
      %s40 = sphi 0, %s42
      %s43 = sphi 0, %s40
      %s44 = sphi 0, %s43
      %s60 = sphi 0, %s44
      %s68 = sphi 0, %s70
      %s71 = sphi 0, %s68
      %s72 = sphi 0, %s71
      %s88 = sphi 0, %s72
      %s94 = sphi 0, %s96
      %s97 = sphi 0, %s94
      %s98 = sphi 0, %s97
      %s114 = sphi 0, %s98
      %s122 = sphi 0, %s124
      %s125 = sphi 0, %s122
      %s126 = sphi 0, %s125
      %s142 = sphi 0, %s126
    $region4: #{lednet_forward.90} parent=1 // loop_header_branch
      %12 = sbr.rel (%p10) target = $region8
    $region5: #{lednet_forward.90} parent=1 // loop_body
      %s14 = ssub.s32 %s9, 1
      %s15 = ssub.s32 %s9, 2
      %s25 = sadd.s32 1, %s18
      %p26 = scmp.ge.s32.totalorder %s25, 2
      %s27 = scalar_select %p26, 0, %s25
      %s28 = sadd.s32 1, %s17
      %s29 = scalar_select %p26, %s28, %s17
      %p30 = scmp.ge.s32.totalorder %s29, 1
      %s31 = scalar_select %p30, 0, %s29
      %s32 = sadd.s32 1, %s16
      %s33 = scalar_select %p30, %s32, %s16
      %p34 = scmp.ge.s32.totalorder %s33, 1
      %s35 = scalar_select %p34, 0, %s33
      %s36 = ssub.s32 %s16, %s35
      %s37 = ssub.s32 %s18, %s27
      %s38 = sor.u32 %s36, %s37
      %p39 = scmp.eq.s32.totalorder %s38, 0
      %s41 = sadd.s32 %s40, 1
      %s42 = scalar_select %p39, %s40, %s41
      %p45 = pneg %p39
      %p46 = scmp.eq.s32.totalorder %s9, 1
      %p47 = por %p45, %p46
      %p48 = scmp.ne.s32.totalorder %s40, %s43
      %p49 = scmp.eq.s32.totalorder %s9, 0
      %p50 = por %p48, %p49
      %p51 = scmp.ne.s32.totalorder %s40, %s43
      %p52 = scmp.eq.s32.totalorder %s14, 1
      %p53 = por %p51, %p52
      %p54 = scmp.ne.s32.totalorder %s43, %s44
      %p55 = scmp.eq.s32.totalorder %s14, 0
      %p56 = por %p54, %p55
      %p57 = scmp.ne.s32.totalorder %s43, %s44
      %p58 = scmp.eq.s32.totalorder %s15, 1
      %p59 = por %p57, %p58
      %p61 = scmp.ne.s32.totalorder %s44, %s60
      %p62 = scmp.eq.s32.totalorder %s15, 0
      %p63 = por %p61, %p62
      %s64 = ssub.s32 %s18, %s27
      %s65 = ssub.s32 %s17, %s31
      %s66 = sor.u32 %s64, %s65
      %p67 = scmp.eq.s32.totalorder %s66, 0
      %s69 = sadd.s32 %s68, 1
      %s70 = scalar_select %p67, %s68, %s69
      %p73 = pneg %p67
      %p74 = scmp.eq.s32.totalorder %s9, 1
      %p75 = por %p73, %p74
      %p76 = scmp.ne.s32.totalorder %s68, %s71
      %p77 = scmp.eq.s32.totalorder %s9, 0
      %p78 = por %p76, %p77
      %p79 = scmp.ne.s32.totalorder %s68, %s71
      %p80 = scmp.eq.s32.totalorder %s14, 1
      %p81 = por %p79, %p80
      %p82 = scmp.ne.s32.totalorder %s71, %s72
      %p83 = scmp.eq.s32.totalorder %s14, 0
      %p84 = por %p82, %p83
      %p85 = scmp.ne.s32.totalorder %s71, %s72
      %p86 = scmp.eq.s32.totalorder %s15, 1
      %p87 = por %p85, %p86
      %p89 = scmp.ne.s32.totalorder %s72, %s88
      %p90 = scmp.eq.s32.totalorder %s15, 0
      %p91 = por %p89, %p90
      %s92 = ssub.s32 %s17, %s31
      %p93 = scmp.eq.s32.totalorder %s92, 0
      %s95 = sadd.s32 %s94, 1
      %s96 = scalar_select %p93, %s94, %s95
      %p99 = pneg %p93
      %p100 = scmp.eq.s32.totalorder %s9, 1
      %p101 = por %p99, %p100
      %p102 = scmp.ne.s32.totalorder %s94, %s97
      %p103 = scmp.eq.s32.totalorder %s9, 0
      %p104 = por %p102, %p103
      %p105 = scmp.ne.s32.totalorder %s94, %s97
      %p106 = scmp.eq.s32.totalorder %s14, 1
      %p107 = por %p105, %p106
      %p108 = scmp.ne.s32.totalorder %s97, %s98
      %p109 = scmp.eq.s32.totalorder %s14, 0
      %p110 = por %p108, %p109
      %p111 = scmp.ne.s32.totalorder %s97, %s98
      %p112 = scmp.eq.s32.totalorder %s15, 1
      %p113 = por %p111, %p112
      %p115 = scmp.ne.s32.totalorder %s98, %s114
      %p116 = scmp.eq.s32.totalorder %s15, 0
      %p117 = por %p115, %p116
      %s118 = ssub.s32 %s16, %s35
      %s119 = ssub.s32 %s17, %s31
      %s120 = sor.u32 %s118, %s119
      %p121 = scmp.eq.s32.totalorder %s120, 0
      %s123 = sadd.s32 %s122, 1
      %s124 = scalar_select %p121, %s122, %s123
      %p127 = pneg %p121
      %p128 = scmp.eq.s32.totalorder %s9, 1
      %p129 = por %p127, %p128
      %p130 = scmp.ne.s32.totalorder %s122, %s125
      %p131 = scmp.eq.s32.totalorder %s9, 0
      %p132 = por %p130, %p131
      %p133 = scmp.ne.s32.totalorder %s122, %s125
      %p134 = scmp.eq.s32.totalorder %s14, 1
      %p135 = por %p133, %p134
      %p136 = scmp.ne.s32.totalorder %s125, %s126
      %p137 = scmp.eq.s32.totalorder %s14, 0
      %p138 = por %p136, %p137
      %p139 = scmp.ne.s32.totalorder %s125, %s126
      %p140 = scmp.eq.s32.totalorder %s15, 1
      %p141 = por %p139, %p140
      %p143 = scmp.ne.s32.totalorder %s126, %s142
      %p144 = scmp.eq.s32.totalorder %s15, 0
      %p145 = por %p143, %p144
      %p146 = scmp.le.s32.totalorder 1, %s9
      %p147 = scmp.lt.s32.totalorder %s9, 3
      %p148 = pnand %p146, %p147
      %p149 = pneg %p148
      // Predicated region
      $region9: #{lednet_forward.90} parent=5 // pred_check
        _
      $region10: #{lednet_forward.90} parent=5 // pred_check_branch
        %151 = sbr.rel (%p148) target = $region12
      $region11: #{lednet_forward.90} parent=5 // pred_region
        %s152 = ssub.s32 %s9, 1
        // Predicated region
        $region13: #{lednet_forward.90} parent=11 // pred_check
          %p153 = pneg %p110
        $region14: #{lednet_forward.90} parent=11 // pred_check_branch
          %155 = sbr.rel (%p153) target = $region16
        $region15: #{lednet_forward.90} parent=11 // pred_region
          %p156 = scmp.lt.s32.totalorder %s20, 0
          %s157 = scalar_select %p156, %s20, 0
          %s158 = scalar_lea.vmem %s2, %s157
        $region16: #{lednet_forward.90} parent=11 // pred_fallthru
          _
      $region12: #{lednet_forward.90} parent=5 // pred_fallthru
        _
      %p159 = scmp.lt.s32.totalorder %s9, 2
      // Predicated region
      $region17: #{lednet_forward.90} parent=5 // pred_check
        %p160 = pneg %p159
      $region18: #{lednet_forward.90} parent=5 // pred_check_branch
        %162 = sbr.rel (%p160) target = $region20
      $region19: #{lednet_forward.90} parent=5 // pred_region
        // Predicated region
        $region21: #{lednet_forward.90} parent=19 // pred_check
          %p163 = pneg %p50
        $region22: #{lednet_forward.90} parent=19 // pred_check_branch
          %165 = sbr.rel (%p163) target = $region24
        $region23: #{lednet_forward.90} parent=19 // pred_region
          %s166 = sand.u32 %s40, 1
          %s167 = sand.u32 %s40, 1
          %s168 = smul.addr %s167, 64
          %s169 = scalar_lea.vmem [#allocation3], %s168
          %s170 = smul.u32 4, %s16
          %s171 = smul.u32 4, %s18
          %s172 = smul.addr %s170, 8
          %s173 = sadd.s32 %s171, %s172
          %s174 = smul.addr %s173, 4
          %s175 = scalar_lea.vmem %s0, %s174
          // Predicated region
          $region25: #{lednet_forward.90} parent=23 // pred_check
            _
          $region26: #{lednet_forward.90} parent=23 // pred_check_branch
            %177 = sbr.rel (0) target = $region28
          $region27: #{lednet_forward.90} parent=23 // pred_region
            // Predicated region
            $region29: #{lednet_forward.90} parent=27 // pred_check
              _
            $region30: #{lednet_forward.90} parent=27 // pred_check_branch
              %179 = sbr.rel (0) target = $region32
            $region31: #{lednet_forward.90} parent=27 // pred_region
              loop: start=0, step=1, limit=1
              $region33: #{lednet_forward.90} parent=31 // loop_pre_header
                _
              $region34: #{lednet_forward.90} parent=31 // loop_header
                %s181 = sphi 0, %s185
                %p182 = scmp.ge.s32.totalorder %s181, 1
                %s186 = sphi %s175, %s175
                %s187 = sphi %s169, %s169
              $region35: #{lednet_forward.90} parent=31 // loop_header_branch
                %184 = sbr.rel (%p182) target = $region39
              $region36: #{lednet_forward.90} parent=31 // loop_body
                %v188 = vld [vmem:[%s186] sm:$0xff]
                %189 = vst [vmem:[%s187] sm:$0xff] %v188
                %v190 = vld [vmem:[%s186 + $0x8] sm:$0xff]
                %191 = vst [vmem:[%s187 + $0x8] sm:$0xff] %v190
                %v192 = vld [vmem:[%s186 + $0x20] sm:$0xff]
                %193 = vst [vmem:[%s187 + $0x10] sm:$0xff] %v192
                %v194 = vld [vmem:[%s186 + $0x28] sm:$0xff]
                %195 = vst [vmem:[%s187 + $0x18] sm:$0xff] %v194
                %v196 = vld [vmem:[%s186 + $0x40] sm:$0xff]
                %197 = vst [vmem:[%s187 + $0x20] sm:$0xff] %v196
                %v198 = vld [vmem:[%s186 + $0x48] sm:$0xff]
                %199 = vst [vmem:[%s187 + $0x28] sm:$0xff] %v198
                %v200 = vld [vmem:[%s186 + $0x60] sm:$0xff]
                %201 = vst [vmem:[%s187 + $0x30] sm:$0xff] %v200
                %v202 = vld [vmem:[%s186 + $0x68] sm:$0xff]
                %203 = vst [vmem:[%s187 + $0x38] sm:$0xff] %v202
              $region37: #{lednet_forward.90} parent=31 // loop_footer
                %s185 = sadd.s32 1, %s181
              $region38: #{lednet_forward.90} parent=31 // loop_footer_branch
                %180 = sbr.rel target = $region34
              $region39: #{lednet_forward.90} parent=31 // loop_exit
                _
            $region32: #{lednet_forward.90} parent=27 // pred_fallthru
              _
            // Predicated region
            $region40: #{lednet_forward.90} parent=27 // pred_check
              _
            $region41: #{lednet_forward.90} parent=27 // pred_check_branch
              %205 = sbr.rel target = $region43
            $region42: #{lednet_forward.90} parent=27 // pred_region
              _
            $region43: #{lednet_forward.90} parent=27 // pred_fallthru
              _
          $region28: #{lednet_forward.90} parent=23 // pred_fallthru
            _
          %206 = vnop
        $region24: #{lednet_forward.90} parent=19 // pred_fallthru
          _
        // Predicated region
        $region44: #{lednet_forward.90} parent=19 // pred_check
          %p207 = pneg %p78
        $region45: #{lednet_forward.90} parent=19 // pred_check_branch
          %209 = sbr.rel (%p207) target = $region47
        $region46: #{lednet_forward.90} parent=19 // pred_region
          %s210 = smul.u32 64, %s18
          %p211 = scmp.lt.s32.totalorder %s210, 127
          %s212 = scalar_select %p211, %s210, 127
          %p213 = scmp.lt.s32.totalorder %s17, 0
          %s214 = scalar_select %p213, %s17, 0
          %s215 = sadd.s32 %s214, %s212
          %s216 = smul.addr %s215, 4
          %s217 = scalar_lea.vmem %s1, %s216
          %s218 = smul.u32 64, %s18
        $region47: #{lednet_forward.90} parent=19 // pred_fallthru
          _
      $region20: #{lednet_forward.90} parent=5 // pred_fallthru
        _
      %p219 = scmp.le.s32.totalorder 1, %s9
      %p220 = scmp.lt.s32.totalorder %s9, 3
      %p221 = pnand %p219, %p220
      %p222 = pneg %p221
      // Predicated region
      $region48: #{lednet_forward.90} parent=5 // pred_check
        _
      $region49: #{lednet_forward.90} parent=5 // pred_check_branch
        %224 = sbr.rel (%p221) target = $region51
      $region50: #{lednet_forward.90} parent=5 // pred_region
        %s225 = ssub.s32 %s9, 1
        %s226 = sand.u32 %s43, 1
        %s227 = sand.u32 %s43, 1
        %s228 = smul.addr %s227, 64
        %s229 = scalar_lea.vmem [#allocation3], %s228
        // Predicated region
        $region52: #{lednet_forward.90} parent=50 // pred_check
          %p230 = pneg %p56
        $region53: #{lednet_forward.90} parent=50 // pred_check_branch
          %232 = sbr.rel (%p230) target = $region55
        $region54: #{lednet_forward.90} parent=50 // pred_region
          _
        $region55: #{lednet_forward.90} parent=50 // pred_fallthru
          _
        %s233 = sand.u32 %s43, 1
        %s234 = sand.u32 %s43, 1
        %s235 = smul.addr %s234, 64
        %s236 = scalar_lea.vmem [#allocation3], %s235
        %p237 = pneg %p56
        %p238 = pneg %p53
        %s239 = smul.u32 64, %s21
        %p240 = scmp.lt.s32.totalorder %s239, 127
        %s241 = scalar_select %p240, %s239, 127
        %p242 = scmp.lt.s32.totalorder %s20, 0
        %s243 = scalar_select %p242, %s20, 0
        %s244 = sadd.s32 %s243, %s241
        %s245 = smul.addr %s244, 4
        %s246 = scalar_lea.vmem %s1, %s245
        %p247 = pneg %p84
        %p248 = pneg %p81
        %p249 = scmp.lt.s32.totalorder %s20, 0
        %s250 = scalar_select %p249, %s20, 0
        %s251 = scalar_lea.vmem %s2, %s250
        %p252 = pneg %p110
        %p253 = pneg %p107
        %p254 = pneg %p138
        %p255 = pneg %p135
        %s256 = smul.u32 4, %s19
        %p257 = scmp.lt.s32.totalorder %s256, 3
        %s258 = scalar_select %p257, %s256, 3
        %p259 = scmp.lt.s32.totalorder %s20, 0
        %s260 = scalar_select %p259, %s20, 0
        %s261 = sadd.s32 %s260, %s258
        %s262 = smul.addr %s261, 4
        %s263 = scalar_lea.vmem %s3, %s262
        %s264 = smul.u32 4, %s19
        %s265 = smul.u32 4, %s21
        %s266 = smul.u32 64, %s21
        %p267 = scmp.lt.s32.totalorder %s266, 127
        %s268 = scalar_select %p267, %s266, 127
        %p269 = scmp.lt.s32.totalorder %s20, 0
        %s270 = scalar_select %p269, %s20, 0
        %s271 = sadd.s32 %s270, %s268
        %s272 = smul.addr %s271, 4
        %s273 = scalar_lea.vmem %s1, %s272
        %s274 = smul.u32 64, %s21
        %p275 = scmp.lt.s32.totalorder %s20, 0
        %s276 = scalar_select %p275, %s20, 0
        %s277 = scalar_lea.vmem %s2, %s276
        %s278 = smul.u32 4, %s19
        %p279 = scmp.lt.s32.totalorder %s278, 3
        %s280 = scalar_select %p279, %s278, 3
        %p281 = scmp.lt.s32.totalorder %s20, 0
        %s282 = scalar_select %p281, %s20, 0
        %s283 = sadd.s32 %s282, %s280
        %s284 = smul.addr %s283, 4
        %s285 = scalar_lea.vmem %s3, %s284
        %s286 = smul.u32 4, %s19
        %p288 = scmp.eq.s32.totalorder %s21, 0
        // Predicated region
        $region56: #{lednet_forward.90} parent=50 // pred_check
          %p289 = pneg %p288
        $region57: #{lednet_forward.90} parent=50 // pred_check_branch
          %291 = sbr.rel (%p289) target = $region59
        $region58: #{lednet_forward.90} parent=50 // pred_region
          %292 = vst [vmem:[#allocation2] sm:$0xff] 0.0
          %293 = vst [vmem:[#allocation2 + $0x8] sm:$0xff] 0.0
          %294 = vst [vmem:[#allocation2 + $0x10] sm:$0xff] 0.0
          %295 = vst [vmem:[#allocation2 + $0x18] sm:$0xff] 0.0
        $region59: #{lednet_forward.90} parent=50 // pred_fallthru
          _
        %v296 = vld [vmem:[#allocation2] sm:$0xff]
        %v297 = vld [vmem:[#allocation2 + $0x8] sm:$0xff]
        %v298 = vld [vmem:[#allocation2 + $0x10] sm:$0xff]
        %v299 = vld [vmem:[#allocation2 + $0x18] sm:$0xff]
        %v300 = vld [vmem:[%s229] sm:$0xff]
        %v301 = vld [vmem:[%s229 + $0x8] sm:$0xff]
        %v302 = vld [vmem:[%s229 + $0x10] sm:$0xff]
        %v303 = vld [vmem:[%s229 + $0x18] sm:$0xff]
        %v304 = vld [vmem:[%s229 + $0x20] sm:$0xff]
        %v305 = vld [vmem:[%s229 + $0x28] sm:$0xff]
        %v306 = vld [vmem:[%s229 + $0x30] sm:$0xff]
        %v307 = vld [vmem:[%s229 + $0x38] sm:$0xff]
        %v308 = vld [vmem:[%s273] sm:$0xf]
        %v309 = vld [vmem:[%s273 + $0x4] sm:$0xf]
        %v310 = vld [vmem:[%s273 + $0x8] sm:$0xf]
        %v311 = vld [vmem:[%s273 + $0xc] sm:$0xf]
        %v312 = vld [vmem:[%s273 + $0x10] sm:$0xf]
        %v313 = vld [vmem:[%s273 + $0x14] sm:$0xf]
        %v314 = vld [vmem:[%s273 + $0x18] sm:$0xf]
        %v315 = vld [vmem:[%s273 + $0x1c] sm:$0xf]
        %v316 = vld [vmem:[%s273 + $0x20] sm:$0xf]
        %v317 = vld [vmem:[%s273 + $0x24] sm:$0xf]
        %v318 = vld [vmem:[%s273 + $0x28] sm:$0xf]
        %v319 = vld [vmem:[%s273 + $0x2c] sm:$0xf]
        %v320 = vld [vmem:[%s273 + $0x30] sm:$0xf]
        %v321 = vld [vmem:[%s273 + $0x34] sm:$0xf]
        %v322 = vld [vmem:[%s273 + $0x38] sm:$0xf]
        %v323 = vld [vmem:[%s273 + $0x3c] sm:$0xf]
        %v324 = vld [vmem:[%s273 + $0x40] sm:$0xf]
        %v325 = vld [vmem:[%s273 + $0x44] sm:$0xf]
        %v326 = vld [vmem:[%s273 + $0x48] sm:$0xf]
        %v327 = vld [vmem:[%s273 + $0x4c] sm:$0xf]
        %v328 = vld [vmem:[%s273 + $0x50] sm:$0xf]
        %v329 = vld [vmem:[%s273 + $0x54] sm:$0xf]
        %v330 = vld [vmem:[%s273 + $0x58] sm:$0xf]
        %v331 = vld [vmem:[%s273 + $0x5c] sm:$0xf]
        %v332 = vld [vmem:[%s273 + $0x60] sm:$0xf]
        %v333 = vld [vmem:[%s273 + $0x64] sm:$0xf]
        %v334 = vld [vmem:[%s273 + $0x68] sm:$0xf]
        %v335 = vld [vmem:[%s273 + $0x6c] sm:$0xf]
        %v336 = vld [vmem:[%s273 + $0x70] sm:$0xf]
        %v337 = vld [vmem:[%s273 + $0x74] sm:$0xf]
        %v338 = vld [vmem:[%s273 + $0x78] sm:$0xf]
        %v339 = vld [vmem:[%s273 + $0x7c] sm:$0xf]
        %v340 = vld [vmem:[%s273 + $0x80] sm:$0xf]
        %v341 = vld [vmem:[%s273 + $0x84] sm:$0xf]
        %v342 = vld [vmem:[%s273 + $0x88] sm:$0xf]
        %v343 = vld [vmem:[%s273 + $0x8c] sm:$0xf]
        %v344 = vld [vmem:[%s273 + $0x90] sm:$0xf]
        %v345 = vld [vmem:[%s273 + $0x94] sm:$0xf]
        %v346 = vld [vmem:[%s273 + $0x98] sm:$0xf]
        %v347 = vld [vmem:[%s273 + $0x9c] sm:$0xf]
        %v348 = vld [vmem:[%s273 + $0xa0] sm:$0xf]
        %v349 = vld [vmem:[%s273 + $0xa4] sm:$0xf]
        %v350 = vld [vmem:[%s273 + $0xa8] sm:$0xf]
        %v351 = vld [vmem:[%s273 + $0xac] sm:$0xf]
        %v352 = vld [vmem:[%s273 + $0xb0] sm:$0xf]
        %v353 = vld [vmem:[%s273 + $0xb4] sm:$0xf]
        %v354 = vld [vmem:[%s273 + $0xb8] sm:$0xf]
        %v355 = vld [vmem:[%s273 + $0xbc] sm:$0xf]
        %v356 = vld [vmem:[%s273 + $0xc0] sm:$0xf]
        %v357 = vld [vmem:[%s273 + $0xc4] sm:$0xf]
        %v358 = vld [vmem:[%s273 + $0xc8] sm:$0xf]
        %v359 = vld [vmem:[%s273 + $0xcc] sm:$0xf]
        %v360 = vld [vmem:[%s273 + $0xd0] sm:$0xf]
        %v361 = vld [vmem:[%s273 + $0xd4] sm:$0xf]
        %v362 = vld [vmem:[%s273 + $0xd8] sm:$0xf]
        %v363 = vld [vmem:[%s273 + $0xdc] sm:$0xf]
        %v364 = vld [vmem:[%s273 + $0xe0] sm:$0xf]
        %v365 = vld [vmem:[%s273 + $0xe4] sm:$0xf]
        %v366 = vld [vmem:[%s273 + $0xe8] sm:$0xf]
        %v367 = vld [vmem:[%s273 + $0xec] sm:$0xf]
        %v368 = vld [vmem:[%s273 + $0xf0] sm:$0xf]
        %v369 = vld [vmem:[%s273 + $0xf4] sm:$0xf]
        %v370 = vld [vmem:[%s273 + $0xf8] sm:$0xf]
        %v371 = vld [vmem:[%s273 + $0xfc] sm:$0xf]
        %v380 = vunpack.c.l.b16 %v300
        %v381 = vunpack.c.h.b16 %v300
        %v382 = vunpack.c.l.b16 %v301
        %v383 = vunpack.c.h.b16 %v301
        %v384 = vunpack.c.l.b16 %v302
        %v385 = vunpack.c.h.b16 %v302
        %v386 = vunpack.c.l.b16 %v303
        %v387 = vunpack.c.h.b16 %v303
        %v388 = vunpack.c.l.b16 %v304
        %v389 = vunpack.c.h.b16 %v304
        %v390 = vunpack.c.l.b16 %v305
        %v391 = vunpack.c.h.b16 %v305
        %v392 = vunpack.c.l.b16 %v306
        %v393 = vunpack.c.h.b16 %v306
        %v394 = vunpack.c.l.b16 %v307
        %v395 = vunpack.c.h.b16 %v307
        %v396 = vpack.c.b16 %v384, %v380
        %v397 = vpack.c.b16 %v385, %v381
        %v398 = vpack.c.b16 %v386, %v382
        %v399 = vpack.c.b16 %v387, %v383
        %v400 = vpack.c.b16 %v392, %v388
        %v401 = vpack.c.b16 %v393, %v389
        %v402 = vpack.c.b16 %v394, %v390
        %v403 = vpack.c.b16 %v395, %v391
        %v476 = vunpack.c.l.b16 %v308
        %v477 = vunpack.c.l.b16 %v309
        %v478 = vunpack.c.l.b16 %v310
        %v479 = vunpack.c.l.b16 %v311
        %v480 = vunpack.c.l.b16 %v312
        %v481 = vunpack.c.l.b16 %v313
        %v482 = vunpack.c.l.b16 %v314
        %v483 = vunpack.c.l.b16 %v315
        %v484 = vunpack.c.l.b16 %v316
        %v485 = vunpack.c.l.b16 %v317
        %v486 = vunpack.c.l.b16 %v318
        %v487 = vunpack.c.l.b16 %v319
        %v488 = vunpack.c.l.b16 %v320
        %v489 = vunpack.c.l.b16 %v321
        %v490 = vunpack.c.l.b16 %v322
        %v491 = vunpack.c.l.b16 %v323
        %v492 = vunpack.c.l.b16 %v324
        %v493 = vunpack.c.l.b16 %v325
        %v494 = vunpack.c.l.b16 %v326
        %v495 = vunpack.c.l.b16 %v327
        %v496 = vunpack.c.l.b16 %v328
        %v497 = vunpack.c.l.b16 %v329
        %v498 = vunpack.c.l.b16 %v330
        %v499 = vunpack.c.l.b16 %v331
        %v500 = vunpack.c.l.b16 %v332
        %v501 = vunpack.c.l.b16 %v333
        %v502 = vunpack.c.l.b16 %v334
        %v503 = vunpack.c.l.b16 %v335
        %v504 = vunpack.c.l.b16 %v336
        %v505 = vunpack.c.l.b16 %v337
        %v506 = vunpack.c.l.b16 %v338
        %v507 = vunpack.c.l.b16 %v339
        %v508 = vunpack.c.l.b16 %v340
        %v509 = vunpack.c.l.b16 %v341
        %v510 = vunpack.c.l.b16 %v342
        %v511 = vunpack.c.l.b16 %v343
        %v512 = vunpack.c.l.b16 %v344
        %v513 = vunpack.c.l.b16 %v345
        %v514 = vunpack.c.l.b16 %v346
        %v515 = vunpack.c.l.b16 %v347
        %v516 = vunpack.c.l.b16 %v348
        %v517 = vunpack.c.l.b16 %v349
        %v518 = vunpack.c.l.b16 %v350
        %v519 = vunpack.c.l.b16 %v351
        %v520 = vunpack.c.l.b16 %v352
        %v521 = vunpack.c.l.b16 %v353
        %v522 = vunpack.c.l.b16 %v354
        %v523 = vunpack.c.l.b16 %v355
        %v524 = vunpack.c.l.b16 %v356
        %v525 = vunpack.c.l.b16 %v357
        %v526 = vunpack.c.l.b16 %v358
        %v527 = vunpack.c.l.b16 %v359
        %v528 = vunpack.c.l.b16 %v360
        %v529 = vunpack.c.l.b16 %v361
        %v530 = vunpack.c.l.b16 %v362
        %v531 = vunpack.c.l.b16 %v363
        %v532 = vunpack.c.l.b16 %v364
        %v533 = vunpack.c.l.b16 %v365
        %v534 = vunpack.c.l.b16 %v366
        %v535 = vunpack.c.l.b16 %v367
        %v536 = vunpack.c.l.b16 %v368
        %v537 = vunpack.c.l.b16 %v369
        %v538 = vunpack.c.l.b16 %v370
        %v539 = vunpack.c.l.b16 %v371
        %v540 = vpack.c.b16 %v477, %v476
        %v541 = vpack.c.b16 %v479, %v478
        %v542 = vpack.c.b16 %v481, %v480
        %v543 = vpack.c.b16 %v483, %v482
        %v544 = vpack.c.b16 %v485, %v484
        %v545 = vpack.c.b16 %v487, %v486
        %v546 = vpack.c.b16 %v489, %v488
        %v547 = vpack.c.b16 %v491, %v490
        %v548 = vpack.c.b16 %v493, %v492
        %v549 = vpack.c.b16 %v495, %v494
        %v550 = vpack.c.b16 %v497, %v496
        %v551 = vpack.c.b16 %v499, %v498
        %v552 = vpack.c.b16 %v501, %v500
        %v553 = vpack.c.b16 %v503, %v502
        %v554 = vpack.c.b16 %v505, %v504
        %v555 = vpack.c.b16 %v507, %v506
        %v556 = vpack.c.b16 %v509, %v508
        %v557 = vpack.c.b16 %v511, %v510
        %v558 = vpack.c.b16 %v513, %v512
        %v559 = vpack.c.b16 %v515, %v514
        %v560 = vpack.c.b16 %v517, %v516
        %v561 = vpack.c.b16 %v519, %v518
        %v562 = vpack.c.b16 %v521, %v520
        %v563 = vpack.c.b16 %v523, %v522
        %v564 = vpack.c.b16 %v525, %v524
        %v565 = vpack.c.b16 %v527, %v526
        %v566 = vpack.c.b16 %v529, %v528
        %v567 = vpack.c.b16 %v531, %v530
        %v568 = vpack.c.b16 %v533, %v532
        %v569 = vpack.c.b16 %v535, %v534
        %v570 = vpack.c.b16 %v537, %v536
        %v571 = vpack.c.b16 %v539, %v538
        %604 = vmatprep.subr.bf16.mxu0 0
        %605 = vmatpush1.bf16.msra.mxu0 %v547
        %606 = vmatprep.subr.bf16.mxu0 0
        %607 = vmatpush1.bf16.msra.mxu0 %v546
        %608 = vmatprep.subr.bf16.mxu0 0
        %609 = vmatpush1.bf16.msra.mxu0 %v545
        %610 = vmatprep.subr.bf16.mxu0 0
        %611 = vmatpush1.bf16.msra.mxu0 %v544
        %612 = vmatprep.subr.bf16.mxu0 0
        %613 = vmatpush1.bf16.msra.mxu0 %v543
        %614 = vmatprep.subr.bf16.mxu0 0
        %615 = vmatpush1.bf16.msra.mxu0 %v542
        %616 = vmatprep.subr.bf16.mxu0 0
        %617 = vmatpush1.bf16.msra.mxu0 %v541
        %618 = vmatprep.subr.bf16.mxu0 0
        %619 = vmatpush1.bf16.msra.mxu0 %v540
        %620 = vmatprep.subr.bf16.mxu0 0
        %621 = vmatpush2.bf16.msra.mxu0 %v555
        %622 = vmatprep.subr.bf16.mxu0 0
        %623 = vmatpush2.bf16.msra.mxu0 %v554
        %624 = vmatprep.subr.bf16.mxu0 0
        %625 = vmatpush2.bf16.msra.mxu0 %v553
        %626 = vmatprep.subr.bf16.mxu0 0
        %627 = vmatpush2.bf16.msra.mxu0 %v552
        %628 = vmatprep.subr.bf16.mxu0 0
        %629 = vmatpush2.bf16.msra.mxu0 %v551
        %630 = vmatprep.subr.bf16.mxu0 0
        %631 = vmatpush2.bf16.msra.mxu0 %v550
        %632 = vmatprep.subr.bf16.mxu0 0
        %633 = vmatpush2.bf16.msra.mxu0 %v549
        %634 = vmatprep.subr.bf16.mxu0 0
        %635 = vmatpush2.bf16.msra.mxu0 %v548
        %636 = vmatprep.mubr.bf16.mxu0 %v397
        %637 = vmatmul.mubr.bf16.gmra.mxu0 %v396
        %v638 = vpop.f32.mrf.mxu0
        %v639 = vadd.f32 0.0, %v638
        %v640 = vpop.f32.mrf.mxu0
        %v641 = vpop.f32.mrf.mxu0
        %v642 = vadd.f32 0.0, %v641
        %v643 = vpop.f32.mrf.mxu0
        %644 = vmatprep.mubr.bf16.mxu0 %v401
        %645 = vmatmul.mubr.bf16.gmra.mxu0 %v400
        %v646 = vpop.f32.mrf.mxu0
        %v647 = vadd.f32 0.0, %v646
        %v648 = vpop.f32.mrf.mxu0
        %v649 = vpop.f32.mrf.mxu0
        %v650 = vadd.f32 0.0, %v649
        %v651 = vpop.f32.mrf.mxu0
        %652 = vdwg.mxu0
        %653 = vmatprep.subr.bf16.mxu0 0
        %654 = vmatpush1.bf16.msra.mxu0 %v563
        %655 = vmatprep.subr.bf16.mxu0 0
        %656 = vmatpush1.bf16.msra.mxu0 %v562
        %657 = vmatprep.subr.bf16.mxu0 0
        %658 = vmatpush1.bf16.msra.mxu0 %v561
        %659 = vmatprep.subr.bf16.mxu0 0
        %660 = vmatpush1.bf16.msra.mxu0 %v560
        %661 = vmatprep.subr.bf16.mxu0 0
        %662 = vmatpush1.bf16.msra.mxu0 %v559
        %663 = vmatprep.subr.bf16.mxu0 0
        %664 = vmatpush1.bf16.msra.mxu0 %v558
        %665 = vmatprep.subr.bf16.mxu0 0
        %666 = vmatpush1.bf16.msra.mxu0 %v557
        %667 = vmatprep.subr.bf16.mxu0 0
        %668 = vmatpush1.bf16.msra.mxu0 %v556
        %669 = vmatprep.subr.bf16.mxu0 0
        %670 = vmatpush2.bf16.msra.mxu0 %v571
        %671 = vmatprep.subr.bf16.mxu0 0
        %672 = vmatpush2.bf16.msra.mxu0 %v570
        %673 = vmatprep.subr.bf16.mxu0 0
        %674 = vmatpush2.bf16.msra.mxu0 %v569
        %675 = vmatprep.subr.bf16.mxu0 0
        %676 = vmatpush2.bf16.msra.mxu0 %v568
        %677 = vmatprep.subr.bf16.mxu0 0
        %678 = vmatpush2.bf16.msra.mxu0 %v567
        %679 = vmatprep.subr.bf16.mxu0 0
        %680 = vmatpush2.bf16.msra.mxu0 %v566
        %681 = vmatprep.subr.bf16.mxu0 0
        %682 = vmatpush2.bf16.msra.mxu0 %v565
        %683 = vmatprep.subr.bf16.mxu0 0
        %684 = vmatpush2.bf16.msra.mxu0 %v564
        %685 = vmatprep.mubr.bf16.mxu0 %v399
        %686 = vmatmul.mubr.bf16.gmra.mxu0 %v398
        %v687 = vpop.f32.mrf.mxu0
        %v688 = vadd.f32 %v639, %v687
        %v689 = vpop.f32.mrf.mxu0
        %v690 = vpop.f32.mrf.mxu0
        %v691 = vadd.f32 %v642, %v690
        %v692 = vpop.f32.mrf.mxu0
        %693 = vmatprep.mubr.bf16.mxu0 %v403
        %694 = vmatmul.mubr.bf16.gmra.mxu0 %v402
        %v695 = vpop.f32.mrf.mxu0
        %v696 = vadd.f32 %v647, %v695
        %v697 = vpop.f32.mrf.mxu0
        %v698 = vpop.f32.mrf.mxu0
        %v699 = vadd.f32 %v650, %v698
        %v700 = vpop.f32.mrf.mxu0
        %701 = vdwg.mxu0
        %v702 = vadd.f32 %v296, %v688
        %v703 = vadd.f32 %v297, %v691
        %v704 = vadd.f32 %v298, %v696
        %v705 = vadd.f32 %v299, %v699
        %706 = vst [vmem:[#allocation2] sm:$0xff] %v702
        %707 = vst [vmem:[#allocation2 + $0x8] sm:$0xff] %v703
        %708 = vst [vmem:[#allocation2 + $0x10] sm:$0xff] %v704
        %709 = vst [vmem:[#allocation2 + $0x18] sm:$0xff] %v705
        %p710 = scmp.eq.s32.totalorder %s21, 1
        // Predicated region
        $region60: #{lednet_forward.90} parent=50 // pred_check
          %p711 = pneg %p710
        $region61: #{lednet_forward.90} parent=50 // pred_check_branch
          %713 = sbr.rel (%p711) target = $region63
        $region62: #{lednet_forward.90} parent=50 // pred_region
          %v714 = vld [vmem:[#allocation2] sm:$0xff]
          %v715 = vld [vmem:[#allocation2 + $0x8] sm:$0xff]
          %v716 = vld [vmem:[#allocation2 + $0x10] sm:$0xff]
          %v717 = vld [vmem:[#allocation2 + $0x18] sm:$0xff]
          %v718 = vld [vmem:[%s277] sm:$0x1]
          %v720 = vlaneseq
          %v721 = vshrl.u32 %v720, 7
          %v722 = vsub.s32 0, %v721
          %v723 = vrot.slane %v718, %v722
          %v725 = vadd.f32 %v714, %v723
          %v726 = vadd.f32 %v715, %v723
          %v727 = vadd.f32 %v716, %v723
          %v728 = vadd.f32 %v717, %v723
          %vm729 = vcmp.ge.f32.partialorder %v725, 0.0
          %vm730 = vcmp.ge.f32.partialorder %v726, 0.0
          %vm731 = vcmp.ge.f32.partialorder %v727, 0.0
          %vm732 = vcmp.ge.f32.partialorder %v728, 0.0
          %v733 = vmul.f32 %v725, 0.25
          %v734 = vmul.f32 %v726, 0.25
          %v735 = vmul.f32 %v727, 0.25
          %v736 = vmul.f32 %v728, 0.25
          %v737 = vsel %vm729, %v725, %v733
          %v738 = vsel %vm730, %v726, %v734
          %v739 = vsel %vm731, %v727, %v735
          %v740 = vsel %vm732, %v728, %v736
          %v741 = vpack.c.bf16 %v738, %v737
          %v742 = vpack.c.bf16 %v740, %v739
          %v745 = vunpack.c.l.b16 %v741
          %v746 = vunpack.c.h.b16 %v741
          %v747 = vunpack.c.l.b16 %v742
          %v748 = vunpack.c.h.b16 %v742
          %v749 = vpack.c.b16 %v745, %v745
          %v750 = vpack.c.b16 %v746, %v746
          %v751 = vpack.c.b16 %v747, %v747
          %v752 = vpack.c.b16 %v748, %v748
          %757 = vst [vmem:[%s285] sm:$0xf] %v749
          %758 = vst [vmem:[%s285 + $0x4] sm:$0xf] %v750
          %759 = vst [vmem:[%s285 + $0x8] sm:$0xf] %v751
          %760 = vst [vmem:[%s285 + $0xc] sm:$0xf] %v752
        $region63: #{lednet_forward.90} parent=50 // pred_fallthru
          _
        %s761 = smul.u32 4, %s19
        %p762 = scmp.lt.s32.totalorder %s761, 3
        %s763 = scalar_select %p762, %s761, 3
        %p764 = scmp.lt.s32.totalorder %s20, 0
        %s765 = scalar_select %p764, %s20, 0
        %s766 = sadd.s32 %s765, %s763
        %s767 = smul.addr %s766, 4
        %s768 = scalar_lea.vmem %s3, %s767
        // Predicated region
        $region64: #{lednet_forward.90} parent=50 // pred_check
          %p769 = pneg %p135
        $region65: #{lednet_forward.90} parent=50 // pred_check_branch
          %771 = sbr.rel (%p769) target = $region67
        $region66: #{lednet_forward.90} parent=50 // pred_region
          %s772 = smul.u32 4, %s19
        $region67: #{lednet_forward.90} parent=50 // pred_fallthru
          _
        // Predicated region
        $region68: #{lednet_forward.90} parent=50 // pred_check
          %p773 = pneg %p135
        $region69: #{lednet_forward.90} parent=50 // pred_check_branch
          %775 = sbr.rel (%p773) target = $region71
        $region70: #{lednet_forward.90} parent=50 // pred_region
          %s776 = smul.u32 4, %s19
          %p777 = scmp.lt.s32.totalorder %s776, 3
          %s778 = scalar_select %p777, %s776, 3
          %p779 = scmp.lt.s32.totalorder %s20, 0
          %s780 = scalar_select %p779, %s20, 0
          %s781 = sadd.s32 %s780, %s778
          %s782 = smul.addr %s781, 4
          %s783 = scalar_lea.vmem %s3, %s782
        $region71: #{lednet_forward.90} parent=50 // pred_fallthru
          _
      $region51: #{lednet_forward.90} parent=5 // pred_fallthru
        _
      %p784 = scmp.le.s32.totalorder 2, %s9
      // Predicated region
      $region72: #{lednet_forward.90} parent=5 // pred_check
        %p785 = pneg %p784
      $region73: #{lednet_forward.90} parent=5 // pred_check_branch
        %787 = sbr.rel (%p785) target = $region75
      $region74: #{lednet_forward.90} parent=5 // pred_region
        %s788 = ssub.s32 %s9, 2
      $region75: #{lednet_forward.90} parent=5 // pred_fallthru
        _
    $region6: #{lednet_forward.90} parent=1 // loop_footer
      %s13 = sadd.s32 1, %s9
    $region7: #{lednet_forward.90} parent=1 // loop_footer_branch
      %8 = sbr.rel target = $region3
    $region8: #{lednet_forward.90} parent=1 // loop_exit
      _

// kernel: lednet_forward.92
$region0: #{lednet_forward.92}
  #allocation0 [shape = 'u32[]', space=smem, size = 0x4, offset = 0x4, fixed_abs, tag = 'smem constant byte address 0x4 - core index']
  #allocation1 [shape = 'u32[144,128]{1,0:T(1,128)}', space=vmem, size = 0x12000, scoped, tag = 'internal scratch']
  #allocation2 [shape = 'f32[32,128]{1,0:T(8,128)}', space=vmem, size = 0x4000, scoped, tag = 'scratch operand']
  %s0 = inlined_call_operand.vmem [shape: bf16[32,384], index: 0, kind: input, shape index: {}]
  %s1 = inlined_call_operand.vmem [shape: bf16[384,128], index: 1, kind: input, shape index: {}]
  %s2 = inlined_call_operand.vmem [shape: f32[1,128], index: 2, kind: input, shape index: {}]
  %s3 = inlined_call_operand.vmem [shape: bf16[32,128], index: 3, kind: output, shape index: {}]
  %s4 = sld [smem:[#allocation0]]
  $region30: #{lednet_forward.92} parent=0
    _
  %s6 = ssub.s32 1, %s4
  %s7 = scalar_select 0, %s6, %s4
  // Predicated region
  $region2: #{lednet_forward.92} parent=0 // pred_check
    _
  $region3: #{lednet_forward.92} parent=0 // pred_check_branch
    %9 = sbr.rel (0) target = $region5
  $region4: #{lednet_forward.92} parent=0 // pred_region
    _
  $region5: #{lednet_forward.92} parent=0 // pred_fallthru
    _
  // Predicated region
  $region6: #{lednet_forward.92} parent=0 // pred_check
    _
  $region7: #{lednet_forward.92} parent=0 // pred_check_branch
    %11 = sbr.rel (0) target = $region9
  $region8: #{lednet_forward.92} parent=0 // pred_region
    _
  $region9: #{lednet_forward.92} parent=0 // pred_fallthru
    _
  // Predicated region
  $region10: #{lednet_forward.92} parent=0 // pred_check
    _
  $region11: #{lednet_forward.92} parent=0 // pred_check_branch
    %13 = sbr.rel (0) target = $region13
  $region12: #{lednet_forward.92} parent=0 // pred_region
    _
  $region13: #{lednet_forward.92} parent=0 // pred_fallthru
    _
  %p15 = scmp.eq.s32.totalorder 0, 0
  // Predicated region
  $region14: #{lednet_forward.92} parent=0 // pred_check
    %p16 = pneg %p15
  $region15: #{lednet_forward.92} parent=0 // pred_check_branch
    %18 = sbr.rel (%p16) target = $region17
  $region16: #{lednet_forward.92} parent=0 // pred_region
    %19 = vst [vmem:[#allocation2] sm:$0xff] 0.0
    %20 = vst [vmem:[#allocation2 + $0x8] sm:$0xff] 0.0
    %21 = vst [vmem:[#allocation2 + $0x10] sm:$0xff] 0.0
    %22 = vst [vmem:[#allocation2 + $0x18] sm:$0xff] 0.0
  $region17: #{lednet_forward.92} parent=0 // pred_fallthru
    _
  %v23 = vld [vmem:[#allocation2] sm:$0xff]
  %v24 = vld [vmem:[#allocation2 + $0x8] sm:$0xff]
  %v25 = vld [vmem:[#allocation2 + $0x10] sm:$0xff]
  %v26 = vld [vmem:[#allocation2 + $0x18] sm:$0xff]
  %v27 = vld [vmem:[%s0] sm:$0xff]
  %v28 = vld [vmem:[%s0 + $0x8] sm:$0xf]
  %v29 = vld [vmem:[%s0 + $0xc] sm:$0xff]
  %v30 = vld [vmem:[%s0 + $0x14] sm:$0xf]
  %v31 = vld [vmem:[%s0 + $0x18] sm:$0xff]
  %v32 = vld [vmem:[%s0 + $0x20] sm:$0xf]
  %v33 = vld [vmem:[%s0 + $0x24] sm:$0xff]
  %v34 = vld [vmem:[%s0 + $0x2c] sm:$0xf]
  %v35 = vld [vmem:[%s1] sm:$0xf]
  %v36 = vld [vmem:[%s1 + $0x4] sm:$0xf]
  %v37 = vld [vmem:[%s1 + $0x8] sm:$0xf]
  %v38 = vld [vmem:[%s1 + $0xc] sm:$0xf]
  %v39 = vld [vmem:[%s1 + $0x10] sm:$0xf]
  %v40 = vld [vmem:[%s1 + $0x14] sm:$0xf]
  %v41 = vld [vmem:[%s1 + $0x18] sm:$0xf]
  %v42 = vld [vmem:[%s1 + $0x1c] sm:$0xf]
  %v43 = vld [vmem:[%s1 + $0x20] sm:$0xf]
  %v44 = vld [vmem:[%s1 + $0x24] sm:$0xf]
  %v45 = vld [vmem:[%s1 + $0x28] sm:$0xf]
  %v46 = vld [vmem:[%s1 + $0x2c] sm:$0xf]
  %v47 = vld [vmem:[%s1 + $0x30] sm:$0xf]
  %v48 = vld [vmem:[%s1 + $0x34] sm:$0xf]
  %v49 = vld [vmem:[%s1 + $0x38] sm:$0xf]
  %v50 = vld [vmem:[%s1 + $0x3c] sm:$0xf]
  %v51 = vld [vmem:[%s1 + $0x40] sm:$0xf]
  %v52 = vld [vmem:[%s1 + $0x44] sm:$0xf]
  %v53 = vld [vmem:[%s1 + $0x48] sm:$0xf]
  %v54 = vld [vmem:[%s1 + $0x4c] sm:$0xf]
  %v55 = vld [vmem:[%s1 + $0x50] sm:$0xf]
  %v56 = vld [vmem:[%s1 + $0x54] sm:$0xf]
  %v57 = vld [vmem:[%s1 + $0x58] sm:$0xf]
  %v58 = vld [vmem:[%s1 + $0x5c] sm:$0xf]
  %v59 = vld [vmem:[%s1 + $0x60] sm:$0xf]
  %v60 = vld [vmem:[%s1 + $0x64] sm:$0xf]
  %v61 = vld [vmem:[%s1 + $0x68] sm:$0xf]
  %v62 = vld [vmem:[%s1 + $0x6c] sm:$0xf]
  %v63 = vld [vmem:[%s1 + $0x70] sm:$0xf]
  %v64 = vld [vmem:[%s1 + $0x74] sm:$0xf]
  %v65 = vld [vmem:[%s1 + $0x78] sm:$0xf]
  %v66 = vld [vmem:[%s1 + $0x7c] sm:$0xf]
  %v67 = vld [vmem:[%s1 + $0x80] sm:$0xf]
  %v68 = vld [vmem:[%s1 + $0x84] sm:$0xf]
  %v69 = vld [vmem:[%s1 + $0x88] sm:$0xf]
  %v70 = vld [vmem:[%s1 + $0x8c] sm:$0xf]
  %v71 = vld [vmem:[%s1 + $0x90] sm:$0xf]
  %v72 = vld [vmem:[%s1 + $0x94] sm:$0xf]
  %v73 = vld [vmem:[%s1 + $0x98] sm:$0xf]
  %v74 = vld [vmem:[%s1 + $0x9c] sm:$0xf]
  %v75 = vld [vmem:[%s1 + $0xa0] sm:$0xf]
  %v76 = vld [vmem:[%s1 + $0xa4] sm:$0xf]
  %v77 = vld [vmem:[%s1 + $0xa8] sm:$0xf]
  %v78 = vld [vmem:[%s1 + $0xac] sm:$0xf]
  %v79 = vld [vmem:[%s1 + $0xb0] sm:$0xf]
  %v80 = vld [vmem:[%s1 + $0xb4] sm:$0xf]
  %v81 = vld [vmem:[%s1 + $0xb8] sm:$0xf]
  %v82 = vld [vmem:[%s1 + $0xbc] sm:$0xf]
  %v91 = vunpack.c.l.b16 %v27
  %v92 = vunpack.c.h.b16 %v27
  %v93 = vunpack.c.l.b16 %v28
  %v94 = vunpack.c.l.b16 %v29
  %v95 = vunpack.c.h.b16 %v29
  %v96 = vunpack.c.l.b16 %v30
  %v97 = vunpack.c.l.b16 %v31
  %v98 = vunpack.c.h.b16 %v31
  %v99 = vunpack.c.l.b16 %v32
  %v100 = vunpack.c.l.b16 %v33
  %v101 = vunpack.c.h.b16 %v33
  %v102 = vunpack.c.l.b16 %v34
  %v103 = vpack.c.b16 %v94, %v91
  %v104 = vpack.c.b16 %v95, %v92
  %v105 = vpack.c.b16 %v96, %v93
  %v106 = vpack.c.b16 %v100, %v97
  %v107 = vpack.c.b16 %v101, %v98
  %v108 = vpack.c.b16 %v102, %v99
  %v163 = vunpack.c.l.b16 %v35
  %v164 = vunpack.c.l.b16 %v36
  %v165 = vunpack.c.l.b16 %v37
  %v166 = vunpack.c.l.b16 %v38
  %v167 = vunpack.c.l.b16 %v39
  %v168 = vunpack.c.l.b16 %v40
  %v169 = vunpack.c.l.b16 %v41
  %v170 = vunpack.c.l.b16 %v42
  %v171 = vunpack.c.l.b16 %v43
  %v172 = vunpack.c.l.b16 %v44
  %v173 = vunpack.c.l.b16 %v45
  %v174 = vunpack.c.l.b16 %v46
  %v175 = vunpack.c.l.b16 %v47
  %v176 = vunpack.c.l.b16 %v48
  %v177 = vunpack.c.l.b16 %v49
  %v178 = vunpack.c.l.b16 %v50
  %v179 = vunpack.c.l.b16 %v51
  %v180 = vunpack.c.l.b16 %v52
  %v181 = vunpack.c.l.b16 %v53
  %v182 = vunpack.c.l.b16 %v54
  %v183 = vunpack.c.l.b16 %v55
  %v184 = vunpack.c.l.b16 %v56
  %v185 = vunpack.c.l.b16 %v57
  %v186 = vunpack.c.l.b16 %v58
  %v187 = vunpack.c.l.b16 %v59
  %v188 = vunpack.c.l.b16 %v60
  %v189 = vunpack.c.l.b16 %v61
  %v190 = vunpack.c.l.b16 %v62
  %v191 = vunpack.c.l.b16 %v63
  %v192 = vunpack.c.l.b16 %v64
  %v193 = vunpack.c.l.b16 %v65
  %v194 = vunpack.c.l.b16 %v66
  %v195 = vunpack.c.l.b16 %v67
  %v196 = vunpack.c.l.b16 %v68
  %v197 = vunpack.c.l.b16 %v69
  %v198 = vunpack.c.l.b16 %v70
  %v199 = vunpack.c.l.b16 %v71
  %v200 = vunpack.c.l.b16 %v72
  %v201 = vunpack.c.l.b16 %v73
  %v202 = vunpack.c.l.b16 %v74
  %v203 = vunpack.c.l.b16 %v75
  %v204 = vunpack.c.l.b16 %v76
  %v205 = vunpack.c.l.b16 %v77
  %v206 = vunpack.c.l.b16 %v78
  %v207 = vunpack.c.l.b16 %v79
  %v208 = vunpack.c.l.b16 %v80
  %v209 = vunpack.c.l.b16 %v81
  %v210 = vunpack.c.l.b16 %v82
  %v211 = vpack.c.b16 %v164, %v163
  %v212 = vpack.c.b16 %v166, %v165
  %v213 = vpack.c.b16 %v168, %v167
  %v214 = vpack.c.b16 %v170, %v169
  %v215 = vpack.c.b16 %v172, %v171
  %v216 = vpack.c.b16 %v174, %v173
  %v217 = vpack.c.b16 %v176, %v175
  %v218 = vpack.c.b16 %v178, %v177
  %v219 = vpack.c.b16 %v180, %v179
  %v220 = vpack.c.b16 %v182, %v181
  %v221 = vpack.c.b16 %v184, %v183
  %v222 = vpack.c.b16 %v186, %v185
  %v223 = vpack.c.b16 %v188, %v187
  %v224 = vpack.c.b16 %v190, %v189
  %v225 = vpack.c.b16 %v192, %v191
  %v226 = vpack.c.b16 %v194, %v193
  %v227 = vpack.c.b16 %v196, %v195
  %v228 = vpack.c.b16 %v198, %v197
  %v229 = vpack.c.b16 %v200, %v199
  %v230 = vpack.c.b16 %v202, %v201
  %v231 = vpack.c.b16 %v204, %v203
  %v232 = vpack.c.b16 %v206, %v205
  %v233 = vpack.c.b16 %v208, %v207
  %v234 = vpack.c.b16 %v210, %v209
  %259 = vmatprep.subr.bf16.mxu0 0
  %260 = vmatpush1.bf16.msra.mxu0 %v218
  %261 = vmatprep.subr.bf16.mxu0 0
  %262 = vmatpush1.bf16.msra.mxu0 %v217
  %263 = vmatprep.subr.bf16.mxu0 0
  %264 = vmatpush1.bf16.msra.mxu0 %v216
  %265 = vmatprep.subr.bf16.mxu0 0
  %266 = vmatpush1.bf16.msra.mxu0 %v215
  %267 = vmatprep.subr.bf16.mxu0 0
  %268 = vmatpush1.bf16.msra.mxu0 %v214
  %269 = vmatprep.subr.bf16.mxu0 0
  %270 = vmatpush1.bf16.msra.mxu0 %v213
  %271 = vmatprep.subr.bf16.mxu0 0
  %272 = vmatpush1.bf16.msra.mxu0 %v212
  %273 = vmatprep.subr.bf16.mxu0 0
  %274 = vmatpush1.bf16.msra.mxu0 %v211
  %275 = vmatprep.subr.bf16.mxu0 0
  %276 = vmatpush2.bf16.msra.mxu0 %v226
  %277 = vmatprep.subr.bf16.mxu0 0
  %278 = vmatpush2.bf16.msra.mxu0 %v225
  %279 = vmatprep.subr.bf16.mxu0 0
  %280 = vmatpush2.bf16.msra.mxu0 %v224
  %281 = vmatprep.subr.bf16.mxu0 0
  %282 = vmatpush2.bf16.msra.mxu0 %v223
  %283 = vmatprep.subr.bf16.mxu0 0
  %284 = vmatpush2.bf16.msra.mxu0 %v222
  %285 = vmatprep.subr.bf16.mxu0 0
  %286 = vmatpush2.bf16.msra.mxu0 %v221
  %287 = vmatprep.subr.bf16.mxu0 0
  %288 = vmatpush2.bf16.msra.mxu0 %v220
  %289 = vmatprep.subr.bf16.mxu0 0
  %290 = vmatpush2.bf16.msra.mxu0 %v219
  %291 = vmatprep.mubr.bf16.mxu0 %v104
  %292 = vmatmul.mubr.bf16.gmra.mxu0 %v103
  %v293 = vpop.f32.mrf.mxu0
  %v294 = vadd.f32 0.0, %v293
  %v295 = vpop.f32.mrf.mxu0
  %v296 = vpop.f32.mrf.mxu0
  %v297 = vadd.f32 0.0, %v296
  %v298 = vpop.f32.mrf.mxu0
  %299 = vmatprep.mubr.bf16.mxu0 %v107
  %300 = vmatmul.mubr.bf16.gmra.mxu0 %v106
  %v301 = vpop.f32.mrf.mxu0
  %v302 = vadd.f32 0.0, %v301
  %v303 = vpop.f32.mrf.mxu0
  %v304 = vpop.f32.mrf.mxu0
  %v305 = vadd.f32 0.0, %v304
  %v306 = vpop.f32.mrf.mxu0
  %307 = vdwg.mxu0
  %308 = vmatprep.subr.bf16.mxu0 0
  %309 = vmatpush1.bf16.msra.mxu0 %v234
  %310 = vmatprep.subr.bf16.mxu0 0
  %311 = vmatpush1.bf16.msra.mxu0 %v233
  %312 = vmatprep.subr.bf16.mxu0 0
  %313 = vmatpush1.bf16.msra.mxu0 %v232
  %314 = vmatprep.subr.bf16.mxu0 0
  %315 = vmatpush1.bf16.msra.mxu0 %v231
  %316 = vmatprep.subr.bf16.mxu0 0
  %317 = vmatpush1.bf16.msra.mxu0 %v230
  %318 = vmatprep.subr.bf16.mxu0 0
  %319 = vmatpush1.bf16.msra.mxu0 %v229
  %320 = vmatprep.subr.bf16.mxu0 0
  %321 = vmatpush1.bf16.msra.mxu0 %v228
  %322 = vmatprep.subr.bf16.mxu0 0
  %323 = vmatpush1.bf16.msra.mxu0 %v227
  %324 = vmatprep.subr.bf16.mxu0 0
  %325 = vmatpush2.bf16.msra.mxu0 0
  %326 = vmatprep.subr.bf16.mxu0 0
  %327 = vmatpush2.bf16.msra.mxu0 0
  %328 = vmatprep.subr.bf16.mxu0 0
  %329 = vmatpush2.bf16.msra.mxu0 0
  %330 = vmatprep.subr.bf16.mxu0 0
  %331 = vmatpush2.bf16.msra.mxu0 0
  %332 = vmatprep.subr.bf16.mxu0 0
  %333 = vmatpush2.bf16.msra.mxu0 0
  %334 = vmatprep.subr.bf16.mxu0 0
  %335 = vmatpush2.bf16.msra.mxu0 0
  %336 = vmatprep.subr.bf16.mxu0 0
  %337 = vmatpush2.bf16.msra.mxu0 0
  %338 = vmatprep.subr.bf16.mxu0 0
  %339 = vmatpush2.bf16.msra.mxu0 0
  %340 = vmatprep.mubr.bf16.mxu0 0
  %341 = vmatmul.mubr.bf16.gmra.mxu0 %v105
  %v342 = vpop.f32.mrf.mxu0
  %v343 = vadd.f32 %v294, %v342
  %v344 = vpop.f32.mrf.mxu0
  %v345 = vpop.f32.mrf.mxu0
  %v346 = vadd.f32 %v297, %v345
  %v347 = vpop.f32.mrf.mxu0
  %348 = vmatprep.mubr.bf16.mxu0 0
  %349 = vmatmul.mubr.bf16.gmra.mxu0 %v108
  %v350 = vpop.f32.mrf.mxu0
  %v351 = vadd.f32 %v302, %v350
  %v352 = vpop.f32.mrf.mxu0
  %v353 = vpop.f32.mrf.mxu0
  %v354 = vadd.f32 %v305, %v353
  %v355 = vpop.f32.mrf.mxu0
  %356 = vdwg.mxu0
  %v357 = vadd.f32 %v23, %v343
  %v358 = vadd.f32 %v24, %v346
  %v359 = vadd.f32 %v25, %v351
  %v360 = vadd.f32 %v26, %v354
  %361 = vst [vmem:[#allocation2] sm:$0xff] %v357
  %362 = vst [vmem:[#allocation2 + $0x8] sm:$0xff] %v358
  %363 = vst [vmem:[#allocation2 + $0x10] sm:$0xff] %v359
  %364 = vst [vmem:[#allocation2 + $0x18] sm:$0xff] %v360
  // Predicated region
  $region18: #{lednet_forward.92} parent=0 // pred_check
    %p365 = pneg %p15
  $region19: #{lednet_forward.92} parent=0 // pred_check_branch
    %367 = sbr.rel (%p365) target = $region21
  $region20: #{lednet_forward.92} parent=0 // pred_region
    %v368 = vld [vmem:[#allocation2] sm:$0xff]
    %v369 = vld [vmem:[#allocation2 + $0x8] sm:$0xff]
    %v370 = vld [vmem:[#allocation2 + $0x10] sm:$0xff]
    %v371 = vld [vmem:[#allocation2 + $0x18] sm:$0xff]
    %v372 = vld [vmem:[%s2] sm:$0x1]
    %v374 = vlaneseq
    %v375 = vshrl.u32 %v374, 7
    %v376 = vsub.s32 0, %v375
    %v377 = vrot.slane %v372, %v376
    %v379 = vadd.f32 %v368, %v377
    %v380 = vadd.f32 %v369, %v377
    %v381 = vadd.f32 %v370, %v377
    %v382 = vadd.f32 %v371, %v377
    %vm383 = vcmp.ge.f32.partialorder %v379, 0.0
    %vm384 = vcmp.ge.f32.partialorder %v380, 0.0
    %vm385 = vcmp.ge.f32.partialorder %v381, 0.0
    %vm386 = vcmp.ge.f32.partialorder %v382, 0.0
    %v387 = vmul.f32 %v379, 0.25
    %v388 = vmul.f32 %v380, 0.25
    %v389 = vmul.f32 %v381, 0.25
    %v390 = vmul.f32 %v382, 0.25
    %v391 = vsel %vm383, %v379, %v387
    %v392 = vsel %vm384, %v380, %v388
    %v393 = vsel %vm385, %v381, %v389
    %v394 = vsel %vm386, %v382, %v390
    %v395 = vpack.c.bf16 %v392, %v391
    %v396 = vpack.c.bf16 %v394, %v393
    %v399 = vunpack.c.l.b16 %v395
    %v400 = vunpack.c.h.b16 %v395
    %v401 = vunpack.c.l.b16 %v396
    %v402 = vunpack.c.h.b16 %v396
    %v403 = vpack.c.b16 %v399, %v399
    %v404 = vpack.c.b16 %v400, %v400
    %v405 = vpack.c.b16 %v401, %v401
    %v406 = vpack.c.b16 %v402, %v402
    %411 = vst [vmem:[%s3] sm:$0xf] %v403
    %412 = vst [vmem:[%s3 + $0x4] sm:$0xf] %v404
    %413 = vst [vmem:[%s3 + $0x8] sm:$0xf] %v405
    %414 = vst [vmem:[%s3 + $0xc] sm:$0xf] %v406
  $region21: #{lednet_forward.92} parent=0 // pred_fallthru
    _
  // Predicated region
  $region22: #{lednet_forward.92} parent=0 // pred_check
    _
  $region23: #{lednet_forward.92} parent=0 // pred_check_branch
    %416 = sbr.rel (0) target = $region25
  $region24: #{lednet_forward.92} parent=0 // pred_region
    _
  $region25: #{lednet_forward.92} parent=0 // pred_fallthru
    _
  // Predicated region
  $region26: #{lednet_forward.92} parent=0 // pred_check
    _
  $region27: #{lednet_forward.92} parent=0 // pred_check_branch
    %418 = sbr.rel (0) target = $region29
  $region28: #{lednet_forward.92} parent=0 // pred_region
    _
  $region29: #{lednet_forward.92} parent=0 // pred_fallthru
    _

// kernel: lednet_forward.95
$region0: #{lednet_forward.95}
  #allocation0 [shape = 'u32[]', space=smem, size = 0x4, offset = 0x4, fixed_abs, tag = 'smem constant byte address 0x4 - core index']
  #allocation1 [shape = 'u32[144,128]{1,0:T(1,128)}', space=vmem, size = 0x12000, scoped, tag = 'internal scratch']
  #allocation2 [shape = 'f32[32,128]{1,0:T(8,128)}', space=vmem, size = 0x4000, scoped, tag = 'scratch operand']
  %s0 = inlined_call_operand.vmem [shape: bf16[32,384], index: 0, kind: input, shape index: {}]
  %s1 = inlined_call_operand.vmem [shape: bf16[384,128], index: 1, kind: input, shape index: {}]
  %s2 = inlined_call_operand.vmem [shape: f32[1,128], index: 2, kind: input, shape index: {}]
  %s3 = inlined_call_operand.vmem [shape: bf16[32,128], index: 3, kind: input, shape index: {}]
  %s4 = inlined_call_operand.vmem [shape: bf16[32,128], index: 4, kind: output, shape index: {}]
  %s5 = sld [smem:[#allocation0]]
  $region34: #{lednet_forward.95} parent=0
    _
  %s7 = ssub.s32 1, %s5
  %s8 = scalar_select 0, %s7, %s5
  // Predicated region
  $region2: #{lednet_forward.95} parent=0 // pred_check
    _
  $region3: #{lednet_forward.95} parent=0 // pred_check_branch
    %10 = sbr.rel (0) target = $region5
  $region4: #{lednet_forward.95} parent=0 // pred_region
    _
  $region5: #{lednet_forward.95} parent=0 // pred_fallthru
    _
  // Predicated region
  $region6: #{lednet_forward.95} parent=0 // pred_check
    _
  $region7: #{lednet_forward.95} parent=0 // pred_check_branch
    %12 = sbr.rel (0) target = $region9
  $region8: #{lednet_forward.95} parent=0 // pred_region
    _
  $region9: #{lednet_forward.95} parent=0 // pred_fallthru
    _
  // Predicated region
  $region10: #{lednet_forward.95} parent=0 // pred_check
    _
  $region11: #{lednet_forward.95} parent=0 // pred_check_branch
    %14 = sbr.rel (0) target = $region13
  $region12: #{lednet_forward.95} parent=0 // pred_region
    _
  $region13: #{lednet_forward.95} parent=0 // pred_fallthru
    _
  // Predicated region
  $region14: #{lednet_forward.95} parent=0 // pred_check
    _
  $region15: #{lednet_forward.95} parent=0 // pred_check_branch
    %16 = sbr.rel (0) target = $region17
  $region16: #{lednet_forward.95} parent=0 // pred_region
    _
  $region17: #{lednet_forward.95} parent=0 // pred_fallthru
    _
  %p18 = scmp.eq.s32.totalorder 0, 0
  // Predicated region
  $region18: #{lednet_forward.95} parent=0 // pred_check
    %p19 = pneg %p18
  $region19: #{lednet_forward.95} parent=0 // pred_check_branch
    %21 = sbr.rel (%p19) target = $region21
  $region20: #{lednet_forward.95} parent=0 // pred_region
    %22 = vst [vmem:[#allocation2] sm:$0xff] 0.0
    %23 = vst [vmem:[#allocation2 + $0x8] sm:$0xff] 0.0
    %24 = vst [vmem:[#allocation2 + $0x10] sm:$0xff] 0.0
    %25 = vst [vmem:[#allocation2 + $0x18] sm:$0xff] 0.0
  $region21: #{lednet_forward.95} parent=0 // pred_fallthru
    _
  %v26 = vld [vmem:[#allocation2] sm:$0xff]
  %v27 = vld [vmem:[#allocation2 + $0x8] sm:$0xff]
  %v28 = vld [vmem:[#allocation2 + $0x10] sm:$0xff]
  %v29 = vld [vmem:[#allocation2 + $0x18] sm:$0xff]
  %v30 = vld [vmem:[%s0] sm:$0xff]
  %v31 = vld [vmem:[%s0 + $0x8] sm:$0xf]
  %v32 = vld [vmem:[%s0 + $0xc] sm:$0xff]
  %v33 = vld [vmem:[%s0 + $0x14] sm:$0xf]
  %v34 = vld [vmem:[%s0 + $0x18] sm:$0xff]
  %v35 = vld [vmem:[%s0 + $0x20] sm:$0xf]
  %v36 = vld [vmem:[%s0 + $0x24] sm:$0xff]
  %v37 = vld [vmem:[%s0 + $0x2c] sm:$0xf]
  %v38 = vld [vmem:[%s1] sm:$0xf]
  %v39 = vld [vmem:[%s1 + $0x4] sm:$0xf]
  %v40 = vld [vmem:[%s1 + $0x8] sm:$0xf]
  %v41 = vld [vmem:[%s1 + $0xc] sm:$0xf]
  %v42 = vld [vmem:[%s1 + $0x10] sm:$0xf]
  %v43 = vld [vmem:[%s1 + $0x14] sm:$0xf]
  %v44 = vld [vmem:[%s1 + $0x18] sm:$0xf]
  %v45 = vld [vmem:[%s1 + $0x1c] sm:$0xf]
  %v46 = vld [vmem:[%s1 + $0x20] sm:$0xf]
  %v47 = vld [vmem:[%s1 + $0x24] sm:$0xf]
  %v48 = vld [vmem:[%s1 + $0x28] sm:$0xf]
  %v49 = vld [vmem:[%s1 + $0x2c] sm:$0xf]
  %v50 = vld [vmem:[%s1 + $0x30] sm:$0xf]
  %v51 = vld [vmem:[%s1 + $0x34] sm:$0xf]
  %v52 = vld [vmem:[%s1 + $0x38] sm:$0xf]
  %v53 = vld [vmem:[%s1 + $0x3c] sm:$0xf]
  %v54 = vld [vmem:[%s1 + $0x40] sm:$0xf]
  %v55 = vld [vmem:[%s1 + $0x44] sm:$0xf]
  %v56 = vld [vmem:[%s1 + $0x48] sm:$0xf]
  %v57 = vld [vmem:[%s1 + $0x4c] sm:$0xf]
  %v58 = vld [vmem:[%s1 + $0x50] sm:$0xf]
  %v59 = vld [vmem:[%s1 + $0x54] sm:$0xf]
  %v60 = vld [vmem:[%s1 + $0x58] sm:$0xf]
  %v61 = vld [vmem:[%s1 + $0x5c] sm:$0xf]
  %v62 = vld [vmem:[%s1 + $0x60] sm:$0xf]
  %v63 = vld [vmem:[%s1 + $0x64] sm:$0xf]
  %v64 = vld [vmem:[%s1 + $0x68] sm:$0xf]
  %v65 = vld [vmem:[%s1 + $0x6c] sm:$0xf]
  %v66 = vld [vmem:[%s1 + $0x70] sm:$0xf]
  %v67 = vld [vmem:[%s1 + $0x74] sm:$0xf]
  %v68 = vld [vmem:[%s1 + $0x78] sm:$0xf]
  %v69 = vld [vmem:[%s1 + $0x7c] sm:$0xf]
  %v70 = vld [vmem:[%s1 + $0x80] sm:$0xf]
  %v71 = vld [vmem:[%s1 + $0x84] sm:$0xf]
  %v72 = vld [vmem:[%s1 + $0x88] sm:$0xf]
  %v73 = vld [vmem:[%s1 + $0x8c] sm:$0xf]
  %v74 = vld [vmem:[%s1 + $0x90] sm:$0xf]
  %v75 = vld [vmem:[%s1 + $0x94] sm:$0xf]
  %v76 = vld [vmem:[%s1 + $0x98] sm:$0xf]
  %v77 = vld [vmem:[%s1 + $0x9c] sm:$0xf]
  %v78 = vld [vmem:[%s1 + $0xa0] sm:$0xf]
  %v79 = vld [vmem:[%s1 + $0xa4] sm:$0xf]
  %v80 = vld [vmem:[%s1 + $0xa8] sm:$0xf]
  %v81 = vld [vmem:[%s1 + $0xac] sm:$0xf]
  %v82 = vld [vmem:[%s1 + $0xb0] sm:$0xf]
  %v83 = vld [vmem:[%s1 + $0xb4] sm:$0xf]
  %v84 = vld [vmem:[%s1 + $0xb8] sm:$0xf]
  %v85 = vld [vmem:[%s1 + $0xbc] sm:$0xf]
  %v94 = vunpack.c.l.b16 %v30
  %v95 = vunpack.c.h.b16 %v30
  %v96 = vunpack.c.l.b16 %v31
  %v97 = vunpack.c.l.b16 %v32
  %v98 = vunpack.c.h.b16 %v32
  %v99 = vunpack.c.l.b16 %v33
  %v100 = vunpack.c.l.b16 %v34
  %v101 = vunpack.c.h.b16 %v34
  %v102 = vunpack.c.l.b16 %v35
  %v103 = vunpack.c.l.b16 %v36
  %v104 = vunpack.c.h.b16 %v36
  %v105 = vunpack.c.l.b16 %v37
  %v106 = vpack.c.b16 %v97, %v94
  %v107 = vpack.c.b16 %v98, %v95
  %v108 = vpack.c.b16 %v99, %v96
  %v109 = vpack.c.b16 %v103, %v100
  %v110 = vpack.c.b16 %v104, %v101
  %v111 = vpack.c.b16 %v105, %v102
  %v166 = vunpack.c.l.b16 %v38
  %v167 = vunpack.c.l.b16 %v39
  %v168 = vunpack.c.l.b16 %v40
  %v169 = vunpack.c.l.b16 %v41
  %v170 = vunpack.c.l.b16 %v42
  %v171 = vunpack.c.l.b16 %v43
  %v172 = vunpack.c.l.b16 %v44
  %v173 = vunpack.c.l.b16 %v45
  %v174 = vunpack.c.l.b16 %v46
  %v175 = vunpack.c.l.b16 %v47
  %v176 = vunpack.c.l.b16 %v48
  %v177 = vunpack.c.l.b16 %v49
  %v178 = vunpack.c.l.b16 %v50
  %v179 = vunpack.c.l.b16 %v51
  %v180 = vunpack.c.l.b16 %v52
  %v181 = vunpack.c.l.b16 %v53
  %v182 = vunpack.c.l.b16 %v54
  %v183 = vunpack.c.l.b16 %v55
  %v184 = vunpack.c.l.b16 %v56
  %v185 = vunpack.c.l.b16 %v57
  %v186 = vunpack.c.l.b16 %v58
  %v187 = vunpack.c.l.b16 %v59
  %v188 = vunpack.c.l.b16 %v60
  %v189 = vunpack.c.l.b16 %v61
  %v190 = vunpack.c.l.b16 %v62
  %v191 = vunpack.c.l.b16 %v63
  %v192 = vunpack.c.l.b16 %v64
  %v193 = vunpack.c.l.b16 %v65
  %v194 = vunpack.c.l.b16 %v66
  %v195 = vunpack.c.l.b16 %v67
  %v196 = vunpack.c.l.b16 %v68
  %v197 = vunpack.c.l.b16 %v69
  %v198 = vunpack.c.l.b16 %v70
  %v199 = vunpack.c.l.b16 %v71
  %v200 = vunpack.c.l.b16 %v72
  %v201 = vunpack.c.l.b16 %v73
  %v202 = vunpack.c.l.b16 %v74
  %v203 = vunpack.c.l.b16 %v75
  %v204 = vunpack.c.l.b16 %v76
  %v205 = vunpack.c.l.b16 %v77
  %v206 = vunpack.c.l.b16 %v78
  %v207 = vunpack.c.l.b16 %v79
  %v208 = vunpack.c.l.b16 %v80
  %v209 = vunpack.c.l.b16 %v81
  %v210 = vunpack.c.l.b16 %v82
  %v211 = vunpack.c.l.b16 %v83
  %v212 = vunpack.c.l.b16 %v84
  %v213 = vunpack.c.l.b16 %v85
  %v214 = vpack.c.b16 %v167, %v166
  %v215 = vpack.c.b16 %v169, %v168
  %v216 = vpack.c.b16 %v171, %v170
  %v217 = vpack.c.b16 %v173, %v172
  %v218 = vpack.c.b16 %v175, %v174
  %v219 = vpack.c.b16 %v177, %v176
  %v220 = vpack.c.b16 %v179, %v178
  %v221 = vpack.c.b16 %v181, %v180
  %v222 = vpack.c.b16 %v183, %v182
  %v223 = vpack.c.b16 %v185, %v184
  %v224 = vpack.c.b16 %v187, %v186
  %v225 = vpack.c.b16 %v189, %v188
  %v226 = vpack.c.b16 %v191, %v190
  %v227 = vpack.c.b16 %v193, %v192
  %v228 = vpack.c.b16 %v195, %v194
  %v229 = vpack.c.b16 %v197, %v196
  %v230 = vpack.c.b16 %v199, %v198
  %v231 = vpack.c.b16 %v201, %v200
  %v232 = vpack.c.b16 %v203, %v202
  %v233 = vpack.c.b16 %v205, %v204
  %v234 = vpack.c.b16 %v207, %v206
  %v235 = vpack.c.b16 %v209, %v208
  %v236 = vpack.c.b16 %v211, %v210
  %v237 = vpack.c.b16 %v213, %v212
  %262 = vmatprep.subr.bf16.mxu0 0
  %263 = vmatpush1.bf16.msra.mxu0 %v221
  %264 = vmatprep.subr.bf16.mxu0 0
  %265 = vmatpush1.bf16.msra.mxu0 %v220
  %266 = vmatprep.subr.bf16.mxu0 0
  %267 = vmatpush1.bf16.msra.mxu0 %v219
  %268 = vmatprep.subr.bf16.mxu0 0
  %269 = vmatpush1.bf16.msra.mxu0 %v218
  %270 = vmatprep.subr.bf16.mxu0 0
  %271 = vmatpush1.bf16.msra.mxu0 %v217
  %272 = vmatprep.subr.bf16.mxu0 0
  %273 = vmatpush1.bf16.msra.mxu0 %v216
  %274 = vmatprep.subr.bf16.mxu0 0
  %275 = vmatpush1.bf16.msra.mxu0 %v215
  %276 = vmatprep.subr.bf16.mxu0 0
  %277 = vmatpush1.bf16.msra.mxu0 %v214
  %278 = vmatprep.subr.bf16.mxu0 0
  %279 = vmatpush2.bf16.msra.mxu0 %v229
  %280 = vmatprep.subr.bf16.mxu0 0
  %281 = vmatpush2.bf16.msra.mxu0 %v228
  %282 = vmatprep.subr.bf16.mxu0 0
  %283 = vmatpush2.bf16.msra.mxu0 %v227
  %284 = vmatprep.subr.bf16.mxu0 0
  %285 = vmatpush2.bf16.msra.mxu0 %v226
  %286 = vmatprep.subr.bf16.mxu0 0
  %287 = vmatpush2.bf16.msra.mxu0 %v225
  %288 = vmatprep.subr.bf16.mxu0 0
  %289 = vmatpush2.bf16.msra.mxu0 %v224
  %290 = vmatprep.subr.bf16.mxu0 0
  %291 = vmatpush2.bf16.msra.mxu0 %v223
  %292 = vmatprep.subr.bf16.mxu0 0
  %293 = vmatpush2.bf16.msra.mxu0 %v222
  %294 = vmatprep.mubr.bf16.mxu0 %v107
  %295 = vmatmul.mubr.bf16.gmra.mxu0 %v106
  %v296 = vpop.f32.mrf.mxu0
  %v297 = vadd.f32 0.0, %v296
  %v298 = vpop.f32.mrf.mxu0
  %v299 = vpop.f32.mrf.mxu0
  %v300 = vadd.f32 0.0, %v299
  %v301 = vpop.f32.mrf.mxu0
  %302 = vmatprep.mubr.bf16.mxu0 %v110
  %303 = vmatmul.mubr.bf16.gmra.mxu0 %v109
  %v304 = vpop.f32.mrf.mxu0
  %v305 = vadd.f32 0.0, %v304
  %v306 = vpop.f32.mrf.mxu0
  %v307 = vpop.f32.mrf.mxu0
  %v308 = vadd.f32 0.0, %v307
  %v309 = vpop.f32.mrf.mxu0
  %310 = vdwg.mxu0
  %311 = vmatprep.subr.bf16.mxu0 0
  %312 = vmatpush1.bf16.msra.mxu0 %v237
  %313 = vmatprep.subr.bf16.mxu0 0
  %314 = vmatpush1.bf16.msra.mxu0 %v236
  %315 = vmatprep.subr.bf16.mxu0 0
  %316 = vmatpush1.bf16.msra.mxu0 %v235
  %317 = vmatprep.subr.bf16.mxu0 0
  %318 = vmatpush1.bf16.msra.mxu0 %v234
  %319 = vmatprep.subr.bf16.mxu0 0
  %320 = vmatpush1.bf16.msra.mxu0 %v233
  %321 = vmatprep.subr.bf16.mxu0 0
  %322 = vmatpush1.bf16.msra.mxu0 %v232
  %323 = vmatprep.subr.bf16.mxu0 0
  %324 = vmatpush1.bf16.msra.mxu0 %v231
  %325 = vmatprep.subr.bf16.mxu0 0
  %326 = vmatpush1.bf16.msra.mxu0 %v230
  %327 = vmatprep.subr.bf16.mxu0 0
  %328 = vmatpush2.bf16.msra.mxu0 0
  %329 = vmatprep.subr.bf16.mxu0 0
  %330 = vmatpush2.bf16.msra.mxu0 0
  %331 = vmatprep.subr.bf16.mxu0 0
  %332 = vmatpush2.bf16.msra.mxu0 0
  %333 = vmatprep.subr.bf16.mxu0 0
  %334 = vmatpush2.bf16.msra.mxu0 0
  %335 = vmatprep.subr.bf16.mxu0 0
  %336 = vmatpush2.bf16.msra.mxu0 0
  %337 = vmatprep.subr.bf16.mxu0 0
  %338 = vmatpush2.bf16.msra.mxu0 0
  %339 = vmatprep.subr.bf16.mxu0 0
  %340 = vmatpush2.bf16.msra.mxu0 0
  %341 = vmatprep.subr.bf16.mxu0 0
  %342 = vmatpush2.bf16.msra.mxu0 0
  %343 = vmatprep.mubr.bf16.mxu0 0
  %344 = vmatmul.mubr.bf16.gmra.mxu0 %v108
  %v345 = vpop.f32.mrf.mxu0
  %v346 = vadd.f32 %v297, %v345
  %v347 = vpop.f32.mrf.mxu0
  %v348 = vpop.f32.mrf.mxu0
  %v349 = vadd.f32 %v300, %v348
  %v350 = vpop.f32.mrf.mxu0
  %351 = vmatprep.mubr.bf16.mxu0 0
  %352 = vmatmul.mubr.bf16.gmra.mxu0 %v111
  %v353 = vpop.f32.mrf.mxu0
  %v354 = vadd.f32 %v305, %v353
  %v355 = vpop.f32.mrf.mxu0
  %v356 = vpop.f32.mrf.mxu0
  %v357 = vadd.f32 %v308, %v356
  %v358 = vpop.f32.mrf.mxu0
  %359 = vdwg.mxu0
  %v360 = vadd.f32 %v26, %v346
  %v361 = vadd.f32 %v27, %v349
  %v362 = vadd.f32 %v28, %v354
  %v363 = vadd.f32 %v29, %v357
  %364 = vst [vmem:[#allocation2] sm:$0xff] %v360
  %365 = vst [vmem:[#allocation2 + $0x8] sm:$0xff] %v361
  %366 = vst [vmem:[#allocation2 + $0x10] sm:$0xff] %v362
  %367 = vst [vmem:[#allocation2 + $0x18] sm:$0xff] %v363
  // Predicated region
  $region22: #{lednet_forward.95} parent=0 // pred_check
    %p368 = pneg %p18
  $region23: #{lednet_forward.95} parent=0 // pred_check_branch
    %370 = sbr.rel (%p368) target = $region25
  $region24: #{lednet_forward.95} parent=0 // pred_region
    %v371 = vld [vmem:[#allocation2] sm:$0xff]
    %v372 = vld [vmem:[#allocation2 + $0x8] sm:$0xff]
    %v373 = vld [vmem:[#allocation2 + $0x10] sm:$0xff]
    %v374 = vld [vmem:[#allocation2 + $0x18] sm:$0xff]
    %v375 = vld [vmem:[%s2] sm:$0x1]
    %v377 = vlaneseq
    %v378 = vshrl.u32 %v377, 7
    %v379 = vsub.s32 0, %v378
    %v380 = vrot.slane %v375, %v379
    %v382 = vadd.f32 %v371, %v380
    %v383 = vadd.f32 %v372, %v380
    %v384 = vadd.f32 %v373, %v380
    %v385 = vadd.f32 %v374, %v380
    %v386 = vld [vmem:[%s3] sm:$0xf]
    %v387 = vld [vmem:[%s3 + $0x4] sm:$0xf]
    %v388 = vld [vmem:[%s3 + $0x8] sm:$0xf]
    %v389 = vld [vmem:[%s3 + $0xc] sm:$0xf]
    %v390 = vunpack.c.l.bf16 %v386
    %v391 = vunpack.c.l.bf16 %v387
    %v392 = vunpack.c.l.bf16 %v388
    %v393 = vunpack.c.l.bf16 %v389
    %v394 = vadd.f32 %v382, %v390
    %v395 = vadd.f32 %v383, %v391
    %v396 = vadd.f32 %v384, %v392
    %v397 = vadd.f32 %v385, %v393
    %vm398 = vcmp.ge.f32.partialorder %v394, 0.0
    %vm399 = vcmp.ge.f32.partialorder %v395, 0.0
    %vm400 = vcmp.ge.f32.partialorder %v396, 0.0
    %vm401 = vcmp.ge.f32.partialorder %v397, 0.0
    %v402 = vmul.f32 %v394, 0.25
    %v403 = vmul.f32 %v395, 0.25
    %v404 = vmul.f32 %v396, 0.25
    %v405 = vmul.f32 %v397, 0.25
    %v406 = vsel %vm398, %v394, %v402
    %v407 = vsel %vm399, %v395, %v403
    %v408 = vsel %vm400, %v396, %v404
    %v409 = vsel %vm401, %v397, %v405
    %v410 = vpack.c.bf16 %v407, %v406
    %v411 = vpack.c.bf16 %v409, %v408
    %v414 = vunpack.c.l.b16 %v410
    %v415 = vunpack.c.h.b16 %v410
    %v416 = vunpack.c.l.b16 %v411
    %v417 = vunpack.c.h.b16 %v411
    %v418 = vpack.c.b16 %v414, %v414
    %v419 = vpack.c.b16 %v415, %v415
    %v420 = vpack.c.b16 %v416, %v416
    %v421 = vpack.c.b16 %v417, %v417
    %426 = vst [vmem:[%s4] sm:$0xf] %v418
    %427 = vst [vmem:[%s4 + $0x4] sm:$0xf] %v419
    %428 = vst [vmem:[%s4 + $0x8] sm:$0xf] %v420
    %429 = vst [vmem:[%s4 + $0xc] sm:$0xf] %v421
  $region25: #{lednet_forward.95} parent=0 // pred_fallthru
    _
  // Predicated region
  $region26: #{lednet_forward.95} parent=0 // pred_check
    _
  $region27: #{lednet_forward.95} parent=0 // pred_check_branch
    %431 = sbr.rel (0) target = $region29
  $region28: #{lednet_forward.95} parent=0 // pred_region
    _
  $region29: #{lednet_forward.95} parent=0 // pred_fallthru
    _
  // Predicated region
  $region30: #{lednet_forward.95} parent=0 // pred_check
    _
  $region31: #{lednet_forward.95} parent=0 // pred_check_branch
    %433 = sbr.rel (0) target = $region33
  $region32: #{lednet_forward.95} parent=0 // pred_region
    _
  $region33: #{lednet_forward.95} parent=0 // pred_fallthru
    _

// kernel: squeeze.6
$region0: #{squeeze.6}
  %s0 = inlined_call_operand.vmem [shape: f32[8], index: 0, kind: input, shape index: {}]
  %s1 = inlined_call_operand.vmem [shape: f32[2,2,2,1], index: 1, kind: output, shape index: {}]
  $region1: #{squeeze.6} parent=0
    #allocation0 [shape = 'u8[8192]{0}', space=vmem, size = 0x2000, scoped, tag = 'scoped mem for output reshape']
    #allocation1 [shape = 'u8[4096]{0}', space=vmem, size = 0x1000, scoped, tag = 'scoped mem for input reshape']
    %s3 = sshll.u32 1, 1
    %s4 = ssub.s32 %s3, 1
    %v5 = vld [vmem:[%s0] sm:%s4]
    %6 = vst [vmem:[#allocation1] sm:%s4] %v5
    %v7 = vld [vmem:[#allocation1] sm:$0x1]
    %vm8 = vcmask 15360
    %9 = vst.msk [vmem:[#allocation0] sm:$0x1] %vm8, %v7
    %v10 = vld [vmem:[#allocation1] sm:$0x1]
    %11 = vrot.lane.b32.xlu0 %v10, 126
    %v12 = vpop.permute.xlu0 %11
    %vm13 = vcmask 15360
    %s14 = scalar_lea.vmem [#allocation0], 1
    %15 = vst.msk [vmem:[%s14] sm:$0x1] %vm13, %v12
    %v16 = vld [vmem:[#allocation1] sm:$0x1]
    %17 = vrot.lane.b32.xlu0 %v16, 124
    %v18 = vpop.permute.xlu0 %17
    %vm19 = vcmask 15360
    %s20 = scalar_lea.vmem [#allocation0], 8
    %21 = vst.msk [vmem:[%s20] sm:$0x1] %vm19, %v18
    %v22 = vld [vmem:[#allocation1] sm:$0x1]
    %23 = vrot.lane.b32.xlu0 %v22, 122
    %v24 = vpop.permute.xlu0 %23
    %vm25 = vcmask 15360
    %s26 = scalar_lea.vmem [#allocation0], 9
    %27 = vst.msk [vmem:[%s26] sm:$0x1] %vm25, %v24
    %s29 = sshll.u32 1, 2
    %s30 = ssub.s32 %s29, 1
    %v32 = vld [vmem:[#allocation0] sm:%s30]
    %s33 = sshll.u32 1, 2
    %s34 = ssub.s32 %s33, 1
    %35 = vst [vmem:[%s1] sm:%s34] %v32
    %s36 = scalar_lea.vmem [#allocation0], 8
    %v37 = vld [vmem:[%s36] sm:%s30]
    %s38 = sshll.u32 1, 2
    %s39 = ssub.s32 %s38, 1
    %s40 = scalar_lea.vmem %s1, 2
    %41 = vst [vmem:[%s40] sm:%s39] %v37

// kernel: lednet_forward.125
$region0: #{lednet_forward.125}
  #allocation0 [shape = 'u32[]', space=smem, size = 0x4, offset = 0x4, fixed_abs, tag = 'smem constant byte address 0x4 - core index']
  #allocation1 [shape = 'u32[144,128]{1,0:T(1,128)}', space=vmem, size = 0x12000, scoped, tag = 'internal scratch']
  #allocation2 [shape = 'f32[16,1]{1,0:T(8,128)}', space=vmem, size = 0x2000, scoped, tag = 'scratch operand']
  #allocation3 [shape = 'f32[1,1]{1,0:T(1,128)S(1)}', space=vmem, size = 0x200, scoped, tag = 'scoped memory for lednet_forward.125']
  %s0 = inlined_call_operand.vmem [shape: bf16[16,6656], index: 0, kind: input, shape index: {}]
  %s1 = inlined_call_operand.vmem [shape: f32[1,6656], index: 1, kind: input, shape index: {}]
  %s2 = inlined_call_operand.<no memory space> [shape: f32[1,1], index: 2, kind: input, shape index: {}]
  %s3 = inlined_call_operand.vmem [shape: f32[16,1], index: 3, kind: output, shape index: {}]
  %s4 = sld [smem:[#allocation0]]
  $region76: #{lednet_forward.125} parent=0
    _
  %s6 = ssub.s32 1, %s4
  %s7 = scalar_select 0, %s6, %s4
  %v8 = vstv %s2
  %9 = vst [vmem:[#allocation3] sm:$0x1] %v8
  $region1: #{lednet_forward.125} parent=0
    #allocation4 [shape = 'u8[32768]{0}', space=vmem, size = 0x8000, scoped, tag = 'input window, operand 0']
    loop: start=0, step=1, limit=15
    $region2: #{lednet_forward.125} parent=1 // loop_pre_header
      _
    $region3: #{lednet_forward.125} parent=1 // loop_header
      %s11 = sphi 0, %s15
      %p12 = scmp.ge.s32.totalorder %s11, 15
      %s18 = sphi 0, %s30
      %s19 = sphi 0, %s26
      %s20 = sphi 0, %s18
      %s21 = sphi 0, %s19
      %s22 = sphi 0, %s20
      %s23 = sphi 0, %s21
      %s35 = sphi 0, %s37
      %s38 = sphi 0, %s35
      %s39 = sphi 0, %s38
      %s55 = sphi 0, %s39
      %s61 = sphi 0, %s63
      %s64 = sphi 0, %s61
      %s65 = sphi 0, %s64
      %s81 = sphi 0, %s65
      %s85 = sphi 0, %s85
      %s87 = sphi 0, %s85
      %s88 = sphi 0, %s87
      %s102 = sphi 0, %s88
      %s108 = sphi 0, %s110
      %s111 = sphi 0, %s108
      %s112 = sphi 0, %s111
      %s128 = sphi 0, %s112
    $region4: #{lednet_forward.125} parent=1 // loop_header_branch
      %14 = sbr.rel (%p12) target = $region8
    $region5: #{lednet_forward.125} parent=1 // loop_body
      %s16 = ssub.s32 %s11, 1
      %s17 = ssub.s32 %s11, 2
      %s24 = sadd.s32 1, %s19
      %p25 = scmp.ge.s32.totalorder %s24, 13
      %s26 = scalar_select %p25, 0, %s24
      %s27 = sadd.s32 1, %s18
      %s28 = scalar_select %p25, %s27, %s18
      %p29 = scmp.ge.s32.totalorder %s28, 1
      %s30 = scalar_select %p29, 0, %s28
      %s31 = ssub.s32 %s18, %s30
      %s32 = ssub.s32 %s19, %s26
      %s33 = sor.u32 %s31, %s32
      %p34 = scmp.eq.s32.totalorder %s33, 0
      %s36 = sadd.s32 %s35, 1
      %s37 = scalar_select %p34, %s35, %s36
      %p40 = pneg %p34
      %p41 = scmp.eq.s32.totalorder %s11, 12
      %p42 = por %p40, %p41
      %p43 = scmp.ne.s32.totalorder %s35, %s38
      %p44 = scmp.eq.s32.totalorder %s11, 0
      %p45 = por %p43, %p44
      %p46 = scmp.ne.s32.totalorder %s35, %s38
      %p47 = scmp.eq.s32.totalorder %s16, 12
      %p48 = por %p46, %p47
      %p49 = scmp.ne.s32.totalorder %s38, %s39
      %p50 = scmp.eq.s32.totalorder %s16, 0
      %p51 = por %p49, %p50
      %p52 = scmp.ne.s32.totalorder %s38, %s39
      %p53 = scmp.eq.s32.totalorder %s17, 12
      %p54 = por %p52, %p53
      %p56 = scmp.ne.s32.totalorder %s39, %s55
      %p57 = scmp.eq.s32.totalorder %s17, 0
      %p58 = por %p56, %p57
      %s59 = ssub.s32 %s19, %s26
      %p60 = scmp.eq.s32.totalorder %s59, 0
      %s62 = sadd.s32 %s61, 1
      %s63 = scalar_select %p60, %s61, %s62
      %p66 = pneg %p60
      %p67 = scmp.eq.s32.totalorder %s11, 12
      %p68 = por %p66, %p67
      %p69 = scmp.ne.s32.totalorder %s61, %s64
      %p70 = scmp.eq.s32.totalorder %s11, 0
      %p71 = por %p69, %p70
      %p72 = scmp.ne.s32.totalorder %s61, %s64
      %p73 = scmp.eq.s32.totalorder %s16, 12
      %p74 = por %p72, %p73
      %p75 = scmp.ne.s32.totalorder %s64, %s65
      %p76 = scmp.eq.s32.totalorder %s16, 0
      %p77 = por %p75, %p76
      %p78 = scmp.ne.s32.totalorder %s64, %s65
      %p79 = scmp.eq.s32.totalorder %s17, 12
      %p80 = por %p78, %p79
      %p82 = scmp.ne.s32.totalorder %s65, %s81
      %p83 = scmp.eq.s32.totalorder %s17, 0
      %p84 = por %p82, %p83
      %s86 = sadd.s32 %s85, 1
      %p89 = scmp.eq.s32.totalorder %s11, 12
      %p90 = scmp.ne.s32.totalorder %s85, %s87
      %p91 = scmp.eq.s32.totalorder %s11, 0
      %p92 = por %p90, %p91
      %p93 = scmp.ne.s32.totalorder %s85, %s87
      %p94 = scmp.eq.s32.totalorder %s16, 12
      %p95 = por %p93, %p94
      %p96 = scmp.ne.s32.totalorder %s87, %s88
      %p97 = scmp.eq.s32.totalorder %s16, 0
      %p98 = por %p96, %p97
      %p99 = scmp.ne.s32.totalorder %s87, %s88
      %p100 = scmp.eq.s32.totalorder %s17, 12
      %p101 = por %p99, %p100
      %p103 = scmp.ne.s32.totalorder %s88, %s102
      %p104 = scmp.eq.s32.totalorder %s17, 0
      %p105 = por %p103, %p104
      %s106 = ssub.s32 %s18, %s30
      %p107 = scmp.eq.s32.totalorder %s106, 0
      %s109 = sadd.s32 %s108, 1
      %s110 = scalar_select %p107, %s108, %s109
      %p113 = pneg %p107
      %p114 = scmp.eq.s32.totalorder %s11, 12
      %p115 = por %p113, %p114
      %p116 = scmp.ne.s32.totalorder %s108, %s111
      %p117 = scmp.eq.s32.totalorder %s11, 0
      %p118 = por %p116, %p117
      %p119 = scmp.ne.s32.totalorder %s108, %s111
      %p120 = scmp.eq.s32.totalorder %s16, 12
      %p121 = por %p119, %p120
      %p122 = scmp.ne.s32.totalorder %s111, %s112
      %p123 = scmp.eq.s32.totalorder %s16, 0
      %p124 = por %p122, %p123
      %p125 = scmp.ne.s32.totalorder %s111, %s112
      %p126 = scmp.eq.s32.totalorder %s17, 12
      %p127 = por %p125, %p126
      %p129 = scmp.ne.s32.totalorder %s112, %s128
      %p130 = scmp.eq.s32.totalorder %s17, 0
      %p131 = por %p129, %p130
      %p132 = scmp.le.s32.totalorder 1, %s11
      %p133 = scmp.lt.s32.totalorder %s11, 14
      %p134 = pnand %p132, %p133
      %p135 = pneg %p134
      // Predicated region
      $region9: #{lednet_forward.125} parent=5 // pred_check
        _
      $region10: #{lednet_forward.125} parent=5 // pred_check_branch
        %137 = sbr.rel (%p134) target = $region12
      $region11: #{lednet_forward.125} parent=5 // pred_region
        %s138 = ssub.s32 %s11, 1
        // Predicated region
        $region13: #{lednet_forward.125} parent=11 // pred_check
          %p139 = pneg %p98
        $region14: #{lednet_forward.125} parent=11 // pred_check_branch
          %141 = sbr.rel (%p139) target = $region16
        $region15: #{lednet_forward.125} parent=11 // pred_region
          _
        $region16: #{lednet_forward.125} parent=11 // pred_fallthru
          _
      $region12: #{lednet_forward.125} parent=5 // pred_fallthru
        _
      %p142 = scmp.lt.s32.totalorder %s11, 13
      // Predicated region
      $region17: #{lednet_forward.125} parent=5 // pred_check
        %p143 = pneg %p142
      $region18: #{lednet_forward.125} parent=5 // pred_check_branch
        %145 = sbr.rel (%p143) target = $region20
      $region19: #{lednet_forward.125} parent=5 // pred_region
        // Predicated region
        $region21: #{lednet_forward.125} parent=19 // pred_check
          %p146 = pneg %p45
        $region22: #{lednet_forward.125} parent=19 // pred_check_branch
          %148 = sbr.rel (%p146) target = $region24
        $region23: #{lednet_forward.125} parent=19 // pred_region
          %s149 = sand.u32 %s35, 1
          %s150 = sand.u32 %s35, 1
          %s151 = smul.addr %s150, 32
          %s152 = scalar_lea.vmem [#allocation4], %s151
          %s153 = smul.u32 2, %s18
          %s154 = smul.u32 4, %s19
          %s155 = smul.addr %s153, 52
          %s156 = sadd.s32 %s154, %s155
          %s157 = smul.addr %s156, 4
          %s158 = scalar_lea.vmem %s0, %s157
          // Predicated region
          $region25: #{lednet_forward.125} parent=23 // pred_check
            _
          $region26: #{lednet_forward.125} parent=23 // pred_check_branch
            %160 = sbr.rel (0) target = $region28
          $region27: #{lednet_forward.125} parent=23 // pred_region
            // Predicated region
            $region29: #{lednet_forward.125} parent=27 // pred_check
              _
            $region30: #{lednet_forward.125} parent=27 // pred_check_branch
              %162 = sbr.rel (0) target = $region32
            $region31: #{lednet_forward.125} parent=27 // pred_region
              loop: start=0, step=1, limit=1
              $region33: #{lednet_forward.125} parent=31 // loop_pre_header
                _
              $region34: #{lednet_forward.125} parent=31 // loop_header
                %s164 = sphi 0, %s168
                %p165 = scmp.ge.s32.totalorder %s164, 1
                %s169 = sphi %s158, %s158
                %s170 = sphi %s152, %s152
              $region35: #{lednet_forward.125} parent=31 // loop_header_branch
                %167 = sbr.rel (%p165) target = $region39
              $region36: #{lednet_forward.125} parent=31 // loop_body
                %v171 = vld [vmem:[%s169] sm:$0xff]
                %172 = vst [vmem:[%s170] sm:$0xff] %v171
                %v173 = vld [vmem:[%s169 + $0x8] sm:$0xff]
                %174 = vst [vmem:[%s170 + $0x8] sm:$0xff] %v173
                %v175 = vld [vmem:[%s169 + $0xd0] sm:$0xff]
                %176 = vst [vmem:[%s170 + $0x10] sm:$0xff] %v175
                %v177 = vld [vmem:[%s169 + $0xd8] sm:$0xff]
                %178 = vst [vmem:[%s170 + $0x18] sm:$0xff] %v177
              $region37: #{lednet_forward.125} parent=31 // loop_footer
                %s168 = sadd.s32 1, %s164
              $region38: #{lednet_forward.125} parent=31 // loop_footer_branch
                %163 = sbr.rel target = $region34
              $region39: #{lednet_forward.125} parent=31 // loop_exit
                _
            $region32: #{lednet_forward.125} parent=27 // pred_fallthru
              _
            // Predicated region
            $region40: #{lednet_forward.125} parent=27 // pred_check
              _
            $region41: #{lednet_forward.125} parent=27 // pred_check_branch
              %180 = sbr.rel target = $region43
            $region42: #{lednet_forward.125} parent=27 // pred_region
              _
            $region43: #{lednet_forward.125} parent=27 // pred_fallthru
              _
          $region28: #{lednet_forward.125} parent=23 // pred_fallthru
            _
          %181 = vnop
        $region24: #{lednet_forward.125} parent=19 // pred_fallthru
          _
        // Predicated region
        $region44: #{lednet_forward.125} parent=19 // pred_check
          %p182 = pneg %p71
        $region45: #{lednet_forward.125} parent=19 // pred_check_branch
          %184 = sbr.rel (%p182) target = $region47
        $region46: #{lednet_forward.125} parent=19 // pred_region
          %s185 = smul.u32 4, %s19
          %p186 = scmp.lt.s32.totalorder %s185, 51
          %s187 = scalar_select %p186, %s185, 51
          %s188 = scalar_lea.vmem %s1, %s187
          %s189 = smul.u32 4, %s19
        $region47: #{lednet_forward.125} parent=19 // pred_fallthru
          _
      $region20: #{lednet_forward.125} parent=5 // pred_fallthru
        _
      %p190 = scmp.le.s32.totalorder 1, %s11
      %p191 = scmp.lt.s32.totalorder %s11, 14
      %p192 = pnand %p190, %p191
      %p193 = pneg %p192
      // Predicated region
      $region48: #{lednet_forward.125} parent=5 // pred_check
        _
      $region49: #{lednet_forward.125} parent=5 // pred_check_branch
        %195 = sbr.rel (%p192) target = $region51
      $region50: #{lednet_forward.125} parent=5 // pred_region
        %s196 = ssub.s32 %s11, 1
        %s197 = sand.u32 %s38, 1
        %s198 = sand.u32 %s38, 1
        %s199 = smul.addr %s198, 32
        %s200 = scalar_lea.vmem [#allocation4], %s199
        // Predicated region
        $region52: #{lednet_forward.125} parent=50 // pred_check
          %p201 = pneg %p51
        $region53: #{lednet_forward.125} parent=50 // pred_check_branch
          %203 = sbr.rel (%p201) target = $region55
        $region54: #{lednet_forward.125} parent=50 // pred_region
          _
        $region55: #{lednet_forward.125} parent=50 // pred_fallthru
          _
        %s204 = sand.u32 %s38, 1
        %s205 = sand.u32 %s38, 1
        %s206 = smul.addr %s205, 32
        %s207 = scalar_lea.vmem [#allocation4], %s206
        %p208 = pneg %p51
        %p209 = pneg %p48
        %s210 = smul.u32 4, %s21
        %p211 = scmp.lt.s32.totalorder %s210, 51
        %s212 = scalar_select %p211, %s210, 51
        %s213 = scalar_lea.vmem %s1, %s212
        %p214 = pneg %p77
        %p215 = pneg %p74
        %p216 = pneg %p98
        %p217 = pneg %p95
        %p218 = pneg %p124
        %p219 = pneg %p121
        %s220 = smul.u32 2, %s20
        %p221 = scmp.lt.s32.totalorder %s220, 1
        %s222 = scalar_select %p221, %s220, 1
        %s223 = smul.addr %s222, 8
        %s224 = scalar_lea.vmem %s3, %s223
        %s225 = smul.u32 2, %s20
        %s226 = smul.u32 4, %s21
        %s227 = smul.u32 4, %s21
        %p228 = scmp.lt.s32.totalorder %s227, 51
        %s229 = scalar_select %p228, %s227, 51
        %s230 = scalar_lea.vmem %s1, %s229
        %s231 = smul.u32 4, %s21
        %s232 = smul.u32 2, %s20
        %p233 = scmp.lt.s32.totalorder %s232, 1
        %s234 = scalar_select %p233, %s232, 1
        %s235 = smul.addr %s234, 8
        %s236 = scalar_lea.vmem %s3, %s235
        %s237 = smul.u32 2, %s20
        %p238 = scmp.eq.s32.totalorder %s21, 0
        // Predicated region
        $region56: #{lednet_forward.125} parent=50 // pred_check
          %p239 = pneg %p238
        $region57: #{lednet_forward.125} parent=50 // pred_check_branch
          %241 = sbr.rel (%p239) target = $region59
        $region58: #{lednet_forward.125} parent=50 // pred_region
          %vm242 = vcmask 7168
          %243 = vst.msk [vmem:[#allocation2] sm:$0xff] %vm242, 0.0
          %244 = vst.msk [vmem:[#allocation2 + $0x8] sm:$0xff] %vm242, 0.0
        $region59: #{lednet_forward.125} parent=50 // pred_fallthru
          _
        %v245 = vld [vmem:[%s200] sm:$0xff]
        %v246 = vld [vmem:[%s200 + $0x8] sm:$0xff]
        %v247 = vld [vmem:[%s200 + $0x10] sm:$0xff]
        %v248 = vld [vmem:[%s200 + $0x18] sm:$0xff]
        %v249 = vunpack.c.l.bf16 %v245
        %v250 = vunpack.c.h.bf16 %v245
        %v251 = vunpack.c.l.bf16 %v246
        %v252 = vunpack.c.h.bf16 %v246
        %v253 = vunpack.c.l.bf16 %v247
        %v254 = vunpack.c.h.bf16 %v247
        %v255 = vunpack.c.l.bf16 %v248
        %v256 = vunpack.c.h.bf16 %v248
        %v257 = vld [vmem:[%s230] sm:$0xf]
        %v258 = vld [vmem:[#allocation2] sm:$0xff]
        %v259 = vld [vmem:[#allocation2 + $0x8] sm:$0xff]
        %v261 = vlaneseq
        %v262 = vshrl.u32 %v261, 7
        %v263 = vsub.s32 0, %v262
        %v264 = vrot.slane %v257, %v263
        %v265 = vlaneseq
        %v266 = vshrl.u32 %v265, 7
        %v267 = vsub.s32 1, %v266
        %v268 = vrot.slane %v257, %v267
        %v269 = vlaneseq
        %v270 = vshrl.u32 %v269, 7
        %v271 = vsub.s32 2, %v270
        %v272 = vrot.slane %v257, %v271
        %v273 = vlaneseq
        %v274 = vshrl.u32 %v273, 7
        %v275 = vsub.s32 3, %v274
        %v276 = vrot.slane %v257, %v275
        %v281 = vmul.f32 %v249, %v264
        %v282 = vmul.f32 %v250, %v268
        %v283 = vmul.f32 %v251, %v272
        %v284 = vmul.f32 %v252, %v276
        %v285 = vmul.f32 %v253, %v264
        %v286 = vmul.f32 %v254, %v268
        %v287 = vmul.f32 %v255, %v272
        %v288 = vmul.f32 %v256, %v276
        %v289 = vadd.f32 %v281, %v282
        %v290 = vadd.f32 %v289, %v283
        %v291 = vadd.f32 %v290, %v284
        %292 = vadd.xlane.f32.xlu0 %v291
        %v293 = vpop.xlane.xlu0 %292
        %v294 = vadd.f32 %v285, %v286
        %v295 = vadd.f32 %v294, %v287
        %v296 = vadd.f32 %v295, %v288
        %297 = vadd.xlane.f32.xlu0 %v296
        %v298 = vpop.xlane.xlu0 %297
        %v299 = vadd.f32 %v258, %v293
        %v300 = vadd.f32 %v259, %v298
        %vm301 = vcmask 7168
        %302 = vst.msk [vmem:[#allocation2] sm:$0xff] %vm301, %v299
        %303 = vst.msk [vmem:[#allocation2 + $0x8] sm:$0xff] %vm301, %v300
        %p304 = scmp.eq.s32.totalorder %s21, 12
        // Predicated region
        $region60: #{lednet_forward.125} parent=50 // pred_check
          %p305 = pneg %p304
        $region61: #{lednet_forward.125} parent=50 // pred_check_branch
          %307 = sbr.rel (%p305) target = $region63
        $region62: #{lednet_forward.125} parent=50 // pred_region
          %v308 = vld [vmem:[#allocation2] sm:$0xff]
          %v309 = vld [vmem:[#allocation2 + $0x8] sm:$0xff]
          %v310 = vld [vmem:[#allocation3] sm:$0x1]
          %v312 = vlaneseq
          %v313 = vshrl.u32 %v312, 7
          %v314 = vsub.s32 0, %v313
          %v315 = vrot.slane %v310, %v314
          %v317 = vadd.f32 %v308, %v315
          %v318 = vadd.f32 %v309, %v315
          %v319 = vmax.f32 %v317, 0.0
          %v320 = vmax.f32 %v318, 0.0
          %321 = vst.msk [vmem:[%s236] sm:$0xff] %vm301, %v319
          %322 = vst.msk [vmem:[%s236 + $0x8] sm:$0xff] %vm301, %v320
        $region63: #{lednet_forward.125} parent=50 // pred_fallthru
          _
        %s323 = smul.u32 2, %s20
        %p324 = scmp.lt.s32.totalorder %s323, 1
        %s325 = scalar_select %p324, %s323, 1
        %s326 = smul.addr %s325, 8
        %s327 = scalar_lea.vmem %s3, %s326
        // Predicated region
        $region64: #{lednet_forward.125} parent=50 // pred_check
          %p328 = pneg %p121
        $region65: #{lednet_forward.125} parent=50 // pred_check_branch
          %330 = sbr.rel (%p328) target = $region67
        $region66: #{lednet_forward.125} parent=50 // pred_region
          %s331 = smul.u32 2, %s20
        $region67: #{lednet_forward.125} parent=50 // pred_fallthru
          _
        // Predicated region
        $region68: #{lednet_forward.125} parent=50 // pred_check
          %p332 = pneg %p121
        $region69: #{lednet_forward.125} parent=50 // pred_check_branch
          %334 = sbr.rel (%p332) target = $region71
        $region70: #{lednet_forward.125} parent=50 // pred_region
          %s335 = smul.u32 2, %s20
          %p336 = scmp.lt.s32.totalorder %s335, 1
          %s337 = scalar_select %p336, %s335, 1
          %s338 = smul.addr %s337, 8
          %s339 = scalar_lea.vmem %s3, %s338
        $region71: #{lednet_forward.125} parent=50 // pred_fallthru
          _
      $region51: #{lednet_forward.125} parent=5 // pred_fallthru
        _
      %p340 = scmp.le.s32.totalorder 2, %s11
      // Predicated region
      $region72: #{lednet_forward.125} parent=5 // pred_check
        %p341 = pneg %p340
      $region73: #{lednet_forward.125} parent=5 // pred_check_branch
        %343 = sbr.rel (%p341) target = $region75
      $region74: #{lednet_forward.125} parent=5 // pred_region
        %s344 = ssub.s32 %s11, 2
      $region75: #{lednet_forward.125} parent=5 // pred_fallthru
        _
    $region6: #{lednet_forward.125} parent=1 // loop_footer
      %s15 = sadd.s32 1, %s11
    $region7: #{lednet_forward.125} parent=1 // loop_footer_branch
      %10 = sbr.rel target = $region3
    $region8: #{lednet_forward.125} parent=1 // loop_exit
      _

// kernel: lednet_forward.126
$region0: #{lednet_forward.126}
  #allocation0 [shape = 'u32[]', space=smem, size = 0x4, offset = 0x4, fixed_abs, tag = 'smem constant byte address 0x4 - core index']
  #allocation1 [shape = 'u32[144,128]{1,0:T(1,128)}', space=vmem, size = 0x12000, scoped, tag = 'internal scratch']
  #allocation2 [shape = 'f32[16,1]{1,0:T(8,128)}', space=vmem, size = 0x2000, scoped, tag = 'scratch operand']
  #allocation3 [shape = 'f32[1,1]{1,0:T(1,128)S(1)}', space=vmem, size = 0x200, scoped, tag = 'scoped memory for lednet_forward.126']
  %s0 = inlined_call_operand.vmem [shape: f32[16,128], index: 0, kind: input, shape index: {}]
  %s1 = inlined_call_operand.vmem [shape: f32[1,128], index: 1, kind: input, shape index: {}]
  %s2 = inlined_call_operand.<no memory space> [shape: f32[1,1], index: 2, kind: input, shape index: {}]
  %s3 = inlined_call_operand.vmem [shape: f32[16,1], index: 3, kind: output, shape index: {}]
  %s4 = sld [smem:[#allocation0]]
  $region30: #{lednet_forward.126} parent=0
    _
  %s6 = ssub.s32 1, %s4
  %s7 = scalar_select 0, %s6, %s4
  %v8 = vstv %s2
  %9 = vst [vmem:[#allocation3] sm:$0x1] %v8
  // Predicated region
  $region2: #{lednet_forward.126} parent=0 // pred_check
    _
  $region3: #{lednet_forward.126} parent=0 // pred_check_branch
    %11 = sbr.rel (0) target = $region5
  $region4: #{lednet_forward.126} parent=0 // pred_region
    _
  $region5: #{lednet_forward.126} parent=0 // pred_fallthru
    _
  // Predicated region
  $region6: #{lednet_forward.126} parent=0 // pred_check
    _
  $region7: #{lednet_forward.126} parent=0 // pred_check_branch
    %13 = sbr.rel (0) target = $region9
  $region8: #{lednet_forward.126} parent=0 // pred_region
    _
  $region9: #{lednet_forward.126} parent=0 // pred_fallthru
    _
  // Predicated region
  $region10: #{lednet_forward.126} parent=0 // pred_check
    _
  $region11: #{lednet_forward.126} parent=0 // pred_check_branch
    %15 = sbr.rel (0) target = $region13
  $region12: #{lednet_forward.126} parent=0 // pred_region
    _
  $region13: #{lednet_forward.126} parent=0 // pred_fallthru
    _
  %p16 = scmp.eq.s32.totalorder 0, 0
  // Predicated region
  $region14: #{lednet_forward.126} parent=0 // pred_check
    %p17 = pneg %p16
  $region15: #{lednet_forward.126} parent=0 // pred_check_branch
    %19 = sbr.rel (%p17) target = $region17
  $region16: #{lednet_forward.126} parent=0 // pred_region
    %vm20 = vcmask 7168
    %21 = vst.msk [vmem:[#allocation2] sm:$0xff] %vm20, 0.0
    %22 = vst.msk [vmem:[#allocation2 + $0x8] sm:$0xff] %vm20, 0.0
  $region17: #{lednet_forward.126} parent=0 // pred_fallthru
    _
  %v23 = vld [vmem:[%s0] sm:$0xff]
  %v24 = vld [vmem:[%s0 + $0x8] sm:$0xff]
  %v25 = vld [vmem:[%s1] sm:$0x1]
  %v26 = vld [vmem:[#allocation2] sm:$0xff]
  %v27 = vld [vmem:[#allocation2 + $0x8] sm:$0xff]
  %v29 = vlaneseq
  %v30 = vshrl.u32 %v29, 7
  %v31 = vsub.s32 0, %v30
  %v32 = vrot.slane %v25, %v31
  %v34 = vmul.f32 %v23, %v32
  %v35 = vmul.f32 %v24, %v32
  %36 = vadd.xlane.f32.xlu0 %v34
  %v37 = vpop.xlane.xlu0 %36
  %38 = vadd.xlane.f32.xlu0 %v35
  %v39 = vpop.xlane.xlu0 %38
  %v40 = vadd.f32 %v26, %v37
  %v41 = vadd.f32 %v27, %v39
  %vm42 = vcmask 7168
  %43 = vst.msk [vmem:[#allocation2] sm:$0xff] %vm42, %v40
  %44 = vst.msk [vmem:[#allocation2 + $0x8] sm:$0xff] %vm42, %v41
  // Predicated region
  $region18: #{lednet_forward.126} parent=0 // pred_check
    %p45 = pneg %p16
  $region19: #{lednet_forward.126} parent=0 // pred_check_branch
    %47 = sbr.rel (%p45) target = $region21
  $region20: #{lednet_forward.126} parent=0 // pred_region
    %v48 = vld [vmem:[#allocation2] sm:$0xff]
    %v49 = vld [vmem:[#allocation2 + $0x8] sm:$0xff]
    %v50 = vld [vmem:[#allocation3] sm:$0x1]
    %v52 = vlaneseq
    %v53 = vshrl.u32 %v52, 7
    %v54 = vsub.s32 0, %v53
    %v55 = vrot.slane %v50, %v54
    %v57 = vadd.f32 %v48, %v55
    %v58 = vadd.f32 %v49, %v55
    %v59 = vmax.f32 %v57, 0.0
    %v60 = vmax.f32 %v58, 0.0
    %61 = vst.msk [vmem:[%s3] sm:$0xff] %vm42, %v59
    %62 = vst.msk [vmem:[%s3 + $0x8] sm:$0xff] %vm42, %v60
  $region21: #{lednet_forward.126} parent=0 // pred_fallthru
    _
  // Predicated region
  $region22: #{lednet_forward.126} parent=0 // pred_check
    _
  $region23: #{lednet_forward.126} parent=0 // pred_check_branch
    %64 = sbr.rel (0) target = $region25
  $region24: #{lednet_forward.126} parent=0 // pred_region
    _
  $region25: #{lednet_forward.126} parent=0 // pred_fallthru
    _
  // Predicated region
  $region26: #{lednet_forward.126} parent=0 // pred_check
    _
  $region27: #{lednet_forward.126} parent=0 // pred_check_branch
    %66 = sbr.rel (0) target = $region29
  $region28: #{lednet_forward.126} parent=0 // pred_region
    _
  $region29: #{lednet_forward.126} parent=0 // pred_fallthru
    _

// kernel: lednet_forward.129
$region0: #{lednet_forward.129}
  #allocation0 [shape = 'u32[]', space=smem, size = 0x4, offset = 0x4, fixed_abs, tag = 'smem constant byte address 0x4 - core index']
  #allocation1 [shape = 'u32[144,128]{1,0:T(1,128)}', space=vmem, size = 0x12000, scoped, tag = 'internal scratch']
  #allocation2 [shape = 'f32[16,1]{1,0:T(8,128)}', space=vmem, size = 0x2000, scoped, tag = 'scratch operand']
  #allocation3 [shape = 'f32[1,1]{1,0:T(1,128)S(1)}', space=vmem, size = 0x200, scoped, tag = 'scoped memory for lednet_forward.129']
  %s0 = inlined_call_operand.vmem [shape: f32[16,128], index: 0, kind: input, shape index: {}]
  %s1 = inlined_call_operand.vmem [shape: f32[1,128], index: 1, kind: input, shape index: {}]
  %s2 = inlined_call_operand.<no memory space> [shape: f32[1,1], index: 2, kind: input, shape index: {}]
  %s3 = inlined_call_operand.vmem [shape: f32[16,1], index: 3, kind: input, shape index: {}]
  %s4 = inlined_call_operand.vmem [shape: f32[16,1], index: 4, kind: output, shape index: {}]
  %s5 = sld [smem:[#allocation0]]
  $region34: #{lednet_forward.129} parent=0
    _
  %s7 = ssub.s32 1, %s5
  %s8 = scalar_select 0, %s7, %s5
  %v9 = vstv %s2
  %10 = vst [vmem:[#allocation3] sm:$0x1] %v9
  // Predicated region
  $region2: #{lednet_forward.129} parent=0 // pred_check
    _
  $region3: #{lednet_forward.129} parent=0 // pred_check_branch
    %12 = sbr.rel (0) target = $region5
  $region4: #{lednet_forward.129} parent=0 // pred_region
    _
  $region5: #{lednet_forward.129} parent=0 // pred_fallthru
    _
  // Predicated region
  $region6: #{lednet_forward.129} parent=0 // pred_check
    _
  $region7: #{lednet_forward.129} parent=0 // pred_check_branch
    %14 = sbr.rel (0) target = $region9
  $region8: #{lednet_forward.129} parent=0 // pred_region
    _
  $region9: #{lednet_forward.129} parent=0 // pred_fallthru
    _
  // Predicated region
  $region10: #{lednet_forward.129} parent=0 // pred_check
    _
  $region11: #{lednet_forward.129} parent=0 // pred_check_branch
    %16 = sbr.rel (0) target = $region13
  $region12: #{lednet_forward.129} parent=0 // pred_region
    _
  $region13: #{lednet_forward.129} parent=0 // pred_fallthru
    _
  // Predicated region
  $region14: #{lednet_forward.129} parent=0 // pred_check
    _
  $region15: #{lednet_forward.129} parent=0 // pred_check_branch
    %18 = sbr.rel (0) target = $region17
  $region16: #{lednet_forward.129} parent=0 // pred_region
    _
  $region17: #{lednet_forward.129} parent=0 // pred_fallthru
    _
  %p19 = scmp.eq.s32.totalorder 0, 0
  // Predicated region
  $region18: #{lednet_forward.129} parent=0 // pred_check
    %p20 = pneg %p19
  $region19: #{lednet_forward.129} parent=0 // pred_check_branch
    %22 = sbr.rel (%p20) target = $region21
  $region20: #{lednet_forward.129} parent=0 // pred_region
    %vm23 = vcmask 7168
    %24 = vst.msk [vmem:[#allocation2] sm:$0xff] %vm23, 0.0
    %25 = vst.msk [vmem:[#allocation2 + $0x8] sm:$0xff] %vm23, 0.0
  $region21: #{lednet_forward.129} parent=0 // pred_fallthru
    _
  %v26 = vld [vmem:[%s0] sm:$0xff]
  %v27 = vld [vmem:[%s0 + $0x8] sm:$0xff]
  %v28 = vld [vmem:[%s1] sm:$0x1]
  %v29 = vld [vmem:[#allocation2] sm:$0xff]
  %v30 = vld [vmem:[#allocation2 + $0x8] sm:$0xff]
  %v32 = vlaneseq
  %v33 = vshrl.u32 %v32, 7
  %v34 = vsub.s32 0, %v33
  %v35 = vrot.slane %v28, %v34
  %v37 = vmul.f32 %v26, %v35
  %v38 = vmul.f32 %v27, %v35
  %39 = vadd.xlane.f32.xlu0 %v37
  %v40 = vpop.xlane.xlu0 %39
  %41 = vadd.xlane.f32.xlu0 %v38
  %v42 = vpop.xlane.xlu0 %41
  %v43 = vadd.f32 %v29, %v40
  %v44 = vadd.f32 %v30, %v42
  %vm45 = vcmask 7168
  %46 = vst.msk [vmem:[#allocation2] sm:$0xff] %vm45, %v43
  %47 = vst.msk [vmem:[#allocation2 + $0x8] sm:$0xff] %vm45, %v44
  // Predicated region
  $region22: #{lednet_forward.129} parent=0 // pred_check
    %p48 = pneg %p19
  $region23: #{lednet_forward.129} parent=0 // pred_check_branch
    %50 = sbr.rel (%p48) target = $region25
  $region24: #{lednet_forward.129} parent=0 // pred_region
    %v51 = vld [vmem:[#allocation2] sm:$0xff]
    %v52 = vld [vmem:[#allocation2 + $0x8] sm:$0xff]
    %v53 = vld [vmem:[#allocation3] sm:$0x1]
    %v55 = vlaneseq
    %v56 = vshrl.u32 %v55, 7
    %v57 = vsub.s32 0, %v56
    %v58 = vrot.slane %v53, %v57
    %v60 = vadd.f32 %v51, %v58
    %v61 = vadd.f32 %v52, %v58
    %v62 = vmax.f32 %v60, 0.0
    %v63 = vmax.f32 %v61, 0.0
    %v64 = vld [vmem:[%s3] sm:$0xff]
    %v65 = vld [vmem:[%s3 + $0x8] sm:$0xff]
    %v66 = vadd.f32 %v62, %v64
    %v67 = vadd.f32 %v63, %v65
    %68 = vst.msk [vmem:[%s4] sm:$0xff] %vm45, %v66
    %69 = vst.msk [vmem:[%s4 + $0x8] sm:$0xff] %vm45, %v67
  $region25: #{lednet_forward.129} parent=0 // pred_fallthru
    _
  // Predicated region
  $region26: #{lednet_forward.129} parent=0 // pred_check
    _
  $region27: #{lednet_forward.129} parent=0 // pred_check_branch
    %71 = sbr.rel (0) target = $region29
  $region28: #{lednet_forward.129} parent=0 // pred_region
    _
  $region29: #{lednet_forward.129} parent=0 // pred_fallthru
    _
  // Predicated region
  $region30: #{lednet_forward.129} parent=0 // pred_check
    _
  $region31: #{lednet_forward.129} parent=0 // pred_check_branch
    %73 = sbr.rel (0) target = $region33
  $region32: #{lednet_forward.129} parent=0 // pred_region
    _
  $region33: #{lednet_forward.129} parent=0 // pred_fallthru
    _

// kernel: lednet_forward.124
$region0: #{lednet_forward.124}
  #allocation0 [shape = 'u32[]', space=smem, size = 0x4, offset = 0x4, fixed_abs, tag = 'smem constant byte address 0x4 - core index']
  #allocation1 [shape = 'u32[144,128]{1,0:T(1,128)}', space=vmem, size = 0x12000, scoped, tag = 'internal scratch']
  #allocation2 [shape = 'f32[16,128]{1,0:T(8,128)}', space=vmem, size = 0x2000, scoped, tag = 'scratch operand']
  %s0 = inlined_call_operand.vmem [shape: bf16[16,128], index: 0, kind: input, shape index: {}]
  %s1 = inlined_call_operand.vmem [shape: bf16[128,128], index: 1, kind: input, shape index: {}]
  %s2 = inlined_call_operand.vmem [shape: f32[1,128], index: 2, kind: input, shape index: {}]
  %s3 = inlined_call_operand.vmem [shape: f32[16,128], index: 3, kind: output, shape index: {}]
  %s4 = sld [smem:[#allocation0]]
  $region30: #{lednet_forward.124} parent=0
    _
  %s6 = ssub.s32 1, %s4
  %s7 = scalar_select 0, %s6, %s4
  // Predicated region
  $region2: #{lednet_forward.124} parent=0 // pred_check
    _
  $region3: #{lednet_forward.124} parent=0 // pred_check_branch
    %9 = sbr.rel (0) target = $region5
  $region4: #{lednet_forward.124} parent=0 // pred_region
    _
  $region5: #{lednet_forward.124} parent=0 // pred_fallthru
    _
  // Predicated region
  $region6: #{lednet_forward.124} parent=0 // pred_check
    _
  $region7: #{lednet_forward.124} parent=0 // pred_check_branch
    %11 = sbr.rel (0) target = $region9
  $region8: #{lednet_forward.124} parent=0 // pred_region
    _
  $region9: #{lednet_forward.124} parent=0 // pred_fallthru
    _
  // Predicated region
  $region10: #{lednet_forward.124} parent=0 // pred_check
    _
  $region11: #{lednet_forward.124} parent=0 // pred_check_branch
    %13 = sbr.rel (0) target = $region13
  $region12: #{lednet_forward.124} parent=0 // pred_region
    _
  $region13: #{lednet_forward.124} parent=0 // pred_fallthru
    _
  %p15 = scmp.eq.s32.totalorder 0, 0
  // Predicated region
  $region14: #{lednet_forward.124} parent=0 // pred_check
    %p16 = pneg %p15
  $region15: #{lednet_forward.124} parent=0 // pred_check_branch
    %18 = sbr.rel (%p16) target = $region17
  $region16: #{lednet_forward.124} parent=0 // pred_region
    %19 = vst [vmem:[#allocation2] sm:$0xff] 0.0
    %20 = vst [vmem:[#allocation2 + $0x8] sm:$0xff] 0.0
  $region17: #{lednet_forward.124} parent=0 // pred_fallthru
    _
  %v21 = vld [vmem:[#allocation2] sm:$0xff]
  %v22 = vld [vmem:[#allocation2 + $0x8] sm:$0xff]
  %v23 = vld [vmem:[%s0] sm:$0xf]
  %v24 = vld [vmem:[%s0 + $0x4] sm:$0xf]
  %v25 = vld [vmem:[%s1] sm:$0xf]
  %v26 = vld [vmem:[%s1 + $0x4] sm:$0xf]
  %v27 = vld [vmem:[%s1 + $0x8] sm:$0xf]
  %v28 = vld [vmem:[%s1 + $0xc] sm:$0xf]
  %v29 = vld [vmem:[%s1 + $0x10] sm:$0xf]
  %v30 = vld [vmem:[%s1 + $0x14] sm:$0xf]
  %v31 = vld [vmem:[%s1 + $0x18] sm:$0xf]
  %v32 = vld [vmem:[%s1 + $0x1c] sm:$0xf]
  %v33 = vld [vmem:[%s1 + $0x20] sm:$0xf]
  %v34 = vld [vmem:[%s1 + $0x24] sm:$0xf]
  %v35 = vld [vmem:[%s1 + $0x28] sm:$0xf]
  %v36 = vld [vmem:[%s1 + $0x2c] sm:$0xf]
  %v37 = vld [vmem:[%s1 + $0x30] sm:$0xf]
  %v38 = vld [vmem:[%s1 + $0x34] sm:$0xf]
  %v39 = vld [vmem:[%s1 + $0x38] sm:$0xf]
  %v40 = vld [vmem:[%s1 + $0x3c] sm:$0xf]
  %v43 = vunpack.c.l.b16 %v23
  %v44 = vunpack.c.l.b16 %v24
  %v45 = vpack.c.b16 %v44, %v43
  %v63 = vunpack.c.l.b16 %v25
  %v64 = vunpack.c.l.b16 %v26
  %v65 = vunpack.c.l.b16 %v27
  %v66 = vunpack.c.l.b16 %v28
  %v67 = vunpack.c.l.b16 %v29
  %v68 = vunpack.c.l.b16 %v30
  %v69 = vunpack.c.l.b16 %v31
  %v70 = vunpack.c.l.b16 %v32
  %v71 = vunpack.c.l.b16 %v33
  %v72 = vunpack.c.l.b16 %v34
  %v73 = vunpack.c.l.b16 %v35
  %v74 = vunpack.c.l.b16 %v36
  %v75 = vunpack.c.l.b16 %v37
  %v76 = vunpack.c.l.b16 %v38
  %v77 = vunpack.c.l.b16 %v39
  %v78 = vunpack.c.l.b16 %v40
  %v79 = vpack.c.b16 %v64, %v63
  %v80 = vpack.c.b16 %v66, %v65
  %v81 = vpack.c.b16 %v68, %v67
  %v82 = vpack.c.b16 %v70, %v69
  %v83 = vpack.c.b16 %v72, %v71
  %v84 = vpack.c.b16 %v74, %v73
  %v85 = vpack.c.b16 %v76, %v75
  %v86 = vpack.c.b16 %v78, %v77
  %95 = vmatprep.subr.bf16.mxu0 0
  %96 = vmatpush1.bf16.msra.mxu0 %v86
  %97 = vmatprep.subr.bf16.mxu0 0
  %98 = vmatpush1.bf16.msra.mxu0 %v85
  %99 = vmatprep.subr.bf16.mxu0 0
  %100 = vmatpush1.bf16.msra.mxu0 %v84
  %101 = vmatprep.subr.bf16.mxu0 0
  %102 = vmatpush1.bf16.msra.mxu0 %v83
  %103 = vmatprep.subr.bf16.mxu0 0
  %104 = vmatpush1.bf16.msra.mxu0 %v82
  %105 = vmatprep.subr.bf16.mxu0 0
  %106 = vmatpush1.bf16.msra.mxu0 %v81
  %107 = vmatprep.subr.bf16.mxu0 0
  %108 = vmatpush1.bf16.msra.mxu0 %v80
  %109 = vmatprep.subr.bf16.mxu0 0
  %110 = vmatpush1.bf16.msra.mxu0 %v79
  %111 = vmatprep.subr.bf16.mxu0 0
  %112 = vmatpush2.bf16.msra.mxu0 0
  %113 = vmatprep.subr.bf16.mxu0 0
  %114 = vmatpush2.bf16.msra.mxu0 0
  %115 = vmatprep.subr.bf16.mxu0 0
  %116 = vmatpush2.bf16.msra.mxu0 0
  %117 = vmatprep.subr.bf16.mxu0 0
  %118 = vmatpush2.bf16.msra.mxu0 0
  %119 = vmatprep.subr.bf16.mxu0 0
  %120 = vmatpush2.bf16.msra.mxu0 0
  %121 = vmatprep.subr.bf16.mxu0 0
  %122 = vmatpush2.bf16.msra.mxu0 0
  %123 = vmatprep.subr.bf16.mxu0 0
  %124 = vmatpush2.bf16.msra.mxu0 0
  %125 = vmatprep.subr.bf16.mxu0 0
  %126 = vmatpush2.bf16.msra.mxu0 0
  %127 = vmatprep.mubr.bf16.mxu0 0
  %128 = vmatmul.mubr.bf16.gmra.mxu0 %v45
  %v129 = vpop.f32.mrf.mxu0
  %v130 = vadd.f32 0.0, %v129
  %v131 = vpop.f32.mrf.mxu0
  %v132 = vpop.f32.mrf.mxu0
  %v133 = vadd.f32 0.0, %v132
  %v134 = vpop.f32.mrf.mxu0
  %135 = vdwg.mxu0
  %v136 = vadd.f32 %v21, %v130
  %v137 = vadd.f32 %v22, %v133
  %138 = vst [vmem:[#allocation2] sm:$0xff] %v136
  %139 = vst [vmem:[#allocation2 + $0x8] sm:$0xff] %v137
  // Predicated region
  $region18: #{lednet_forward.124} parent=0 // pred_check
    %p140 = pneg %p15
  $region19: #{lednet_forward.124} parent=0 // pred_check_branch
    %142 = sbr.rel (%p140) target = $region21
  $region20: #{lednet_forward.124} parent=0 // pred_region
    %v143 = vld [vmem:[#allocation2] sm:$0xff]
    %v144 = vld [vmem:[#allocation2 + $0x8] sm:$0xff]
    %v145 = vld [vmem:[%s2] sm:$0x1]
    %v147 = vlaneseq
    %v148 = vshrl.u32 %v147, 7
    %v149 = vsub.s32 0, %v148
    %v150 = vrot.slane %v145, %v149
    %v152 = vadd.f32 %v143, %v150
    %v153 = vadd.f32 %v144, %v150
    %154 = vst [vmem:[%s3] sm:$0xff] %v152
    %155 = vst [vmem:[%s3 + $0x8] sm:$0xff] %v153
  $region21: #{lednet_forward.124} parent=0 // pred_fallthru
    _
  // Predicated region
  $region22: #{lednet_forward.124} parent=0 // pred_check
    _
  $region23: #{lednet_forward.124} parent=0 // pred_check_branch
    %157 = sbr.rel (0) target = $region25
  $region24: #{lednet_forward.124} parent=0 // pred_region
    _
  $region25: #{lednet_forward.124} parent=0 // pred_fallthru
    _
  // Predicated region
  $region26: #{lednet_forward.124} parent=0 // pred_check
    _
  $region27: #{lednet_forward.124} parent=0 // pred_check_branch
    %159 = sbr.rel (0) target = $region29
  $region28: #{lednet_forward.124} parent=0 // pred_region
    _
  $region29: #{lednet_forward.124} parent=0 // pred_fallthru
    _

// kernel: lednet_forward.131
$region0: #{lednet_forward.131}
  #allocation0 [shape = 'u32[]', space=smem, size = 0x4, offset = 0x4, fixed_abs, tag = 'smem constant byte address 0x4 - core index']
  #allocation1 [shape = 'u32[144,128]{1,0:T(1,128)}', space=vmem, size = 0x12000, scoped, tag = 'internal scratch']
  #allocation2 [shape = 'f32[32,128]{1,0:T(8,128)}', space=vmem, size = 0x4000, scoped, tag = 'scratch operand']
  %s0 = inlined_call_operand.vmem [shape: bf16[32,128], index: 0, kind: input, shape index: {}]
  %s1 = inlined_call_operand.vmem [shape: bf16[128,128], index: 1, kind: input, shape index: {}]
  %s2 = inlined_call_operand.vmem [shape: f32[1,128], index: 2, kind: input, shape index: {}]
  %s3 = inlined_call_operand.vmem [shape: f32[32,128], index: 3, kind: input, shape index: {}]
  %s4 = inlined_call_operand.vmem [shape: f32[32,128], index: 4, kind: input, shape index: {}]
  %s5 = inlined_call_operand.hbm [shape: f32[32,128], index: 5, kind: output, shape index: {}]
  %s6 = sld [smem:[#allocation0]]
  $region38: #{lednet_forward.131} parent=0
    _
  %s8 = ssub.s32 1, %s6
  %s9 = scalar_select 0, %s8, %s6
  $region1: #{lednet_forward.131} parent=0
    #allocation3 [shape = 'u8[16384]{0}', space=vmem, size = 0x4000, scoped, tag = 'output window, operand 0, single buffered']
    #allocation4 [shape = 's32[1]{0}', space=sflag, size = 0x4, scoped, tag = 'scoped memory for lednet_forward.131']
    %10 = vsyncpa [#allocation4], 0
    // Predicated region
    $region2: #{lednet_forward.131} parent=1 // pred_check
      _
    $region3: #{lednet_forward.131} parent=1 // pred_check_branch
      %12 = sbr.rel (0) target = $region5
    $region4: #{lednet_forward.131} parent=1 // pred_region
      _
    $region5: #{lednet_forward.131} parent=1 // pred_fallthru
      _
    // Predicated region
    $region6: #{lednet_forward.131} parent=1 // pred_check
      _
    $region7: #{lednet_forward.131} parent=1 // pred_check_branch
      %14 = sbr.rel (0) target = $region9
    $region8: #{lednet_forward.131} parent=1 // pred_region
      _
    $region9: #{lednet_forward.131} parent=1 // pred_fallthru
      _
    // Predicated region
    $region10: #{lednet_forward.131} parent=1 // pred_check
      _
    $region11: #{lednet_forward.131} parent=1 // pred_check_branch
      %16 = sbr.rel (0) target = $region13
    $region12: #{lednet_forward.131} parent=1 // pred_region
      _
    $region13: #{lednet_forward.131} parent=1 // pred_fallthru
      _
    // Predicated region
    $region14: #{lednet_forward.131} parent=1 // pred_check
      _
    $region15: #{lednet_forward.131} parent=1 // pred_check_branch
      %18 = sbr.rel (0) target = $region17
    $region16: #{lednet_forward.131} parent=1 // pred_region
      _
    $region17: #{lednet_forward.131} parent=1 // pred_fallthru
      _
    // Predicated region
    $region18: #{lednet_forward.131} parent=1 // pred_check
      _
    $region19: #{lednet_forward.131} parent=1 // pred_check_branch
      %20 = sbr.rel (0) target = $region21
    $region20: #{lednet_forward.131} parent=1 // pred_region
      _
    $region21: #{lednet_forward.131} parent=1 // pred_fallthru
      _
    %p22 = scmp.eq.s32.totalorder 0, 0
    // Predicated region
    $region22: #{lednet_forward.131} parent=1 // pred_check
      %p23 = pneg %p22
    $region23: #{lednet_forward.131} parent=1 // pred_check_branch
      %25 = sbr.rel (%p23) target = $region25
    $region24: #{lednet_forward.131} parent=1 // pred_region
      %26 = vst [vmem:[#allocation2] sm:$0xff] 0.0
      %27 = vst [vmem:[#allocation2 + $0x8] sm:$0xff] 0.0
      %28 = vst [vmem:[#allocation2 + $0x10] sm:$0xff] 0.0
      %29 = vst [vmem:[#allocation2 + $0x18] sm:$0xff] 0.0
    $region25: #{lednet_forward.131} parent=1 // pred_fallthru
      _
    %v30 = vld [vmem:[#allocation2] sm:$0xff]
    %v31 = vld [vmem:[#allocation2 + $0x8] sm:$0xff]
    %v32 = vld [vmem:[#allocation2 + $0x10] sm:$0xff]
    %v33 = vld [vmem:[#allocation2 + $0x18] sm:$0xff]
    %v34 = vld [vmem:[%s0] sm:$0xf]
    %v35 = vld [vmem:[%s0 + $0x4] sm:$0xf]
    %v36 = vld [vmem:[%s0 + $0x8] sm:$0xf]
    %v37 = vld [vmem:[%s0 + $0xc] sm:$0xf]
    %v38 = vld [vmem:[%s1] sm:$0xf]
    %v39 = vld [vmem:[%s1 + $0x4] sm:$0xf]
    %v40 = vld [vmem:[%s1 + $0x8] sm:$0xf]
    %v41 = vld [vmem:[%s1 + $0xc] sm:$0xf]
    %v42 = vld [vmem:[%s1 + $0x10] sm:$0xf]
    %v43 = vld [vmem:[%s1 + $0x14] sm:$0xf]
    %v44 = vld [vmem:[%s1 + $0x18] sm:$0xf]
    %v45 = vld [vmem:[%s1 + $0x1c] sm:$0xf]
    %v46 = vld [vmem:[%s1 + $0x20] sm:$0xf]
    %v47 = vld [vmem:[%s1 + $0x24] sm:$0xf]
    %v48 = vld [vmem:[%s1 + $0x28] sm:$0xf]
    %v49 = vld [vmem:[%s1 + $0x2c] sm:$0xf]
    %v50 = vld [vmem:[%s1 + $0x30] sm:$0xf]
    %v51 = vld [vmem:[%s1 + $0x34] sm:$0xf]
    %v52 = vld [vmem:[%s1 + $0x38] sm:$0xf]
    %v53 = vld [vmem:[%s1 + $0x3c] sm:$0xf]
    %v58 = vunpack.c.l.b16 %v34
    %v59 = vunpack.c.l.b16 %v35
    %v60 = vunpack.c.l.b16 %v36
    %v61 = vunpack.c.l.b16 %v37
    %v62 = vpack.c.b16 %v59, %v58
    %v63 = vpack.c.b16 %v61, %v60
    %v82 = vunpack.c.l.b16 %v38
    %v83 = vunpack.c.l.b16 %v39
    %v84 = vunpack.c.l.b16 %v40
    %v85 = vunpack.c.l.b16 %v41
    %v86 = vunpack.c.l.b16 %v42
    %v87 = vunpack.c.l.b16 %v43
    %v88 = vunpack.c.l.b16 %v44
    %v89 = vunpack.c.l.b16 %v45
    %v90 = vunpack.c.l.b16 %v46
    %v91 = vunpack.c.l.b16 %v47
    %v92 = vunpack.c.l.b16 %v48
    %v93 = vunpack.c.l.b16 %v49
    %v94 = vunpack.c.l.b16 %v50
    %v95 = vunpack.c.l.b16 %v51
    %v96 = vunpack.c.l.b16 %v52
    %v97 = vunpack.c.l.b16 %v53
    %v98 = vpack.c.b16 %v83, %v82
    %v99 = vpack.c.b16 %v85, %v84
    %v100 = vpack.c.b16 %v87, %v86
    %v101 = vpack.c.b16 %v89, %v88
    %v102 = vpack.c.b16 %v91, %v90
    %v103 = vpack.c.b16 %v93, %v92
    %v104 = vpack.c.b16 %v95, %v94
    %v105 = vpack.c.b16 %v97, %v96
    %114 = vmatprep.subr.bf16.mxu0 0
    %115 = vmatpush1.bf16.msra.mxu0 %v105
    %116 = vmatprep.subr.bf16.mxu0 0
    %117 = vmatpush1.bf16.msra.mxu0 %v104
    %118 = vmatprep.subr.bf16.mxu0 0
    %119 = vmatpush1.bf16.msra.mxu0 %v103
    %120 = vmatprep.subr.bf16.mxu0 0
    %121 = vmatpush1.bf16.msra.mxu0 %v102
    %122 = vmatprep.subr.bf16.mxu0 0
    %123 = vmatpush1.bf16.msra.mxu0 %v101
    %124 = vmatprep.subr.bf16.mxu0 0
    %125 = vmatpush1.bf16.msra.mxu0 %v100
    %126 = vmatprep.subr.bf16.mxu0 0
    %127 = vmatpush1.bf16.msra.mxu0 %v99
    %128 = vmatprep.subr.bf16.mxu0 0
    %129 = vmatpush1.bf16.msra.mxu0 %v98
    %130 = vmatprep.subr.bf16.mxu0 0
    %131 = vmatpush2.bf16.msra.mxu0 0
    %132 = vmatprep.subr.bf16.mxu0 0
    %133 = vmatpush2.bf16.msra.mxu0 0
    %134 = vmatprep.subr.bf16.mxu0 0
    %135 = vmatpush2.bf16.msra.mxu0 0
    %136 = vmatprep.subr.bf16.mxu0 0
    %137 = vmatpush2.bf16.msra.mxu0 0
    %138 = vmatprep.subr.bf16.mxu0 0
    %139 = vmatpush2.bf16.msra.mxu0 0
    %140 = vmatprep.subr.bf16.mxu0 0
    %141 = vmatpush2.bf16.msra.mxu0 0
    %142 = vmatprep.subr.bf16.mxu0 0
    %143 = vmatpush2.bf16.msra.mxu0 0
    %144 = vmatprep.subr.bf16.mxu0 0
    %145 = vmatpush2.bf16.msra.mxu0 0
    %146 = vmatprep.mubr.bf16.mxu0 0
    %147 = vmatmul.mubr.bf16.gmra.mxu0 %v62
    %v148 = vpop.f32.mrf.mxu0
    %v149 = vadd.f32 0.0, %v148
    %v150 = vpop.f32.mrf.mxu0
    %v151 = vpop.f32.mrf.mxu0
    %v152 = vadd.f32 0.0, %v151
    %v153 = vpop.f32.mrf.mxu0
    %154 = vmatprep.mubr.bf16.mxu0 0
    %155 = vmatmul.mubr.bf16.gmra.mxu0 %v63
    %v156 = vpop.f32.mrf.mxu0
    %v157 = vadd.f32 0.0, %v156
    %v158 = vpop.f32.mrf.mxu0
    %v159 = vpop.f32.mrf.mxu0
    %v160 = vadd.f32 0.0, %v159
    %v161 = vpop.f32.mrf.mxu0
    %162 = vdwg.mxu0
    %v163 = vadd.f32 %v30, %v149
    %v164 = vadd.f32 %v31, %v152
    %v165 = vadd.f32 %v32, %v157
    %v166 = vadd.f32 %v33, %v160
    %167 = vst [vmem:[#allocation2] sm:$0xff] %v163
    %168 = vst [vmem:[#allocation2 + $0x8] sm:$0xff] %v164
    %169 = vst [vmem:[#allocation2 + $0x10] sm:$0xff] %v165
    %170 = vst [vmem:[#allocation2 + $0x18] sm:$0xff] %v166
    // Predicated region
    $region26: #{lednet_forward.131} parent=1 // pred_check
      %p171 = pneg %p22
    $region27: #{lednet_forward.131} parent=1 // pred_check_branch
      %173 = sbr.rel (%p171) target = $region29
    $region28: #{lednet_forward.131} parent=1 // pred_region
      %v174 = vld [vmem:[#allocation2] sm:$0xff]
      %v175 = vld [vmem:[#allocation2 + $0x8] sm:$0xff]
      %v176 = vld [vmem:[#allocation2 + $0x10] sm:$0xff]
      %v177 = vld [vmem:[#allocation2 + $0x18] sm:$0xff]
      %v178 = vld [vmem:[%s2] sm:$0x1]
      %v180 = vlaneseq
      %v181 = vshrl.u32 %v180, 7
      %v182 = vsub.s32 0, %v181
      %v183 = vrot.slane %v178, %v182
      %v185 = vadd.f32 %v174, %v183
      %v186 = vadd.f32 %v175, %v183
      %v187 = vadd.f32 %v176, %v183
      %v188 = vadd.f32 %v177, %v183
      %v189 = vld [vmem:[%s3] sm:$0xff]
      %v190 = vld [vmem:[%s3 + $0x8] sm:$0xff]
      %v191 = vld [vmem:[%s3 + $0x10] sm:$0xff]
      %v192 = vld [vmem:[%s3 + $0x18] sm:$0xff]
      %v193 = vmul.f32 %v185, %v189
      %v194 = vmul.f32 %v186, %v190
      %v195 = vmul.f32 %v187, %v191
      %v196 = vmul.f32 %v188, %v192
      %v197 = vld [vmem:[%s4] sm:$0xff]
      %v198 = vld [vmem:[%s4 + $0x8] sm:$0xff]
      %v199 = vld [vmem:[%s4 + $0x10] sm:$0xff]
      %v200 = vld [vmem:[%s4 + $0x18] sm:$0xff]
      %v201 = vadd.f32 %v193, %v197
      %v202 = vadd.f32 %v194, %v198
      %v203 = vadd.f32 %v195, %v199
      %v204 = vadd.f32 %v196, %v200
      %205 = vst [vmem:[#allocation3] sm:$0xff] %v201
      %206 = vst [vmem:[#allocation3 + $0x8] sm:$0xff] %v202
      %207 = vst [vmem:[#allocation3 + $0x10] sm:$0xff] %v203
      %208 = vst [vmem:[#allocation3 + $0x18] sm:$0xff] %v204
    $region29: #{lednet_forward.131} parent=1 // pred_fallthru
      _
    // Predicated region
    $region30: #{lednet_forward.131} parent=1 // pred_check
      _
    $region31: #{lednet_forward.131} parent=1 // pred_check_branch
      %210 = sbr.rel (0) target = $region33
    $region32: #{lednet_forward.131} parent=1 // pred_region
      %s212 = ssub.s32 512, 512
      %213 = vsyncadd [#allocation4], %s212
      %s214 = sshll.u32 [#allocation3], 4
      %s215 = int_to_ptr.vmem [resolvable:$true] %s214
      %220 = dma.vmem_to_hbm [thread:$0]  %s215, 512, %s5, [#allocation4], 128, 128, 8
    $region33: #{lednet_forward.131} parent=1 // pred_fallthru
      _
    // Predicated region
    $region34: #{lednet_forward.131} parent=1 // pred_check
      _
    $region35: #{lednet_forward.131} parent=1 // pred_check_branch
      %222 = sbr.rel (0) target = $region37
    $region36: #{lednet_forward.131} parent=1 // pred_region
      %223 = dma.done [#allocation4], 512
    $region37: #{lednet_forward.131} parent=1 // pred_fallthru
      _
    %224 = vsyncpa [#allocation4], 1

</llo_original>
